<compile_context>
chip_gen: v7x
topology: tpu7x:2x2x1
jax: 0.10.0
libtpu: 0.0.40
codegen_flags: <defaults>
</compile_context>

<pallas_src>
import math
from types import SimpleNamespace

import numpy as np
import jax
import jax.numpy as jnp
from jax.experimental import pallas as pl
from jax.experimental.pallas import tpu as pltpu

TOPK_RATE = 0.1
BN_EPS = 1e-5
_HIGH = jax.lax.Precision.HIGHEST   # reference only


def _round_up(x, m):
    return ((x + m - 1) // m) * m


# ----------------------------- Pallas kernel -----------------------------

def _dra_fused_kernel(feat_ref, pool_ref, patch_ref,
                      w0t_ref, w2t_ref, w10_ref, wsm_ref, bias_ref,
                      normal_ref, ad_ref, comp_ref):
    f = feat_ref[...]                                            # [Np, 512] bf16

    # packed bias slab (all lane-slice starts are multiples of 128)
    b10 = bias_ref[:, 0:512]                                     # [1, 512] conv bias (BN folded)
    b0 = bias_ref[:, 512:768]                                    # [1, 256] MLP hidden bias
    b46 = bias_ref[:, 768:770]                                   # [1, 2]   abnormal/dummy bias

    # ---- head 0: global-avg-pool as a selector matmul -> 2-layer MLP -------
    pooled = jnp.dot(pool_ref[...], f,
                     preferred_element_type=jnp.float32)         # [n_pad, 512]
    h = jnp.maximum(jnp.dot(pooled.astype(jnp.bfloat16), w0t_ref[...],
                            preferred_element_type=jnp.float32) + b0, 0.0)
    normal_ref[...] = jnp.dot(h.astype(jnp.bfloat16), w2t_ref[...],
                              preferred_element_type=jnp.float32)   # (+b2 in glue)

    # ---- heads 1 & 2: both 1x1 convs via the packed [512,3] weight ---------
    ad_ref[...] = jnp.dot(f, wsm_ref[...],
                          preferred_element_type=jnp.float32)[:, 0:2] + b46

    # ---- head 3: 3x3/stride-3 conv (im2col matmul, BN folded) -> ReLU -> 1x1
    y = jnp.maximum(jnp.dot(patch_ref[...], w10_ref[...],
                            preferred_element_type=jnp.float32) + b10, 0.0)
    comp_ref[...] = jnp.dot(y.astype(jnp.bfloat16), wsm_ref[...],
                            preferred_element_type=jnp.float32)[:, 2:3]  # (+b8 in glue)


# ----------------------------- JAX glue -----------------------------

def topk_mean_abs(x, rate=TOPK_RATE):
    # torch.topk(torch.abs(x), k, dim=1) -> mean.  k is static (shape-derived).
    # TODO(synk): top-k stays in JAX glue (tiny reduction, <=81 elements/row).
    k = max(int(x.shape[1] * rate), 1)
    vals = jax.lax.top_k(jnp.abs(x), k)[0]
    return jnp.mean(vals, axis=1, keepdims=True)


def init_vars(key):
    """Deterministic parameter init with the same shapes as DRA.__init__."""
    ks = jax.random.split(key, 8)

    def kaiming(k, shape, fan_in):
        return jax.random.normal(k, shape, jnp.float32) * math.sqrt(2.0 / fan_in)

    v = []
    v.append(kaiming(ks[0], (256, 512), 512));           v.append(jnp.zeros((256,), jnp.float32))
    v.append(kaiming(ks[1], (1, 256), 256));             v.append(jnp.zeros((1,), jnp.float32))
    v.append(kaiming(ks[2], (1, 512, 1, 1), 512));       v.append(jnp.zeros((1,), jnp.float32))
    v.append(kaiming(ks[3], (1, 512, 1, 1), 512));       v.append(jnp.zeros((1,), jnp.float32))
    v.append(kaiming(ks[4], (1, 512, 1, 1), 512));       v.append(jnp.zeros((1,), jnp.float32))
    v.append(kaiming(ks[5], (512, 512, 3, 3), 512 * 9)); v.append(jnp.zeros((512,), jnp.float32))
    # var[12]/var[13] = batch-norm affine params (zeros in the torch __init__;
    # randomized here so the comparison head is not degenerate all-zeros).
    v.append(0.1 * jax.random.normal(ks[6], (512,), jnp.float32))
    v.append(0.05 * jax.random.normal(ks[7], (512,), jnp.float32))
    return v


def prep_params(v):
    """Re-layout torch-shaped params into kernel-friendly bf16 slabs.
    Called ONCE, eagerly, OUTSIDE the jitted forward (hoisted weight re-layout)."""
    # eval-mode BN with running_mean=0, running_var=1 folded into conv weight/bias.
    # TODO(synk): fold real running_mean / running_var here when loading a checkpoint.
    gamma_eff = v[12] / jnp.sqrt(1.0 + BN_EPS)                            # [512]
    w10 = jnp.transpose(v[10], (2, 3, 1, 0)).reshape(9 * 512, 512)        # im2col order
    w10 = (w10 * gamma_eff[None, :]).astype(jnp.bfloat16)                 # [4608, 512]
    b10 = v[11] * gamma_eff + v[13]                                       # [512]

    p = {}
    p['w0t'] = v[0].T.astype(jnp.bfloat16)                                # [512, 256]
    p['w2t'] = v[2].T.astype(jnp.bfloat16)                                # [256, 1]
    # abnormal / dummy / comparison 1x1-conv weights stacked into one [512, 3]
    p['wsm'] = jnp.concatenate([v[4].reshape(1, 512),
                                v[6].reshape(1, 512),
                                v[8].reshape(1, 512)], axis=0).T.astype(jnp.bfloat16)
    p['w10'] = w10
    bias = jnp.zeros((1, 1024), jnp.float32)
    bias = bias.at[0, 0:512].set(b10)
    bias = bias.at[0, 512:768].set(v[1])
    bias = bias.at[0, 768].set(v[5][0])
    bias = bias.at[0, 769].set(v[7][0])
    p['bias'] = bias
    p['b2'] = v[3].reshape(1, 1)          # tiny output biases added in glue
    p['b8'] = v[9].reshape(1, 1)
    return p


def _prep_scale(feature_full, nRef):
    """Per-scale layout prep: pixel-major feature rows and im2col patches of
    (mean(ref) - feature).  im2col is a pure reshape/transpose (stride==kernel==3)."""
    ref_feature = feature_full[:nRef]
    feature = feature_full[nRef:]
    B, C, H, W = feature.shape
    f_pix = jnp.transpose(feature, (0, 2, 3, 1)).reshape(B * H * W, C)

    ref = jnp.mean(ref_feature, axis=0, keepdims=True)
    temp = jnp.transpose(ref - feature, (0, 2, 3, 1))            # [B, H, W, C]
    Ho, Wo = H // 3, W // 3
    temp = temp[:, :Ho * 3, :Wo * 3, :]
    patches = temp.reshape(B, Ho, 3, Wo, 3, C)
    patches = jnp.transpose(patches, (0, 1, 3, 2, 4, 5)).reshape(B * Ho * Wo, 9 * C)
    return f_pix, patches, B, H * W, Ho * Wo


def dra_forward(image, image_scale, p, cfg):
    # TODO(synk): the training branch (`feature[label != k]` boolean indexing)
    # has data-dependent shapes; only the eval / st=True path is implemented.
    scales = [image, image_scale][:cfg.n_scales]
    preps = [_prep_scale(s, cfg.nRef) for s in scales]

    f_pix_all = jnp.concatenate([pr[0] for pr in preps], axis=0).astype(jnp.bfloat16)
    patch_all = jnp.concatenate([pr[1] for pr in preps], axis=0).astype(jnp.bfloat16)

    n_img = sum(pr[2] for pr in preps)
    Np, Mp = f_pix_all.shape[0], patch_all.shape[0]
    Np_pad, Mp_pad, n_pad = _round_up(Np, 16), _round_up(Mp, 16), _round_up(n_img, 8)

    # zero-pad rows to sublane-friendly counts (padded rows are sliced off below,
    # so they never reach topk_mean_abs).
    f_pix_all = jnp.pad(f_pix_all, ((0, Np_pad - Np), (0, 0)))
    patch_all = jnp.pad(patch_all, ((0, Mp_pad - Mp), (0, 0)))

    # Global-avg-pool as a constant selector matrix (1/HW over each image's rows).
    # Fine at this size; would switch to a scalar-prefetched segment sum for big batches.
    pm = np.zeros((n_pad, Np_pad), np.float32)
    r, c = 0, 0
    for (_, _, B, HW, _) in preps:
        for _b in range(B):
            pm[r, c:c + HW] = 1.0 / HW
            r += 1
            c += HW
    pool_mat = jnp.asarray(pm, dtype=jnp.bfloat16)

    ins = (f_pix_all, pool_mat, patch_all,
           p['w0t'], p['w2t'], p['w10'], p['wsm'], p['bias'])
    outs_shape = (jax.ShapeDtypeStruct((n_pad, 1), jnp.float32),
                  jax.ShapeDtypeStruct((Np_pad, 2), jnp.float32),
                  jax.ShapeDtypeStruct((Mp_pad, 1), jnp.float32))

    flops = 2 * (n_pad * Np_pad * 512 + n_pad * 512 * 256 + n_pad * 256
                 + Np_pad * 512 * 3 + Mp_pad * (9 * 512) * 512 + Mp_pad * 512 * 3)
    bytes_accessed = sum(int(np.prod(x.shape)) * x.dtype.itemsize for x in ins)
    bytes_accessed += sum(int(np.prod(s.shape)) * 4 for s in outs_shape)

    vmem = pl.BlockSpec(memory_space=pltpu.MemorySpace.VMEM)
    # TODO(synk): P10 cross-call prefetch of p['w10'] + v7x 2-core channel split.
    normal, ad, comp = pl.pallas_call(
        _dra_fused_kernel,
        out_shape=outs_shape,
        in_specs=[vmem] * len(ins),
        out_specs=(vmem, vmem, vmem),
        cost_estimate=pl.CostEstimate(flops=flops, transcendentals=0,
                                      bytes_accessed=bytes_accessed),
    )(*ins)

    normal = normal + p['b2']
    comp = comp + p['b8']

    pyramid = [[] for _ in range(cfg.total_heads)]
    ri, pi, ci = 0, 0, 0
    for (_, _, B, HW, HoWo) in preps:
        pyramid[0].append(normal[ri:ri + B])                                  # [B, 1]
        ab = ad[pi:pi + B * HW, 0].reshape(B, HW)
        dm = ad[pi:pi + B * HW, 1].reshape(B, HW)
        cp = comp[ci:ci + B * HoWo, 0].reshape(B, HoWo)
        pyramid[1].append(topk_mean_abs(ab))
        pyramid[2].append(topk_mean_abs(dm))
        pyramid[3].append(topk_mean_abs(cp))
        ri += B
        pi += B * HW
        ci += B * HoWo
    return [jnp.mean(jnp.concatenate(pyramid[i], axis=1), axis=1)
            for i in range(cfg.total_heads)]


# ----------------------------- pure-JAX f32 reference -----------------------------

def dra_forward_reference(image, image_scale, vars_, cfg):
    v = vars_

    def heads(feature_full):
        ref_feature = feature_full[:cfg.nRef]
        feature = feature_full[cfg.nRef:]
        B = feature.shape[0]
        pooled = jnp.mean(feature, axis=(2, 3))
        h = jnp.maximum(jnp.dot(pooled, v[0].T, precision=_HIGH) + v[1], 0.0)
        normal = jnp.dot(h, v[2].T, precision=_HIGH) + v[3]

        def c1x1(feat, w, b):
            y = jnp.einsum('bchw,c->bhw', feat, w.reshape(-1), precision=_HIGH) + b[0]
            return y.reshape(B, -1)

        abnormal = topk_mean_abs(c1x1(feature, v[4], v[5]))
        dummy = topk_mean_abs(c1x1(feature, v[6], v[7]))

        ref = jnp.mean(ref_feature, axis=0, keepdims=True)
        temp = ref - feature
        y = jax.lax.conv_general_dilated(temp, v[10], (3, 3), 'VALID',
                                         dimension_numbers=('NCHW', 'OIHW', 'NCHW'),
                                         precision=_HIGH)
        y = y + v[11].reshape(1, -1, 1, 1)
        y = y / jnp.sqrt(1.0 + BN_EPS) * v[12].reshape(1, -1, 1, 1) + v[13].reshape(1, -1, 1, 1)
        y = jnp.maximum(y, 0.0)
        comparison = topk_mean_abs(c1x1(y, v[8], v[9]))
        return [normal, abnormal, dummy, comparison]

    scales = [image, image_scale][:cfg.n_scales]
    pyramid = [[] for _ in range(cfg.total_heads)]
    for feat in scales:
        hs = heads(feat)
        for i in range(cfg.total_heads):
            pyramid[i].append(hs[i])
    return [jnp.mean(jnp.concatenate(pyramid[i], axis=1), axis=1)
            for i in range(cfg.total_heads)]


# ----------------------------- main -----------------------------

if __name__ == "__main__":
    cfg = SimpleNamespace(total_heads=4, n_scales=2, nRef=2)
    key = jax.random.PRNGKey(0)
    k_var, k_img, k_sc = jax.random.split(key, 3)
    vars_ = init_vars(k_var)

    # Weight re-layout hoisted out of the per-call path: done once, eagerly.
    params = jax.tree_util.tree_map(jax.block_until_ready, prep_params(vars_))

    # batch = nRef reference images + 2 query images; 512 channels (backbone out dim)
    image = jax.random.normal(k_img, (cfg.nRef + 2, 512, 9, 9), jnp.float32)
    image_scale = jax.random.normal(k_sc, (cfg.nRef + 2, 512, 6, 6), jnp.float32)

    fwd = jax.jit(lambda im, ims, prm: dra_forward(im, ims, prm, cfg))
    out = jax.block_until_ready(fwd(image, image_scale, params))

    ref = jax.block_until_ready(dra_forward_reference(image, image_scale, vars_, cfg))

    for o, r in zip(out, ref):
        assert o.shape == r.shape, (o.shape, r.shape)
        assert jnp.allclose(o, r, rtol=1e-2, atol=1e-2), (o, r)

    print("KERNEL_OK")
</pallas_src>

<mosaic_0001>
module attributes {stable_mosaic.version = 11 : i64} {
  func.func @_dra_fused_kernel(%arg0: memref<240x512xbf16, #tpu.memory_space<vmem>>, %arg1: memref<8x240xbf16, #tpu.memory_space<vmem>>, %arg2: memref<32x4608xbf16, #tpu.memory_space<vmem>>, %arg3: memref<512x256xbf16, #tpu.memory_space<vmem>>, %arg4: memref<256x1xbf16, #tpu.memory_space<vmem>>, %arg5: memref<4608x512xbf16, #tpu.memory_space<vmem>>, %arg6: memref<512x3xbf16, #tpu.memory_space<vmem>>, %arg7: memref<1x1024xf32, #tpu.memory_space<vmem>>, %arg8: memref<8x1xf32, #tpu.memory_space<vmem>>, %arg9: memref<240x2xf32, #tpu.memory_space<vmem>>, %arg10: memref<32x1xf32, #tpu.memory_space<vmem>>) attributes {dimension_semantics = [], scalar_prefetch = 0 : i64, scratch_operands = 0 : i64, tpu.core_type = #tpu.core_type<tc>} {
    %c0 = arith.constant 0 : index
    %c0_0 = arith.constant 0 : index
    %0 = vector.load %arg0[%c0, %c0_0] : memref<240x512xbf16, #tpu.memory_space<vmem>>, vector<240x512xbf16>
    %c0_1 = arith.constant 0 : index
    %c0_2 = arith.constant 0 : index
    %1 = vector.load %arg7[%c0_1, %c0_2] : memref<1x1024xf32, #tpu.memory_space<vmem>>, vector<1x512xf32>
    %c0_3 = arith.constant 0 : index
    %c512 = arith.constant 512 : index
    %2 = vector.load %arg7[%c0_3, %c512] : memref<1x1024xf32, #tpu.memory_space<vmem>>, vector<1x256xf32>
    %c0_4 = arith.constant 0 : index
    %c768 = arith.constant 768 : index
    %3 = vector.load %arg7[%c0_4, %c768] : memref<1x1024xf32, #tpu.memory_space<vmem>>, vector<1x2xf32>
    %c0_5 = arith.constant 0 : index
    %c0_6 = arith.constant 0 : index
    %4 = vector.load %arg1[%c0_5, %c0_6] : memref<8x240xbf16, #tpu.memory_space<vmem>>, vector<8x240xbf16>
    %cst = arith.constant dense<0.000000e+00> : vector<8x512xf32>
    %5 = tpu.matmul %4, %0, %cst {dimension_numbers = #tpu.dot_dimension_numbers<[1], [0], [0], [1], [0, 0, 1, 1], [], []>} : vector<8x240xbf16>, vector<240x512xbf16>, vector<8x512xf32> -> vector<8x512xf32>
    %6 = arith.truncf %5 : vector<8x512xf32> to vector<8x512xbf16>
    %c0_7 = arith.constant 0 : index
    %c0_8 = arith.constant 0 : index
    %7 = vector.load %arg3[%c0_7, %c0_8] : memref<512x256xbf16, #tpu.memory_space<vmem>>, vector<512x256xbf16>
    %cst_9 = arith.constant dense<0.000000e+00> : vector<8x256xf32>
    %8 = tpu.matmul %6, %7, %cst_9 {dimension_numbers = #tpu.dot_dimension_numbers<[1], [0], [0], [1], [0, 0, 1, 1], [], []>} : vector<8x512xbf16>, vector<512x256xbf16>, vector<8x256xf32> -> vector<8x256xf32>
    %9 = vector.broadcast %2 : vector<1x256xf32> to vector<8x256xf32>
    %10 = arith.addf %8, %9 : vector<8x256xf32>
    %cst_10 = arith.constant 0.000000e+00 : f32
    %11 = vector.broadcast %cst_10 : f32 to vector<8x256xf32>
    %12 = arith.maximumf %10, %11 : vector<8x256xf32>
    %13 = arith.truncf %12 : vector<8x256xf32> to vector<8x256xbf16>
    %c0_11 = arith.constant 0 : index
    %c0_12 = arith.constant 0 : index
    %14 = vector.load %arg4[%c0_11, %c0_12] : memref<256x1xbf16, #tpu.memory_space<vmem>>, vector<256x1xbf16>
    %cst_13 = arith.constant dense<0.000000e+00> : vector<8x1xf32>
    %15 = tpu.matmul %13, %14, %cst_13 {dimension_numbers = #tpu.dot_dimension_numbers<[1], [0], [0], [1], [0, 0, 1, 1], [], []>} : vector<8x256xbf16>, vector<256x1xbf16>, vector<8x1xf32> -> vector<8x1xf32>
    %c0_14 = arith.constant 0 : index
    %c0_15 = arith.constant 0 : index
    %16 = vector.load %arg8[%c0_14, %c0_15] : memref<8x1xf32, #tpu.memory_space<vmem>>, vector<8x1xf32>
    tpu.vector_store %arg8[%c0_14, %c0_15], %15 {strides = array<i32>} : memref<8x1xf32, #tpu.memory_space<vmem>>, vector<8x1xf32>,
    %c0_16 = arith.constant 0 : index
    %c0_17 = arith.constant 0 : index
    %17 = vector.load %arg6[%c0_16, %c0_17] : memref<512x3xbf16, #tpu.memory_space<vmem>>, vector<512x3xbf16>
    %cst_18 = arith.constant dense<0.000000e+00> : vector<240x3xf32>
    %18 = tpu.matmul %0, %17, %cst_18 {dimension_numbers = #tpu.dot_dimension_numbers<[1], [0], [0], [1], [0, 0, 1, 1], [], []>} : vector<240x512xbf16>, vector<512x3xbf16>, vector<240x3xf32> -> vector<240x3xf32>
    %19 = vector.extract_strided_slice %18 {offsets = [0, 0], sizes = [240, 2], strides = [1, 1]} : vector<240x3xf32> to vector<240x2xf32>
    %20 = vector.broadcast %3 : vector<1x2xf32> to vector<240x2xf32>
    %21 = arith.addf %19, %20 : vector<240x2xf32>
    %c0_19 = arith.constant 0 : index
    %c0_20 = arith.constant 0 : index
    %22 = vector.load %arg9[%c0_19, %c0_20] : memref<240x2xf32, #tpu.memory_space<vmem>>, vector<240x2xf32>
    tpu.vector_store %arg9[%c0_19, %c0_20], %21 {strides = array<i32>} : memref<240x2xf32, #tpu.memory_space<vmem>>, vector<240x2xf32>,
    %c0_21 = arith.constant 0 : index
    %c0_22 = arith.constant 0 : index
    %23 = vector.load %arg2[%c0_21, %c0_22] : memref<32x4608xbf16, #tpu.memory_space<vmem>>, vector<32x4608xbf16>
    %c0_23 = arith.constant 0 : index
    %c0_24 = arith.constant 0 : index
    %24 = vector.load %arg5[%c0_23, %c0_24] : memref<4608x512xbf16, #tpu.memory_space<vmem>>, vector<4608x512xbf16>
    %cst_25 = arith.constant dense<0.000000e+00> : vector<32x512xf32>
    %25 = tpu.matmul %23, %24, %cst_25 {dimension_numbers = #tpu.dot_dimension_numbers<[1], [0], [0], [1], [0, 0, 1, 1], [], []>} : vector<32x4608xbf16>, vector<4608x512xbf16>, vector<32x512xf32> -> vector<32x512xf32>
    %26 = vector.broadcast %1 : vector<1x512xf32> to vector<32x512xf32>
    %27 = arith.addf %25, %26 : vector<32x512xf32>
    %cst_26 = arith.constant 0.000000e+00 : f32
    %28 = vector.broadcast %cst_26 : f32 to vector<32x512xf32>
    %29 = arith.maximumf %27, %28 : vector<32x512xf32>
    %30 = arith.truncf %29 : vector<32x512xf32> to vector<32x512xbf16>
    %c0_27 = arith.constant 0 : index
    %c0_28 = arith.constant 0 : index
    %31 = vector.load %arg6[%c0_27, %c0_28] : memref<512x3xbf16, #tpu.memory_space<vmem>>, vector<512x3xbf16>
    %cst_29 = arith.constant dense<0.000000e+00> : vector<32x3xf32>
    %32 = tpu.matmul %30, %31, %cst_29 {dimension_numbers = #tpu.dot_dimension_numbers<[1], [0], [0], [1], [0, 0, 1, 1], [], []>} : vector<32x512xbf16>, vector<512x3xbf16>, vector<32x3xf32> -> vector<32x3xf32>
    %33 = vector.extract_strided_slice %32 {offsets = [0, 2], sizes = [32, 1], strides = [1, 1]} : vector<32x3xf32> to vector<32x1xf32>
    %c0_30 = arith.constant 0 : index
    %c0_31 = arith.constant 0 : index
    %34 = vector.load %arg10[%c0_30, %c0_31] : memref<32x1xf32, #tpu.memory_space<vmem>>, vector<32x1xf32>
    tpu.vector_store %arg10[%c0_30, %c0_31], %33 {strides = array<i32>} : memref<32x1xf32, #tpu.memory_space<vmem>>, vector<32x1xf32>,
    return
  }
}

</mosaic_0001>

<llo_original>
// kernel: custom-call
$region0: #{custom-call}
  #allocation0 [shape = 'u32[8,128]{1,0}', space=vmem, size = 0x1000, scoped, tag = 'scratch']
  #allocation1 [shape = 'u32[8,128]{1,0}', space=vmem, size = 0x1000, scoped, tag = 'scratch']
  #allocation2 [shape = 'u32[8,128]{1,0}', space=vmem, size = 0x1000, scoped, tag = 'scratch']
  #allocation3 [shape = 'u32[8,128]{1,0}', space=vmem, size = 0x1000, scoped, tag = 'scratch']
  #allocation4 [shape = 'u32[8,128]{1,0}', space=vmem, size = 0x1000, scoped, tag = 'scratch']
  #allocation5 [shape = 'u32[8,128]{1,0}', space=vmem, size = 0x1000, scoped, tag = 'scratch']
  #allocation6 [shape = 'u32[8,128]{1,0}', space=vmem, size = 0x1000, scoped, tag = 'scratch']
  %s0 = inlined_call_operand.vmem [shape: f32[2,9], index: 0, kind: input, shape index: {}]
  %s1 = inlined_call_operand.vmem [shape: f32[2,1], index: 1, kind: output, shape index: {0}]
  %s2 = inlined_call_operand.hbm [shape: s32[2,1], index: 2, kind: output, shape index: {1}]
  %3 = xla_tuple %s1, %s2
  %4 = xla_tuple 2147483648, 2147483647
  $region1: #{custom-call} parent=0
    #allocation7 [shape = 'u8[4096]{0}', space=vmem, size = 0x1000, scoped, tag = 'operand span for operand 1']
    #allocation8 [shape = 'u8[1024]{0}', space=vmem, size = 0x400, scoped, tag = 'packed  for operand 1']
    #allocation9 [shape = 'u8[4096]{0}', space=vmem, size = 0x1000, scoped, tag = 'operand span for operand 2']
    #allocation10 [shape = 'u8[1024]{0}', space=vmem, size = 0x400, scoped, tag = 'packed  for operand 2']
    #allocation11 [shape = 's32[1]{0}', space=sflag, size = 0x4, scoped, tag = 'scoped memory for custom-call']
    #allocation12 [shape = 'f32[1,2]{1,0:T(8,128)}', space=vmem, size = 0x1000, scoped, tag = 'scoped memory for custom-call']
    #allocation13 [shape = 'f32[1,2]{1,0:T(8,128)}', space=vmem, size = 0x1000, scoped, tag = 'scoped memory for custom-call']
    #allocation14 [shape = 's32[1,2]{1,0:T(8,128)}', space=vmem, size = 0x1000, scoped, tag = 'scoped memory for custom-call']
    #allocation15 [shape = 's32[1,2]{1,0:T(8,128)}', space=vmem, size = 0x1000, scoped, tag = 'scoped memory for custom-call']
    %5 = vsyncpa [#allocation11], 0
    %6 = xla_tuple [#allocation7], [#allocation9]
    %7 = vst [vmem:[#allocation12] sm:$0xff] 2147483648
    %8 = vst [vmem:[#allocation14] sm:$0xff] 2147483647
    %9 = xla_tuple [#allocation12], [#allocation14]
    %10 = xla_tuple [#allocation13], [#allocation15]
    $region2: #{custom-call} parent=1
      #allocation16 [shape = 'u8[4096]{0}', space=vmem, size = 0x1000, scoped, tag = 'operand span for operand 0']
      #allocation17 [shape = 's32[1024]{0}', space=vmem, size = 0x1000, scoped, tag = 'scoped memory for custom-call']
      // Predicated region
      $region3: #{custom-call} parent=2 // pred_check
        _
      $region4: #{custom-call} parent=2 // pred_check_branch
        %12 = sbr.rel (0) target = $region6
      $region5: #{custom-call} parent=2 // pred_region
        // Predicated region
        $region7: #{custom-call} parent=5 // pred_check
          _
        $region8: #{custom-call} parent=5 // pred_check_branch
          %14 = sbr.rel (0) target = $region10
        $region9: #{custom-call} parent=5 // pred_region
          // Predicated region
          $region11: #{custom-call} parent=9 // pred_check
            _
          $region12: #{custom-call} parent=9 // pred_check_branch
            %16 = sbr.rel target = $region14
          $region13: #{custom-call} parent=9 // pred_region
            // Predicated region
            $region26: #{custom-call} parent=13 // pred_check
              _
            $region27: #{custom-call} parent=13 // pred_check_branch
              %31 = sbr.rel (0) target = $region29
            $region28: #{custom-call} parent=13 // pred_region
              loop: start=0, step=1, limit=1
              $region30: #{custom-call} parent=28 // loop_pre_header
                _
              $region31: #{custom-call} parent=28 // loop_header
                %s34 = sphi 0, %s38
                %p35 = scmp.ge.s32.totalorder %s34, 1
                %s39 = sphi %s0, %s0
                %s40 = sphi [#allocation16], [#allocation16]
              $region32: #{custom-call} parent=28 // loop_header_branch
                %37 = sbr.rel (%p35) target = $region36
              $region33: #{custom-call} parent=28 // loop_body
                %v41 = vld [vmem:[%s39] sm:$0x3]
                %42 = vst [vmem:[%s40] sm:$0x3] %v41
              $region34: #{custom-call} parent=28 // loop_footer
                %s38 = sadd.s32 1, %s34
              $region35: #{custom-call} parent=28 // loop_footer_branch
                %33 = sbr.rel target = $region31
              $region36: #{custom-call} parent=28 // loop_exit
                _
            $region29: #{custom-call} parent=13 // pred_fallthru
              _
          $region14: #{custom-call} parent=9 // pred_fallthru
            _
          // Predicated region
          $region15: #{custom-call} parent=9 // pred_check
            _
          $region16: #{custom-call} parent=9 // pred_check_branch
            %18 = sbr.rel (0) target = $region18
          $region17: #{custom-call} parent=9 // pred_region
            loop: start=0, step=1, limit=1
            $region19: #{custom-call} parent=17 // loop_pre_header
              _
            $region20: #{custom-call} parent=17 // loop_header
              %s21 = sphi 0, %s25
              %p22 = scmp.ge.s32.totalorder %s21, 1
              %s26 = sphi %s0, %s0
              %s27 = sphi [#allocation16], [#allocation16]
            $region21: #{custom-call} parent=17 // loop_header_branch
              %24 = sbr.rel (%p22) target = $region25
            $region22: #{custom-call} parent=17 // loop_body
              %v28 = vld [vmem:[%s26] sm:$0x3]
              %29 = vst [vmem:[%s27] sm:$0x3] %v28
            $region23: #{custom-call} parent=17 // loop_footer
              %s25 = sadd.s32 1, %s21
            $region24: #{custom-call} parent=17 // loop_footer_branch
              %20 = sbr.rel target = $region20
            $region25: #{custom-call} parent=17 // loop_exit
              _
          $region18: #{custom-call} parent=9 // pred_fallthru
            _
        $region10: #{custom-call} parent=5 // pred_fallthru
          _
        %43 = vnop
      $region6: #{custom-call} parent=2 // pred_fallthru
        _
      // Predicated region
      $region37: #{custom-call} parent=2 // pred_check
        _
      $region38: #{custom-call} parent=2 // pred_check_branch
        %45 = sbr.rel (0) target = $region40
      $region39: #{custom-call} parent=2 // pred_region
        _
      $region40: #{custom-call} parent=2 // pred_fallthru
        _
      %v46 = vlaneseq
      %v47 = vand.u32 %v46, 127
      %v48 = vlaneseq
      %v49 = vshrl.u32 %v48, 7
      %v50 = vshrl.u32 %v49, 1
      %v51 = vand.u32 %v49, 1
      %v52 = vmul.u32 %v50, 128
      %v53 = vadd.s32 %v47, %v52
      %v55 = vld [vmem:[#allocation16] sm:$0xff]
      %vm56 = vcmp.lt.s32.totalorder %v55, 0
      %v57 = vsub.s32 2147483647, %v55
      %v58 = vsel %vm56, %v57, %v55
      %vm60 = vcmp.lt.s32.totalorder %v53, 9
      %v61 = vsel %vm60, %v58, 2147483648
      %62 = vst [vmem:[#allocation16] sm:$0xff] %v61
      %v63 = vlaneseq
      %v64 = vand.u32 %v63, 127
      %v65 = vlaneseq
      %v66 = vshrl.u32 %v65, 7
      %v67 = vshrl.u32 %v66, 1
      %v68 = vand.u32 %v66, 1
      %v69 = vmul.u32 %v67, 128
      %v70 = vadd.s32 %v64, %v69
      %73 = vst [vmem:[#allocation17] sm:$0xff] %v70
      %74 = xla_tuple [#allocation16], [#allocation17]
      %75 = vst [vmem:[#allocation13] sm:$0xff] 2147483648
      %76 = vst [vmem:[#allocation15] sm:$0xff] 2147483647
      %77 = xla_tuple [#allocation13], [#allocation15]
      loop: start=0, step=1, limit=1
      $region41: #{custom-call} parent=2 // loop_pre_header
        _
      $region42: #{custom-call} parent=2 // loop_header
        %s79 = sphi 0, %s83
        %p80 = scmp.ge.s32.totalorder %s79, 1
      $region43: #{custom-call} parent=2 // loop_header_branch
        %82 = sbr.rel (%p80) target = $region47
      $region44: #{custom-call} parent=2 // loop_body
        %v84 = vld [vmem:[#allocation16] sm:$0xff]
        %v85 = vld [vmem:[#allocation17] sm:$0xff]
        %86 = xla_tuple %v84, %v85
        %v87 = vrot.slane %v84, 2
        %v88 = vrot.slane %v85, 2
        %89 = xla_tuple %v87, %v88
        %vm90 = vcmp.gt.s32.totalorder %v87, %v84
        %vm91 = vcmp.eq.s32.totalorder %v87, %v84
        %vm92 = vcmp.lt.s32.totalorder %v88, %v85
        %vm93 = vmand %vm91, %vm92
        %vm94 = vmor %vm90, %vm93
        %v95 = vsel %vm94, %v87, %v84
        %v96 = vsel %vm94, %v88, %v85
        %97 = xla_tuple %v95, %v96
        %v98 = vrot.slane %v95, 2
        %v99 = vrot.slane %v96, 2
        %100 = xla_tuple %v98, %v99
        %vm101 = vcmp.gt.s32.totalorder %v98, %v95
        %vm102 = vcmp.eq.s32.totalorder %v98, %v95
        %vm103 = vcmp.lt.s32.totalorder %v99, %v96
        %vm104 = vmand %vm102, %vm103
        %vm105 = vmor %vm101, %vm104
        %v106 = vsel %vm105, %v98, %v95
        %v107 = vsel %vm105, %v99, %v96
        %108 = xla_tuple %v106, %v107
        %v109 = vrot.slane %v106, 2
        %v110 = vrot.slane %v107, 2
        %111 = xla_tuple %v109, %v110
        %vm112 = vcmp.gt.s32.totalorder %v109, %v106
        %vm113 = vcmp.eq.s32.totalorder %v109, %v106
        %vm114 = vcmp.lt.s32.totalorder %v110, %v107
        %vm115 = vmand %vm113, %vm114
        %vm116 = vmor %vm112, %vm115
        %v117 = vsel %vm116, %v109, %v106
        %v118 = vsel %vm116, %v110, %v107
        %119 = xla_tuple %v117, %v118
        %120 = vxpose.xlu0.b32.start [1/16] %v117, 128
        %121 = vxpose.xlu0.b32.cont [2/16] %v117, 128
        %122 = vxpose.xlu0.b32.cont [3/16] %v117, 128
        %123 = vxpose.xlu0.b32.cont [4/16] %v117, 128
        %124 = vxpose.xlu0.b32.cont [5/16] %v117, 128
        %125 = vxpose.xlu0.b32.cont [6/16] %v117, 128
        %126 = vxpose.xlu0.b32.cont [7/16] %v117, 128
        %127 = vxpose.xlu0.b32.cont [8/16] %v117, 128
        %128 = vxpose.xlu0.b32.cont [9/16] %v117, 128
        %129 = vxpose.xlu0.b32.cont [10/16] %v117, 128
        %130 = vxpose.xlu0.b32.cont [11/16] %v117, 128
        %131 = vxpose.xlu0.b32.cont [12/16] %v117, 128
        %132 = vxpose.xlu0.b32.cont [13/16] %v117, 128
        %133 = vxpose.xlu0.b32.cont [14/16] %v117, 128
        %134 = vxpose.xlu0.b32.cont [15/16] %v117, 128
        %135 = vxpose.xlu0.b32.end [16/16] %v117, 128
        %v136 = vpop.trf.xlu0
        %v137 = vpop.trf.xlu0
        %v138 = vpop.trf.xlu0
        %v139 = vpop.trf.xlu0
        %v140 = vpop.trf.xlu0
        %v141 = vpop.trf.xlu0
        %v142 = vpop.trf.xlu0
        %v143 = vpop.trf.xlu0
        %v144 = vpop.trf.xlu0
        %v145 = vpop.trf.xlu0
        %v146 = vpop.trf.xlu0
        %v147 = vpop.trf.xlu0
        %v148 = vpop.trf.xlu0
        %v149 = vpop.trf.xlu0
        %v150 = vpop.trf.xlu0
        %v151 = vpop.trf.xlu0
        %152 = vxpose.xlu0.b32.start [1/16] %v118, 128
        %153 = vxpose.xlu0.b32.cont [2/16] %v118, 128
        %154 = vxpose.xlu0.b32.cont [3/16] %v118, 128
        %155 = vxpose.xlu0.b32.cont [4/16] %v118, 128
        %156 = vxpose.xlu0.b32.cont [5/16] %v118, 128
        %157 = vxpose.xlu0.b32.cont [6/16] %v118, 128
        %158 = vxpose.xlu0.b32.cont [7/16] %v118, 128
        %159 = vxpose.xlu0.b32.cont [8/16] %v118, 128
        %160 = vxpose.xlu0.b32.cont [9/16] %v118, 128
        %161 = vxpose.xlu0.b32.cont [10/16] %v118, 128
        %162 = vxpose.xlu0.b32.cont [11/16] %v118, 128
        %163 = vxpose.xlu0.b32.cont [12/16] %v118, 128
        %164 = vxpose.xlu0.b32.cont [13/16] %v118, 128
        %165 = vxpose.xlu0.b32.cont [14/16] %v118, 128
        %166 = vxpose.xlu0.b32.cont [15/16] %v118, 128
        %167 = vxpose.xlu0.b32.end [16/16] %v118, 128
        %v168 = vpop.trf.xlu0
        %v169 = vpop.trf.xlu0
        %v170 = vpop.trf.xlu0
        %v171 = vpop.trf.xlu0
        %v172 = vpop.trf.xlu0
        %v173 = vpop.trf.xlu0
        %v174 = vpop.trf.xlu0
        %v175 = vpop.trf.xlu0
        %v176 = vpop.trf.xlu0
        %v177 = vpop.trf.xlu0
        %v178 = vpop.trf.xlu0
        %v179 = vpop.trf.xlu0
        %v180 = vpop.trf.xlu0
        %v181 = vpop.trf.xlu0
        %v182 = vpop.trf.xlu0
        %v183 = vpop.trf.xlu0
        %184 = xla_tuple %v136, %v168
        %185 = xla_tuple %v137, %v169
        %vm186 = vcmp.gt.s32.totalorder %v137, %v136
        %vm187 = vcmp.eq.s32.totalorder %v137, %v136
        %vm188 = vcmp.lt.s32.totalorder %v169, %v168
        %vm189 = vmand %vm187, %vm188
        %vm190 = vmor %vm186, %vm189
        %v191 = vsel %vm190, %v137, %v136
        %v192 = vsel %vm190, %v169, %v168
        %193 = xla_tuple %v191, %v192
        %194 = xla_tuple %v138, %v170
        %vm195 = vcmp.gt.s32.totalorder %v138, %v191
        %vm196 = vcmp.eq.s32.totalorder %v138, %v191
        %vm197 = vcmp.lt.s32.totalorder %v170, %v192
        %vm198 = vmand %vm196, %vm197
        %vm199 = vmor %vm195, %vm198
        %v200 = vsel %vm199, %v138, %v191
        %v201 = vsel %vm199, %v170, %v192
        %202 = xla_tuple %v200, %v201
        %203 = xla_tuple %v139, %v171
        %vm204 = vcmp.gt.s32.totalorder %v139, %v200
        %vm205 = vcmp.eq.s32.totalorder %v139, %v200
        %vm206 = vcmp.lt.s32.totalorder %v171, %v201
        %vm207 = vmand %vm205, %vm206
        %vm208 = vmor %vm204, %vm207
        %v209 = vsel %vm208, %v139, %v200
        %v210 = vsel %vm208, %v171, %v201
        %211 = xla_tuple %v209, %v210
        %212 = xla_tuple %v140, %v172
        %vm213 = vcmp.gt.s32.totalorder %v140, %v209
        %vm214 = vcmp.eq.s32.totalorder %v140, %v209
        %vm215 = vcmp.lt.s32.totalorder %v172, %v210
        %vm216 = vmand %vm214, %vm215
        %vm217 = vmor %vm213, %vm216
        %v218 = vsel %vm217, %v140, %v209
        %v219 = vsel %vm217, %v172, %v210
        %220 = xla_tuple %v218, %v219
        %221 = xla_tuple %v141, %v173
        %vm222 = vcmp.gt.s32.totalorder %v141, %v218
        %vm223 = vcmp.eq.s32.totalorder %v141, %v218
        %vm224 = vcmp.lt.s32.totalorder %v173, %v219
        %vm225 = vmand %vm223, %vm224
        %vm226 = vmor %vm222, %vm225
        %v227 = vsel %vm226, %v141, %v218
        %v228 = vsel %vm226, %v173, %v219
        %229 = xla_tuple %v227, %v228
        %230 = xla_tuple %v142, %v174
        %vm231 = vcmp.gt.s32.totalorder %v142, %v227
        %vm232 = vcmp.eq.s32.totalorder %v142, %v227
        %vm233 = vcmp.lt.s32.totalorder %v174, %v228
        %vm234 = vmand %vm232, %vm233
        %vm235 = vmor %vm231, %vm234
        %v236 = vsel %vm235, %v142, %v227
        %v237 = vsel %vm235, %v174, %v228
        %238 = xla_tuple %v236, %v237
        %239 = xla_tuple %v143, %v175
        %vm240 = vcmp.gt.s32.totalorder %v143, %v236
        %vm241 = vcmp.eq.s32.totalorder %v143, %v236
        %vm242 = vcmp.lt.s32.totalorder %v175, %v237
        %vm243 = vmand %vm241, %vm242
        %vm244 = vmor %vm240, %vm243
        %v245 = vsel %vm244, %v143, %v236
        %v246 = vsel %vm244, %v175, %v237
        %247 = xla_tuple %v245, %v246
        %248 = xla_tuple %v144, %v176
        %vm249 = vcmp.gt.s32.totalorder %v144, %v245
        %vm250 = vcmp.eq.s32.totalorder %v144, %v245
        %vm251 = vcmp.lt.s32.totalorder %v176, %v246
        %vm252 = vmand %vm250, %vm251
        %vm253 = vmor %vm249, %vm252
        %v254 = vsel %vm253, %v144, %v245
        %v255 = vsel %vm253, %v176, %v246
        %256 = xla_tuple %v254, %v255
        %257 = xla_tuple %v145, %v177
        %vm258 = vcmp.gt.s32.totalorder %v145, %v254
        %vm259 = vcmp.eq.s32.totalorder %v145, %v254
        %vm260 = vcmp.lt.s32.totalorder %v177, %v255
        %vm261 = vmand %vm259, %vm260
        %vm262 = vmor %vm258, %vm261
        %v263 = vsel %vm262, %v145, %v254
        %v264 = vsel %vm262, %v177, %v255
        %265 = xla_tuple %v263, %v264
        %266 = xla_tuple %v146, %v178
        %vm267 = vcmp.gt.s32.totalorder %v146, %v263
        %vm268 = vcmp.eq.s32.totalorder %v146, %v263
        %vm269 = vcmp.lt.s32.totalorder %v178, %v264
        %vm270 = vmand %vm268, %vm269
        %vm271 = vmor %vm267, %vm270
        %v272 = vsel %vm271, %v146, %v263
        %v273 = vsel %vm271, %v178, %v264
        %274 = xla_tuple %v272, %v273
        %275 = xla_tuple %v147, %v179
        %vm276 = vcmp.gt.s32.totalorder %v147, %v272
        %vm277 = vcmp.eq.s32.totalorder %v147, %v272
        %vm278 = vcmp.lt.s32.totalorder %v179, %v273
        %vm279 = vmand %vm277, %vm278
        %vm280 = vmor %vm276, %vm279
        %v281 = vsel %vm280, %v147, %v272
        %v282 = vsel %vm280, %v179, %v273
        %283 = xla_tuple %v281, %v282
        %284 = xla_tuple %v148, %v180
        %vm285 = vcmp.gt.s32.totalorder %v148, %v281
        %vm286 = vcmp.eq.s32.totalorder %v148, %v281
        %vm287 = vcmp.lt.s32.totalorder %v180, %v282
        %vm288 = vmand %vm286, %vm287
        %vm289 = vmor %vm285, %vm288
        %v290 = vsel %vm289, %v148, %v281
        %v291 = vsel %vm289, %v180, %v282
        %292 = xla_tuple %v290, %v291
        %293 = xla_tuple %v149, %v181
        %vm294 = vcmp.gt.s32.totalorder %v149, %v290
        %vm295 = vcmp.eq.s32.totalorder %v149, %v290
        %vm296 = vcmp.lt.s32.totalorder %v181, %v291
        %vm297 = vmand %vm295, %vm296
        %vm298 = vmor %vm294, %vm297
        %v299 = vsel %vm298, %v149, %v290
        %v300 = vsel %vm298, %v181, %v291
        %301 = xla_tuple %v299, %v300
        %302 = xla_tuple %v150, %v182
        %vm303 = vcmp.gt.s32.totalorder %v150, %v299
        %vm304 = vcmp.eq.s32.totalorder %v150, %v299
        %vm305 = vcmp.lt.s32.totalorder %v182, %v300
        %vm306 = vmand %vm304, %vm305
        %vm307 = vmor %vm303, %vm306
        %v308 = vsel %vm307, %v150, %v299
        %v309 = vsel %vm307, %v182, %v300
        %310 = xla_tuple %v308, %v309
        %311 = xla_tuple %v151, %v183
        %vm312 = vcmp.gt.s32.totalorder %v151, %v308
        %vm313 = vcmp.eq.s32.totalorder %v151, %v308
        %vm314 = vcmp.lt.s32.totalorder %v183, %v309
        %vm315 = vmand %vm313, %vm314
        %vm316 = vmor %vm312, %vm315
        %v317 = vsel %vm316, %v151, %v308
        %v318 = vsel %vm316, %v183, %v309
        %319 = xla_tuple %v317, %v318
        %v320 = vrot.slane %v317, 1
        %v321 = vrot.slane %v318, 1
        %322 = xla_tuple %v320, %v321
        %vm323 = vcmp.gt.s32.totalorder %v320, %v317
        %vm324 = vcmp.eq.s32.totalorder %v320, %v317
        %vm325 = vcmp.lt.s32.totalorder %v321, %v318
        %vm326 = vmand %vm324, %vm325
        %vm327 = vmor %vm323, %vm326
        %v328 = vsel %vm327, %v320, %v317
        %v329 = vsel %vm327, %v321, %v318
        %330 = xla_tuple %v328, %v329
        %v331 = vrot.slane %v328, 1
        %v332 = vrot.slane %v329, 1
        %333 = xla_tuple %v331, %v332
        %vm334 = vcmp.gt.s32.totalorder %v331, %v328
        %vm335 = vcmp.eq.s32.totalorder %v331, %v328
        %vm336 = vcmp.lt.s32.totalorder %v332, %v329
        %vm337 = vmand %vm335, %vm336
        %vm338 = vmor %vm334, %vm337
        %v339 = vsel %vm338, %v331, %v328
        %v340 = vsel %vm338, %v332, %v329
        %341 = xla_tuple %v339, %v340
        %v342 = vrot.slane %v339, 1
        %v343 = vrot.slane %v340, 1
        %344 = xla_tuple %v342, %v343
        %vm345 = vcmp.gt.s32.totalorder %v342, %v339
        %vm346 = vcmp.eq.s32.totalorder %v342, %v339
        %vm347 = vcmp.lt.s32.totalorder %v343, %v340
        %vm348 = vmand %vm346, %vm347
        %vm349 = vmor %vm345, %vm348
        %v350 = vsel %vm349, %v342, %v339
        %v351 = vsel %vm349, %v343, %v340
        %352 = xla_tuple %v350, %v351
        %v353 = vrot.slane %v350, 1
        %v354 = vrot.slane %v351, 1
        %355 = xla_tuple %v353, %v354
        %vm356 = vcmp.gt.s32.totalorder %v353, %v350
        %vm357 = vcmp.eq.s32.totalorder %v353, %v350
        %vm358 = vcmp.lt.s32.totalorder %v354, %v351
        %vm359 = vmand %vm357, %vm358
        %vm360 = vmor %vm356, %vm359
        %v361 = vsel %vm360, %v353, %v350
        %v362 = vsel %vm360, %v354, %v351
        %363 = xla_tuple %v361, %v362
        %v364 = vrot.slane %v361, 1
        %v365 = vrot.slane %v362, 1
        %366 = xla_tuple %v364, %v365
        %vm367 = vcmp.gt.s32.totalorder %v364, %v361
        %vm368 = vcmp.eq.s32.totalorder %v364, %v361
        %vm369 = vcmp.lt.s32.totalorder %v365, %v362
        %vm370 = vmand %vm368, %vm369
        %vm371 = vmor %vm367, %vm370
        %v372 = vsel %vm371, %v364, %v361
        %v373 = vsel %vm371, %v365, %v362
        %374 = xla_tuple %v372, %v373
        %v375 = vrot.slane %v372, 1
        %v376 = vrot.slane %v373, 1
        %377 = xla_tuple %v375, %v376
        %vm378 = vcmp.gt.s32.totalorder %v375, %v372
        %vm379 = vcmp.eq.s32.totalorder %v375, %v372
        %vm380 = vcmp.lt.s32.totalorder %v376, %v373
        %vm381 = vmand %vm379, %vm380
        %vm382 = vmor %vm378, %vm381
        %v383 = vsel %vm382, %v375, %v372
        %v384 = vsel %vm382, %v376, %v373
        %385 = xla_tuple %v383, %v384
        %v386 = vrot.slane %v383, 1
        %v387 = vrot.slane %v384, 1
        %388 = xla_tuple %v386, %v387
        %vm389 = vcmp.gt.s32.totalorder %v386, %v383
        %vm390 = vcmp.eq.s32.totalorder %v386, %v383
        %vm391 = vcmp.lt.s32.totalorder %v387, %v384
        %vm392 = vmand %vm390, %vm391
        %vm393 = vmor %vm389, %vm392
        %v394 = vsel %vm393, %v386, %v383
        %v395 = vsel %vm393, %v387, %v384
        %396 = xla_tuple %v394, %v395
        %s397 = scalar_lea.vmem [#allocation13], %s79
        %398 = vst [vmem:[%s397] sm:$0x1] %v394
        %s399 = scalar_lea.vmem [#allocation15], %s79
        %400 = vst [vmem:[%s399] sm:$0x1] %v395
        %401 = xla_tuple %398, %400
        %402 = vxpose.xlu0.b32.start [1/16] %v395, 128
        %403 = vxpose.xlu0.b32.cont [2/16] 0.0, 128
        %404 = vxpose.xlu0.b32.cont [3/16] 0.0, 128
        %405 = vxpose.xlu0.b32.cont [4/16] 0.0, 128
        %406 = vxpose.xlu0.b32.cont [5/16] 0.0, 128
        %407 = vxpose.xlu0.b32.cont [6/16] 0.0, 128
        %408 = vxpose.xlu0.b32.cont [7/16] 0.0, 128
        %409 = vxpose.xlu0.b32.cont [8/16] 0.0, 128
        %410 = vxpose.xlu0.b32.cont [9/16] 0.0, 128
        %411 = vxpose.xlu0.b32.cont [10/16] 0.0, 128
        %412 = vxpose.xlu0.b32.cont [11/16] 0.0, 128
        %413 = vxpose.xlu0.b32.cont [12/16] 0.0, 128
        %414 = vxpose.xlu0.b32.cont [13/16] 0.0, 128
        %415 = vxpose.xlu0.b32.cont [14/16] 0.0, 128
        %416 = vxpose.xlu0.b32.cont [15/16] 0.0, 128
        %417 = vxpose.xlu0.b32.end [16/16] 0.0, 128
        %v418 = vpop.trf.xlu0
        %v419 = vpop.trf.xlu0
        %v420 = vpop.trf.xlu0
        %v421 = vpop.trf.xlu0
        %v422 = vpop.trf.xlu0
        %v423 = vpop.trf.xlu0
        %v424 = vpop.trf.xlu0
        %v425 = vpop.trf.xlu0
        %v426 = vpop.trf.xlu0
        %v427 = vpop.trf.xlu0
        %v428 = vpop.trf.xlu0
        %v429 = vpop.trf.xlu0
        %v430 = vpop.trf.xlu0
        %v431 = vpop.trf.xlu0
        %v432 = vpop.trf.xlu0
        %v433 = vpop.trf.xlu0
        %s434 = vtos %v418
        %s435 = sshrl.u32 %s434, 9
        %p436 = scmp.lt.s32.totalorder %s434, 0
        %s437 = ssub.s32 0, %s434
        %s438 = scalar_select %p436, %s437, %s434
        %s439 = sand.u32 %s438, 511
        %s440 = ssub.s32 0, %s439
        %s441 = scalar_select %p436, %s440, %s439
        %s442 = sshrl.u32 %s441, 7
        %s443 = smul.u32 %s442, 256
        %s444 = sand.u32 %s441, 127
        %s445 = sadd.s32 %s443, %s444
        %v446 = vlaneseq
        %v447 = vstv %s445
        %vm449 = vcmp.eq.s32.totalorder %v446, %v447
        %s450 = smul.addr %s435, 8
        %s451 = scalar_lea.vmem [#allocation16], %s450
        %452 = vst.msk [vmem:[%s451] sm:$0xff] %vm449, 2147483648
        %s453 = smul.addr %s435, 8
        %s454 = scalar_lea.vmem [#allocation17], %s453
        %455 = vst.msk [vmem:[%s454] sm:$0xff] %vm449, 2147483647
        %456 = xla_tuple %452, %455
        %v457 = vrot.slane %v418, 1
        %s458 = vtos %v457
        %s459 = sshrl.u32 %s458, 9
        %p460 = scmp.lt.s32.totalorder %s458, 0
        %s461 = ssub.s32 0, %s458
        %s462 = scalar_select %p460, %s461, %s458
        %s463 = sand.u32 %s462, 511
        %s464 = ssub.s32 0, %s463
        %s465 = scalar_select %p460, %s464, %s463
        %s466 = sshrl.u32 %s465, 7
        %s467 = smul.u32 %s466, 256
        %s468 = sand.u32 %s465, 127
        %s469 = sadd.s32 %s467, %s468
        %v470 = vlaneseq
        %v471 = vstv %s469
        %v472 = vadd.s32 %v471, 128
        %vm473 = vcmp.eq.s32.totalorder %v470, %v472
        %s474 = smul.addr %s459, 8
        %s475 = scalar_lea.vmem [#allocation16], %s474
        %476 = vst.msk [vmem:[%s475] sm:$0xff] %vm473, 2147483648
        %s477 = smul.addr %s459, 8
        %s478 = scalar_lea.vmem [#allocation17], %s477
        %479 = vst.msk [vmem:[%s478] sm:$0xff] %vm473, 2147483647
        %480 = xla_tuple %476, %479
        %v481 = vrot.slane %v457, 1
      $region45: #{custom-call} parent=2 // loop_footer
        %s83 = sadd.s32 1, %s79
      $region46: #{custom-call} parent=2 // loop_footer_branch
        %78 = sbr.rel target = $region42
      $region47: #{custom-call} parent=2 // loop_exit
        _
      %s482 = scalar_lea.vmem [#allocation13], 7
      %v483 = vld [vmem:[%s482] ss:$-1 sm:$0xff]
      %s484 = scalar_lea.vmem [#allocation13], 7
      %v485 = vld [vmem:[%s484] ss:$-1 sm:$0xff]
      %486 = vst [vmem:[#allocation13] sm:$0xff] %v485
      %487 = vst [vmem:[#allocation13] sm:$0xff] %v483
      %s488 = scalar_lea.vmem [#allocation15], 7
      %v489 = vld [vmem:[%s488] ss:$-1 sm:$0xff]
      %s490 = scalar_lea.vmem [#allocation15], 7
      %v491 = vld [vmem:[%s490] ss:$-1 sm:$0xff]
      %492 = vst [vmem:[#allocation15] sm:$0xff] %v491
      %493 = vst [vmem:[#allocation15] sm:$0xff] %v489
      %494 = xla_tuple %487, %493
      %v495 = vld [vmem:[#allocation12] sm:$0xff]
      %v496 = vld [vmem:[#allocation14] sm:$0xff]
      %497 = xla_tuple %v495, %v496
      %v498 = vld [vmem:[#allocation13] sm:$0xff]
      %v499 = vld [vmem:[#allocation15] sm:$0xff]
      %500 = xla_tuple %v498, %v499
      %vm501 = vcmp.gt.s32.totalorder %v495, %v498
      %vm502 = vcmp.eq.s32.totalorder %v495, %v498
      %vm503 = vcmp.lt.s32.totalorder %v496, %v499
      %vm504 = vmand %vm502, %vm503
      %vm505 = vmor %vm501, %vm504
      %v506 = vsel %vm505, %v495, %v498
      %507 = vst [vmem:[#allocation12] sm:$0xff] %v506
      %v508 = vsel %vm505, %v498, %v495
      %509 = vst [vmem:[#allocation13] sm:$0xff] %v508
      %v510 = vsel %vm505, %v496, %v499
      %511 = vst [vmem:[#allocation14] sm:$0xff] %v510
      %v512 = vsel %vm505, %v499, %v496
      %513 = vst [vmem:[#allocation15] sm:$0xff] %v512
      %514 = xla_tuple %509, %513
      %515 = xla_tuple [#allocation12], [#allocation14]
      %v516 = vld [vmem:[#allocation12] sm:$0xff]
      %v517 = vld [vmem:[#allocation14] sm:$0xff]
      %518 = xla_tuple %v516, %v517
      %v520 = vunpack.c.l.s4 839939668
      %v521 = vunpack.c.0.s8 %v520
      %v522 = vlaneseq
      %v523 = vshrl.u32 %v522, 7
      %v524 = vsub.s32 %v521, %v523
      %v525 = vrot.slane %v516, %v524
      %v527 = vunpack.c.l.s4 839939668
      %v528 = vunpack.c.0.s8 %v527
      %v529 = vlaneseq
      %v530 = vshrl.u32 %v529, 7
      %v531 = vsub.s32 %v528, %v530
      %v532 = vrot.slane %v517, %v531
      %533 = xla_tuple %v525, %v532
      %vm534 = vcmp.gt.s32.totalorder %v516, %v525
      %vm535 = vcmp.eq.s32.totalorder %v516, %v525
      %vm536 = vcmp.lt.s32.totalorder %v517, %v532
      %vm537 = vmand %vm535, %vm536
      %vm538 = vmor %vm534, %vm537
      %v539 = vlaneseq
      %v540 = vshrl.u32 %v539, 7
      %v541 = vand.u32 %v540, 4
      %vm542 = vcmp.ne.s32.totalorder %v541, 0
      %vm543 = vmxor %vm538, %vm542
      %v544 = vsel %vm543, %v516, %v525
      %v545 = vsel %vm543, %v517, %v532
      %546 = xla_tuple %v544, %v545
      %v548 = vunpack.c.l.s4 1417023538
      %v549 = vunpack.c.0.s8 %v548
      %v550 = vlaneseq
      %v551 = vshrl.u32 %v550, 7
      %v552 = vsub.s32 %v549, %v551
      %v553 = vrot.slane %v544, %v552
      %v555 = vunpack.c.l.s4 1417023538
      %v556 = vunpack.c.0.s8 %v555
      %v557 = vlaneseq
      %v558 = vshrl.u32 %v557, 7
      %v559 = vsub.s32 %v556, %v558
      %v560 = vrot.slane %v545, %v559
      %561 = xla_tuple %v553, %v560
      %vm562 = vcmp.gt.s32.totalorder %v544, %v553
      %vm563 = vcmp.eq.s32.totalorder %v544, %v553
      %vm564 = vcmp.lt.s32.totalorder %v545, %v560
      %vm565 = vmand %vm563, %vm564
      %vm566 = vmor %vm562, %vm565
      %v567 = vlaneseq
      %v568 = vshrl.u32 %v567, 7
      %v569 = vand.u32 %v568, 2
      %vm570 = vcmp.ne.s32.totalorder %v569, 0
      %vm571 = vmxor %vm566, %vm570
      %v572 = vsel %vm571, %v544, %v553
      %v573 = vsel %vm571, %v545, %v560
      %574 = xla_tuple %v572, %v573
      %v576 = vunpack.c.l.s4 1732584193
      %v577 = vunpack.c.0.s8 %v576
      %v578 = vlaneseq
      %v579 = vshrl.u32 %v578, 7
      %v580 = vsub.s32 %v577, %v579
      %v581 = vrot.slane %v572, %v580
      %v583 = vunpack.c.l.s4 1732584193
      %v584 = vunpack.c.0.s8 %v583
      %v585 = vlaneseq
      %v586 = vshrl.u32 %v585, 7
      %v587 = vsub.s32 %v584, %v586
      %v588 = vrot.slane %v573, %v587
      %589 = xla_tuple %v581, %v588
      %vm590 = vcmp.gt.s32.totalorder %v572, %v581
      %vm591 = vcmp.eq.s32.totalorder %v572, %v581
      %vm592 = vcmp.lt.s32.totalorder %v573, %v588
      %vm593 = vmand %vm591, %vm592
      %vm594 = vmor %vm590, %vm593
      %v595 = vlaneseq
      %v596 = vshrl.u32 %v595, 7
      %v597 = vand.u32 %v596, 1
      %vm598 = vcmp.ne.s32.totalorder %v597, 0
      %vm599 = vmxor %vm594, %vm598
      %v600 = vsel %vm599, %v572, %v581
      %v601 = vsel %vm599, %v573, %v588
      %602 = xla_tuple %v600, %v601
      %603 = vst [vmem:[#allocation12] sm:$0xff] %v600
      %604 = vst [vmem:[#allocation14] sm:$0xff] %v601
      %605 = xla_tuple %603, %604
      %v606 = vld [vmem:[#allocation12] sm:$0xff]
      %v607 = vld [vmem:[#allocation14] sm:$0xff]
      %608 = xla_tuple %v606, %v607
      %v610 = vunpack.c.l.s4 839939668
      %v611 = vunpack.c.0.s8 %v610
      %v612 = vlaneseq
      %v613 = vshrl.u32 %v612, 7
      %v614 = vsub.s32 %v611, %v613
      %v615 = vrot.slane %v606, %v614
      %v617 = vunpack.c.l.s4 839939668
      %v618 = vunpack.c.0.s8 %v617
      %v619 = vlaneseq
      %v620 = vshrl.u32 %v619, 7
      %v621 = vsub.s32 %v618, %v620
      %v622 = vrot.slane %v607, %v621
      %623 = xla_tuple %v615, %v622
      %vm624 = vcmp.gt.s32.totalorder %v606, %v615
      %vm625 = vcmp.eq.s32.totalorder %v606, %v615
      %vm626 = vcmp.lt.s32.totalorder %v607, %v622
      %vm627 = vmand %vm625, %vm626
      %vm628 = vmor %vm624, %vm627
      %v629 = vlaneseq
      %v630 = vshrl.u32 %v629, 7
      %v631 = vand.u32 %v630, 4
      %vm632 = vcmp.ne.s32.totalorder %v631, 0
      %vm633 = vmxor %vm628, %vm632
      %v634 = vsel %vm633, %v606, %v615
      %v635 = vsel %vm633, %v607, %v622
      %636 = xla_tuple %v634, %v635
      %v638 = vunpack.c.l.s4 1417023538
      %v639 = vunpack.c.0.s8 %v638
      %v640 = vlaneseq
      %v641 = vshrl.u32 %v640, 7
      %v642 = vsub.s32 %v639, %v641
      %v643 = vrot.slane %v634, %v642
      %v645 = vunpack.c.l.s4 1417023538
      %v646 = vunpack.c.0.s8 %v645
      %v647 = vlaneseq
      %v648 = vshrl.u32 %v647, 7
      %v649 = vsub.s32 %v646, %v648
      %v650 = vrot.slane %v635, %v649
      %651 = xla_tuple %v643, %v650
      %vm652 = vcmp.gt.s32.totalorder %v634, %v643
      %vm653 = vcmp.eq.s32.totalorder %v634, %v643
      %vm654 = vcmp.lt.s32.totalorder %v635, %v650
      %vm655 = vmand %vm653, %vm654
      %vm656 = vmor %vm652, %vm655
      %v657 = vlaneseq
      %v658 = vshrl.u32 %v657, 7
      %v659 = vand.u32 %v658, 2
      %vm660 = vcmp.ne.s32.totalorder %v659, 0
      %vm661 = vmxor %vm656, %vm660
      %v662 = vsel %vm661, %v634, %v643
      %v663 = vsel %vm661, %v635, %v650
      %664 = xla_tuple %v662, %v663
      %v666 = vunpack.c.l.s4 1732584193
      %v667 = vunpack.c.0.s8 %v666
      %v668 = vlaneseq
      %v669 = vshrl.u32 %v668, 7
      %v670 = vsub.s32 %v667, %v669
      %v671 = vrot.slane %v662, %v670
      %v673 = vunpack.c.l.s4 1732584193
      %v674 = vunpack.c.0.s8 %v673
      %v675 = vlaneseq
      %v676 = vshrl.u32 %v675, 7
      %v677 = vsub.s32 %v674, %v676
      %v678 = vrot.slane %v663, %v677
      %679 = xla_tuple %v671, %v678
      %vm680 = vcmp.gt.s32.totalorder %v662, %v671
      %vm681 = vcmp.eq.s32.totalorder %v662, %v671
      %vm682 = vcmp.lt.s32.totalorder %v663, %v678
      %vm683 = vmand %vm681, %vm682
      %vm684 = vmor %vm680, %vm683
      %v685 = vlaneseq
      %v686 = vshrl.u32 %v685, 7
      %v687 = vand.u32 %v686, 1
      %vm688 = vcmp.ne.s32.totalorder %v687, 0
      %vm689 = vmxor %vm684, %vm688
      %v690 = vsel %vm689, %v662, %v671
      %v691 = vsel %vm689, %v663, %v678
      %692 = xla_tuple %v690, %v691
      %693 = vst [vmem:[#allocation12] sm:$0xff] %v690
      %694 = vst [vmem:[#allocation14] sm:$0xff] %v691
      %695 = xla_tuple %693, %694
      %696 = xla_tuple [#allocation13], [#allocation15]
      %v697 = vld [vmem:[#allocation13] sm:$0xff]
      %v698 = vld [vmem:[#allocation15] sm:$0xff]
      %699 = xla_tuple %v697, %v698
      %v701 = vunpack.c.l.s4 839939668
      %v702 = vunpack.c.0.s8 %v701
      %v703 = vlaneseq
      %v704 = vshrl.u32 %v703, 7
      %v705 = vsub.s32 %v702, %v704
      %v706 = vrot.slane %v697, %v705
      %v708 = vunpack.c.l.s4 839939668
      %v709 = vunpack.c.0.s8 %v708
      %v710 = vlaneseq
      %v711 = vshrl.u32 %v710, 7
      %v712 = vsub.s32 %v709, %v711
      %v713 = vrot.slane %v698, %v712
      %714 = xla_tuple %v706, %v713
      %vm715 = vcmp.gt.s32.totalorder %v697, %v706
      %vm716 = vcmp.eq.s32.totalorder %v697, %v706
      %vm717 = vcmp.lt.s32.totalorder %v698, %v713
      %vm718 = vmand %vm716, %vm717
      %vm719 = vmor %vm715, %vm718
      %v720 = vlaneseq
      %v721 = vshrl.u32 %v720, 7
      %v722 = vand.u32 %v721, 4
      %vm723 = vcmp.ne.s32.totalorder %v722, 0
      %vm724 = vmxor %vm719, %vm723
      %v725 = vsel %vm724, %v697, %v706
      %v726 = vsel %vm724, %v698, %v713
      %727 = xla_tuple %v725, %v726
      %v729 = vunpack.c.l.s4 1417023538
      %v730 = vunpack.c.0.s8 %v729
      %v731 = vlaneseq
      %v732 = vshrl.u32 %v731, 7
      %v733 = vsub.s32 %v730, %v732
      %v734 = vrot.slane %v725, %v733
      %v736 = vunpack.c.l.s4 1417023538
      %v737 = vunpack.c.0.s8 %v736
      %v738 = vlaneseq
      %v739 = vshrl.u32 %v738, 7
      %v740 = vsub.s32 %v737, %v739
      %v741 = vrot.slane %v726, %v740
      %742 = xla_tuple %v734, %v741
      %vm743 = vcmp.gt.s32.totalorder %v725, %v734
      %vm744 = vcmp.eq.s32.totalorder %v725, %v734
      %vm745 = vcmp.lt.s32.totalorder %v726, %v741
      %vm746 = vmand %vm744, %vm745
      %vm747 = vmor %vm743, %vm746
      %v748 = vlaneseq
      %v749 = vshrl.u32 %v748, 7
      %v750 = vand.u32 %v749, 2
      %vm751 = vcmp.ne.s32.totalorder %v750, 0
      %vm752 = vmxor %vm747, %vm751
      %v753 = vsel %vm752, %v725, %v734
      %v754 = vsel %vm752, %v726, %v741
      %755 = xla_tuple %v753, %v754
      %v757 = vunpack.c.l.s4 1732584193
      %v758 = vunpack.c.0.s8 %v757
      %v759 = vlaneseq
      %v760 = vshrl.u32 %v759, 7
      %v761 = vsub.s32 %v758, %v760
      %v762 = vrot.slane %v753, %v761
      %v764 = vunpack.c.l.s4 1732584193
      %v765 = vunpack.c.0.s8 %v764
      %v766 = vlaneseq
      %v767 = vshrl.u32 %v766, 7
      %v768 = vsub.s32 %v765, %v767
      %v769 = vrot.slane %v754, %v768
      %770 = xla_tuple %v762, %v769
      %vm771 = vcmp.gt.s32.totalorder %v753, %v762
      %vm772 = vcmp.eq.s32.totalorder %v753, %v762
      %vm773 = vcmp.lt.s32.totalorder %v754, %v769
      %vm774 = vmand %vm772, %vm773
      %vm775 = vmor %vm771, %vm774
      %v776 = vlaneseq
      %v777 = vshrl.u32 %v776, 7
      %v778 = vand.u32 %v777, 1
      %vm779 = vcmp.ne.s32.totalorder %v778, 0
      %vm780 = vmxor %vm775, %vm779
      %v781 = vsel %vm780, %v753, %v762
      %v782 = vsel %vm780, %v754, %v769
      %783 = xla_tuple %v781, %v782
      %784 = vst [vmem:[#allocation13] sm:$0xff] %v781
      %785 = vst [vmem:[#allocation15] sm:$0xff] %v782
      %786 = xla_tuple %784, %785
      %v787 = vld [vmem:[#allocation13] sm:$0xff]
      %v788 = vld [vmem:[#allocation15] sm:$0xff]
      %789 = xla_tuple %v787, %v788
      %v791 = vunpack.c.l.s4 839939668
      %v792 = vunpack.c.0.s8 %v791
      %v793 = vlaneseq
      %v794 = vshrl.u32 %v793, 7
      %v795 = vsub.s32 %v792, %v794
      %v796 = vrot.slane %v787, %v795
      %v798 = vunpack.c.l.s4 839939668
      %v799 = vunpack.c.0.s8 %v798
      %v800 = vlaneseq
      %v801 = vshrl.u32 %v800, 7
      %v802 = vsub.s32 %v799, %v801
      %v803 = vrot.slane %v788, %v802
      %804 = xla_tuple %v796, %v803
      %vm805 = vcmp.gt.s32.totalorder %v787, %v796
      %vm806 = vcmp.eq.s32.totalorder %v787, %v796
      %vm807 = vcmp.lt.s32.totalorder %v788, %v803
      %vm808 = vmand %vm806, %vm807
      %vm809 = vmor %vm805, %vm808
      %v810 = vlaneseq
      %v811 = vshrl.u32 %v810, 7
      %v812 = vand.u32 %v811, 4
      %vm813 = vcmp.ne.s32.totalorder %v812, 0
      %vm814 = vmxor %vm809, %vm813
      %v815 = vsel %vm814, %v787, %v796
      %v816 = vsel %vm814, %v788, %v803
      %817 = xla_tuple %v815, %v816
      %v819 = vunpack.c.l.s4 1417023538
      %v820 = vunpack.c.0.s8 %v819
      %v821 = vlaneseq
      %v822 = vshrl.u32 %v821, 7
      %v823 = vsub.s32 %v820, %v822
      %v824 = vrot.slane %v815, %v823
      %v826 = vunpack.c.l.s4 1417023538
      %v827 = vunpack.c.0.s8 %v826
      %v828 = vlaneseq
      %v829 = vshrl.u32 %v828, 7
      %v830 = vsub.s32 %v827, %v829
      %v831 = vrot.slane %v816, %v830
      %832 = xla_tuple %v824, %v831
      %vm833 = vcmp.gt.s32.totalorder %v815, %v824
      %vm834 = vcmp.eq.s32.totalorder %v815, %v824
      %vm835 = vcmp.lt.s32.totalorder %v816, %v831
      %vm836 = vmand %vm834, %vm835
      %vm837 = vmor %vm833, %vm836
      %v838 = vlaneseq
      %v839 = vshrl.u32 %v838, 7
      %v840 = vand.u32 %v839, 2
      %vm841 = vcmp.ne.s32.totalorder %v840, 0
      %vm842 = vmxor %vm837, %vm841
      %v843 = vsel %vm842, %v815, %v824
      %v844 = vsel %vm842, %v816, %v831
      %845 = xla_tuple %v843, %v844
      %v847 = vunpack.c.l.s4 1732584193
      %v848 = vunpack.c.0.s8 %v847
      %v849 = vlaneseq
      %v850 = vshrl.u32 %v849, 7
      %v851 = vsub.s32 %v848, %v850
      %v852 = vrot.slane %v843, %v851
      %v854 = vunpack.c.l.s4 1732584193
      %v855 = vunpack.c.0.s8 %v854
      %v856 = vlaneseq
      %v857 = vshrl.u32 %v856, 7
      %v858 = vsub.s32 %v855, %v857
      %v859 = vrot.slane %v844, %v858
      %860 = xla_tuple %v852, %v859
      %vm861 = vcmp.gt.s32.totalorder %v843, %v852
      %vm862 = vcmp.eq.s32.totalorder %v843, %v852
      %vm863 = vcmp.lt.s32.totalorder %v844, %v859
      %vm864 = vmand %vm862, %vm863
      %vm865 = vmor %vm861, %vm864
      %v866 = vlaneseq
      %v867 = vshrl.u32 %v866, 7
      %v868 = vand.u32 %v867, 1
      %vm869 = vcmp.ne.s32.totalorder %v868, 0
      %vm870 = vmxor %vm865, %vm869
      %v871 = vsel %vm870, %v843, %v852
      %v872 = vsel %vm870, %v844, %v859
      %873 = xla_tuple %v871, %v872
      %874 = vst [vmem:[#allocation13] sm:$0xff] %v871
      %875 = vst [vmem:[#allocation15] sm:$0xff] %v872
      %876 = xla_tuple %874, %875
    %v877 = vld [vmem:[#allocation12] sm:$0xff]
    %vm878 = vcmp.lt.s32.totalorder %v877, 0
    %v879 = vsub.s32 2147483647, %v877
    %v880 = vsel %vm878, %v879, %v877
    %881 = vst [vmem:[#allocation12] sm:$0xff] %v880
    %v882 = vld [vmem:[#allocation12] sm:$0xff]
    %883 = vxpose.xlu0.b32.start.end [1/1] (short) %v882, 128
    %v884 = vpop.trf.xlu0
    %v885 = vpop.trf.xlu0
    %v886 = vpop.trf.xlu0
    %v887 = vpop.trf.xlu0
    %v888 = vpop.trf.xlu0
    %v889 = vpop.trf.xlu0
    %v890 = vpop.trf.xlu0
    %v891 = vpop.trf.xlu0
    %v892 = vpop.trf.xlu0
    %v893 = vpop.trf.xlu0
    %v894 = vpop.trf.xlu0
    %v895 = vpop.trf.xlu0
    %v896 = vpop.trf.xlu0
    %v897 = vpop.trf.xlu0
    %v898 = vpop.trf.xlu0
    %v899 = vpop.trf.xlu0
    %900 = vst [vmem:[#allocation7] sm:$0xff] %v884
    %v901 = vld [vmem:[#allocation14] sm:$0xff]
    %902 = vxpose.xlu0.b32.start.end [1/1] (short) %v901, 128
    %v903 = vpop.trf.xlu0
    %v904 = vpop.trf.xlu0
    %v905 = vpop.trf.xlu0
    %v906 = vpop.trf.xlu0
    %v907 = vpop.trf.xlu0
    %v908 = vpop.trf.xlu0
    %v909 = vpop.trf.xlu0
    %v910 = vpop.trf.xlu0
    %v911 = vpop.trf.xlu0
    %v912 = vpop.trf.xlu0
    %v913 = vpop.trf.xlu0
    %v914 = vpop.trf.xlu0
    %v915 = vpop.trf.xlu0
    %v916 = vpop.trf.xlu0
    %v917 = vpop.trf.xlu0
    %v918 = vpop.trf.xlu0
    %919 = vst [vmem:[#allocation9] sm:$0xff] %v903
    %s921 = sshllo.u32 0, 2
    %v923 = vld [vmem:[#allocation7] sm:%s921]
    %s924 = sshllo.u32 0, 2
    %925 = vst [vmem:[#allocation8] sm:%s924] %v923
    %s927 = sshllo.u32 0, 2
    %v929 = vld [vmem:[#allocation9] sm:%s927]
    %s930 = sshllo.u32 0, 2
    %931 = vst [vmem:[#allocation10] sm:%s930] %v929
    // Predicated region
    $region48: #{custom-call} parent=1 // pred_check
      _
    $region49: #{custom-call} parent=1 // pred_check_branch
      %933 = sbr.rel (0) target = $region51
    $region50: #{custom-call} parent=1 // pred_region
      // Predicated region
      $region52: #{custom-call} parent=50 // pred_check
        _
      $region53: #{custom-call} parent=50 // pred_check_branch
        %935 = sbr.rel target = $region55
      $region54: #{custom-call} parent=50 // pred_region
        // Predicated region
        $region67: #{custom-call} parent=54 // pred_check
          _
        $region68: #{custom-call} parent=54 // pred_check_branch
          %950 = sbr.rel (0) target = $region70
        $region69: #{custom-call} parent=54 // pred_region
          loop: start=0, step=1, limit=1
          $region71: #{custom-call} parent=69 // loop_pre_header
            _
          $region72: #{custom-call} parent=69 // loop_header
            %s953 = sphi 0, %s957
            %p954 = scmp.ge.s32.totalorder %s953, 1
            %s958 = sphi [#allocation8], [#allocation8]
            %s959 = sphi %s1, %s1
          $region73: #{custom-call} parent=69 // loop_header_branch
            %956 = sbr.rel (%p954) target = $region77
          $region74: #{custom-call} parent=69 // loop_body
            %v960 = vld [vmem:[%s958] sm:$0x3]
            %961 = vst [vmem:[%s959] sm:$0x3] %v960
          $region75: #{custom-call} parent=69 // loop_footer
            %s957 = sadd.s32 1, %s953
          $region76: #{custom-call} parent=69 // loop_footer_branch
            %952 = sbr.rel target = $region72
          $region77: #{custom-call} parent=69 // loop_exit
            _
        $region70: #{custom-call} parent=54 // pred_fallthru
          _
      $region55: #{custom-call} parent=50 // pred_fallthru
        _
      // Predicated region
      $region56: #{custom-call} parent=50 // pred_check
        _
      $region57: #{custom-call} parent=50 // pred_check_branch
        %937 = sbr.rel (0) target = $region59
      $region58: #{custom-call} parent=50 // pred_region
        loop: start=0, step=1, limit=1
        $region60: #{custom-call} parent=58 // loop_pre_header
          _
        $region61: #{custom-call} parent=58 // loop_header
          %s940 = sphi 0, %s944
          %p941 = scmp.ge.s32.totalorder %s940, 1
          %s945 = sphi [#allocation8], [#allocation8]
          %s946 = sphi %s1, %s1
        $region62: #{custom-call} parent=58 // loop_header_branch
          %943 = sbr.rel (%p941) target = $region66
        $region63: #{custom-call} parent=58 // loop_body
          %v947 = vld [vmem:[%s945] sm:$0x3]
          %948 = vst [vmem:[%s946] sm:$0x3] %v947
        $region64: #{custom-call} parent=58 // loop_footer
          %s944 = sadd.s32 1, %s940
        $region65: #{custom-call} parent=58 // loop_footer_branch
          %939 = sbr.rel target = $region61
        $region66: #{custom-call} parent=58 // loop_exit
          _
      $region59: #{custom-call} parent=50 // pred_fallthru
        _
    $region51: #{custom-call} parent=1 // pred_fallthru
      _
    %962 = vnop
    %s964 = ssub.s32 32, 32
    %965 = vsyncadd [#allocation11], %s964
    %s967 = sshll.u32 [#allocation10], 4
    %s968 = int_to_ptr.vmem [resolvable:$true] %s967
    %970 = dma.vmem_to_hbm [thread:$0]  %s968, 32, %s2, [#allocation11]
    %971 = dma.done [#allocation11], 32
    %972 = vsyncpa [#allocation11], 1

// kernel: custom-call.1
$region0: #{custom-call.1}
  #allocation0 [shape = 'u32[8,128]{1,0}', space=vmem, size = 0x1000, scoped, tag = 'scratch']
  #allocation1 [shape = 'u32[8,128]{1,0}', space=vmem, size = 0x1000, scoped, tag = 'scratch']
  #allocation2 [shape = 'u32[8,128]{1,0}', space=vmem, size = 0x1000, scoped, tag = 'scratch']
  #allocation3 [shape = 'u32[8,128]{1,0}', space=vmem, size = 0x1000, scoped, tag = 'scratch']
  #allocation4 [shape = 'u32[8,128]{1,0}', space=vmem, size = 0x1000, scoped, tag = 'scratch']
  #allocation5 [shape = 'u32[8,128]{1,0}', space=vmem, size = 0x1000, scoped, tag = 'scratch']
  #allocation6 [shape = 'u32[8,128]{1,0}', space=vmem, size = 0x1000, scoped, tag = 'scratch']
  %s0 = inlined_call_operand.vmem [shape: f32[2,4], index: 0, kind: input, shape index: {}]
  %s1 = inlined_call_operand.vmem [shape: f32[2,1], index: 1, kind: output, shape index: {0}]
  %s2 = inlined_call_operand.hbm [shape: s32[2,1], index: 2, kind: output, shape index: {1}]
  %3 = xla_tuple %s1, %s2
  %4 = xla_tuple 2147483648, 2147483647
  $region1: #{custom-call.1} parent=0
    #allocation7 [shape = 'u8[4096]{0}', space=vmem, size = 0x1000, scoped, tag = 'operand span for operand 1']
    #allocation8 [shape = 'u8[1024]{0}', space=vmem, size = 0x400, scoped, tag = 'packed  for operand 1']
    #allocation9 [shape = 'u8[4096]{0}', space=vmem, size = 0x1000, scoped, tag = 'operand span for operand 2']
    #allocation10 [shape = 'u8[1024]{0}', space=vmem, size = 0x400, scoped, tag = 'packed  for operand 2']
    #allocation11 [shape = 's32[1]{0}', space=sflag, size = 0x4, scoped, tag = 'scoped memory for custom-call.1']
    #allocation12 [shape = 'f32[1,2]{1,0:T(8,128)}', space=vmem, size = 0x1000, scoped, tag = 'scoped memory for custom-call.1']
    #allocation13 [shape = 'f32[1,2]{1,0:T(8,128)}', space=vmem, size = 0x1000, scoped, tag = 'scoped memory for custom-call.1']
    #allocation14 [shape = 's32[1,2]{1,0:T(8,128)}', space=vmem, size = 0x1000, scoped, tag = 'scoped memory for custom-call.1']
    #allocation15 [shape = 's32[1,2]{1,0:T(8,128)}', space=vmem, size = 0x1000, scoped, tag = 'scoped memory for custom-call.1']
    %5 = vsyncpa [#allocation11], 0
    %6 = xla_tuple [#allocation7], [#allocation9]
    %7 = vst [vmem:[#allocation12] sm:$0xff] 2147483648
    %8 = vst [vmem:[#allocation14] sm:$0xff] 2147483647
    %9 = xla_tuple [#allocation12], [#allocation14]
    %10 = xla_tuple [#allocation13], [#allocation15]
    $region2: #{custom-call.1} parent=1
      #allocation16 [shape = 'u8[4096]{0}', space=vmem, size = 0x1000, scoped, tag = 'operand span for operand 0']
      #allocation17 [shape = 's32[1024]{0}', space=vmem, size = 0x1000, scoped, tag = 'scoped memory for custom-call.1']
      // Predicated region
      $region3: #{custom-call.1} parent=2 // pred_check
        _
      $region4: #{custom-call.1} parent=2 // pred_check_branch
        %12 = sbr.rel (0) target = $region6
      $region5: #{custom-call.1} parent=2 // pred_region
        // Predicated region
        $region7: #{custom-call.1} parent=5 // pred_check
          _
        $region8: #{custom-call.1} parent=5 // pred_check_branch
          %14 = sbr.rel (0) target = $region10
        $region9: #{custom-call.1} parent=5 // pred_region
          // Predicated region
          $region11: #{custom-call.1} parent=9 // pred_check
            _
          $region12: #{custom-call.1} parent=9 // pred_check_branch
            %16 = sbr.rel target = $region14
          $region13: #{custom-call.1} parent=9 // pred_region
            // Predicated region
            $region26: #{custom-call.1} parent=13 // pred_check
              _
            $region27: #{custom-call.1} parent=13 // pred_check_branch
              %31 = sbr.rel (0) target = $region29
            $region28: #{custom-call.1} parent=13 // pred_region
              loop: start=0, step=1, limit=1
              $region30: #{custom-call.1} parent=28 // loop_pre_header
                _
              $region31: #{custom-call.1} parent=28 // loop_header
                %s34 = sphi 0, %s38
                %p35 = scmp.ge.s32.totalorder %s34, 1
                %s39 = sphi %s0, %s0
                %s40 = sphi [#allocation16], [#allocation16]
              $region32: #{custom-call.1} parent=28 // loop_header_branch
                %37 = sbr.rel (%p35) target = $region36
              $region33: #{custom-call.1} parent=28 // loop_body
                %v41 = vld [vmem:[%s39] sm:$0x3]
                %42 = vst [vmem:[%s40] sm:$0x3] %v41
              $region34: #{custom-call.1} parent=28 // loop_footer
                %s38 = sadd.s32 1, %s34
              $region35: #{custom-call.1} parent=28 // loop_footer_branch
                %33 = sbr.rel target = $region31
              $region36: #{custom-call.1} parent=28 // loop_exit
                _
            $region29: #{custom-call.1} parent=13 // pred_fallthru
              _
          $region14: #{custom-call.1} parent=9 // pred_fallthru
            _
          // Predicated region
          $region15: #{custom-call.1} parent=9 // pred_check
            _
          $region16: #{custom-call.1} parent=9 // pred_check_branch
            %18 = sbr.rel (0) target = $region18
          $region17: #{custom-call.1} parent=9 // pred_region
            loop: start=0, step=1, limit=1
            $region19: #{custom-call.1} parent=17 // loop_pre_header
              _
            $region20: #{custom-call.1} parent=17 // loop_header
              %s21 = sphi 0, %s25
              %p22 = scmp.ge.s32.totalorder %s21, 1
              %s26 = sphi %s0, %s0
              %s27 = sphi [#allocation16], [#allocation16]
            $region21: #{custom-call.1} parent=17 // loop_header_branch
              %24 = sbr.rel (%p22) target = $region25
            $region22: #{custom-call.1} parent=17 // loop_body
              %v28 = vld [vmem:[%s26] sm:$0x3]
              %29 = vst [vmem:[%s27] sm:$0x3] %v28
            $region23: #{custom-call.1} parent=17 // loop_footer
              %s25 = sadd.s32 1, %s21
            $region24: #{custom-call.1} parent=17 // loop_footer_branch
              %20 = sbr.rel target = $region20
            $region25: #{custom-call.1} parent=17 // loop_exit
              _
          $region18: #{custom-call.1} parent=9 // pred_fallthru
            _
        $region10: #{custom-call.1} parent=5 // pred_fallthru
          _
        %43 = vnop
      $region6: #{custom-call.1} parent=2 // pred_fallthru
        _
      // Predicated region
      $region37: #{custom-call.1} parent=2 // pred_check
        _
      $region38: #{custom-call.1} parent=2 // pred_check_branch
        %45 = sbr.rel (0) target = $region40
      $region39: #{custom-call.1} parent=2 // pred_region
        _
      $region40: #{custom-call.1} parent=2 // pred_fallthru
        _
      %v46 = vlaneseq
      %v47 = vand.u32 %v46, 127
      %v48 = vlaneseq
      %v49 = vshrl.u32 %v48, 7
      %v50 = vshrl.u32 %v49, 1
      %v51 = vand.u32 %v49, 1
      %v52 = vmul.u32 %v50, 128
      %v53 = vadd.s32 %v47, %v52
      %v55 = vld [vmem:[#allocation16] sm:$0xff]
      %vm56 = vcmp.lt.s32.totalorder %v55, 0
      %v57 = vsub.s32 2147483647, %v55
      %v58 = vsel %vm56, %v57, %v55
      %vm60 = vcmp.lt.s32.totalorder %v53, 4
      %v61 = vsel %vm60, %v58, 2147483648
      %62 = vst [vmem:[#allocation16] sm:$0xff] %v61
      %v63 = vlaneseq
      %v64 = vand.u32 %v63, 127
      %v65 = vlaneseq
      %v66 = vshrl.u32 %v65, 7
      %v67 = vshrl.u32 %v66, 1
      %v68 = vand.u32 %v66, 1
      %v69 = vmul.u32 %v67, 128
      %v70 = vadd.s32 %v64, %v69
      %73 = vst [vmem:[#allocation17] sm:$0xff] %v70
      %74 = xla_tuple [#allocation16], [#allocation17]
      %75 = vst [vmem:[#allocation13] sm:$0xff] 2147483648
      %76 = vst [vmem:[#allocation15] sm:$0xff] 2147483647
      %77 = xla_tuple [#allocation13], [#allocation15]
      loop: start=0, step=1, limit=1
      $region41: #{custom-call.1} parent=2 // loop_pre_header
        _
      $region42: #{custom-call.1} parent=2 // loop_header
        %s79 = sphi 0, %s83
        %p80 = scmp.ge.s32.totalorder %s79, 1
      $region43: #{custom-call.1} parent=2 // loop_header_branch
        %82 = sbr.rel (%p80) target = $region47
      $region44: #{custom-call.1} parent=2 // loop_body
        %v84 = vld [vmem:[#allocation16] sm:$0xff]
        %v85 = vld [vmem:[#allocation17] sm:$0xff]
        %86 = xla_tuple %v84, %v85
        %v87 = vrot.slane %v84, 2
        %v88 = vrot.slane %v85, 2
        %89 = xla_tuple %v87, %v88
        %vm90 = vcmp.gt.s32.totalorder %v87, %v84
        %vm91 = vcmp.eq.s32.totalorder %v87, %v84
        %vm92 = vcmp.lt.s32.totalorder %v88, %v85
        %vm93 = vmand %vm91, %vm92
        %vm94 = vmor %vm90, %vm93
        %v95 = vsel %vm94, %v87, %v84
        %v96 = vsel %vm94, %v88, %v85
        %97 = xla_tuple %v95, %v96
        %v98 = vrot.slane %v95, 2
        %v99 = vrot.slane %v96, 2
        %100 = xla_tuple %v98, %v99
        %vm101 = vcmp.gt.s32.totalorder %v98, %v95
        %vm102 = vcmp.eq.s32.totalorder %v98, %v95
        %vm103 = vcmp.lt.s32.totalorder %v99, %v96
        %vm104 = vmand %vm102, %vm103
        %vm105 = vmor %vm101, %vm104
        %v106 = vsel %vm105, %v98, %v95
        %v107 = vsel %vm105, %v99, %v96
        %108 = xla_tuple %v106, %v107
        %v109 = vrot.slane %v106, 2
        %v110 = vrot.slane %v107, 2
        %111 = xla_tuple %v109, %v110
        %vm112 = vcmp.gt.s32.totalorder %v109, %v106
        %vm113 = vcmp.eq.s32.totalorder %v109, %v106
        %vm114 = vcmp.lt.s32.totalorder %v110, %v107
        %vm115 = vmand %vm113, %vm114
        %vm116 = vmor %vm112, %vm115
        %v117 = vsel %vm116, %v109, %v106
        %v118 = vsel %vm116, %v110, %v107
        %119 = xla_tuple %v117, %v118
        %120 = vxpose.xlu0.b32.start [1/16] %v117, 128
        %121 = vxpose.xlu0.b32.cont [2/16] %v117, 128
        %122 = vxpose.xlu0.b32.cont [3/16] %v117, 128
        %123 = vxpose.xlu0.b32.cont [4/16] %v117, 128
        %124 = vxpose.xlu0.b32.cont [5/16] %v117, 128
        %125 = vxpose.xlu0.b32.cont [6/16] %v117, 128
        %126 = vxpose.xlu0.b32.cont [7/16] %v117, 128
        %127 = vxpose.xlu0.b32.cont [8/16] %v117, 128
        %128 = vxpose.xlu0.b32.cont [9/16] %v117, 128
        %129 = vxpose.xlu0.b32.cont [10/16] %v117, 128
        %130 = vxpose.xlu0.b32.cont [11/16] %v117, 128
        %131 = vxpose.xlu0.b32.cont [12/16] %v117, 128
        %132 = vxpose.xlu0.b32.cont [13/16] %v117, 128
        %133 = vxpose.xlu0.b32.cont [14/16] %v117, 128
        %134 = vxpose.xlu0.b32.cont [15/16] %v117, 128
        %135 = vxpose.xlu0.b32.end [16/16] %v117, 128
        %v136 = vpop.trf.xlu0
        %v137 = vpop.trf.xlu0
        %v138 = vpop.trf.xlu0
        %v139 = vpop.trf.xlu0
        %v140 = vpop.trf.xlu0
        %v141 = vpop.trf.xlu0
        %v142 = vpop.trf.xlu0
        %v143 = vpop.trf.xlu0
        %v144 = vpop.trf.xlu0
        %v145 = vpop.trf.xlu0
        %v146 = vpop.trf.xlu0
        %v147 = vpop.trf.xlu0
        %v148 = vpop.trf.xlu0
        %v149 = vpop.trf.xlu0
        %v150 = vpop.trf.xlu0
        %v151 = vpop.trf.xlu0
        %152 = vxpose.xlu0.b32.start [1/16] %v118, 128
        %153 = vxpose.xlu0.b32.cont [2/16] %v118, 128
        %154 = vxpose.xlu0.b32.cont [3/16] %v118, 128
        %155 = vxpose.xlu0.b32.cont [4/16] %v118, 128
        %156 = vxpose.xlu0.b32.cont [5/16] %v118, 128
        %157 = vxpose.xlu0.b32.cont [6/16] %v118, 128
        %158 = vxpose.xlu0.b32.cont [7/16] %v118, 128
        %159 = vxpose.xlu0.b32.cont [8/16] %v118, 128
        %160 = vxpose.xlu0.b32.cont [9/16] %v118, 128
        %161 = vxpose.xlu0.b32.cont [10/16] %v118, 128
        %162 = vxpose.xlu0.b32.cont [11/16] %v118, 128
        %163 = vxpose.xlu0.b32.cont [12/16] %v118, 128
        %164 = vxpose.xlu0.b32.cont [13/16] %v118, 128
        %165 = vxpose.xlu0.b32.cont [14/16] %v118, 128
        %166 = vxpose.xlu0.b32.cont [15/16] %v118, 128
        %167 = vxpose.xlu0.b32.end [16/16] %v118, 128
        %v168 = vpop.trf.xlu0
        %v169 = vpop.trf.xlu0
        %v170 = vpop.trf.xlu0
        %v171 = vpop.trf.xlu0
        %v172 = vpop.trf.xlu0
        %v173 = vpop.trf.xlu0
        %v174 = vpop.trf.xlu0
        %v175 = vpop.trf.xlu0
        %v176 = vpop.trf.xlu0
        %v177 = vpop.trf.xlu0
        %v178 = vpop.trf.xlu0
        %v179 = vpop.trf.xlu0
        %v180 = vpop.trf.xlu0
        %v181 = vpop.trf.xlu0
        %v182 = vpop.trf.xlu0
        %v183 = vpop.trf.xlu0
        %184 = xla_tuple %v136, %v168
        %185 = xla_tuple %v137, %v169
        %vm186 = vcmp.gt.s32.totalorder %v137, %v136
        %vm187 = vcmp.eq.s32.totalorder %v137, %v136
        %vm188 = vcmp.lt.s32.totalorder %v169, %v168
        %vm189 = vmand %vm187, %vm188
        %vm190 = vmor %vm186, %vm189
        %v191 = vsel %vm190, %v137, %v136
        %v192 = vsel %vm190, %v169, %v168
        %193 = xla_tuple %v191, %v192
        %194 = xla_tuple %v138, %v170
        %vm195 = vcmp.gt.s32.totalorder %v138, %v191
        %vm196 = vcmp.eq.s32.totalorder %v138, %v191
        %vm197 = vcmp.lt.s32.totalorder %v170, %v192
        %vm198 = vmand %vm196, %vm197
        %vm199 = vmor %vm195, %vm198
        %v200 = vsel %vm199, %v138, %v191
        %v201 = vsel %vm199, %v170, %v192
        %202 = xla_tuple %v200, %v201
        %203 = xla_tuple %v139, %v171
        %vm204 = vcmp.gt.s32.totalorder %v139, %v200
        %vm205 = vcmp.eq.s32.totalorder %v139, %v200
        %vm206 = vcmp.lt.s32.totalorder %v171, %v201
        %vm207 = vmand %vm205, %vm206
        %vm208 = vmor %vm204, %vm207
        %v209 = vsel %vm208, %v139, %v200
        %v210 = vsel %vm208, %v171, %v201
        %211 = xla_tuple %v209, %v210
        %212 = xla_tuple %v140, %v172
        %vm213 = vcmp.gt.s32.totalorder %v140, %v209
        %vm214 = vcmp.eq.s32.totalorder %v140, %v209
        %vm215 = vcmp.lt.s32.totalorder %v172, %v210
        %vm216 = vmand %vm214, %vm215
        %vm217 = vmor %vm213, %vm216
        %v218 = vsel %vm217, %v140, %v209
        %v219 = vsel %vm217, %v172, %v210
        %220 = xla_tuple %v218, %v219
        %221 = xla_tuple %v141, %v173
        %vm222 = vcmp.gt.s32.totalorder %v141, %v218
        %vm223 = vcmp.eq.s32.totalorder %v141, %v218
        %vm224 = vcmp.lt.s32.totalorder %v173, %v219
        %vm225 = vmand %vm223, %vm224
        %vm226 = vmor %vm222, %vm225
        %v227 = vsel %vm226, %v141, %v218
        %v228 = vsel %vm226, %v173, %v219
        %229 = xla_tuple %v227, %v228
        %230 = xla_tuple %v142, %v174
        %vm231 = vcmp.gt.s32.totalorder %v142, %v227
        %vm232 = vcmp.eq.s32.totalorder %v142, %v227
        %vm233 = vcmp.lt.s32.totalorder %v174, %v228
        %vm234 = vmand %vm232, %vm233
        %vm235 = vmor %vm231, %vm234
        %v236 = vsel %vm235, %v142, %v227
        %v237 = vsel %vm235, %v174, %v228
        %238 = xla_tuple %v236, %v237
        %239 = xla_tuple %v143, %v175
        %vm240 = vcmp.gt.s32.totalorder %v143, %v236
        %vm241 = vcmp.eq.s32.totalorder %v143, %v236
        %vm242 = vcmp.lt.s32.totalorder %v175, %v237
        %vm243 = vmand %vm241, %vm242
        %vm244 = vmor %vm240, %vm243
        %v245 = vsel %vm244, %v143, %v236
        %v246 = vsel %vm244, %v175, %v237
        %247 = xla_tuple %v245, %v246
        %248 = xla_tuple %v144, %v176
        %vm249 = vcmp.gt.s32.totalorder %v144, %v245
        %vm250 = vcmp.eq.s32.totalorder %v144, %v245
        %vm251 = vcmp.lt.s32.totalorder %v176, %v246
        %vm252 = vmand %vm250, %vm251
        %vm253 = vmor %vm249, %vm252
        %v254 = vsel %vm253, %v144, %v245
        %v255 = vsel %vm253, %v176, %v246
        %256 = xla_tuple %v254, %v255
        %257 = xla_tuple %v145, %v177
        %vm258 = vcmp.gt.s32.totalorder %v145, %v254
        %vm259 = vcmp.eq.s32.totalorder %v145, %v254
        %vm260 = vcmp.lt.s32.totalorder %v177, %v255
        %vm261 = vmand %vm259, %vm260
        %vm262 = vmor %vm258, %vm261
        %v263 = vsel %vm262, %v145, %v254
        %v264 = vsel %vm262, %v177, %v255
        %265 = xla_tuple %v263, %v264
        %266 = xla_tuple %v146, %v178
        %vm267 = vcmp.gt.s32.totalorder %v146, %v263
        %vm268 = vcmp.eq.s32.totalorder %v146, %v263
        %vm269 = vcmp.lt.s32.totalorder %v178, %v264
        %vm270 = vmand %vm268, %vm269
        %vm271 = vmor %vm267, %vm270
        %v272 = vsel %vm271, %v146, %v263
        %v273 = vsel %vm271, %v178, %v264
        %274 = xla_tuple %v272, %v273
        %275 = xla_tuple %v147, %v179
        %vm276 = vcmp.gt.s32.totalorder %v147, %v272
        %vm277 = vcmp.eq.s32.totalorder %v147, %v272
        %vm278 = vcmp.lt.s32.totalorder %v179, %v273
        %vm279 = vmand %vm277, %vm278
        %vm280 = vmor %vm276, %vm279
        %v281 = vsel %vm280, %v147, %v272
        %v282 = vsel %vm280, %v179, %v273
        %283 = xla_tuple %v281, %v282
        %284 = xla_tuple %v148, %v180
        %vm285 = vcmp.gt.s32.totalorder %v148, %v281
        %vm286 = vcmp.eq.s32.totalorder %v148, %v281
        %vm287 = vcmp.lt.s32.totalorder %v180, %v282
        %vm288 = vmand %vm286, %vm287
        %vm289 = vmor %vm285, %vm288
        %v290 = vsel %vm289, %v148, %v281
        %v291 = vsel %vm289, %v180, %v282
        %292 = xla_tuple %v290, %v291
        %293 = xla_tuple %v149, %v181
        %vm294 = vcmp.gt.s32.totalorder %v149, %v290
        %vm295 = vcmp.eq.s32.totalorder %v149, %v290
        %vm296 = vcmp.lt.s32.totalorder %v181, %v291
        %vm297 = vmand %vm295, %vm296
        %vm298 = vmor %vm294, %vm297
        %v299 = vsel %vm298, %v149, %v290
        %v300 = vsel %vm298, %v181, %v291
        %301 = xla_tuple %v299, %v300
        %302 = xla_tuple %v150, %v182
        %vm303 = vcmp.gt.s32.totalorder %v150, %v299
        %vm304 = vcmp.eq.s32.totalorder %v150, %v299
        %vm305 = vcmp.lt.s32.totalorder %v182, %v300
        %vm306 = vmand %vm304, %vm305
        %vm307 = vmor %vm303, %vm306
        %v308 = vsel %vm307, %v150, %v299
        %v309 = vsel %vm307, %v182, %v300
        %310 = xla_tuple %v308, %v309
        %311 = xla_tuple %v151, %v183
        %vm312 = vcmp.gt.s32.totalorder %v151, %v308
        %vm313 = vcmp.eq.s32.totalorder %v151, %v308
        %vm314 = vcmp.lt.s32.totalorder %v183, %v309
        %vm315 = vmand %vm313, %vm314
        %vm316 = vmor %vm312, %vm315
        %v317 = vsel %vm316, %v151, %v308
        %v318 = vsel %vm316, %v183, %v309
        %319 = xla_tuple %v317, %v318
        %v320 = vrot.slane %v317, 1
        %v321 = vrot.slane %v318, 1
        %322 = xla_tuple %v320, %v321
        %vm323 = vcmp.gt.s32.totalorder %v320, %v317
        %vm324 = vcmp.eq.s32.totalorder %v320, %v317
        %vm325 = vcmp.lt.s32.totalorder %v321, %v318
        %vm326 = vmand %vm324, %vm325
        %vm327 = vmor %vm323, %vm326
        %v328 = vsel %vm327, %v320, %v317
        %v329 = vsel %vm327, %v321, %v318
        %330 = xla_tuple %v328, %v329
        %v331 = vrot.slane %v328, 1
        %v332 = vrot.slane %v329, 1
        %333 = xla_tuple %v331, %v332
        %vm334 = vcmp.gt.s32.totalorder %v331, %v328
        %vm335 = vcmp.eq.s32.totalorder %v331, %v328
        %vm336 = vcmp.lt.s32.totalorder %v332, %v329
        %vm337 = vmand %vm335, %vm336
        %vm338 = vmor %vm334, %vm337
        %v339 = vsel %vm338, %v331, %v328
        %v340 = vsel %vm338, %v332, %v329
        %341 = xla_tuple %v339, %v340
        %v342 = vrot.slane %v339, 1
        %v343 = vrot.slane %v340, 1
        %344 = xla_tuple %v342, %v343
        %vm345 = vcmp.gt.s32.totalorder %v342, %v339
        %vm346 = vcmp.eq.s32.totalorder %v342, %v339
        %vm347 = vcmp.lt.s32.totalorder %v343, %v340
        %vm348 = vmand %vm346, %vm347
        %vm349 = vmor %vm345, %vm348
        %v350 = vsel %vm349, %v342, %v339
        %v351 = vsel %vm349, %v343, %v340
        %352 = xla_tuple %v350, %v351
        %v353 = vrot.slane %v350, 1
        %v354 = vrot.slane %v351, 1
        %355 = xla_tuple %v353, %v354
        %vm356 = vcmp.gt.s32.totalorder %v353, %v350
        %vm357 = vcmp.eq.s32.totalorder %v353, %v350
        %vm358 = vcmp.lt.s32.totalorder %v354, %v351
        %vm359 = vmand %vm357, %vm358
        %vm360 = vmor %vm356, %vm359
        %v361 = vsel %vm360, %v353, %v350
        %v362 = vsel %vm360, %v354, %v351
        %363 = xla_tuple %v361, %v362
        %v364 = vrot.slane %v361, 1
        %v365 = vrot.slane %v362, 1
        %366 = xla_tuple %v364, %v365
        %vm367 = vcmp.gt.s32.totalorder %v364, %v361
        %vm368 = vcmp.eq.s32.totalorder %v364, %v361
        %vm369 = vcmp.lt.s32.totalorder %v365, %v362
        %vm370 = vmand %vm368, %vm369
        %vm371 = vmor %vm367, %vm370
        %v372 = vsel %vm371, %v364, %v361
        %v373 = vsel %vm371, %v365, %v362
        %374 = xla_tuple %v372, %v373
        %v375 = vrot.slane %v372, 1
        %v376 = vrot.slane %v373, 1
        %377 = xla_tuple %v375, %v376
        %vm378 = vcmp.gt.s32.totalorder %v375, %v372
        %vm379 = vcmp.eq.s32.totalorder %v375, %v372
        %vm380 = vcmp.lt.s32.totalorder %v376, %v373
        %vm381 = vmand %vm379, %vm380
        %vm382 = vmor %vm378, %vm381
        %v383 = vsel %vm382, %v375, %v372
        %v384 = vsel %vm382, %v376, %v373
        %385 = xla_tuple %v383, %v384
        %v386 = vrot.slane %v383, 1
        %v387 = vrot.slane %v384, 1
        %388 = xla_tuple %v386, %v387
        %vm389 = vcmp.gt.s32.totalorder %v386, %v383
        %vm390 = vcmp.eq.s32.totalorder %v386, %v383
        %vm391 = vcmp.lt.s32.totalorder %v387, %v384
        %vm392 = vmand %vm390, %vm391
        %vm393 = vmor %vm389, %vm392
        %v394 = vsel %vm393, %v386, %v383
        %v395 = vsel %vm393, %v387, %v384
        %396 = xla_tuple %v394, %v395
        %s397 = scalar_lea.vmem [#allocation13], %s79
        %398 = vst [vmem:[%s397] sm:$0x1] %v394
        %s399 = scalar_lea.vmem [#allocation15], %s79
        %400 = vst [vmem:[%s399] sm:$0x1] %v395
        %401 = xla_tuple %398, %400
        %402 = vxpose.xlu0.b32.start [1/16] %v395, 128
        %403 = vxpose.xlu0.b32.cont [2/16] 0.0, 128
        %404 = vxpose.xlu0.b32.cont [3/16] 0.0, 128
        %405 = vxpose.xlu0.b32.cont [4/16] 0.0, 128
        %406 = vxpose.xlu0.b32.cont [5/16] 0.0, 128
        %407 = vxpose.xlu0.b32.cont [6/16] 0.0, 128
        %408 = vxpose.xlu0.b32.cont [7/16] 0.0, 128
        %409 = vxpose.xlu0.b32.cont [8/16] 0.0, 128
        %410 = vxpose.xlu0.b32.cont [9/16] 0.0, 128
        %411 = vxpose.xlu0.b32.cont [10/16] 0.0, 128
        %412 = vxpose.xlu0.b32.cont [11/16] 0.0, 128
        %413 = vxpose.xlu0.b32.cont [12/16] 0.0, 128
        %414 = vxpose.xlu0.b32.cont [13/16] 0.0, 128
        %415 = vxpose.xlu0.b32.cont [14/16] 0.0, 128
        %416 = vxpose.xlu0.b32.cont [15/16] 0.0, 128
        %417 = vxpose.xlu0.b32.end [16/16] 0.0, 128
        %v418 = vpop.trf.xlu0
        %v419 = vpop.trf.xlu0
        %v420 = vpop.trf.xlu0
        %v421 = vpop.trf.xlu0
        %v422 = vpop.trf.xlu0
        %v423 = vpop.trf.xlu0
        %v424 = vpop.trf.xlu0
        %v425 = vpop.trf.xlu0
        %v426 = vpop.trf.xlu0
        %v427 = vpop.trf.xlu0
        %v428 = vpop.trf.xlu0
        %v429 = vpop.trf.xlu0
        %v430 = vpop.trf.xlu0
        %v431 = vpop.trf.xlu0
        %v432 = vpop.trf.xlu0
        %v433 = vpop.trf.xlu0
        %s434 = vtos %v418
        %s435 = sshrl.u32 %s434, 9
        %p436 = scmp.lt.s32.totalorder %s434, 0
        %s437 = ssub.s32 0, %s434
        %s438 = scalar_select %p436, %s437, %s434
        %s439 = sand.u32 %s438, 511
        %s440 = ssub.s32 0, %s439
        %s441 = scalar_select %p436, %s440, %s439
        %s442 = sshrl.u32 %s441, 7
        %s443 = smul.u32 %s442, 256
        %s444 = sand.u32 %s441, 127
        %s445 = sadd.s32 %s443, %s444
        %v446 = vlaneseq
        %v447 = vstv %s445
        %vm449 = vcmp.eq.s32.totalorder %v446, %v447
        %s450 = smul.addr %s435, 8
        %s451 = scalar_lea.vmem [#allocation16], %s450
        %452 = vst.msk [vmem:[%s451] sm:$0xff] %vm449, 2147483648
        %s453 = smul.addr %s435, 8
        %s454 = scalar_lea.vmem [#allocation17], %s453
        %455 = vst.msk [vmem:[%s454] sm:$0xff] %vm449, 2147483647
        %456 = xla_tuple %452, %455
        %v457 = vrot.slane %v418, 1
        %s458 = vtos %v457
        %s459 = sshrl.u32 %s458, 9
        %p460 = scmp.lt.s32.totalorder %s458, 0
        %s461 = ssub.s32 0, %s458
        %s462 = scalar_select %p460, %s461, %s458
        %s463 = sand.u32 %s462, 511
        %s464 = ssub.s32 0, %s463
        %s465 = scalar_select %p460, %s464, %s463
        %s466 = sshrl.u32 %s465, 7
        %s467 = smul.u32 %s466, 256
        %s468 = sand.u32 %s465, 127
        %s469 = sadd.s32 %s467, %s468
        %v470 = vlaneseq
        %v471 = vstv %s469
        %v472 = vadd.s32 %v471, 128
        %vm473 = vcmp.eq.s32.totalorder %v470, %v472
        %s474 = smul.addr %s459, 8
        %s475 = scalar_lea.vmem [#allocation16], %s474
        %476 = vst.msk [vmem:[%s475] sm:$0xff] %vm473, 2147483648
        %s477 = smul.addr %s459, 8
        %s478 = scalar_lea.vmem [#allocation17], %s477
        %479 = vst.msk [vmem:[%s478] sm:$0xff] %vm473, 2147483647
        %480 = xla_tuple %476, %479
        %v481 = vrot.slane %v457, 1
      $region45: #{custom-call.1} parent=2 // loop_footer
        %s83 = sadd.s32 1, %s79
      $region46: #{custom-call.1} parent=2 // loop_footer_branch
        %78 = sbr.rel target = $region42
      $region47: #{custom-call.1} parent=2 // loop_exit
        _
      %s482 = scalar_lea.vmem [#allocation13], 7
      %v483 = vld [vmem:[%s482] ss:$-1 sm:$0xff]
      %s484 = scalar_lea.vmem [#allocation13], 7
      %v485 = vld [vmem:[%s484] ss:$-1 sm:$0xff]
      %486 = vst [vmem:[#allocation13] sm:$0xff] %v485
      %487 = vst [vmem:[#allocation13] sm:$0xff] %v483
      %s488 = scalar_lea.vmem [#allocation15], 7
      %v489 = vld [vmem:[%s488] ss:$-1 sm:$0xff]
      %s490 = scalar_lea.vmem [#allocation15], 7
      %v491 = vld [vmem:[%s490] ss:$-1 sm:$0xff]
      %492 = vst [vmem:[#allocation15] sm:$0xff] %v491
      %493 = vst [vmem:[#allocation15] sm:$0xff] %v489
      %494 = xla_tuple %487, %493
      %v495 = vld [vmem:[#allocation12] sm:$0xff]
      %v496 = vld [vmem:[#allocation14] sm:$0xff]
      %497 = xla_tuple %v495, %v496
      %v498 = vld [vmem:[#allocation13] sm:$0xff]
      %v499 = vld [vmem:[#allocation15] sm:$0xff]
      %500 = xla_tuple %v498, %v499
      %vm501 = vcmp.gt.s32.totalorder %v495, %v498
      %vm502 = vcmp.eq.s32.totalorder %v495, %v498
      %vm503 = vcmp.lt.s32.totalorder %v496, %v499
      %vm504 = vmand %vm502, %vm503
      %vm505 = vmor %vm501, %vm504
      %v506 = vsel %vm505, %v495, %v498
      %507 = vst [vmem:[#allocation12] sm:$0xff] %v506
      %v508 = vsel %vm505, %v498, %v495
      %509 = vst [vmem:[#allocation13] sm:$0xff] %v508
      %v510 = vsel %vm505, %v496, %v499
      %511 = vst [vmem:[#allocation14] sm:$0xff] %v510
      %v512 = vsel %vm505, %v499, %v496
      %513 = vst [vmem:[#allocation15] sm:$0xff] %v512
      %514 = xla_tuple %509, %513
      %515 = xla_tuple [#allocation12], [#allocation14]
      %v516 = vld [vmem:[#allocation12] sm:$0xff]
      %v517 = vld [vmem:[#allocation14] sm:$0xff]
      %518 = xla_tuple %v516, %v517
      %v520 = vunpack.c.l.s4 839939668
      %v521 = vunpack.c.0.s8 %v520
      %v522 = vlaneseq
      %v523 = vshrl.u32 %v522, 7
      %v524 = vsub.s32 %v521, %v523
      %v525 = vrot.slane %v516, %v524
      %v527 = vunpack.c.l.s4 839939668
      %v528 = vunpack.c.0.s8 %v527
      %v529 = vlaneseq
      %v530 = vshrl.u32 %v529, 7
      %v531 = vsub.s32 %v528, %v530
      %v532 = vrot.slane %v517, %v531
      %533 = xla_tuple %v525, %v532
      %vm534 = vcmp.gt.s32.totalorder %v516, %v525
      %vm535 = vcmp.eq.s32.totalorder %v516, %v525
      %vm536 = vcmp.lt.s32.totalorder %v517, %v532
      %vm537 = vmand %vm535, %vm536
      %vm538 = vmor %vm534, %vm537
      %v539 = vlaneseq
      %v540 = vshrl.u32 %v539, 7
      %v541 = vand.u32 %v540, 4
      %vm542 = vcmp.ne.s32.totalorder %v541, 0
      %vm543 = vmxor %vm538, %vm542
      %v544 = vsel %vm543, %v516, %v525
      %v545 = vsel %vm543, %v517, %v532
      %546 = xla_tuple %v544, %v545
      %v548 = vunpack.c.l.s4 1417023538
      %v549 = vunpack.c.0.s8 %v548
      %v550 = vlaneseq
      %v551 = vshrl.u32 %v550, 7
      %v552 = vsub.s32 %v549, %v551
      %v553 = vrot.slane %v544, %v552
      %v555 = vunpack.c.l.s4 1417023538
      %v556 = vunpack.c.0.s8 %v555
      %v557 = vlaneseq
      %v558 = vshrl.u32 %v557, 7
      %v559 = vsub.s32 %v556, %v558
      %v560 = vrot.slane %v545, %v559
      %561 = xla_tuple %v553, %v560
      %vm562 = vcmp.gt.s32.totalorder %v544, %v553
      %vm563 = vcmp.eq.s32.totalorder %v544, %v553
      %vm564 = vcmp.lt.s32.totalorder %v545, %v560
      %vm565 = vmand %vm563, %vm564
      %vm566 = vmor %vm562, %vm565
      %v567 = vlaneseq
      %v568 = vshrl.u32 %v567, 7
      %v569 = vand.u32 %v568, 2
      %vm570 = vcmp.ne.s32.totalorder %v569, 0
      %vm571 = vmxor %vm566, %vm570
      %v572 = vsel %vm571, %v544, %v553
      %v573 = vsel %vm571, %v545, %v560
      %574 = xla_tuple %v572, %v573
      %v576 = vunpack.c.l.s4 1732584193
      %v577 = vunpack.c.0.s8 %v576
      %v578 = vlaneseq
      %v579 = vshrl.u32 %v578, 7
      %v580 = vsub.s32 %v577, %v579
      %v581 = vrot.slane %v572, %v580
      %v583 = vunpack.c.l.s4 1732584193
      %v584 = vunpack.c.0.s8 %v583
      %v585 = vlaneseq
      %v586 = vshrl.u32 %v585, 7
      %v587 = vsub.s32 %v584, %v586
      %v588 = vrot.slane %v573, %v587
      %589 = xla_tuple %v581, %v588
      %vm590 = vcmp.gt.s32.totalorder %v572, %v581
      %vm591 = vcmp.eq.s32.totalorder %v572, %v581
      %vm592 = vcmp.lt.s32.totalorder %v573, %v588
      %vm593 = vmand %vm591, %vm592
      %vm594 = vmor %vm590, %vm593
      %v595 = vlaneseq
      %v596 = vshrl.u32 %v595, 7
      %v597 = vand.u32 %v596, 1
      %vm598 = vcmp.ne.s32.totalorder %v597, 0
      %vm599 = vmxor %vm594, %vm598
      %v600 = vsel %vm599, %v572, %v581
      %v601 = vsel %vm599, %v573, %v588
      %602 = xla_tuple %v600, %v601
      %603 = vst [vmem:[#allocation12] sm:$0xff] %v600
      %604 = vst [vmem:[#allocation14] sm:$0xff] %v601
      %605 = xla_tuple %603, %604
      %v606 = vld [vmem:[#allocation12] sm:$0xff]
      %v607 = vld [vmem:[#allocation14] sm:$0xff]
      %608 = xla_tuple %v606, %v607
      %v610 = vunpack.c.l.s4 839939668
      %v611 = vunpack.c.0.s8 %v610
      %v612 = vlaneseq
      %v613 = vshrl.u32 %v612, 7
      %v614 = vsub.s32 %v611, %v613
      %v615 = vrot.slane %v606, %v614
      %v617 = vunpack.c.l.s4 839939668
      %v618 = vunpack.c.0.s8 %v617
      %v619 = vlaneseq
      %v620 = vshrl.u32 %v619, 7
      %v621 = vsub.s32 %v618, %v620
      %v622 = vrot.slane %v607, %v621
      %623 = xla_tuple %v615, %v622
      %vm624 = vcmp.gt.s32.totalorder %v606, %v615
      %vm625 = vcmp.eq.s32.totalorder %v606, %v615
      %vm626 = vcmp.lt.s32.totalorder %v607, %v622
      %vm627 = vmand %vm625, %vm626
      %vm628 = vmor %vm624, %vm627
      %v629 = vlaneseq
      %v630 = vshrl.u32 %v629, 7
      %v631 = vand.u32 %v630, 4
      %vm632 = vcmp.ne.s32.totalorder %v631, 0
      %vm633 = vmxor %vm628, %vm632
      %v634 = vsel %vm633, %v606, %v615
      %v635 = vsel %vm633, %v607, %v622
      %636 = xla_tuple %v634, %v635
      %v638 = vunpack.c.l.s4 1417023538
      %v639 = vunpack.c.0.s8 %v638
      %v640 = vlaneseq
      %v641 = vshrl.u32 %v640, 7
      %v642 = vsub.s32 %v639, %v641
      %v643 = vrot.slane %v634, %v642
      %v645 = vunpack.c.l.s4 1417023538
      %v646 = vunpack.c.0.s8 %v645
      %v647 = vlaneseq
      %v648 = vshrl.u32 %v647, 7
      %v649 = vsub.s32 %v646, %v648
      %v650 = vrot.slane %v635, %v649
      %651 = xla_tuple %v643, %v650
      %vm652 = vcmp.gt.s32.totalorder %v634, %v643
      %vm653 = vcmp.eq.s32.totalorder %v634, %v643
      %vm654 = vcmp.lt.s32.totalorder %v635, %v650
      %vm655 = vmand %vm653, %vm654
      %vm656 = vmor %vm652, %vm655
      %v657 = vlaneseq
      %v658 = vshrl.u32 %v657, 7
      %v659 = vand.u32 %v658, 2
      %vm660 = vcmp.ne.s32.totalorder %v659, 0
      %vm661 = vmxor %vm656, %vm660
      %v662 = vsel %vm661, %v634, %v643
      %v663 = vsel %vm661, %v635, %v650
      %664 = xla_tuple %v662, %v663
      %v666 = vunpack.c.l.s4 1732584193
      %v667 = vunpack.c.0.s8 %v666
      %v668 = vlaneseq
      %v669 = vshrl.u32 %v668, 7
      %v670 = vsub.s32 %v667, %v669
      %v671 = vrot.slane %v662, %v670
      %v673 = vunpack.c.l.s4 1732584193
      %v674 = vunpack.c.0.s8 %v673
      %v675 = vlaneseq
      %v676 = vshrl.u32 %v675, 7
      %v677 = vsub.s32 %v674, %v676
      %v678 = vrot.slane %v663, %v677
      %679 = xla_tuple %v671, %v678
      %vm680 = vcmp.gt.s32.totalorder %v662, %v671
      %vm681 = vcmp.eq.s32.totalorder %v662, %v671
      %vm682 = vcmp.lt.s32.totalorder %v663, %v678
      %vm683 = vmand %vm681, %vm682
      %vm684 = vmor %vm680, %vm683
      %v685 = vlaneseq
      %v686 = vshrl.u32 %v685, 7
      %v687 = vand.u32 %v686, 1
      %vm688 = vcmp.ne.s32.totalorder %v687, 0
      %vm689 = vmxor %vm684, %vm688
      %v690 = vsel %vm689, %v662, %v671
      %v691 = vsel %vm689, %v663, %v678
      %692 = xla_tuple %v690, %v691
      %693 = vst [vmem:[#allocation12] sm:$0xff] %v690
      %694 = vst [vmem:[#allocation14] sm:$0xff] %v691
      %695 = xla_tuple %693, %694
      %696 = xla_tuple [#allocation13], [#allocation15]
      %v697 = vld [vmem:[#allocation13] sm:$0xff]
      %v698 = vld [vmem:[#allocation15] sm:$0xff]
      %699 = xla_tuple %v697, %v698
      %v701 = vunpack.c.l.s4 839939668
      %v702 = vunpack.c.0.s8 %v701
      %v703 = vlaneseq
      %v704 = vshrl.u32 %v703, 7
      %v705 = vsub.s32 %v702, %v704
      %v706 = vrot.slane %v697, %v705
      %v708 = vunpack.c.l.s4 839939668
      %v709 = vunpack.c.0.s8 %v708
      %v710 = vlaneseq
      %v711 = vshrl.u32 %v710, 7
      %v712 = vsub.s32 %v709, %v711
      %v713 = vrot.slane %v698, %v712
      %714 = xla_tuple %v706, %v713
      %vm715 = vcmp.gt.s32.totalorder %v697, %v706
      %vm716 = vcmp.eq.s32.totalorder %v697, %v706
      %vm717 = vcmp.lt.s32.totalorder %v698, %v713
      %vm718 = vmand %vm716, %vm717
      %vm719 = vmor %vm715, %vm718
      %v720 = vlaneseq
      %v721 = vshrl.u32 %v720, 7
      %v722 = vand.u32 %v721, 4
      %vm723 = vcmp.ne.s32.totalorder %v722, 0
      %vm724 = vmxor %vm719, %vm723
      %v725 = vsel %vm724, %v697, %v706
      %v726 = vsel %vm724, %v698, %v713
      %727 = xla_tuple %v725, %v726
      %v729 = vunpack.c.l.s4 1417023538
      %v730 = vunpack.c.0.s8 %v729
      %v731 = vlaneseq
      %v732 = vshrl.u32 %v731, 7
      %v733 = vsub.s32 %v730, %v732
      %v734 = vrot.slane %v725, %v733
      %v736 = vunpack.c.l.s4 1417023538
      %v737 = vunpack.c.0.s8 %v736
      %v738 = vlaneseq
      %v739 = vshrl.u32 %v738, 7
      %v740 = vsub.s32 %v737, %v739
      %v741 = vrot.slane %v726, %v740
      %742 = xla_tuple %v734, %v741
      %vm743 = vcmp.gt.s32.totalorder %v725, %v734
      %vm744 = vcmp.eq.s32.totalorder %v725, %v734
      %vm745 = vcmp.lt.s32.totalorder %v726, %v741
      %vm746 = vmand %vm744, %vm745
      %vm747 = vmor %vm743, %vm746
      %v748 = vlaneseq
      %v749 = vshrl.u32 %v748, 7
      %v750 = vand.u32 %v749, 2
      %vm751 = vcmp.ne.s32.totalorder %v750, 0
      %vm752 = vmxor %vm747, %vm751
      %v753 = vsel %vm752, %v725, %v734
      %v754 = vsel %vm752, %v726, %v741
      %755 = xla_tuple %v753, %v754
      %v757 = vunpack.c.l.s4 1732584193
      %v758 = vunpack.c.0.s8 %v757
      %v759 = vlaneseq
      %v760 = vshrl.u32 %v759, 7
      %v761 = vsub.s32 %v758, %v760
      %v762 = vrot.slane %v753, %v761
      %v764 = vunpack.c.l.s4 1732584193
      %v765 = vunpack.c.0.s8 %v764
      %v766 = vlaneseq
      %v767 = vshrl.u32 %v766, 7
      %v768 = vsub.s32 %v765, %v767
      %v769 = vrot.slane %v754, %v768
      %770 = xla_tuple %v762, %v769
      %vm771 = vcmp.gt.s32.totalorder %v753, %v762
      %vm772 = vcmp.eq.s32.totalorder %v753, %v762
      %vm773 = vcmp.lt.s32.totalorder %v754, %v769
      %vm774 = vmand %vm772, %vm773
      %vm775 = vmor %vm771, %vm774
      %v776 = vlaneseq
      %v777 = vshrl.u32 %v776, 7
      %v778 = vand.u32 %v777, 1
      %vm779 = vcmp.ne.s32.totalorder %v778, 0
      %vm780 = vmxor %vm775, %vm779
      %v781 = vsel %vm780, %v753, %v762
      %v782 = vsel %vm780, %v754, %v769
      %783 = xla_tuple %v781, %v782
      %784 = vst [vmem:[#allocation13] sm:$0xff] %v781
      %785 = vst [vmem:[#allocation15] sm:$0xff] %v782
      %786 = xla_tuple %784, %785
      %v787 = vld [vmem:[#allocation13] sm:$0xff]
      %v788 = vld [vmem:[#allocation15] sm:$0xff]
      %789 = xla_tuple %v787, %v788
      %v791 = vunpack.c.l.s4 839939668
      %v792 = vunpack.c.0.s8 %v791
      %v793 = vlaneseq
      %v794 = vshrl.u32 %v793, 7
      %v795 = vsub.s32 %v792, %v794
      %v796 = vrot.slane %v787, %v795
      %v798 = vunpack.c.l.s4 839939668
      %v799 = vunpack.c.0.s8 %v798
      %v800 = vlaneseq
      %v801 = vshrl.u32 %v800, 7
      %v802 = vsub.s32 %v799, %v801
      %v803 = vrot.slane %v788, %v802
      %804 = xla_tuple %v796, %v803
      %vm805 = vcmp.gt.s32.totalorder %v787, %v796
      %vm806 = vcmp.eq.s32.totalorder %v787, %v796
      %vm807 = vcmp.lt.s32.totalorder %v788, %v803
      %vm808 = vmand %vm806, %vm807
      %vm809 = vmor %vm805, %vm808
      %v810 = vlaneseq
      %v811 = vshrl.u32 %v810, 7
      %v812 = vand.u32 %v811, 4
      %vm813 = vcmp.ne.s32.totalorder %v812, 0
      %vm814 = vmxor %vm809, %vm813
      %v815 = vsel %vm814, %v787, %v796
      %v816 = vsel %vm814, %v788, %v803
      %817 = xla_tuple %v815, %v816
      %v819 = vunpack.c.l.s4 1417023538
      %v820 = vunpack.c.0.s8 %v819
      %v821 = vlaneseq
      %v822 = vshrl.u32 %v821, 7
      %v823 = vsub.s32 %v820, %v822
      %v824 = vrot.slane %v815, %v823
      %v826 = vunpack.c.l.s4 1417023538
      %v827 = vunpack.c.0.s8 %v826
      %v828 = vlaneseq
      %v829 = vshrl.u32 %v828, 7
      %v830 = vsub.s32 %v827, %v829
      %v831 = vrot.slane %v816, %v830
      %832 = xla_tuple %v824, %v831
      %vm833 = vcmp.gt.s32.totalorder %v815, %v824
      %vm834 = vcmp.eq.s32.totalorder %v815, %v824
      %vm835 = vcmp.lt.s32.totalorder %v816, %v831
      %vm836 = vmand %vm834, %vm835
      %vm837 = vmor %vm833, %vm836
      %v838 = vlaneseq
      %v839 = vshrl.u32 %v838, 7
      %v840 = vand.u32 %v839, 2
      %vm841 = vcmp.ne.s32.totalorder %v840, 0
      %vm842 = vmxor %vm837, %vm841
      %v843 = vsel %vm842, %v815, %v824
      %v844 = vsel %vm842, %v816, %v831
      %845 = xla_tuple %v843, %v844
      %v847 = vunpack.c.l.s4 1732584193
      %v848 = vunpack.c.0.s8 %v847
      %v849 = vlaneseq
      %v850 = vshrl.u32 %v849, 7
      %v851 = vsub.s32 %v848, %v850
      %v852 = vrot.slane %v843, %v851
      %v854 = vunpack.c.l.s4 1732584193
      %v855 = vunpack.c.0.s8 %v854
      %v856 = vlaneseq
      %v857 = vshrl.u32 %v856, 7
      %v858 = vsub.s32 %v855, %v857
      %v859 = vrot.slane %v844, %v858
      %860 = xla_tuple %v852, %v859
      %vm861 = vcmp.gt.s32.totalorder %v843, %v852
      %vm862 = vcmp.eq.s32.totalorder %v843, %v852
      %vm863 = vcmp.lt.s32.totalorder %v844, %v859
      %vm864 = vmand %vm862, %vm863
      %vm865 = vmor %vm861, %vm864
      %v866 = vlaneseq
      %v867 = vshrl.u32 %v866, 7
      %v868 = vand.u32 %v867, 1
      %vm869 = vcmp.ne.s32.totalorder %v868, 0
      %vm870 = vmxor %vm865, %vm869
      %v871 = vsel %vm870, %v843, %v852
      %v872 = vsel %vm870, %v844, %v859
      %873 = xla_tuple %v871, %v872
      %874 = vst [vmem:[#allocation13] sm:$0xff] %v871
      %875 = vst [vmem:[#allocation15] sm:$0xff] %v872
      %876 = xla_tuple %874, %875
    %v877 = vld [vmem:[#allocation12] sm:$0xff]
    %vm878 = vcmp.lt.s32.totalorder %v877, 0
    %v879 = vsub.s32 2147483647, %v877
    %v880 = vsel %vm878, %v879, %v877
    %881 = vst [vmem:[#allocation12] sm:$0xff] %v880
    %v882 = vld [vmem:[#allocation12] sm:$0xff]
    %883 = vxpose.xlu0.b32.start.end [1/1] (short) %v882, 128
    %v884 = vpop.trf.xlu0
    %v885 = vpop.trf.xlu0
    %v886 = vpop.trf.xlu0
    %v887 = vpop.trf.xlu0
    %v888 = vpop.trf.xlu0
    %v889 = vpop.trf.xlu0
    %v890 = vpop.trf.xlu0
    %v891 = vpop.trf.xlu0
    %v892 = vpop.trf.xlu0
    %v893 = vpop.trf.xlu0
    %v894 = vpop.trf.xlu0
    %v895 = vpop.trf.xlu0
    %v896 = vpop.trf.xlu0
    %v897 = vpop.trf.xlu0
    %v898 = vpop.trf.xlu0
    %v899 = vpop.trf.xlu0
    %900 = vst [vmem:[#allocation7] sm:$0xff] %v884
    %v901 = vld [vmem:[#allocation14] sm:$0xff]
    %902 = vxpose.xlu0.b32.start.end [1/1] (short) %v901, 128
    %v903 = vpop.trf.xlu0
    %v904 = vpop.trf.xlu0
    %v905 = vpop.trf.xlu0
    %v906 = vpop.trf.xlu0
    %v907 = vpop.trf.xlu0
    %v908 = vpop.trf.xlu0
    %v909 = vpop.trf.xlu0
    %v910 = vpop.trf.xlu0
    %v911 = vpop.trf.xlu0
    %v912 = vpop.trf.xlu0
    %v913 = vpop.trf.xlu0
    %v914 = vpop.trf.xlu0
    %v915 = vpop.trf.xlu0
    %v916 = vpop.trf.xlu0
    %v917 = vpop.trf.xlu0
    %v918 = vpop.trf.xlu0
    %919 = vst [vmem:[#allocation9] sm:$0xff] %v903
    %s921 = sshllo.u32 0, 2
    %v923 = vld [vmem:[#allocation7] sm:%s921]
    %s924 = sshllo.u32 0, 2
    %925 = vst [vmem:[#allocation8] sm:%s924] %v923
    %s927 = sshllo.u32 0, 2
    %v929 = vld [vmem:[#allocation9] sm:%s927]
    %s930 = sshllo.u32 0, 2
    %931 = vst [vmem:[#allocation10] sm:%s930] %v929
    // Predicated region
    $region48: #{custom-call.1} parent=1 // pred_check
      _
    $region49: #{custom-call.1} parent=1 // pred_check_branch
      %933 = sbr.rel (0) target = $region51
    $region50: #{custom-call.1} parent=1 // pred_region
      // Predicated region
      $region52: #{custom-call.1} parent=50 // pred_check
        _
      $region53: #{custom-call.1} parent=50 // pred_check_branch
        %935 = sbr.rel target = $region55
      $region54: #{custom-call.1} parent=50 // pred_region
        // Predicated region
        $region67: #{custom-call.1} parent=54 // pred_check
          _
        $region68: #{custom-call.1} parent=54 // pred_check_branch
          %950 = sbr.rel (0) target = $region70
        $region69: #{custom-call.1} parent=54 // pred_region
          loop: start=0, step=1, limit=1
          $region71: #{custom-call.1} parent=69 // loop_pre_header
            _
          $region72: #{custom-call.1} parent=69 // loop_header
            %s953 = sphi 0, %s957
            %p954 = scmp.ge.s32.totalorder %s953, 1
            %s958 = sphi [#allocation8], [#allocation8]
            %s959 = sphi %s1, %s1
          $region73: #{custom-call.1} parent=69 // loop_header_branch
            %956 = sbr.rel (%p954) target = $region77
          $region74: #{custom-call.1} parent=69 // loop_body
            %v960 = vld [vmem:[%s958] sm:$0x3]
            %961 = vst [vmem:[%s959] sm:$0x3] %v960
          $region75: #{custom-call.1} parent=69 // loop_footer
            %s957 = sadd.s32 1, %s953
          $region76: #{custom-call.1} parent=69 // loop_footer_branch
            %952 = sbr.rel target = $region72
          $region77: #{custom-call.1} parent=69 // loop_exit
            _
        $region70: #{custom-call.1} parent=54 // pred_fallthru
          _
      $region55: #{custom-call.1} parent=50 // pred_fallthru
        _
      // Predicated region
      $region56: #{custom-call.1} parent=50 // pred_check
        _
      $region57: #{custom-call.1} parent=50 // pred_check_branch
        %937 = sbr.rel (0) target = $region59
      $region58: #{custom-call.1} parent=50 // pred_region
        loop: start=0, step=1, limit=1
        $region60: #{custom-call.1} parent=58 // loop_pre_header
          _
        $region61: #{custom-call.1} parent=58 // loop_header
          %s940 = sphi 0, %s944
          %p941 = scmp.ge.s32.totalorder %s940, 1
          %s945 = sphi [#allocation8], [#allocation8]
          %s946 = sphi %s1, %s1
        $region62: #{custom-call.1} parent=58 // loop_header_branch
          %943 = sbr.rel (%p941) target = $region66
        $region63: #{custom-call.1} parent=58 // loop_body
          %v947 = vld [vmem:[%s945] sm:$0x3]
          %948 = vst [vmem:[%s946] sm:$0x3] %v947
        $region64: #{custom-call.1} parent=58 // loop_footer
          %s944 = sadd.s32 1, %s940
        $region65: #{custom-call.1} parent=58 // loop_footer_branch
          %939 = sbr.rel target = $region61
        $region66: #{custom-call.1} parent=58 // loop_exit
          _
      $region59: #{custom-call.1} parent=50 // pred_fallthru
        _
    $region51: #{custom-call.1} parent=1 // pred_fallthru
      _
    %962 = vnop
    %s964 = ssub.s32 32, 32
    %965 = vsyncadd [#allocation11], %s964
    %s967 = sshll.u32 [#allocation10], 4
    %s968 = int_to_ptr.vmem [resolvable:$true] %s967
    %970 = dma.vmem_to_hbm [thread:$0]  %s968, 32, %s2, [#allocation11]
    %971 = dma.done [#allocation11], 32
    %972 = vsyncpa [#allocation11], 1

// kernel: _lambda_.1
$region0: #{_lambda_.1}
  #allocation0 [shape = 'u32[]', space=smem, size = 0x4, offset = 0x4, fixed_abs, tag = 'smem constant byte address 0x4 - core index']
  #allocation1 [shape = 'u32[144,128]{1,0:T(1,128)}', space=vmem, size = 0x12000, scoped, tag = 'internal scratch']
  %s0 = inlined_call_operand.vmem [shape: bf16[240,512], index: 0, kind: input, shape index: {}]
  %s1 = inlined_call_operand.vmem [shape: bf16[8,240], index: 1, kind: input, shape index: {}]
  %s2 = inlined_call_operand.vmem [shape: bf16[32,4608], index: 2, kind: input, shape index: {}]
  %s3 = inlined_call_operand.vmem [shape: bf16[512,256], index: 3, kind: input, shape index: {}]
  %s4 = inlined_call_operand.vmem [shape: bf16[256,1], index: 4, kind: input, shape index: {}]
  %s5 = inlined_call_operand.vmem [shape: bf16[4608,512], index: 5, kind: input, shape index: {}]
  %s6 = inlined_call_operand.vmem [shape: bf16[512,3], index: 6, kind: input, shape index: {}]
  %s7 = inlined_call_operand.vmem [shape: f32[1,1024], index: 7, kind: input, shape index: {}]
  %s8 = inlined_call_operand.vmem [shape: f32[8,1], index: 8, kind: output, shape index: {0}]
  %s9 = inlined_call_operand.vmem [shape: f32[240,2], index: 9, kind: output, shape index: {1}]
  %s10 = inlined_call_operand.vmem [shape: f32[32,1], index: 10, kind: output, shape index: {2}]
  %11 = xla_tuple %s8, %s9, %s10
  %s12 = sld [smem:[#allocation0]]
  $region58: #{_lambda_.1} parent=0
    _
  %s14 = ssub.s32 1, %s12
  %s15 = scalar_select 0, %s14, %s12
  // Predicated region
  $region2: #{_lambda_.1} parent=0 // pred_check
    _
  $region3: #{_lambda_.1} parent=0 // pred_check_branch
    %17 = sbr.rel (0) target = $region5
  $region4: #{_lambda_.1} parent=0 // pred_region
    _
  $region5: #{_lambda_.1} parent=0 // pred_fallthru
    _
  // Predicated region
  $region6: #{_lambda_.1} parent=0 // pred_check
    _
  $region7: #{_lambda_.1} parent=0 // pred_check_branch
    %19 = sbr.rel (0) target = $region9
  $region8: #{_lambda_.1} parent=0 // pred_region
    _
  $region9: #{_lambda_.1} parent=0 // pred_fallthru
    _
  // Predicated region
  $region10: #{_lambda_.1} parent=0 // pred_check
    _
  $region11: #{_lambda_.1} parent=0 // pred_check_branch
    %21 = sbr.rel (0) target = $region13
  $region12: #{_lambda_.1} parent=0 // pred_region
    _
  $region13: #{_lambda_.1} parent=0 // pred_fallthru
    _
  // Predicated region
  $region14: #{_lambda_.1} parent=0 // pred_check
    _
  $region15: #{_lambda_.1} parent=0 // pred_check_branch
    %23 = sbr.rel (0) target = $region17
  $region16: #{_lambda_.1} parent=0 // pred_region
    _
  $region17: #{_lambda_.1} parent=0 // pred_fallthru
    _
  // Predicated region
  $region18: #{_lambda_.1} parent=0 // pred_check
    _
  $region19: #{_lambda_.1} parent=0 // pred_check_branch
    %25 = sbr.rel (0) target = $region21
  $region20: #{_lambda_.1} parent=0 // pred_region
    _
  $region21: #{_lambda_.1} parent=0 // pred_fallthru
    _
  // Predicated region
  $region22: #{_lambda_.1} parent=0 // pred_check
    _
  $region23: #{_lambda_.1} parent=0 // pred_check_branch
    %27 = sbr.rel (0) target = $region25
  $region24: #{_lambda_.1} parent=0 // pred_region
    _
  $region25: #{_lambda_.1} parent=0 // pred_fallthru
    _
  // Predicated region
  $region26: #{_lambda_.1} parent=0 // pred_check
    _
  $region27: #{_lambda_.1} parent=0 // pred_check_branch
    %29 = sbr.rel (0) target = $region29
  $region28: #{_lambda_.1} parent=0 // pred_region
    _
  $region29: #{_lambda_.1} parent=0 // pred_fallthru
    _
  // Predicated region
  $region30: #{_lambda_.1} parent=0 // pred_check
    _
  $region31: #{_lambda_.1} parent=0 // pred_check_branch
    %31 = sbr.rel (0) target = $region33
  $region32: #{_lambda_.1} parent=0 // pred_region
    _
  $region33: #{_lambda_.1} parent=0 // pred_fallthru
    _
  %v33 = vld [vmem:[%s0] sm:$0xff]
  %v34 = vld [vmem:[%s0 + $0x8] sm:$0xff]
  %v35 = vld [vmem:[%s0 + $0x10] sm:$0xff]
  %v36 = vld [vmem:[%s0 + $0x18] sm:$0xff]
  %v37 = vld [vmem:[%s0 + $0x20] sm:$0xff]
  %v38 = vld [vmem:[%s0 + $0x28] sm:$0xff]
  %v39 = vld [vmem:[%s0 + $0x30] sm:$0xff]
  %v40 = vld [vmem:[%s0 + $0x38] sm:$0xff]
  %v41 = vld [vmem:[%s0 + $0x40] sm:$0xff]
  %v42 = vld [vmem:[%s0 + $0x48] sm:$0xff]
  %v43 = vld [vmem:[%s0 + $0x50] sm:$0xff]
  %v44 = vld [vmem:[%s0 + $0x58] sm:$0xff]
  %v45 = vld [vmem:[%s0 + $0x60] sm:$0xff]
  %v46 = vld [vmem:[%s0 + $0x68] sm:$0xff]
  %v47 = vld [vmem:[%s0 + $0x70] sm:$0xff]
  %v48 = vld [vmem:[%s0 + $0x78] sm:$0xff]
  %v49 = vld [vmem:[%s0 + $0x80] sm:$0xff]
  %v50 = vld [vmem:[%s0 + $0x88] sm:$0xff]
  %v51 = vld [vmem:[%s0 + $0x90] sm:$0xff]
  %v52 = vld [vmem:[%s0 + $0x98] sm:$0xff]
  %v53 = vld [vmem:[%s0 + $0xa0] sm:$0xff]
  %v54 = vld [vmem:[%s0 + $0xa8] sm:$0xff]
  %v55 = vld [vmem:[%s0 + $0xb0] sm:$0xff]
  %v56 = vld [vmem:[%s0 + $0xb8] sm:$0xff]
  %v57 = vld [vmem:[%s0 + $0xc0] sm:$0xff]
  %v58 = vld [vmem:[%s0 + $0xc8] sm:$0xff]
  %v59 = vld [vmem:[%s0 + $0xd0] sm:$0xff]
  %v60 = vld [vmem:[%s0 + $0xd8] sm:$0xff]
  %v61 = vld [vmem:[%s0 + $0xe0] sm:$0xff]
  %v62 = vld [vmem:[%s0 + $0xe8] sm:$0xff]
  %v63 = vld [vmem:[%s0 + $0xf0] sm:$0xff]
  %v64 = vld [vmem:[%s0 + $0xf8] sm:$0xff]
  %v65 = vld [vmem:[%s0 + $0x100] sm:$0xff]
  %v66 = vld [vmem:[%s0 + $0x108] sm:$0xff]
  %v67 = vld [vmem:[%s0 + $0x110] sm:$0xff]
  %v68 = vld [vmem:[%s0 + $0x118] sm:$0xff]
  %v69 = vld [vmem:[%s0 + $0x120] sm:$0xff]
  %v70 = vld [vmem:[%s0 + $0x128] sm:$0xff]
  %v71 = vld [vmem:[%s0 + $0x130] sm:$0xff]
  %v72 = vld [vmem:[%s0 + $0x138] sm:$0xff]
  %v73 = vld [vmem:[%s0 + $0x140] sm:$0xff]
  %v74 = vld [vmem:[%s0 + $0x148] sm:$0xff]
  %v75 = vld [vmem:[%s0 + $0x150] sm:$0xff]
  %v76 = vld [vmem:[%s0 + $0x158] sm:$0xff]
  %v77 = vld [vmem:[%s0 + $0x160] sm:$0xff]
  %v78 = vld [vmem:[%s0 + $0x168] sm:$0xff]
  %v79 = vld [vmem:[%s0 + $0x170] sm:$0xff]
  %v80 = vld [vmem:[%s0 + $0x178] sm:$0xff]
  %v81 = vld [vmem:[%s0 + $0x180] sm:$0xff]
  %v82 = vld [vmem:[%s0 + $0x188] sm:$0xff]
  %v83 = vld [vmem:[%s0 + $0x190] sm:$0xff]
  %v84 = vld [vmem:[%s0 + $0x198] sm:$0xff]
  %v85 = vld [vmem:[%s0 + $0x1a0] sm:$0xff]
  %v86 = vld [vmem:[%s0 + $0x1a8] sm:$0xff]
  %v87 = vld [vmem:[%s0 + $0x1b0] sm:$0xff]
  %v88 = vld [vmem:[%s0 + $0x1b8] sm:$0xff]
  %v89 = vld [vmem:[%s0 + $0x1c0] sm:$0xff]
  %v90 = vld [vmem:[%s0 + $0x1c8] sm:$0xff]
  %v91 = vld [vmem:[%s0 + $0x1d0] sm:$0xff]
  %v92 = vld [vmem:[%s0 + $0x1d8] sm:$0xff]
  %v93 = vld [vmem:[%s7] sm:$0xf]
  %v94 = vld [vmem:[%s7 + $0x4] sm:$0x3]
  %v95 = vld [vmem:[%s7 + $0x6] sm:$0x1]
  %v96 = vld [vmem:[%s1] sm:$0xff]
  %v98 = vunpack.c.l.b16 %v96
  %v99 = vunpack.c.h.b16 %v96
  %v100 = vpack.c.b16 %v98, %v98
  %v101 = vpack.c.b16 %v99, %v99
  %v163 = vunpack.c.l.b16 %v33
  %v164 = vunpack.c.h.b16 %v33
  %v165 = vunpack.c.l.b16 %v34
  %v166 = vunpack.c.h.b16 %v34
  %v167 = vunpack.c.l.b16 %v35
  %v168 = vunpack.c.h.b16 %v35
  %v169 = vunpack.c.l.b16 %v36
  %v170 = vunpack.c.h.b16 %v36
  %v171 = vunpack.c.l.b16 %v37
  %v172 = vunpack.c.h.b16 %v37
  %v173 = vunpack.c.l.b16 %v38
  %v174 = vunpack.c.h.b16 %v38
  %v175 = vunpack.c.l.b16 %v39
  %v176 = vunpack.c.h.b16 %v39
  %v177 = vunpack.c.l.b16 %v40
  %v178 = vunpack.c.h.b16 %v40
  %v179 = vunpack.c.l.b16 %v41
  %v180 = vunpack.c.h.b16 %v41
  %v181 = vunpack.c.l.b16 %v42
  %v182 = vunpack.c.h.b16 %v42
  %v183 = vunpack.c.l.b16 %v43
  %v184 = vunpack.c.h.b16 %v43
  %v185 = vunpack.c.l.b16 %v44
  %v186 = vunpack.c.h.b16 %v44
  %v187 = vunpack.c.l.b16 %v45
  %v188 = vunpack.c.h.b16 %v45
  %v189 = vunpack.c.l.b16 %v46
  %v190 = vunpack.c.h.b16 %v46
  %v191 = vunpack.c.l.b16 %v47
  %v192 = vunpack.c.h.b16 %v47
  %v193 = vunpack.c.l.b16 %v48
  %v194 = vunpack.c.h.b16 %v48
  %v195 = vunpack.c.l.b16 %v49
  %v196 = vunpack.c.h.b16 %v49
  %v197 = vunpack.c.l.b16 %v50
  %v198 = vunpack.c.h.b16 %v50
  %v199 = vunpack.c.l.b16 %v51
  %v200 = vunpack.c.h.b16 %v51
  %v201 = vunpack.c.l.b16 %v52
  %v202 = vunpack.c.h.b16 %v52
  %v203 = vunpack.c.l.b16 %v53
  %v204 = vunpack.c.h.b16 %v53
  %v205 = vunpack.c.l.b16 %v54
  %v206 = vunpack.c.h.b16 %v54
  %v207 = vunpack.c.l.b16 %v55
  %v208 = vunpack.c.h.b16 %v55
  %v209 = vunpack.c.l.b16 %v56
  %v210 = vunpack.c.h.b16 %v56
  %v211 = vunpack.c.l.b16 %v57
  %v212 = vunpack.c.h.b16 %v57
  %v213 = vunpack.c.l.b16 %v58
  %v214 = vunpack.c.h.b16 %v58
  %v215 = vunpack.c.l.b16 %v59
  %v216 = vunpack.c.h.b16 %v59
  %v217 = vunpack.c.l.b16 %v60
  %v218 = vunpack.c.h.b16 %v60
  %v219 = vunpack.c.l.b16 %v61
  %v220 = vunpack.c.h.b16 %v61
  %v221 = vunpack.c.l.b16 %v62
  %v222 = vunpack.c.h.b16 %v62
  %v223 = vunpack.c.l.b16 %v63
  %v224 = vunpack.c.h.b16 %v63
  %v225 = vunpack.c.l.b16 %v64
  %v226 = vunpack.c.h.b16 %v64
  %v227 = vunpack.c.l.b16 %v65
  %v228 = vunpack.c.h.b16 %v65
  %v229 = vunpack.c.l.b16 %v66
  %v230 = vunpack.c.h.b16 %v66
  %v231 = vunpack.c.l.b16 %v67
  %v232 = vunpack.c.h.b16 %v67
  %v233 = vunpack.c.l.b16 %v68
  %v234 = vunpack.c.h.b16 %v68
  %v235 = vunpack.c.l.b16 %v69
  %v236 = vunpack.c.h.b16 %v69
  %v237 = vunpack.c.l.b16 %v70
  %v238 = vunpack.c.h.b16 %v70
  %v239 = vunpack.c.l.b16 %v71
  %v240 = vunpack.c.h.b16 %v71
  %v241 = vunpack.c.l.b16 %v72
  %v242 = vunpack.c.h.b16 %v72
  %v243 = vunpack.c.l.b16 %v73
  %v244 = vunpack.c.h.b16 %v73
  %v245 = vunpack.c.l.b16 %v74
  %v246 = vunpack.c.h.b16 %v74
  %v247 = vunpack.c.l.b16 %v75
  %v248 = vunpack.c.h.b16 %v75
  %v249 = vunpack.c.l.b16 %v76
  %v250 = vunpack.c.h.b16 %v76
  %v251 = vunpack.c.l.b16 %v77
  %v252 = vunpack.c.h.b16 %v77
  %v253 = vunpack.c.l.b16 %v78
  %v254 = vunpack.c.h.b16 %v78
  %v255 = vunpack.c.l.b16 %v79
  %v256 = vunpack.c.h.b16 %v79
  %v257 = vunpack.c.l.b16 %v80
  %v258 = vunpack.c.h.b16 %v80
  %v259 = vunpack.c.l.b16 %v81
  %v260 = vunpack.c.h.b16 %v81
  %v261 = vunpack.c.l.b16 %v82
  %v262 = vunpack.c.h.b16 %v82
  %v263 = vunpack.c.l.b16 %v83
  %v264 = vunpack.c.h.b16 %v83
  %v265 = vunpack.c.l.b16 %v84
  %v266 = vunpack.c.h.b16 %v84
  %v267 = vunpack.c.l.b16 %v85
  %v268 = vunpack.c.h.b16 %v85
  %v269 = vunpack.c.l.b16 %v86
  %v270 = vunpack.c.h.b16 %v86
  %v271 = vunpack.c.l.b16 %v87
  %v272 = vunpack.c.h.b16 %v87
  %v273 = vunpack.c.l.b16 %v88
  %v274 = vunpack.c.h.b16 %v88
  %v275 = vunpack.c.l.b16 %v89
  %v276 = vunpack.c.h.b16 %v89
  %v277 = vunpack.c.l.b16 %v90
  %v278 = vunpack.c.h.b16 %v90
  %v279 = vunpack.c.l.b16 %v91
  %v280 = vunpack.c.h.b16 %v91
  %v281 = vunpack.c.l.b16 %v92
  %v282 = vunpack.c.h.b16 %v92
  %v283 = vpack.c.b16 %v167, %v163
  %v284 = vpack.c.b16 %v168, %v164
  %v285 = vpack.c.b16 %v169, %v165
  %v286 = vpack.c.b16 %v170, %v166
  %v287 = vpack.c.b16 %v175, %v171
  %v288 = vpack.c.b16 %v176, %v172
  %v289 = vpack.c.b16 %v177, %v173
  %v290 = vpack.c.b16 %v178, %v174
  %v291 = vpack.c.b16 %v183, %v179
  %v292 = vpack.c.b16 %v184, %v180
  %v293 = vpack.c.b16 %v185, %v181
  %v294 = vpack.c.b16 %v186, %v182
  %v295 = vpack.c.b16 %v191, %v187
  %v296 = vpack.c.b16 %v192, %v188
  %v297 = vpack.c.b16 %v193, %v189
  %v298 = vpack.c.b16 %v194, %v190
  %v299 = vpack.c.b16 %v199, %v195
  %v300 = vpack.c.b16 %v200, %v196
  %v301 = vpack.c.b16 %v201, %v197
  %v302 = vpack.c.b16 %v202, %v198
  %v303 = vpack.c.b16 %v207, %v203
  %v304 = vpack.c.b16 %v208, %v204
  %v305 = vpack.c.b16 %v209, %v205
  %v306 = vpack.c.b16 %v210, %v206
  %v307 = vpack.c.b16 %v215, %v211
  %v308 = vpack.c.b16 %v216, %v212
  %v309 = vpack.c.b16 %v217, %v213
  %v310 = vpack.c.b16 %v218, %v214
  %v311 = vpack.c.b16 %v223, %v219
  %v312 = vpack.c.b16 %v224, %v220
  %v313 = vpack.c.b16 %v225, %v221
  %v314 = vpack.c.b16 %v226, %v222
  %v315 = vpack.c.b16 %v231, %v227
  %v316 = vpack.c.b16 %v232, %v228
  %v317 = vpack.c.b16 %v233, %v229
  %v318 = vpack.c.b16 %v234, %v230
  %v319 = vpack.c.b16 %v239, %v235
  %v320 = vpack.c.b16 %v240, %v236
  %v321 = vpack.c.b16 %v241, %v237
  %v322 = vpack.c.b16 %v242, %v238
  %v323 = vpack.c.b16 %v247, %v243
  %v324 = vpack.c.b16 %v248, %v244
  %v325 = vpack.c.b16 %v249, %v245
  %v326 = vpack.c.b16 %v250, %v246
  %v327 = vpack.c.b16 %v255, %v251
  %v328 = vpack.c.b16 %v256, %v252
  %v329 = vpack.c.b16 %v257, %v253
  %v330 = vpack.c.b16 %v258, %v254
  %v331 = vpack.c.b16 %v263, %v259
  %v332 = vpack.c.b16 %v264, %v260
  %v333 = vpack.c.b16 %v265, %v261
  %v334 = vpack.c.b16 %v266, %v262
  %v335 = vpack.c.b16 %v271, %v267
  %v336 = vpack.c.b16 %v272, %v268
  %v337 = vpack.c.b16 %v273, %v269
  %v338 = vpack.c.b16 %v274, %v270
  %v339 = vpack.c.b16 %v279, %v275
  %v340 = vpack.c.b16 %v280, %v276
  %v341 = vpack.c.b16 %v281, %v277
  %v342 = vpack.c.b16 %v282, %v278
  %vm403 = vcmask 916480
  %v405 = vsel %vm403, %v101, 0
  %407 = vmatprep.subr.bf16.mxu0 %v284
  %408 = vmatpush1.bf16.msra.mxu0 %v283
  %409 = vmatprep.subr.bf16.mxu0 %v288
  %410 = vmatpush1.bf16.msra.mxu0 %v287
  %411 = vmatprep.subr.bf16.mxu0 %v292
  %412 = vmatpush1.bf16.msra.mxu0 %v291
  %413 = vmatprep.subr.bf16.mxu0 %v296
  %414 = vmatpush1.bf16.msra.mxu0 %v295
  %415 = vmatprep.subr.bf16.mxu0 %v300
  %416 = vmatpush1.bf16.msra.mxu0 %v299
  %417 = vmatprep.subr.bf16.mxu0 %v304
  %418 = vmatpush1.bf16.msra.mxu0 %v303
  %419 = vmatprep.subr.bf16.mxu0 %v308
  %420 = vmatpush1.bf16.msra.mxu0 %v307
  %421 = vmatprep.subr.bf16.mxu0 %v312
  %422 = vmatpush1.bf16.msra.mxu0 %v311
  %423 = vmatprep.subr.bf16.mxu0 %v316
  %424 = vmatpush1.bf16.msra.mxu0 %v315
  %425 = vmatprep.subr.bf16.mxu0 %v320
  %426 = vmatpush1.bf16.msra.mxu0 %v319
  %427 = vmatprep.subr.bf16.mxu0 %v324
  %428 = vmatpush1.bf16.msra.mxu0 %v323
  %429 = vmatprep.subr.bf16.mxu0 %v328
  %430 = vmatpush1.bf16.msra.mxu0 %v327
  %431 = vmatprep.subr.bf16.mxu0 %v332
  %432 = vmatpush1.bf16.msra.mxu0 %v331
  %433 = vmatprep.subr.bf16.mxu0 %v336
  %434 = vmatpush1.bf16.msra.mxu0 %v335
  %435 = vmatprep.subr.bf16.mxu0 %v340
  %436 = vmatpush1.bf16.msra.mxu0 %v339
  %437 = vmatprep.subr.bf16.mxu0 0
  %438 = vmatpush1.bf16.msra.mxu0 0
  %439 = vmatprep.mubr.bf16.mxu0 %v405
  %440 = vmatmul.mubr.bf16.gmra.mrb[0].mxu0 %v100
  %v441 = vpop.f32.mrb[0].mxu0
  %v442 = vadd.f32 0.0, %v441
  %v443 = vpop.f32.mrb[0].mxu0
  %v444 = vadd.f32 0.0, %v443
  %v445 = vpop.f32.mrb[0].mxu0
  %v446 = vpop.f32.mrb[0].mxu0
  %447 = vdwg.mxu0
  %448 = vmatprep.subr.bf16.mxu0 %v286
  %449 = vmatpush1.bf16.msra.mxu0 %v285
  %450 = vmatprep.subr.bf16.mxu0 %v290
  %451 = vmatpush1.bf16.msra.mxu0 %v289
  %452 = vmatprep.subr.bf16.mxu0 %v294
  %453 = vmatpush1.bf16.msra.mxu0 %v293
  %454 = vmatprep.subr.bf16.mxu0 %v298
  %455 = vmatpush1.bf16.msra.mxu0 %v297
  %456 = vmatprep.subr.bf16.mxu0 %v302
  %457 = vmatpush1.bf16.msra.mxu0 %v301
  %458 = vmatprep.subr.bf16.mxu0 %v306
  %459 = vmatpush1.bf16.msra.mxu0 %v305
  %460 = vmatprep.subr.bf16.mxu0 %v310
  %461 = vmatpush1.bf16.msra.mxu0 %v309
  %462 = vmatprep.subr.bf16.mxu0 %v314
  %463 = vmatpush1.bf16.msra.mxu0 %v313
  %464 = vmatprep.subr.bf16.mxu0 %v318
  %465 = vmatpush1.bf16.msra.mxu0 %v317
  %466 = vmatprep.subr.bf16.mxu0 %v322
  %467 = vmatpush1.bf16.msra.mxu0 %v321
  %468 = vmatprep.subr.bf16.mxu0 %v326
  %469 = vmatpush1.bf16.msra.mxu0 %v325
  %470 = vmatprep.subr.bf16.mxu0 %v330
  %471 = vmatpush1.bf16.msra.mxu0 %v329
  %472 = vmatprep.subr.bf16.mxu0 %v334
  %473 = vmatpush1.bf16.msra.mxu0 %v333
  %474 = vmatprep.subr.bf16.mxu0 %v338
  %475 = vmatpush1.bf16.msra.mxu0 %v337
  %476 = vmatprep.subr.bf16.mxu0 %v342
  %477 = vmatpush1.bf16.msra.mxu0 %v341
  %478 = vmatprep.subr.bf16.mxu0 0
  %479 = vmatpush1.bf16.msra.mxu0 0
  %480 = vmatprep.mubr.bf16.mxu0 %v405
  %481 = vmatmul.mubr.bf16.gmra.mrb[0].mxu0 %v100
  %v482 = vpop.f32.mrb[0].mxu0
  %v483 = vadd.f32 0.0, %v482
  %v484 = vpop.f32.mrb[0].mxu0
  %v485 = vadd.f32 0.0, %v484
  %v486 = vpop.f32.mrb[0].mxu0
  %v487 = vpop.f32.mrb[0].mxu0
  %488 = vdwg.mxu0
  %v489 = vpack.c.bf16 %v442, %v442
  %v490 = vpack.c.bf16 %v444, %v444
  %v491 = vpack.c.bf16 %v483, %v483
  %v492 = vpack.c.bf16 %v485, %v485
  %v493 = vld [vmem:[%s3] sm:$0xff]
  %v494 = vld [vmem:[%s3 + $0x8] sm:$0xff]
  %v495 = vld [vmem:[%s3 + $0x10] sm:$0xff]
  %v496 = vld [vmem:[%s3 + $0x18] sm:$0xff]
  %v497 = vld [vmem:[%s3 + $0x20] sm:$0xff]
  %v498 = vld [vmem:[%s3 + $0x28] sm:$0xff]
  %v499 = vld [vmem:[%s3 + $0x30] sm:$0xff]
  %v500 = vld [vmem:[%s3 + $0x38] sm:$0xff]
  %v501 = vld [vmem:[%s3 + $0x40] sm:$0xff]
  %v502 = vld [vmem:[%s3 + $0x48] sm:$0xff]
  %v503 = vld [vmem:[%s3 + $0x50] sm:$0xff]
  %v504 = vld [vmem:[%s3 + $0x58] sm:$0xff]
  %v505 = vld [vmem:[%s3 + $0x60] sm:$0xff]
  %v506 = vld [vmem:[%s3 + $0x68] sm:$0xff]
  %v507 = vld [vmem:[%s3 + $0x70] sm:$0xff]
  %v508 = vld [vmem:[%s3 + $0x78] sm:$0xff]
  %v509 = vld [vmem:[%s3 + $0x80] sm:$0xff]
  %v510 = vld [vmem:[%s3 + $0x88] sm:$0xff]
  %v511 = vld [vmem:[%s3 + $0x90] sm:$0xff]
  %v512 = vld [vmem:[%s3 + $0x98] sm:$0xff]
  %v513 = vld [vmem:[%s3 + $0xa0] sm:$0xff]
  %v514 = vld [vmem:[%s3 + $0xa8] sm:$0xff]
  %v515 = vld [vmem:[%s3 + $0xb0] sm:$0xff]
  %v516 = vld [vmem:[%s3 + $0xb8] sm:$0xff]
  %v517 = vld [vmem:[%s3 + $0xc0] sm:$0xff]
  %v518 = vld [vmem:[%s3 + $0xc8] sm:$0xff]
  %v519 = vld [vmem:[%s3 + $0xd0] sm:$0xff]
  %v520 = vld [vmem:[%s3 + $0xd8] sm:$0xff]
  %v521 = vld [vmem:[%s3 + $0xe0] sm:$0xff]
  %v522 = vld [vmem:[%s3 + $0xe8] sm:$0xff]
  %v523 = vld [vmem:[%s3 + $0xf0] sm:$0xff]
  %v524 = vld [vmem:[%s3 + $0xf8] sm:$0xff]
  %v525 = vld [vmem:[%s3 + $0x100] sm:$0xff]
  %v526 = vld [vmem:[%s3 + $0x108] sm:$0xff]
  %v527 = vld [vmem:[%s3 + $0x110] sm:$0xff]
  %v528 = vld [vmem:[%s3 + $0x118] sm:$0xff]
  %v529 = vld [vmem:[%s3 + $0x120] sm:$0xff]
  %v530 = vld [vmem:[%s3 + $0x128] sm:$0xff]
  %v531 = vld [vmem:[%s3 + $0x130] sm:$0xff]
  %v532 = vld [vmem:[%s3 + $0x138] sm:$0xff]
  %v533 = vld [vmem:[%s3 + $0x140] sm:$0xff]
  %v534 = vld [vmem:[%s3 + $0x148] sm:$0xff]
  %v535 = vld [vmem:[%s3 + $0x150] sm:$0xff]
  %v536 = vld [vmem:[%s3 + $0x158] sm:$0xff]
  %v537 = vld [vmem:[%s3 + $0x160] sm:$0xff]
  %v538 = vld [vmem:[%s3 + $0x168] sm:$0xff]
  %v539 = vld [vmem:[%s3 + $0x170] sm:$0xff]
  %v540 = vld [vmem:[%s3 + $0x178] sm:$0xff]
  %v541 = vld [vmem:[%s3 + $0x180] sm:$0xff]
  %v542 = vld [vmem:[%s3 + $0x188] sm:$0xff]
  %v543 = vld [vmem:[%s3 + $0x190] sm:$0xff]
  %v544 = vld [vmem:[%s3 + $0x198] sm:$0xff]
  %v545 = vld [vmem:[%s3 + $0x1a0] sm:$0xff]
  %v546 = vld [vmem:[%s3 + $0x1a8] sm:$0xff]
  %v547 = vld [vmem:[%s3 + $0x1b0] sm:$0xff]
  %v548 = vld [vmem:[%s3 + $0x1b8] sm:$0xff]
  %v549 = vld [vmem:[%s3 + $0x1c0] sm:$0xff]
  %v550 = vld [vmem:[%s3 + $0x1c8] sm:$0xff]
  %v551 = vld [vmem:[%s3 + $0x1d0] sm:$0xff]
  %v552 = vld [vmem:[%s3 + $0x1d8] sm:$0xff]
  %v553 = vld [vmem:[%s3 + $0x1e0] sm:$0xff]
  %v554 = vld [vmem:[%s3 + $0x1e8] sm:$0xff]
  %v555 = vld [vmem:[%s3 + $0x1f0] sm:$0xff]
  %v556 = vld [vmem:[%s3 + $0x1f8] sm:$0xff]
  %v558 = vlaneseq
  %v559 = vshrl.u32 %v558, 7
  %v560 = vsub.s32 0, %v559
  %v561 = vrot.slane %v94, %v560
  %v562 = vlaneseq
  %v563 = vshrl.u32 %v562, 7
  %v564 = vsub.s32 1, %v563
  %v565 = vrot.slane %v94, %v564
  %v632 = vunpack.c.l.b16 %v493
  %v633 = vunpack.c.h.b16 %v493
  %v634 = vunpack.c.l.b16 %v494
  %v635 = vunpack.c.h.b16 %v494
  %v636 = vunpack.c.l.b16 %v495
  %v637 = vunpack.c.h.b16 %v495
  %v638 = vunpack.c.l.b16 %v496
  %v639 = vunpack.c.h.b16 %v496
  %v640 = vunpack.c.l.b16 %v497
  %v641 = vunpack.c.h.b16 %v497
  %v642 = vunpack.c.l.b16 %v498
  %v643 = vunpack.c.h.b16 %v498
  %v644 = vunpack.c.l.b16 %v499
  %v645 = vunpack.c.h.b16 %v499
  %v646 = vunpack.c.l.b16 %v500
  %v647 = vunpack.c.h.b16 %v500
  %v648 = vunpack.c.l.b16 %v501
  %v649 = vunpack.c.h.b16 %v501
  %v650 = vunpack.c.l.b16 %v502
  %v651 = vunpack.c.h.b16 %v502
  %v652 = vunpack.c.l.b16 %v503
  %v653 = vunpack.c.h.b16 %v503
  %v654 = vunpack.c.l.b16 %v504
  %v655 = vunpack.c.h.b16 %v504
  %v656 = vunpack.c.l.b16 %v505
  %v657 = vunpack.c.h.b16 %v505
  %v658 = vunpack.c.l.b16 %v506
  %v659 = vunpack.c.h.b16 %v506
  %v660 = vunpack.c.l.b16 %v507
  %v661 = vunpack.c.h.b16 %v507
  %v662 = vunpack.c.l.b16 %v508
  %v663 = vunpack.c.h.b16 %v508
  %v664 = vunpack.c.l.b16 %v509
  %v665 = vunpack.c.h.b16 %v509
  %v666 = vunpack.c.l.b16 %v510
  %v667 = vunpack.c.h.b16 %v510
  %v668 = vunpack.c.l.b16 %v511
  %v669 = vunpack.c.h.b16 %v511
  %v670 = vunpack.c.l.b16 %v512
  %v671 = vunpack.c.h.b16 %v512
  %v672 = vunpack.c.l.b16 %v513
  %v673 = vunpack.c.h.b16 %v513
  %v674 = vunpack.c.l.b16 %v514
  %v675 = vunpack.c.h.b16 %v514
  %v676 = vunpack.c.l.b16 %v515
  %v677 = vunpack.c.h.b16 %v515
  %v678 = vunpack.c.l.b16 %v516
  %v679 = vunpack.c.h.b16 %v516
  %v680 = vunpack.c.l.b16 %v517
  %v681 = vunpack.c.h.b16 %v517
  %v682 = vunpack.c.l.b16 %v518
  %v683 = vunpack.c.h.b16 %v518
  %v684 = vunpack.c.l.b16 %v519
  %v685 = vunpack.c.h.b16 %v519
  %v686 = vunpack.c.l.b16 %v520
  %v687 = vunpack.c.h.b16 %v520
  %v688 = vunpack.c.l.b16 %v521
  %v689 = vunpack.c.h.b16 %v521
  %v690 = vunpack.c.l.b16 %v522
  %v691 = vunpack.c.h.b16 %v522
  %v692 = vunpack.c.l.b16 %v523
  %v693 = vunpack.c.h.b16 %v523
  %v694 = vunpack.c.l.b16 %v524
  %v695 = vunpack.c.h.b16 %v524
  %v696 = vunpack.c.l.b16 %v525
  %v697 = vunpack.c.h.b16 %v525
  %v698 = vunpack.c.l.b16 %v526
  %v699 = vunpack.c.h.b16 %v526
  %v700 = vunpack.c.l.b16 %v527
  %v701 = vunpack.c.h.b16 %v527
  %v702 = vunpack.c.l.b16 %v528
  %v703 = vunpack.c.h.b16 %v528
  %v704 = vunpack.c.l.b16 %v529
  %v705 = vunpack.c.h.b16 %v529
  %v706 = vunpack.c.l.b16 %v530
  %v707 = vunpack.c.h.b16 %v530
  %v708 = vunpack.c.l.b16 %v531
  %v709 = vunpack.c.h.b16 %v531
  %v710 = vunpack.c.l.b16 %v532
  %v711 = vunpack.c.h.b16 %v532
  %v712 = vunpack.c.l.b16 %v533
  %v713 = vunpack.c.h.b16 %v533
  %v714 = vunpack.c.l.b16 %v534
  %v715 = vunpack.c.h.b16 %v534
  %v716 = vunpack.c.l.b16 %v535
  %v717 = vunpack.c.h.b16 %v535
  %v718 = vunpack.c.l.b16 %v536
  %v719 = vunpack.c.h.b16 %v536
  %v720 = vunpack.c.l.b16 %v537
  %v721 = vunpack.c.h.b16 %v537
  %v722 = vunpack.c.l.b16 %v538
  %v723 = vunpack.c.h.b16 %v538
  %v724 = vunpack.c.l.b16 %v539
  %v725 = vunpack.c.h.b16 %v539
  %v726 = vunpack.c.l.b16 %v540
  %v727 = vunpack.c.h.b16 %v540
  %v728 = vunpack.c.l.b16 %v541
  %v729 = vunpack.c.h.b16 %v541
  %v730 = vunpack.c.l.b16 %v542
  %v731 = vunpack.c.h.b16 %v542
  %v732 = vunpack.c.l.b16 %v543
  %v733 = vunpack.c.h.b16 %v543
  %v734 = vunpack.c.l.b16 %v544
  %v735 = vunpack.c.h.b16 %v544
  %v736 = vunpack.c.l.b16 %v545
  %v737 = vunpack.c.h.b16 %v545
  %v738 = vunpack.c.l.b16 %v546
  %v739 = vunpack.c.h.b16 %v546
  %v740 = vunpack.c.l.b16 %v547
  %v741 = vunpack.c.h.b16 %v547
  %v742 = vunpack.c.l.b16 %v548
  %v743 = vunpack.c.h.b16 %v548
  %v744 = vunpack.c.l.b16 %v549
  %v745 = vunpack.c.h.b16 %v549
  %v746 = vunpack.c.l.b16 %v550
  %v747 = vunpack.c.h.b16 %v550
  %v748 = vunpack.c.l.b16 %v551
  %v749 = vunpack.c.h.b16 %v551
  %v750 = vunpack.c.l.b16 %v552
  %v751 = vunpack.c.h.b16 %v552
  %v752 = vunpack.c.l.b16 %v553
  %v753 = vunpack.c.h.b16 %v553
  %v754 = vunpack.c.l.b16 %v554
  %v755 = vunpack.c.h.b16 %v554
  %v756 = vunpack.c.l.b16 %v555
  %v757 = vunpack.c.h.b16 %v555
  %v758 = vunpack.c.l.b16 %v556
  %v759 = vunpack.c.h.b16 %v556
  %v760 = vpack.c.b16 %v634, %v632
  %v761 = vpack.c.b16 %v635, %v633
  %v762 = vpack.c.b16 %v638, %v636
  %v763 = vpack.c.b16 %v639, %v637
  %v764 = vpack.c.b16 %v642, %v640
  %v765 = vpack.c.b16 %v643, %v641
  %v766 = vpack.c.b16 %v646, %v644
  %v767 = vpack.c.b16 %v647, %v645
  %v768 = vpack.c.b16 %v650, %v648
  %v769 = vpack.c.b16 %v651, %v649
  %v770 = vpack.c.b16 %v654, %v652
  %v771 = vpack.c.b16 %v655, %v653
  %v772 = vpack.c.b16 %v658, %v656
  %v773 = vpack.c.b16 %v659, %v657
  %v774 = vpack.c.b16 %v662, %v660
  %v775 = vpack.c.b16 %v663, %v661
  %v776 = vpack.c.b16 %v666, %v664
  %v777 = vpack.c.b16 %v667, %v665
  %v778 = vpack.c.b16 %v670, %v668
  %v779 = vpack.c.b16 %v671, %v669
  %v780 = vpack.c.b16 %v674, %v672
  %v781 = vpack.c.b16 %v675, %v673
  %v782 = vpack.c.b16 %v678, %v676
  %v783 = vpack.c.b16 %v679, %v677
  %v784 = vpack.c.b16 %v682, %v680
  %v785 = vpack.c.b16 %v683, %v681
  %v786 = vpack.c.b16 %v686, %v684
  %v787 = vpack.c.b16 %v687, %v685
  %v788 = vpack.c.b16 %v690, %v688
  %v789 = vpack.c.b16 %v691, %v689
  %v790 = vpack.c.b16 %v694, %v692
  %v791 = vpack.c.b16 %v695, %v693
  %v792 = vpack.c.b16 %v698, %v696
  %v793 = vpack.c.b16 %v699, %v697
  %v794 = vpack.c.b16 %v702, %v700
  %v795 = vpack.c.b16 %v703, %v701
  %v796 = vpack.c.b16 %v706, %v704
  %v797 = vpack.c.b16 %v707, %v705
  %v798 = vpack.c.b16 %v710, %v708
  %v799 = vpack.c.b16 %v711, %v709
  %v800 = vpack.c.b16 %v714, %v712
  %v801 = vpack.c.b16 %v715, %v713
  %v802 = vpack.c.b16 %v718, %v716
  %v803 = vpack.c.b16 %v719, %v717
  %v804 = vpack.c.b16 %v722, %v720
  %v805 = vpack.c.b16 %v723, %v721
  %v806 = vpack.c.b16 %v726, %v724
  %v807 = vpack.c.b16 %v727, %v725
  %v808 = vpack.c.b16 %v730, %v728
  %v809 = vpack.c.b16 %v731, %v729
  %v810 = vpack.c.b16 %v734, %v732
  %v811 = vpack.c.b16 %v735, %v733
  %v812 = vpack.c.b16 %v738, %v736
  %v813 = vpack.c.b16 %v739, %v737
  %v814 = vpack.c.b16 %v742, %v740
  %v815 = vpack.c.b16 %v743, %v741
  %v816 = vpack.c.b16 %v746, %v744
  %v817 = vpack.c.b16 %v747, %v745
  %v818 = vpack.c.b16 %v750, %v748
  %v819 = vpack.c.b16 %v751, %v749
  %v820 = vpack.c.b16 %v754, %v752
  %v821 = vpack.c.b16 %v755, %v753
  %v822 = vpack.c.b16 %v758, %v756
  %v823 = vpack.c.b16 %v759, %v757
  %888 = vmatprep.subr.bf16.mxu0 %v761
  %889 = vmatpush1.bf16.msra.mxu0 %v760
  %890 = vmatprep.subr.bf16.mxu0 %v763
  %891 = vmatpush1.bf16.msra.mxu0 %v762
  %892 = vmatprep.subr.bf16.mxu0 %v765
  %893 = vmatpush1.bf16.msra.mxu0 %v764
  %894 = vmatprep.subr.bf16.mxu0 %v767
  %895 = vmatpush1.bf16.msra.mxu0 %v766
  %896 = vmatprep.subr.bf16.mxu0 %v769
  %897 = vmatpush1.bf16.msra.mxu0 %v768
  %898 = vmatprep.subr.bf16.mxu0 %v771
  %899 = vmatpush1.bf16.msra.mxu0 %v770
  %900 = vmatprep.subr.bf16.mxu0 %v773
  %901 = vmatpush1.bf16.msra.mxu0 %v772
  %902 = vmatprep.subr.bf16.mxu0 %v775
  %903 = vmatpush1.bf16.msra.mxu0 %v774
  %904 = vmatprep.subr.bf16.mxu0 %v777
  %905 = vmatpush1.bf16.msra.mxu0 %v776
  %906 = vmatprep.subr.bf16.mxu0 %v779
  %907 = vmatpush1.bf16.msra.mxu0 %v778
  %908 = vmatprep.subr.bf16.mxu0 %v781
  %909 = vmatpush1.bf16.msra.mxu0 %v780
  %910 = vmatprep.subr.bf16.mxu0 %v783
  %911 = vmatpush1.bf16.msra.mxu0 %v782
  %912 = vmatprep.subr.bf16.mxu0 %v785
  %913 = vmatpush1.bf16.msra.mxu0 %v784
  %914 = vmatprep.subr.bf16.mxu0 %v787
  %915 = vmatpush1.bf16.msra.mxu0 %v786
  %916 = vmatprep.subr.bf16.mxu0 %v789
  %917 = vmatpush1.bf16.msra.mxu0 %v788
  %918 = vmatprep.subr.bf16.mxu0 %v791
  %919 = vmatpush1.bf16.msra.mxu0 %v790
  %920 = vmatprep.mubr.bf16.mxu0 %v490
  %921 = vmatmul.mubr.bf16.gmra.mrb[0].mxu0 %v489
  %v922 = vpop.f32.mrb[0].mxu0
  %v923 = vadd.f32 %v561, %v922
  %v924 = vpop.f32.mrb[0].mxu0
  %v925 = vadd.f32 %v565, %v924
  %v926 = vpop.f32.mrb[0].mxu0
  %v927 = vpop.f32.mrb[0].mxu0
  %928 = vdwg.mxu0
  %929 = vmatprep.subr.bf16.mxu0 %v793
  %930 = vmatpush1.bf16.msra.mxu0 %v792
  %931 = vmatprep.subr.bf16.mxu0 %v795
  %932 = vmatpush1.bf16.msra.mxu0 %v794
  %933 = vmatprep.subr.bf16.mxu0 %v797
  %934 = vmatpush1.bf16.msra.mxu0 %v796
  %935 = vmatprep.subr.bf16.mxu0 %v799
  %936 = vmatpush1.bf16.msra.mxu0 %v798
  %937 = vmatprep.subr.bf16.mxu0 %v801
  %938 = vmatpush1.bf16.msra.mxu0 %v800
  %939 = vmatprep.subr.bf16.mxu0 %v803
  %940 = vmatpush1.bf16.msra.mxu0 %v802
  %941 = vmatprep.subr.bf16.mxu0 %v805
  %942 = vmatpush1.bf16.msra.mxu0 %v804
  %943 = vmatprep.subr.bf16.mxu0 %v807
  %944 = vmatpush1.bf16.msra.mxu0 %v806
  %945 = vmatprep.subr.bf16.mxu0 %v809
  %946 = vmatpush1.bf16.msra.mxu0 %v808
  %947 = vmatprep.subr.bf16.mxu0 %v811
  %948 = vmatpush1.bf16.msra.mxu0 %v810
  %949 = vmatprep.subr.bf16.mxu0 %v813
  %950 = vmatpush1.bf16.msra.mxu0 %v812
  %951 = vmatprep.subr.bf16.mxu0 %v815
  %952 = vmatpush1.bf16.msra.mxu0 %v814
  %953 = vmatprep.subr.bf16.mxu0 %v817
  %954 = vmatpush1.bf16.msra.mxu0 %v816
  %955 = vmatprep.subr.bf16.mxu0 %v819
  %956 = vmatpush1.bf16.msra.mxu0 %v818
  %957 = vmatprep.subr.bf16.mxu0 %v821
  %958 = vmatpush1.bf16.msra.mxu0 %v820
  %959 = vmatprep.subr.bf16.mxu0 %v823
  %960 = vmatpush1.bf16.msra.mxu0 %v822
  %961 = vmatprep.mubr.bf16.mxu0 %v492
  %962 = vmatmul.mubr.bf16.gmra.mrb[0].mxu0 %v491
  %v963 = vpop.f32.mrb[0].mxu0
  %v964 = vadd.f32 %v923, %v963
  %v965 = vpop.f32.mrb[0].mxu0
  %v966 = vadd.f32 %v925, %v965
  %v967 = vpop.f32.mrb[0].mxu0
  %v968 = vpop.f32.mrb[0].mxu0
  %969 = vdwg.mxu0
  %v970 = vmax.f32 %v964, 0.0
  %v971 = vmax.f32 %v966, 0.0
  %v972 = vpack.c.bf16 %v970, %v970
  %v973 = vpack.c.bf16 %v971, %v971
  %v974 = vld [vmem:[%s4] sm:$0xf]
  %v975 = vld [vmem:[%s4 + $0x4] sm:$0xf]
  %v976 = vld [vmem:[%s4 + $0x8] sm:$0xf]
  %v977 = vld [vmem:[%s4 + $0xc] sm:$0xf]
  %v978 = vld [vmem:[%s4 + $0x10] sm:$0xf]
  %v979 = vld [vmem:[%s4 + $0x14] sm:$0xf]
  %v980 = vld [vmem:[%s4 + $0x18] sm:$0xf]
  %v981 = vld [vmem:[%s4 + $0x1c] sm:$0xf]
  %v982 = vld [vmem:[%s4 + $0x20] sm:$0xf]
  %v983 = vld [vmem:[%s4 + $0x24] sm:$0xf]
  %v984 = vld [vmem:[%s4 + $0x28] sm:$0xf]
  %v985 = vld [vmem:[%s4 + $0x2c] sm:$0xf]
  %v986 = vld [vmem:[%s4 + $0x30] sm:$0xf]
  %v987 = vld [vmem:[%s4 + $0x34] sm:$0xf]
  %v988 = vld [vmem:[%s4 + $0x38] sm:$0xf]
  %v989 = vld [vmem:[%s4 + $0x3c] sm:$0xf]
  %v990 = vld [vmem:[%s4 + $0x40] sm:$0xf]
  %v991 = vld [vmem:[%s4 + $0x44] sm:$0xf]
  %v992 = vld [vmem:[%s4 + $0x48] sm:$0xf]
  %v993 = vld [vmem:[%s4 + $0x4c] sm:$0xf]
  %v994 = vld [vmem:[%s4 + $0x50] sm:$0xf]
  %v995 = vld [vmem:[%s4 + $0x54] sm:$0xf]
  %v996 = vld [vmem:[%s4 + $0x58] sm:$0xf]
  %v997 = vld [vmem:[%s4 + $0x5c] sm:$0xf]
  %v998 = vld [vmem:[%s4 + $0x60] sm:$0xf]
  %v999 = vld [vmem:[%s4 + $0x64] sm:$0xf]
  %v1000 = vld [vmem:[%s4 + $0x68] sm:$0xf]
  %v1001 = vld [vmem:[%s4 + $0x6c] sm:$0xf]
  %v1002 = vld [vmem:[%s4 + $0x70] sm:$0xf]
  %v1003 = vld [vmem:[%s4 + $0x74] sm:$0xf]
  %v1004 = vld [vmem:[%s4 + $0x78] sm:$0xf]
  %v1005 = vld [vmem:[%s4 + $0x7c] sm:$0xf]
  %v1038 = vunpack.c.l.b16 %v974
  %v1039 = vunpack.c.l.b16 %v975
  %v1040 = vunpack.c.l.b16 %v976
  %v1041 = vunpack.c.l.b16 %v977
  %v1042 = vunpack.c.l.b16 %v978
  %v1043 = vunpack.c.l.b16 %v979
  %v1044 = vunpack.c.l.b16 %v980
  %v1045 = vunpack.c.l.b16 %v981
  %v1046 = vunpack.c.l.b16 %v982
  %v1047 = vunpack.c.l.b16 %v983
  %v1048 = vunpack.c.l.b16 %v984
  %v1049 = vunpack.c.l.b16 %v985
  %v1050 = vunpack.c.l.b16 %v986
  %v1051 = vunpack.c.l.b16 %v987
  %v1052 = vunpack.c.l.b16 %v988
  %v1053 = vunpack.c.l.b16 %v989
  %v1054 = vunpack.c.l.b16 %v990
  %v1055 = vunpack.c.l.b16 %v991
  %v1056 = vunpack.c.l.b16 %v992
  %v1057 = vunpack.c.l.b16 %v993
  %v1058 = vunpack.c.l.b16 %v994
  %v1059 = vunpack.c.l.b16 %v995
  %v1060 = vunpack.c.l.b16 %v996
  %v1061 = vunpack.c.l.b16 %v997
  %v1062 = vunpack.c.l.b16 %v998
  %v1063 = vunpack.c.l.b16 %v999
  %v1064 = vunpack.c.l.b16 %v1000
  %v1065 = vunpack.c.l.b16 %v1001
  %v1066 = vunpack.c.l.b16 %v1002
  %v1067 = vunpack.c.l.b16 %v1003
  %v1068 = vunpack.c.l.b16 %v1004
  %v1069 = vunpack.c.l.b16 %v1005
  %v1070 = vpack.c.b16 %v1039, %v1038
  %v1071 = vpack.c.b16 %v1041, %v1040
  %v1072 = vpack.c.b16 %v1043, %v1042
  %v1073 = vpack.c.b16 %v1045, %v1044
  %v1074 = vpack.c.b16 %v1047, %v1046
  %v1075 = vpack.c.b16 %v1049, %v1048
  %v1076 = vpack.c.b16 %v1051, %v1050
  %v1077 = vpack.c.b16 %v1053, %v1052
  %v1078 = vpack.c.b16 %v1055, %v1054
  %v1079 = vpack.c.b16 %v1057, %v1056
  %v1080 = vpack.c.b16 %v1059, %v1058
  %v1081 = vpack.c.b16 %v1061, %v1060
  %v1082 = vpack.c.b16 %v1063, %v1062
  %v1083 = vpack.c.b16 %v1065, %v1064
  %v1084 = vpack.c.b16 %v1067, %v1066
  %v1085 = vpack.c.b16 %v1069, %v1068
  %1102 = vmatprep.subr.bf16.mxu0 0
  %1103 = vmatpush1.bf16.msra.mxu0 %v1070
  %1104 = vmatprep.subr.bf16.mxu0 0
  %1105 = vmatpush1.bf16.msra.mxu0 %v1071
  %1106 = vmatprep.subr.bf16.mxu0 0
  %1107 = vmatpush1.bf16.msra.mxu0 %v1072
  %1108 = vmatprep.subr.bf16.mxu0 0
  %1109 = vmatpush1.bf16.msra.mxu0 %v1073
  %1110 = vmatprep.subr.bf16.mxu0 0
  %1111 = vmatpush1.bf16.msra.mxu0 %v1074
  %1112 = vmatprep.subr.bf16.mxu0 0
  %1113 = vmatpush1.bf16.msra.mxu0 %v1075
  %1114 = vmatprep.subr.bf16.mxu0 0
  %1115 = vmatpush1.bf16.msra.mxu0 %v1076
  %1116 = vmatprep.subr.bf16.mxu0 0
  %1117 = vmatpush1.bf16.msra.mxu0 %v1077
  %1118 = vmatprep.subr.bf16.mxu0 0
  %1119 = vmatpush1.bf16.msra.mxu0 %v1078
  %1120 = vmatprep.subr.bf16.mxu0 0
  %1121 = vmatpush1.bf16.msra.mxu0 %v1079
  %1122 = vmatprep.subr.bf16.mxu0 0
  %1123 = vmatpush1.bf16.msra.mxu0 %v1080
  %1124 = vmatprep.subr.bf16.mxu0 0
  %1125 = vmatpush1.bf16.msra.mxu0 %v1081
  %1126 = vmatprep.subr.bf16.mxu0 0
  %1127 = vmatpush1.bf16.msra.mxu0 %v1082
  %1128 = vmatprep.subr.bf16.mxu0 0
  %1129 = vmatpush1.bf16.msra.mxu0 %v1083
  %1130 = vmatprep.subr.bf16.mxu0 0
  %1131 = vmatpush1.bf16.msra.mxu0 %v1084
  %1132 = vmatprep.subr.bf16.mxu0 0
  %1133 = vmatpush1.bf16.msra.mxu0 %v1085
  %1134 = vmatprep.mubr.bf16.mxu0 %v973
  %1135 = vmatmul.mubr.bf16.gmra.mrb[0].mxu0 %v972
  %v1136 = vpop.f32.mrb[0].mxu0
  %v1137 = vadd.f32 0.0, %v1136
  %v1138 = vpop.f32.mrb[0].mxu0
  %v1139 = vpop.f32.mrb[0].mxu0
  %v1140 = vpop.f32.mrb[0].mxu0
  %1141 = vdwg.mxu0
  %vm1142 = vcmask 7168
  %1143 = vst.msk [vmem:[%s8] sm:$0xff] %vm1142, %v1137
  %v1144 = vld [vmem:[%s6] sm:$0xf]
  %v1145 = vld [vmem:[%s6 + $0x4] sm:$0xf]
  %v1146 = vld [vmem:[%s6 + $0x8] sm:$0xf]
  %v1147 = vld [vmem:[%s6 + $0xc] sm:$0xf]
  %v1148 = vld [vmem:[%s6 + $0x10] sm:$0xf]
  %v1149 = vld [vmem:[%s6 + $0x14] sm:$0xf]
  %v1150 = vld [vmem:[%s6 + $0x18] sm:$0xf]
  %v1151 = vld [vmem:[%s6 + $0x1c] sm:$0xf]
  %v1152 = vld [vmem:[%s6 + $0x20] sm:$0xf]
  %v1153 = vld [vmem:[%s6 + $0x24] sm:$0xf]
  %v1154 = vld [vmem:[%s6 + $0x28] sm:$0xf]
  %v1155 = vld [vmem:[%s6 + $0x2c] sm:$0xf]
  %v1156 = vld [vmem:[%s6 + $0x30] sm:$0xf]
  %v1157 = vld [vmem:[%s6 + $0x34] sm:$0xf]
  %v1158 = vld [vmem:[%s6 + $0x38] sm:$0xf]
  %v1159 = vld [vmem:[%s6 + $0x3c] sm:$0xf]
  %v1160 = vld [vmem:[%s6 + $0x40] sm:$0xf]
  %v1161 = vld [vmem:[%s6 + $0x44] sm:$0xf]
  %v1162 = vld [vmem:[%s6 + $0x48] sm:$0xf]
  %v1163 = vld [vmem:[%s6 + $0x4c] sm:$0xf]
  %v1164 = vld [vmem:[%s6 + $0x50] sm:$0xf]
  %v1165 = vld [vmem:[%s6 + $0x54] sm:$0xf]
  %v1166 = vld [vmem:[%s6 + $0x58] sm:$0xf]
  %v1167 = vld [vmem:[%s6 + $0x5c] sm:$0xf]
  %v1168 = vld [vmem:[%s6 + $0x60] sm:$0xf]
  %v1169 = vld [vmem:[%s6 + $0x64] sm:$0xf]
  %v1170 = vld [vmem:[%s6 + $0x68] sm:$0xf]
  %v1171 = vld [vmem:[%s6 + $0x6c] sm:$0xf]
  %v1172 = vld [vmem:[%s6 + $0x70] sm:$0xf]
  %v1173 = vld [vmem:[%s6 + $0x74] sm:$0xf]
  %v1174 = vld [vmem:[%s6 + $0x78] sm:$0xf]
  %v1175 = vld [vmem:[%s6 + $0x7c] sm:$0xf]
  %v1176 = vld [vmem:[%s6 + $0x80] sm:$0xf]
  %v1177 = vld [vmem:[%s6 + $0x84] sm:$0xf]
  %v1178 = vld [vmem:[%s6 + $0x88] sm:$0xf]
  %v1179 = vld [vmem:[%s6 + $0x8c] sm:$0xf]
  %v1180 = vld [vmem:[%s6 + $0x90] sm:$0xf]
  %v1181 = vld [vmem:[%s6 + $0x94] sm:$0xf]
  %v1182 = vld [vmem:[%s6 + $0x98] sm:$0xf]
  %v1183 = vld [vmem:[%s6 + $0x9c] sm:$0xf]
  %v1184 = vld [vmem:[%s6 + $0xa0] sm:$0xf]
  %v1185 = vld [vmem:[%s6 + $0xa4] sm:$0xf]
  %v1186 = vld [vmem:[%s6 + $0xa8] sm:$0xf]
  %v1187 = vld [vmem:[%s6 + $0xac] sm:$0xf]
  %v1188 = vld [vmem:[%s6 + $0xb0] sm:$0xf]
  %v1189 = vld [vmem:[%s6 + $0xb4] sm:$0xf]
  %v1190 = vld [vmem:[%s6 + $0xb8] sm:$0xf]
  %v1191 = vld [vmem:[%s6 + $0xbc] sm:$0xf]
  %v1192 = vld [vmem:[%s6 + $0xc0] sm:$0xf]
  %v1193 = vld [vmem:[%s6 + $0xc4] sm:$0xf]
  %v1194 = vld [vmem:[%s6 + $0xc8] sm:$0xf]
  %v1195 = vld [vmem:[%s6 + $0xcc] sm:$0xf]
  %v1196 = vld [vmem:[%s6 + $0xd0] sm:$0xf]
  %v1197 = vld [vmem:[%s6 + $0xd4] sm:$0xf]
  %v1198 = vld [vmem:[%s6 + $0xd8] sm:$0xf]
  %v1199 = vld [vmem:[%s6 + $0xdc] sm:$0xf]
  %v1200 = vld [vmem:[%s6 + $0xe0] sm:$0xf]
  %v1201 = vld [vmem:[%s6 + $0xe4] sm:$0xf]
  %v1202 = vld [vmem:[%s6 + $0xe8] sm:$0xf]
  %v1203 = vld [vmem:[%s6 + $0xec] sm:$0xf]
  %v1204 = vld [vmem:[%s6 + $0xf0] sm:$0xf]
  %v1205 = vld [vmem:[%s6 + $0xf4] sm:$0xf]
  %v1206 = vld [vmem:[%s6 + $0xf8] sm:$0xf]
  %v1207 = vld [vmem:[%s6 + $0xfc] sm:$0xf]
  %v1272 = vunpack.c.l.b16 %v1144
  %v1273 = vunpack.c.l.b16 %v1145
  %v1274 = vunpack.c.l.b16 %v1146
  %v1275 = vunpack.c.l.b16 %v1147
  %v1276 = vunpack.c.l.b16 %v1148
  %v1277 = vunpack.c.l.b16 %v1149
  %v1278 = vunpack.c.l.b16 %v1150
  %v1279 = vunpack.c.l.b16 %v1151
  %v1280 = vunpack.c.l.b16 %v1152
  %v1281 = vunpack.c.l.b16 %v1153
  %v1282 = vunpack.c.l.b16 %v1154
  %v1283 = vunpack.c.l.b16 %v1155
  %v1284 = vunpack.c.l.b16 %v1156
  %v1285 = vunpack.c.l.b16 %v1157
  %v1286 = vunpack.c.l.b16 %v1158
  %v1287 = vunpack.c.l.b16 %v1159
  %v1288 = vunpack.c.l.b16 %v1160
  %v1289 = vunpack.c.l.b16 %v1161
  %v1290 = vunpack.c.l.b16 %v1162
  %v1291 = vunpack.c.l.b16 %v1163
  %v1292 = vunpack.c.l.b16 %v1164
  %v1293 = vunpack.c.l.b16 %v1165
  %v1294 = vunpack.c.l.b16 %v1166
  %v1295 = vunpack.c.l.b16 %v1167
  %v1296 = vunpack.c.l.b16 %v1168
  %v1297 = vunpack.c.l.b16 %v1169
  %v1298 = vunpack.c.l.b16 %v1170
  %v1299 = vunpack.c.l.b16 %v1171
  %v1300 = vunpack.c.l.b16 %v1172
  %v1301 = vunpack.c.l.b16 %v1173
  %v1302 = vunpack.c.l.b16 %v1174
  %v1303 = vunpack.c.l.b16 %v1175
  %v1304 = vunpack.c.l.b16 %v1176
  %v1305 = vunpack.c.l.b16 %v1177
  %v1306 = vunpack.c.l.b16 %v1178
  %v1307 = vunpack.c.l.b16 %v1179
  %v1308 = vunpack.c.l.b16 %v1180
  %v1309 = vunpack.c.l.b16 %v1181
  %v1310 = vunpack.c.l.b16 %v1182
  %v1311 = vunpack.c.l.b16 %v1183
  %v1312 = vunpack.c.l.b16 %v1184
  %v1313 = vunpack.c.l.b16 %v1185
  %v1314 = vunpack.c.l.b16 %v1186
  %v1315 = vunpack.c.l.b16 %v1187
  %v1316 = vunpack.c.l.b16 %v1188
  %v1317 = vunpack.c.l.b16 %v1189
  %v1318 = vunpack.c.l.b16 %v1190
  %v1319 = vunpack.c.l.b16 %v1191
  %v1320 = vunpack.c.l.b16 %v1192
  %v1321 = vunpack.c.l.b16 %v1193
  %v1322 = vunpack.c.l.b16 %v1194
  %v1323 = vunpack.c.l.b16 %v1195
  %v1324 = vunpack.c.l.b16 %v1196
  %v1325 = vunpack.c.l.b16 %v1197
  %v1326 = vunpack.c.l.b16 %v1198
  %v1327 = vunpack.c.l.b16 %v1199
  %v1328 = vunpack.c.l.b16 %v1200
  %v1329 = vunpack.c.l.b16 %v1201
  %v1330 = vunpack.c.l.b16 %v1202
  %v1331 = vunpack.c.l.b16 %v1203
  %v1332 = vunpack.c.l.b16 %v1204
  %v1333 = vunpack.c.l.b16 %v1205
  %v1334 = vunpack.c.l.b16 %v1206
  %v1335 = vunpack.c.l.b16 %v1207
  %v1336 = vpack.c.b16 %v1273, %v1272
  %v1337 = vpack.c.b16 %v1275, %v1274
  %v1338 = vpack.c.b16 %v1277, %v1276
  %v1339 = vpack.c.b16 %v1279, %v1278
  %v1340 = vpack.c.b16 %v1281, %v1280
  %v1341 = vpack.c.b16 %v1283, %v1282
  %v1342 = vpack.c.b16 %v1285, %v1284
  %v1343 = vpack.c.b16 %v1287, %v1286
  %v1344 = vpack.c.b16 %v1289, %v1288
  %v1345 = vpack.c.b16 %v1291, %v1290
  %v1346 = vpack.c.b16 %v1293, %v1292
  %v1347 = vpack.c.b16 %v1295, %v1294
  %v1348 = vpack.c.b16 %v1297, %v1296
  %v1349 = vpack.c.b16 %v1299, %v1298
  %v1350 = vpack.c.b16 %v1301, %v1300
  %v1351 = vpack.c.b16 %v1303, %v1302
  %v1352 = vpack.c.b16 %v1305, %v1304
  %v1353 = vpack.c.b16 %v1307, %v1306
  %v1354 = vpack.c.b16 %v1309, %v1308
  %v1355 = vpack.c.b16 %v1311, %v1310
  %v1356 = vpack.c.b16 %v1313, %v1312
  %v1357 = vpack.c.b16 %v1315, %v1314
  %v1358 = vpack.c.b16 %v1317, %v1316
  %v1359 = vpack.c.b16 %v1319, %v1318
  %v1360 = vpack.c.b16 %v1321, %v1320
  %v1361 = vpack.c.b16 %v1323, %v1322
  %v1362 = vpack.c.b16 %v1325, %v1324
  %v1363 = vpack.c.b16 %v1327, %v1326
  %v1364 = vpack.c.b16 %v1329, %v1328
  %v1365 = vpack.c.b16 %v1331, %v1330
  %v1366 = vpack.c.b16 %v1333, %v1332
  %v1367 = vpack.c.b16 %v1335, %v1334
  %1400 = vmatprep.subr.bf16.mxu0 0
  %1401 = vmatpush1.bf16.msra.mxu0 %v1336
  %1402 = vmatprep.subr.bf16.mxu0 0
  %1403 = vmatpush1.bf16.msra.mxu0 %v1337
  %1404 = vmatprep.subr.bf16.mxu0 0
  %1405 = vmatpush1.bf16.msra.mxu0 %v1338
  %1406 = vmatprep.subr.bf16.mxu0 0
  %1407 = vmatpush1.bf16.msra.mxu0 %v1339
  %1408 = vmatprep.subr.bf16.mxu0 0
  %1409 = vmatpush1.bf16.msra.mxu0 %v1340
  %1410 = vmatprep.subr.bf16.mxu0 0
  %1411 = vmatpush1.bf16.msra.mxu0 %v1341
  %1412 = vmatprep.subr.bf16.mxu0 0
  %1413 = vmatpush1.bf16.msra.mxu0 %v1342
  %1414 = vmatprep.subr.bf16.mxu0 0
  %1415 = vmatpush1.bf16.msra.mxu0 %v1343
  %1416 = vmatprep.subr.bf16.mxu0 0
  %1417 = vmatpush1.bf16.msra.mxu0 %v1344
  %1418 = vmatprep.subr.bf16.mxu0 0
  %1419 = vmatpush1.bf16.msra.mxu0 %v1345
  %1420 = vmatprep.subr.bf16.mxu0 0
  %1421 = vmatpush1.bf16.msra.mxu0 %v1346
  %1422 = vmatprep.subr.bf16.mxu0 0
  %1423 = vmatpush1.bf16.msra.mxu0 %v1347
  %1424 = vmatprep.subr.bf16.mxu0 0
  %1425 = vmatpush1.bf16.msra.mxu0 %v1348
  %1426 = vmatprep.subr.bf16.mxu0 0
  %1427 = vmatpush1.bf16.msra.mxu0 %v1349
  %1428 = vmatprep.subr.bf16.mxu0 0
  %1429 = vmatpush1.bf16.msra.mxu0 %v1350
  %1430 = vmatprep.subr.bf16.mxu0 0
  %1431 = vmatpush1.bf16.msra.mxu0 %v1351
  %1432 = vmatprep.mubr.bf16.mxu0 %v284
  %1433 = vmatmul.mubr.bf16.gmra.mrb[0].mxu0 %v283
  %v1434 = vpop.f32.mrb[0].mxu0
  %v1435 = vadd.f32 0.0, %v1434
  %v1436 = vpop.f32.mrb[0].mxu0
  %v1437 = vpop.f32.mrb[0].mxu0
  %v1438 = vadd.f32 0.0, %v1437
  %v1439 = vpop.f32.mrb[0].mxu0
  %1440 = vmatprep.mubr.bf16.mxu0 %v288
  %1441 = vmatmul.mubr.bf16.gmra.mrb[0].mxu0 %v287
  %v1442 = vpop.f32.mrb[0].mxu0
  %v1443 = vadd.f32 0.0, %v1442
  %v1444 = vpop.f32.mrb[0].mxu0
  %v1445 = vpop.f32.mrb[0].mxu0
  %v1446 = vadd.f32 0.0, %v1445
  %v1447 = vpop.f32.mrb[0].mxu0
  %1448 = vmatprep.mubr.bf16.mxu0 %v292
  %1449 = vmatmul.mubr.bf16.gmra.mrb[0].mxu0 %v291
  %v1450 = vpop.f32.mrb[0].mxu0
  %v1451 = vadd.f32 0.0, %v1450
  %v1452 = vpop.f32.mrb[0].mxu0
  %v1453 = vpop.f32.mrb[0].mxu0
  %v1454 = vadd.f32 0.0, %v1453
  %v1455 = vpop.f32.mrb[0].mxu0
  %1456 = vmatprep.mubr.bf16.mxu0 %v296
  %1457 = vmatmul.mubr.bf16.gmra.mrb[0].mxu0 %v295
  %v1458 = vpop.f32.mrb[0].mxu0
  %v1459 = vadd.f32 0.0, %v1458
  %v1460 = vpop.f32.mrb[0].mxu0
  %v1461 = vpop.f32.mrb[0].mxu0
  %v1462 = vadd.f32 0.0, %v1461
  %v1463 = vpop.f32.mrb[0].mxu0
  %1464 = vmatprep.mubr.bf16.mxu0 %v300
  %1465 = vmatmul.mubr.bf16.gmra.mrb[0].mxu0 %v299
  %v1466 = vpop.f32.mrb[0].mxu0
  %v1467 = vadd.f32 0.0, %v1466
  %v1468 = vpop.f32.mrb[0].mxu0
  %v1469 = vpop.f32.mrb[0].mxu0
  %v1470 = vadd.f32 0.0, %v1469
  %v1471 = vpop.f32.mrb[0].mxu0
  %1472 = vmatprep.mubr.bf16.mxu0 %v304
  %1473 = vmatmul.mubr.bf16.gmra.mrb[0].mxu0 %v303
  %v1474 = vpop.f32.mrb[0].mxu0
  %v1475 = vadd.f32 0.0, %v1474
  %v1476 = vpop.f32.mrb[0].mxu0
  %v1477 = vpop.f32.mrb[0].mxu0
  %v1478 = vadd.f32 0.0, %v1477
  %v1479 = vpop.f32.mrb[0].mxu0
  %1480 = vmatprep.mubr.bf16.mxu0 %v308
  %1481 = vmatmul.mubr.bf16.gmra.mrb[0].mxu0 %v307
  %v1482 = vpop.f32.mrb[0].mxu0
  %v1483 = vadd.f32 0.0, %v1482
  %v1484 = vpop.f32.mrb[0].mxu0
  %v1485 = vpop.f32.mrb[0].mxu0
  %v1486 = vadd.f32 0.0, %v1485
  %v1487 = vpop.f32.mrb[0].mxu0
  %1488 = vmatprep.mubr.bf16.mxu0 %v312
  %1489 = vmatmul.mubr.bf16.gmra.mrb[0].mxu0 %v311
  %v1490 = vpop.f32.mrb[0].mxu0
  %v1491 = vadd.f32 0.0, %v1490
  %v1492 = vpop.f32.mrb[0].mxu0
  %v1493 = vpop.f32.mrb[0].mxu0
  %v1494 = vadd.f32 0.0, %v1493
  %v1495 = vpop.f32.mrb[0].mxu0
  %1496 = vmatprep.mubr.bf16.mxu0 %v316
  %1497 = vmatmul.mubr.bf16.gmra.mrb[0].mxu0 %v315
  %v1498 = vpop.f32.mrb[0].mxu0
  %v1499 = vadd.f32 0.0, %v1498
  %v1500 = vpop.f32.mrb[0].mxu0
  %v1501 = vpop.f32.mrb[0].mxu0
  %v1502 = vadd.f32 0.0, %v1501
  %v1503 = vpop.f32.mrb[0].mxu0
  %1504 = vmatprep.mubr.bf16.mxu0 %v320
  %1505 = vmatmul.mubr.bf16.gmra.mrb[0].mxu0 %v319
  %v1506 = vpop.f32.mrb[0].mxu0
  %v1507 = vadd.f32 0.0, %v1506
  %v1508 = vpop.f32.mrb[0].mxu0
  %v1509 = vpop.f32.mrb[0].mxu0
  %v1510 = vadd.f32 0.0, %v1509
  %v1511 = vpop.f32.mrb[0].mxu0
  %1512 = vmatprep.mubr.bf16.mxu0 %v324
  %1513 = vmatmul.mubr.bf16.gmra.mrb[0].mxu0 %v323
  %v1514 = vpop.f32.mrb[0].mxu0
  %v1515 = vadd.f32 0.0, %v1514
  %v1516 = vpop.f32.mrb[0].mxu0
  %v1517 = vpop.f32.mrb[0].mxu0
  %v1518 = vadd.f32 0.0, %v1517
  %v1519 = vpop.f32.mrb[0].mxu0
  %1520 = vmatprep.mubr.bf16.mxu0 %v328
  %1521 = vmatmul.mubr.bf16.gmra.mrb[0].mxu0 %v327
  %v1522 = vpop.f32.mrb[0].mxu0
  %v1523 = vadd.f32 0.0, %v1522
  %v1524 = vpop.f32.mrb[0].mxu0
  %v1525 = vpop.f32.mrb[0].mxu0
  %v1526 = vadd.f32 0.0, %v1525
  %v1527 = vpop.f32.mrb[0].mxu0
  %1528 = vmatprep.mubr.bf16.mxu0 %v332
  %1529 = vmatmul.mubr.bf16.gmra.mrb[0].mxu0 %v331
  %v1530 = vpop.f32.mrb[0].mxu0
  %v1531 = vadd.f32 0.0, %v1530
  %v1532 = vpop.f32.mrb[0].mxu0
  %v1533 = vpop.f32.mrb[0].mxu0
  %v1534 = vadd.f32 0.0, %v1533
  %v1535 = vpop.f32.mrb[0].mxu0
  %1536 = vmatprep.mubr.bf16.mxu0 %v336
  %1537 = vmatmul.mubr.bf16.gmra.mrb[0].mxu0 %v335
  %v1538 = vpop.f32.mrb[0].mxu0
  %v1539 = vadd.f32 0.0, %v1538
  %v1540 = vpop.f32.mrb[0].mxu0
  %v1541 = vpop.f32.mrb[0].mxu0
  %v1542 = vadd.f32 0.0, %v1541
  %v1543 = vpop.f32.mrb[0].mxu0
  %1544 = vmatprep.mubr.bf16.mxu0 %v340
  %1545 = vmatmul.mubr.bf16.gmra.mrb[0].mxu0 %v339
  %v1546 = vpop.f32.mrb[0].mxu0
  %v1547 = vadd.f32 0.0, %v1546
  %v1548 = vpop.f32.mrb[0].mxu0
  %v1549 = vpop.f32.mrb[0].mxu0
  %v1550 = vadd.f32 0.0, %v1549
  %v1551 = vpop.f32.mrb[0].mxu0
  %1552 = vdwg.mxu0
  %1553 = vmatprep.subr.bf16.mxu0 0
  %1554 = vmatpush1.bf16.msra.mxu0 %v1352
  %1555 = vmatprep.subr.bf16.mxu0 0
  %1556 = vmatpush1.bf16.msra.mxu0 %v1353
  %1557 = vmatprep.subr.bf16.mxu0 0
  %1558 = vmatpush1.bf16.msra.mxu0 %v1354
  %1559 = vmatprep.subr.bf16.mxu0 0
  %1560 = vmatpush1.bf16.msra.mxu0 %v1355
  %1561 = vmatprep.subr.bf16.mxu0 0
  %1562 = vmatpush1.bf16.msra.mxu0 %v1356
  %1563 = vmatprep.subr.bf16.mxu0 0
  %1564 = vmatpush1.bf16.msra.mxu0 %v1357
  %1565 = vmatprep.subr.bf16.mxu0 0
  %1566 = vmatpush1.bf16.msra.mxu0 %v1358
  %1567 = vmatprep.subr.bf16.mxu0 0
  %1568 = vmatpush1.bf16.msra.mxu0 %v1359
  %1569 = vmatprep.subr.bf16.mxu0 0
  %1570 = vmatpush1.bf16.msra.mxu0 %v1360
  %1571 = vmatprep.subr.bf16.mxu0 0
  %1572 = vmatpush1.bf16.msra.mxu0 %v1361
  %1573 = vmatprep.subr.bf16.mxu0 0
  %1574 = vmatpush1.bf16.msra.mxu0 %v1362
  %1575 = vmatprep.subr.bf16.mxu0 0
  %1576 = vmatpush1.bf16.msra.mxu0 %v1363
  %1577 = vmatprep.subr.bf16.mxu0 0
  %1578 = vmatpush1.bf16.msra.mxu0 %v1364
  %1579 = vmatprep.subr.bf16.mxu0 0
  %1580 = vmatpush1.bf16.msra.mxu0 %v1365
  %1581 = vmatprep.subr.bf16.mxu0 0
  %1582 = vmatpush1.bf16.msra.mxu0 %v1366
  %1583 = vmatprep.subr.bf16.mxu0 0
  %1584 = vmatpush1.bf16.msra.mxu0 %v1367
  %1585 = vmatprep.mubr.bf16.mxu0 %v286
  %1586 = vmatmul.mubr.bf16.gmra.mrb[0].mxu0 %v285
  %v1587 = vpop.f32.mrb[0].mxu0
  %v1588 = vadd.f32 %v1435, %v1587
  %v1589 = vpop.f32.mrb[0].mxu0
  %v1590 = vpop.f32.mrb[0].mxu0
  %v1591 = vadd.f32 %v1438, %v1590
  %v1592 = vpop.f32.mrb[0].mxu0
  %1593 = vmatprep.mubr.bf16.mxu0 %v290
  %1594 = vmatmul.mubr.bf16.gmra.mrb[0].mxu0 %v289
  %v1595 = vpop.f32.mrb[0].mxu0
  %v1596 = vadd.f32 %v1443, %v1595
  %v1597 = vpop.f32.mrb[0].mxu0
  %v1598 = vpop.f32.mrb[0].mxu0
  %v1599 = vadd.f32 %v1446, %v1598
  %v1600 = vpop.f32.mrb[0].mxu0
  %1601 = vmatprep.mubr.bf16.mxu0 %v294
  %1602 = vmatmul.mubr.bf16.gmra.mrb[0].mxu0 %v293
  %v1603 = vpop.f32.mrb[0].mxu0
  %v1604 = vadd.f32 %v1451, %v1603
  %v1605 = vpop.f32.mrb[0].mxu0
  %v1606 = vpop.f32.mrb[0].mxu0
  %v1607 = vadd.f32 %v1454, %v1606
  %v1608 = vpop.f32.mrb[0].mxu0
  %1609 = vmatprep.mubr.bf16.mxu0 %v298
  %1610 = vmatmul.mubr.bf16.gmra.mrb[0].mxu0 %v297
  %v1611 = vpop.f32.mrb[0].mxu0
  %v1612 = vadd.f32 %v1459, %v1611
  %v1613 = vpop.f32.mrb[0].mxu0
  %v1614 = vpop.f32.mrb[0].mxu0
  %v1615 = vadd.f32 %v1462, %v1614
  %v1616 = vpop.f32.mrb[0].mxu0
  %1617 = vmatprep.mubr.bf16.mxu0 %v302
  %1618 = vmatmul.mubr.bf16.gmra.mrb[0].mxu0 %v301
  %v1619 = vpop.f32.mrb[0].mxu0
  %v1620 = vadd.f32 %v1467, %v1619
  %v1621 = vpop.f32.mrb[0].mxu0
  %v1622 = vpop.f32.mrb[0].mxu0
  %v1623 = vadd.f32 %v1470, %v1622
  %v1624 = vpop.f32.mrb[0].mxu0
  %1625 = vmatprep.mubr.bf16.mxu0 %v306
  %1626 = vmatmul.mubr.bf16.gmra.mrb[0].mxu0 %v305
  %v1627 = vpop.f32.mrb[0].mxu0
  %v1628 = vadd.f32 %v1475, %v1627
  %v1629 = vpop.f32.mrb[0].mxu0
  %v1630 = vpop.f32.mrb[0].mxu0
  %v1631 = vadd.f32 %v1478, %v1630
  %v1632 = vpop.f32.mrb[0].mxu0
  %1633 = vmatprep.mubr.bf16.mxu0 %v310
  %1634 = vmatmul.mubr.bf16.gmra.mrb[0].mxu0 %v309
  %v1635 = vpop.f32.mrb[0].mxu0
  %v1636 = vadd.f32 %v1483, %v1635
  %v1637 = vpop.f32.mrb[0].mxu0
  %v1638 = vpop.f32.mrb[0].mxu0
  %v1639 = vadd.f32 %v1486, %v1638
  %v1640 = vpop.f32.mrb[0].mxu0
  %1641 = vmatprep.mubr.bf16.mxu0 %v314
  %1642 = vmatmul.mubr.bf16.gmra.mrb[0].mxu0 %v313
  %v1643 = vpop.f32.mrb[0].mxu0
  %v1644 = vadd.f32 %v1491, %v1643
  %v1645 = vpop.f32.mrb[0].mxu0
  %v1646 = vpop.f32.mrb[0].mxu0
  %v1647 = vadd.f32 %v1494, %v1646
  %v1648 = vpop.f32.mrb[0].mxu0
  %1649 = vmatprep.mubr.bf16.mxu0 %v318
  %1650 = vmatmul.mubr.bf16.gmra.mrb[0].mxu0 %v317
  %v1651 = vpop.f32.mrb[0].mxu0
  %v1652 = vadd.f32 %v1499, %v1651
  %v1653 = vpop.f32.mrb[0].mxu0
  %v1654 = vpop.f32.mrb[0].mxu0
  %v1655 = vadd.f32 %v1502, %v1654
  %v1656 = vpop.f32.mrb[0].mxu0
  %1657 = vmatprep.mubr.bf16.mxu0 %v322
  %1658 = vmatmul.mubr.bf16.gmra.mrb[0].mxu0 %v321
  %v1659 = vpop.f32.mrb[0].mxu0
  %v1660 = vadd.f32 %v1507, %v1659
  %v1661 = vpop.f32.mrb[0].mxu0
  %v1662 = vpop.f32.mrb[0].mxu0
  %v1663 = vadd.f32 %v1510, %v1662
  %v1664 = vpop.f32.mrb[0].mxu0
  %1665 = vmatprep.mubr.bf16.mxu0 %v326
  %1666 = vmatmul.mubr.bf16.gmra.mrb[0].mxu0 %v325
  %v1667 = vpop.f32.mrb[0].mxu0
  %v1668 = vadd.f32 %v1515, %v1667
  %v1669 = vpop.f32.mrb[0].mxu0
  %v1670 = vpop.f32.mrb[0].mxu0
  %v1671 = vadd.f32 %v1518, %v1670
  %v1672 = vpop.f32.mrb[0].mxu0
  %1673 = vmatprep.mubr.bf16.mxu0 %v330
  %1674 = vmatmul.mubr.bf16.gmra.mrb[0].mxu0 %v329
  %v1675 = vpop.f32.mrb[0].mxu0
  %v1676 = vadd.f32 %v1523, %v1675
  %v1677 = vpop.f32.mrb[0].mxu0
  %v1678 = vpop.f32.mrb[0].mxu0
  %v1679 = vadd.f32 %v1526, %v1678
  %v1680 = vpop.f32.mrb[0].mxu0
  %1681 = vmatprep.mubr.bf16.mxu0 %v334
  %1682 = vmatmul.mubr.bf16.gmra.mrb[0].mxu0 %v333
  %v1683 = vpop.f32.mrb[0].mxu0
  %v1684 = vadd.f32 %v1531, %v1683
  %v1685 = vpop.f32.mrb[0].mxu0
  %v1686 = vpop.f32.mrb[0].mxu0
  %v1687 = vadd.f32 %v1534, %v1686
  %v1688 = vpop.f32.mrb[0].mxu0
  %1689 = vmatprep.mubr.bf16.mxu0 %v338
  %1690 = vmatmul.mubr.bf16.gmra.mrb[0].mxu0 %v337
  %v1691 = vpop.f32.mrb[0].mxu0
  %v1692 = vadd.f32 %v1539, %v1691
  %v1693 = vpop.f32.mrb[0].mxu0
  %v1694 = vpop.f32.mrb[0].mxu0
  %v1695 = vadd.f32 %v1542, %v1694
  %v1696 = vpop.f32.mrb[0].mxu0
  %1697 = vmatprep.mubr.bf16.mxu0 %v342
  %1698 = vmatmul.mubr.bf16.gmra.mrb[0].mxu0 %v341
  %v1699 = vpop.f32.mrb[0].mxu0
  %v1700 = vadd.f32 %v1547, %v1699
  %v1701 = vpop.f32.mrb[0].mxu0
  %v1702 = vpop.f32.mrb[0].mxu0
  %v1703 = vadd.f32 %v1550, %v1702
  %v1704 = vpop.f32.mrb[0].mxu0
  %1705 = vdwg.mxu0
  %v1707 = vlaneseq
  %v1708 = vshrl.u32 %v1707, 7
  %v1709 = vsub.s32 0, %v1708
  %v1710 = vrot.slane %v95, %v1709
  %v1712 = vadd.f32 %v1588, %v1710
  %v1713 = vadd.f32 %v1591, %v1710
  %v1714 = vadd.f32 %v1596, %v1710
  %v1715 = vadd.f32 %v1599, %v1710
  %v1716 = vadd.f32 %v1604, %v1710
  %v1717 = vadd.f32 %v1607, %v1710
  %v1718 = vadd.f32 %v1612, %v1710
  %v1719 = vadd.f32 %v1615, %v1710
  %v1720 = vadd.f32 %v1620, %v1710
  %v1721 = vadd.f32 %v1623, %v1710
  %v1722 = vadd.f32 %v1628, %v1710
  %v1723 = vadd.f32 %v1631, %v1710
  %v1724 = vadd.f32 %v1636, %v1710
  %v1725 = vadd.f32 %v1639, %v1710
  %v1726 = vadd.f32 %v1644, %v1710
  %v1727 = vadd.f32 %v1647, %v1710
  %v1728 = vadd.f32 %v1652, %v1710
  %v1729 = vadd.f32 %v1655, %v1710
  %v1730 = vadd.f32 %v1660, %v1710
  %v1731 = vadd.f32 %v1663, %v1710
  %v1732 = vadd.f32 %v1668, %v1710
  %v1733 = vadd.f32 %v1671, %v1710
  %v1734 = vadd.f32 %v1676, %v1710
  %v1735 = vadd.f32 %v1679, %v1710
  %v1736 = vadd.f32 %v1684, %v1710
  %v1737 = vadd.f32 %v1687, %v1710
  %v1738 = vadd.f32 %v1692, %v1710
  %v1739 = vadd.f32 %v1695, %v1710
  %v1740 = vadd.f32 %v1700, %v1710
  %v1741 = vadd.f32 %v1703, %v1710
  %vm1742 = vcmask 15360
  %1743 = vst.msk [vmem:[%s9] sm:$0xff] %vm1742, %v1712
  %1744 = vst.msk [vmem:[%s9 + $0x8] sm:$0xff] %vm1742, %v1713
  %1745 = vst.msk [vmem:[%s9 + $0x10] sm:$0xff] %vm1742, %v1714
  %1746 = vst.msk [vmem:[%s9 + $0x18] sm:$0xff] %vm1742, %v1715
  %1747 = vst.msk [vmem:[%s9 + $0x20] sm:$0xff] %vm1742, %v1716
  %1748 = vst.msk [vmem:[%s9 + $0x28] sm:$0xff] %vm1742, %v1717
  %1749 = vst.msk [vmem:[%s9 + $0x30] sm:$0xff] %vm1742, %v1718
  %1750 = vst.msk [vmem:[%s9 + $0x38] sm:$0xff] %vm1742, %v1719
  %1751 = vst.msk [vmem:[%s9 + $0x40] sm:$0xff] %vm1742, %v1720
  %1752 = vst.msk [vmem:[%s9 + $0x48] sm:$0xff] %vm1742, %v1721
  %1753 = vst.msk [vmem:[%s9 + $0x50] sm:$0xff] %vm1742, %v1722
  %1754 = vst.msk [vmem:[%s9 + $0x58] sm:$0xff] %vm1742, %v1723
  %1755 = vst.msk [vmem:[%s9 + $0x60] sm:$0xff] %vm1742, %v1724
  %1756 = vst.msk [vmem:[%s9 + $0x68] sm:$0xff] %vm1742, %v1725
  %1757 = vst.msk [vmem:[%s9 + $0x70] sm:$0xff] %vm1742, %v1726
  %1758 = vst.msk [vmem:[%s9 + $0x78] sm:$0xff] %vm1742, %v1727
  %1759 = vst.msk [vmem:[%s9 + $0x80] sm:$0xff] %vm1742, %v1728
  %1760 = vst.msk [vmem:[%s9 + $0x88] sm:$0xff] %vm1742, %v1729
  %1761 = vst.msk [vmem:[%s9 + $0x90] sm:$0xff] %vm1742, %v1730
  %1762 = vst.msk [vmem:[%s9 + $0x98] sm:$0xff] %vm1742, %v1731
  %1763 = vst.msk [vmem:[%s9 + $0xa0] sm:$0xff] %vm1742, %v1732
  %1764 = vst.msk [vmem:[%s9 + $0xa8] sm:$0xff] %vm1742, %v1733
  %1765 = vst.msk [vmem:[%s9 + $0xb0] sm:$0xff] %vm1742, %v1734
  %1766 = vst.msk [vmem:[%s9 + $0xb8] sm:$0xff] %vm1742, %v1735
  %1767 = vst.msk [vmem:[%s9 + $0xc0] sm:$0xff] %vm1742, %v1736
  %1768 = vst.msk [vmem:[%s9 + $0xc8] sm:$0xff] %vm1742, %v1737
  %1769 = vst.msk [vmem:[%s9 + $0xd0] sm:$0xff] %vm1742, %v1738
  %1770 = vst.msk [vmem:[%s9 + $0xd8] sm:$0xff] %vm1742, %v1739
  %1771 = vst.msk [vmem:[%s9 + $0xe0] sm:$0xff] %vm1742, %v1740
  %1772 = vst.msk [vmem:[%s9 + $0xe8] sm:$0xff] %vm1742, %v1741
  %v1773 = vld [vmem:[%s2] sm:$0xff]
  %v1774 = vld [vmem:[%s2 + $0x8] sm:$0xff]
  %v1775 = vld [vmem:[%s2 + $0x10] sm:$0xff]
  %v1776 = vld [vmem:[%s2 + $0x18] sm:$0xff]
  %v1777 = vld [vmem:[%s2 + $0x20] sm:$0xff]
  %v1778 = vld [vmem:[%s2 + $0x28] sm:$0xff]
  %v1779 = vld [vmem:[%s2 + $0x30] sm:$0xff]
  %v1780 = vld [vmem:[%s2 + $0x38] sm:$0xff]
  %v1781 = vld [vmem:[%s2 + $0x40] sm:$0xff]
  %v1782 = vld [vmem:[%s2 + $0x48] sm:$0xff]
  %v1783 = vld [vmem:[%s2 + $0x50] sm:$0xff]
  %v1784 = vld [vmem:[%s2 + $0x58] sm:$0xff]
  %v1785 = vld [vmem:[%s2 + $0x60] sm:$0xff]
  %v1786 = vld [vmem:[%s2 + $0x68] sm:$0xff]
  %v1787 = vld [vmem:[%s2 + $0x70] sm:$0xff]
  %v1788 = vld [vmem:[%s2 + $0x78] sm:$0xff]
  %v1789 = vld [vmem:[%s2 + $0x80] sm:$0xff]
  %v1790 = vld [vmem:[%s2 + $0x88] sm:$0xff]
  %v1791 = vld [vmem:[%s2 + $0x90] sm:$0xff]
  %v1792 = vld [vmem:[%s2 + $0x98] sm:$0xff]
  %v1793 = vld [vmem:[%s2 + $0xa0] sm:$0xff]
  %v1794 = vld [vmem:[%s2 + $0xa8] sm:$0xff]
  %v1795 = vld [vmem:[%s2 + $0xb0] sm:$0xff]
  %v1796 = vld [vmem:[%s2 + $0xb8] sm:$0xff]
  %v1797 = vld [vmem:[%s2 + $0xc0] sm:$0xff]
  %v1798 = vld [vmem:[%s2 + $0xc8] sm:$0xff]
  %v1799 = vld [vmem:[%s2 + $0xd0] sm:$0xff]
  %v1800 = vld [vmem:[%s2 + $0xd8] sm:$0xff]
  %v1801 = vld [vmem:[%s2 + $0xe0] sm:$0xff]
  %v1802 = vld [vmem:[%s2 + $0xe8] sm:$0xff]
  %v1803 = vld [vmem:[%s2 + $0xf0] sm:$0xff]
  %v1804 = vld [vmem:[%s2 + $0xf8] sm:$0xff]
  %v1805 = vld [vmem:[%s2 + $0x100] sm:$0xff]
  %v1806 = vld [vmem:[%s2 + $0x108] sm:$0xff]
  %v1807 = vld [vmem:[%s2 + $0x110] sm:$0xff]
  %v1808 = vld [vmem:[%s2 + $0x118] sm:$0xff]
  %v1809 = vld [vmem:[%s2 + $0x120] sm:$0xff]
  %v1810 = vld [vmem:[%s2 + $0x128] sm:$0xff]
  %v1811 = vld [vmem:[%s2 + $0x130] sm:$0xff]
  %v1812 = vld [vmem:[%s2 + $0x138] sm:$0xff]
  %v1813 = vld [vmem:[%s2 + $0x140] sm:$0xff]
  %v1814 = vld [vmem:[%s2 + $0x148] sm:$0xff]
  %v1815 = vld [vmem:[%s2 + $0x150] sm:$0xff]
  %v1816 = vld [vmem:[%s2 + $0x158] sm:$0xff]
  %v1817 = vld [vmem:[%s2 + $0x160] sm:$0xff]
  %v1818 = vld [vmem:[%s2 + $0x168] sm:$0xff]
  %v1819 = vld [vmem:[%s2 + $0x170] sm:$0xff]
  %v1820 = vld [vmem:[%s2 + $0x178] sm:$0xff]
  %v1821 = vld [vmem:[%s2 + $0x180] sm:$0xff]
  %v1822 = vld [vmem:[%s2 + $0x188] sm:$0xff]
  %v1823 = vld [vmem:[%s2 + $0x190] sm:$0xff]
  %v1824 = vld [vmem:[%s2 + $0x198] sm:$0xff]
  %v1825 = vld [vmem:[%s2 + $0x1a0] sm:$0xff]
  %v1826 = vld [vmem:[%s2 + $0x1a8] sm:$0xff]
  %v1827 = vld [vmem:[%s2 + $0x1b0] sm:$0xff]
  %v1828 = vld [vmem:[%s2 + $0x1b8] sm:$0xff]
  %v1829 = vld [vmem:[%s2 + $0x1c0] sm:$0xff]
  %v1830 = vld [vmem:[%s2 + $0x1c8] sm:$0xff]
  %v1831 = vld [vmem:[%s2 + $0x1d0] sm:$0xff]
  %v1832 = vld [vmem:[%s2 + $0x1d8] sm:$0xff]
  %v1833 = vld [vmem:[%s2 + $0x1e0] sm:$0xff]
  %v1834 = vld [vmem:[%s2 + $0x1e8] sm:$0xff]
  %v1835 = vld [vmem:[%s2 + $0x1f0] sm:$0xff]
  %v1836 = vld [vmem:[%s2 + $0x1f8] sm:$0xff]
  %v1837 = vld [vmem:[%s2 + $0x200] sm:$0xff]
  %v1838 = vld [vmem:[%s2 + $0x208] sm:$0xff]
  %v1839 = vld [vmem:[%s2 + $0x210] sm:$0xff]
  %v1840 = vld [vmem:[%s2 + $0x218] sm:$0xff]
  %v1841 = vld [vmem:[%s2 + $0x220] sm:$0xff]
  %v1842 = vld [vmem:[%s2 + $0x228] sm:$0xff]
  %v1843 = vld [vmem:[%s2 + $0x230] sm:$0xff]
  %v1844 = vld [vmem:[%s2 + $0x238] sm:$0xff]
  %v1845 = vld [vmem:[%s5] sm:$0xff]
  %v1846 = vld [vmem:[%s5 + $0x8] sm:$0xff]
  %v1847 = vld [vmem:[%s5 + $0x10] sm:$0xff]
  %v1848 = vld [vmem:[%s5 + $0x18] sm:$0xff]
  %v1849 = vld [vmem:[%s5 + $0x20] sm:$0xff]
  %v1850 = vld [vmem:[%s5 + $0x28] sm:$0xff]
  %v1851 = vld [vmem:[%s5 + $0x30] sm:$0xff]
  %v1852 = vld [vmem:[%s5 + $0x38] sm:$0xff]
  %v1853 = vld [vmem:[%s5 + $0x40] sm:$0xff]
  %v1854 = vld [vmem:[%s5 + $0x48] sm:$0xff]
  %v1855 = vld [vmem:[%s5 + $0x50] sm:$0xff]
  %v1856 = vld [vmem:[%s5 + $0x58] sm:$0xff]
  %v1857 = vld [vmem:[%s5 + $0x60] sm:$0xff]
  %v1858 = vld [vmem:[%s5 + $0x68] sm:$0xff]
  %v1859 = vld [vmem:[%s5 + $0x70] sm:$0xff]
  %v1860 = vld [vmem:[%s5 + $0x78] sm:$0xff]
  %v1861 = vld [vmem:[%s5 + $0x80] sm:$0xff]
  %v1862 = vld [vmem:[%s5 + $0x88] sm:$0xff]
  %v1863 = vld [vmem:[%s5 + $0x90] sm:$0xff]
  %v1864 = vld [vmem:[%s5 + $0x98] sm:$0xff]
  %v1865 = vld [vmem:[%s5 + $0xa0] sm:$0xff]
  %v1866 = vld [vmem:[%s5 + $0xa8] sm:$0xff]
  %v1867 = vld [vmem:[%s5 + $0xb0] sm:$0xff]
  %v1868 = vld [vmem:[%s5 + $0xb8] sm:$0xff]
  %v1869 = vld [vmem:[%s5 + $0xc0] sm:$0xff]
  %v1870 = vld [vmem:[%s5 + $0xc8] sm:$0xff]
  %v1871 = vld [vmem:[%s5 + $0xd0] sm:$0xff]
  %v1872 = vld [vmem:[%s5 + $0xd8] sm:$0xff]
  %v1873 = vld [vmem:[%s5 + $0xe0] sm:$0xff]
  %v1874 = vld [vmem:[%s5 + $0xe8] sm:$0xff]
  %v1875 = vld [vmem:[%s5 + $0xf0] sm:$0xff]
  %v1876 = vld [vmem:[%s5 + $0xf8] sm:$0xff]
  %v1877 = vld [vmem:[%s5 + $0x100] sm:$0xff]
  %v1878 = vld [vmem:[%s5 + $0x108] sm:$0xff]
  %v1879 = vld [vmem:[%s5 + $0x110] sm:$0xff]
  %v1880 = vld [vmem:[%s5 + $0x118] sm:$0xff]
  %v1881 = vld [vmem:[%s5 + $0x120] sm:$0xff]
  %v1882 = vld [vmem:[%s5 + $0x128] sm:$0xff]
  %v1883 = vld [vmem:[%s5 + $0x130] sm:$0xff]
  %v1884 = vld [vmem:[%s5 + $0x138] sm:$0xff]
  %v1885 = vld [vmem:[%s5 + $0x140] sm:$0xff]
  %v1886 = vld [vmem:[%s5 + $0x148] sm:$0xff]
  %v1887 = vld [vmem:[%s5 + $0x150] sm:$0xff]
  %v1888 = vld [vmem:[%s5 + $0x158] sm:$0xff]
  %v1889 = vld [vmem:[%s5 + $0x160] sm:$0xff]
  %v1890 = vld [vmem:[%s5 + $0x168] sm:$0xff]
  %v1891 = vld [vmem:[%s5 + $0x170] sm:$0xff]
  %v1892 = vld [vmem:[%s5 + $0x178] sm:$0xff]
  %v1893 = vld [vmem:[%s5 + $0x180] sm:$0xff]
  %v1894 = vld [vmem:[%s5 + $0x188] sm:$0xff]
  %v1895 = vld [vmem:[%s5 + $0x190] sm:$0xff]
  %v1896 = vld [vmem:[%s5 + $0x198] sm:$0xff]
  %v1897 = vld [vmem:[%s5 + $0x1a0] sm:$0xff]
  %v1898 = vld [vmem:[%s5 + $0x1a8] sm:$0xff]
  %v1899 = vld [vmem:[%s5 + $0x1b0] sm:$0xff]
  %v1900 = vld [vmem:[%s5 + $0x1b8] sm:$0xff]
  %v1901 = vld [vmem:[%s5 + $0x1c0] sm:$0xff]
  %v1902 = vld [vmem:[%s5 + $0x1c8] sm:$0xff]
  %v1903 = vld [vmem:[%s5 + $0x1d0] sm:$0xff]
  %v1904 = vld [vmem:[%s5 + $0x1d8] sm:$0xff]
  %v1905 = vld [vmem:[%s5 + $0x1e0] sm:$0xff]
  %v1906 = vld [vmem:[%s5 + $0x1e8] sm:$0xff]
  %v1907 = vld [vmem:[%s5 + $0x1f0] sm:$0xff]
  %v1908 = vld [vmem:[%s5 + $0x1f8] sm:$0xff]
  %v1909 = vld [vmem:[%s5 + $0x200] sm:$0xff]
  %v1910 = vld [vmem:[%s5 + $0x208] sm:$0xff]
  %v1911 = vld [vmem:[%s5 + $0x210] sm:$0xff]
  %v1912 = vld [vmem:[%s5 + $0x218] sm:$0xff]
  %v1913 = vld [vmem:[%s5 + $0x220] sm:$0xff]
  %v1914 = vld [vmem:[%s5 + $0x228] sm:$0xff]
  %v1915 = vld [vmem:[%s5 + $0x230] sm:$0xff]
  %v1916 = vld [vmem:[%s5 + $0x238] sm:$0xff]
  %v1917 = vld [vmem:[%s5 + $0x240] sm:$0xff]
  %v1918 = vld [vmem:[%s5 + $0x248] sm:$0xff]
  %v1919 = vld [vmem:[%s5 + $0x250] sm:$0xff]
  %v1920 = vld [vmem:[%s5 + $0x258] sm:$0xff]
  %v1921 = vld [vmem:[%s5 + $0x260] sm:$0xff]
  %v1922 = vld [vmem:[%s5 + $0x268] sm:$0xff]
  %v1923 = vld [vmem:[%s5 + $0x270] sm:$0xff]
  %v1924 = vld [vmem:[%s5 + $0x278] sm:$0xff]
  %v1925 = vld [vmem:[%s5 + $0x280] sm:$0xff]
  %v1926 = vld [vmem:[%s5 + $0x288] sm:$0xff]
  %v1927 = vld [vmem:[%s5 + $0x290] sm:$0xff]
  %v1928 = vld [vmem:[%s5 + $0x298] sm:$0xff]
  %v1929 = vld [vmem:[%s5 + $0x2a0] sm:$0xff]
  %v1930 = vld [vmem:[%s5 + $0x2a8] sm:$0xff]
  %v1931 = vld [vmem:[%s5 + $0x2b0] sm:$0xff]
  %v1932 = vld [vmem:[%s5 + $0x2b8] sm:$0xff]
  %v1933 = vld [vmem:[%s5 + $0x2c0] sm:$0xff]
  %v1934 = vld [vmem:[%s5 + $0x2c8] sm:$0xff]
  %v1935 = vld [vmem:[%s5 + $0x2d0] sm:$0xff]
  %v1936 = vld [vmem:[%s5 + $0x2d8] sm:$0xff]
  %v1937 = vld [vmem:[%s5 + $0x2e0] sm:$0xff]
  %v1938 = vld [vmem:[%s5 + $0x2e8] sm:$0xff]
  %v1939 = vld [vmem:[%s5 + $0x2f0] sm:$0xff]
  %v1940 = vld [vmem:[%s5 + $0x2f8] sm:$0xff]
  %v1941 = vld [vmem:[%s5 + $0x300] sm:$0xff]
  %v1942 = vld [vmem:[%s5 + $0x308] sm:$0xff]
  %v1943 = vld [vmem:[%s5 + $0x310] sm:$0xff]
  %v1944 = vld [vmem:[%s5 + $0x318] sm:$0xff]
  %v1945 = vld [vmem:[%s5 + $0x320] sm:$0xff]
  %v1946 = vld [vmem:[%s5 + $0x328] sm:$0xff]
  %v1947 = vld [vmem:[%s5 + $0x330] sm:$0xff]
  %v1948 = vld [vmem:[%s5 + $0x338] sm:$0xff]
  %v1949 = vld [vmem:[%s5 + $0x340] sm:$0xff]
  %v1950 = vld [vmem:[%s5 + $0x348] sm:$0xff]
  %v1951 = vld [vmem:[%s5 + $0x350] sm:$0xff]
  %v1952 = vld [vmem:[%s5 + $0x358] sm:$0xff]
  %v1953 = vld [vmem:[%s5 + $0x360] sm:$0xff]
  %v1954 = vld [vmem:[%s5 + $0x368] sm:$0xff]
  %v1955 = vld [vmem:[%s5 + $0x370] sm:$0xff]
  %v1956 = vld [vmem:[%s5 + $0x378] sm:$0xff]
  %v1957 = vld [vmem:[%s5 + $0x380] sm:$0xff]
  %v1958 = vld [vmem:[%s5 + $0x388] sm:$0xff]
  %v1959 = vld [vmem:[%s5 + $0x390] sm:$0xff]
  %v1960 = vld [vmem:[%s5 + $0x398] sm:$0xff]
  %v1961 = vld [vmem:[%s5 + $0x3a0] sm:$0xff]
  %v1962 = vld [vmem:[%s5 + $0x3a8] sm:$0xff]
  %v1963 = vld [vmem:[%s5 + $0x3b0] sm:$0xff]
  %v1964 = vld [vmem:[%s5 + $0x3b8] sm:$0xff]
  %v1965 = vld [vmem:[%s5 + $0x3c0] sm:$0xff]
  %v1966 = vld [vmem:[%s5 + $0x3c8] sm:$0xff]
  %v1967 = vld [vmem:[%s5 + $0x3d0] sm:$0xff]
  %v1968 = vld [vmem:[%s5 + $0x3d8] sm:$0xff]
  %v1969 = vld [vmem:[%s5 + $0x3e0] sm:$0xff]
  %v1970 = vld [vmem:[%s5 + $0x3e8] sm:$0xff]
  %v1971 = vld [vmem:[%s5 + $0x3f0] sm:$0xff]
  %v1972 = vld [vmem:[%s5 + $0x3f8] sm:$0xff]
  %v1973 = vld [vmem:[%s5 + $0x400] sm:$0xff]
  %v1974 = vld [vmem:[%s5 + $0x408] sm:$0xff]
  %v1975 = vld [vmem:[%s5 + $0x410] sm:$0xff]
  %v1976 = vld [vmem:[%s5 + $0x418] sm:$0xff]
  %v1977 = vld [vmem:[%s5 + $0x420] sm:$0xff]
  %v1978 = vld [vmem:[%s5 + $0x428] sm:$0xff]
  %v1979 = vld [vmem:[%s5 + $0x430] sm:$0xff]
  %v1980 = vld [vmem:[%s5 + $0x438] sm:$0xff]
  %v1981 = vld [vmem:[%s5 + $0x440] sm:$0xff]
  %v1982 = vld [vmem:[%s5 + $0x448] sm:$0xff]
  %v1983 = vld [vmem:[%s5 + $0x450] sm:$0xff]
  %v1984 = vld [vmem:[%s5 + $0x458] sm:$0xff]
  %v1985 = vld [vmem:[%s5 + $0x460] sm:$0xff]
  %v1986 = vld [vmem:[%s5 + $0x468] sm:$0xff]
  %v1987 = vld [vmem:[%s5 + $0x470] sm:$0xff]
  %v1988 = vld [vmem:[%s5 + $0x478] sm:$0xff]
  %v1989 = vld [vmem:[%s5 + $0x480] sm:$0xff]
  %v1990 = vld [vmem:[%s5 + $0x488] sm:$0xff]
  %v1991 = vld [vmem:[%s5 + $0x490] sm:$0xff]
  %v1992 = vld [vmem:[%s5 + $0x498] sm:$0xff]
  %v1993 = vld [vmem:[%s5 + $0x4a0] sm:$0xff]
  %v1994 = vld [vmem:[%s5 + $0x4a8] sm:$0xff]
  %v1995 = vld [vmem:[%s5 + $0x4b0] sm:$0xff]
  %v1996 = vld [vmem:[%s5 + $0x4b8] sm:$0xff]
  %v1997 = vld [vmem:[%s5 + $0x4c0] sm:$0xff]
  %v1998 = vld [vmem:[%s5 + $0x4c8] sm:$0xff]
  %v1999 = vld [vmem:[%s5 + $0x4d0] sm:$0xff]
  %v2000 = vld [vmem:[%s5 + $0x4d8] sm:$0xff]
  %v2001 = vld [vmem:[%s5 + $0x4e0] sm:$0xff]
  %v2002 = vld [vmem:[%s5 + $0x4e8] sm:$0xff]
  %v2003 = vld [vmem:[%s5 + $0x4f0] sm:$0xff]
  %v2004 = vld [vmem:[%s5 + $0x4f8] sm:$0xff]
  %v2005 = vld [vmem:[%s5 + $0x500] sm:$0xff]
  %v2006 = vld [vmem:[%s5 + $0x508] sm:$0xff]
  %v2007 = vld [vmem:[%s5 + $0x510] sm:$0xff]
  %v2008 = vld [vmem:[%s5 + $0x518] sm:$0xff]
  %v2009 = vld [vmem:[%s5 + $0x520] sm:$0xff]
  %v2010 = vld [vmem:[%s5 + $0x528] sm:$0xff]
  %v2011 = vld [vmem:[%s5 + $0x530] sm:$0xff]
  %v2012 = vld [vmem:[%s5 + $0x538] sm:$0xff]
  %v2013 = vld [vmem:[%s5 + $0x540] sm:$0xff]
  %v2014 = vld [vmem:[%s5 + $0x548] sm:$0xff]
  %v2015 = vld [vmem:[%s5 + $0x550] sm:$0xff]
  %v2016 = vld [vmem:[%s5 + $0x558] sm:$0xff]
  %v2017 = vld [vmem:[%s5 + $0x560] sm:$0xff]
  %v2018 = vld [vmem:[%s5 + $0x568] sm:$0xff]
  %v2019 = vld [vmem:[%s5 + $0x570] sm:$0xff]
  %v2020 = vld [vmem:[%s5 + $0x578] sm:$0xff]
  %v2021 = vld [vmem:[%s5 + $0x580] sm:$0xff]
  %v2022 = vld [vmem:[%s5 + $0x588] sm:$0xff]
  %v2023 = vld [vmem:[%s5 + $0x590] sm:$0xff]
  %v2024 = vld [vmem:[%s5 + $0x598] sm:$0xff]
  %v2025 = vld [vmem:[%s5 + $0x5a0] sm:$0xff]
  %v2026 = vld [vmem:[%s5 + $0x5a8] sm:$0xff]
  %v2027 = vld [vmem:[%s5 + $0x5b0] sm:$0xff]
  %v2028 = vld [vmem:[%s5 + $0x5b8] sm:$0xff]
  %v2029 = vld [vmem:[%s5 + $0x5c0] sm:$0xff]
  %v2030 = vld [vmem:[%s5 + $0x5c8] sm:$0xff]
  %v2031 = vld [vmem:[%s5 + $0x5d0] sm:$0xff]
  %v2032 = vld [vmem:[%s5 + $0x5d8] sm:$0xff]
  %v2033 = vld [vmem:[%s5 + $0x5e0] sm:$0xff]
  %v2034 = vld [vmem:[%s5 + $0x5e8] sm:$0xff]
  %v2035 = vld [vmem:[%s5 + $0x5f0] sm:$0xff]
  %v2036 = vld [vmem:[%s5 + $0x5f8] sm:$0xff]
  %v2037 = vld [vmem:[%s5 + $0x600] sm:$0xff]
  %v2038 = vld [vmem:[%s5 + $0x608] sm:$0xff]
  %v2039 = vld [vmem:[%s5 + $0x610] sm:$0xff]
  %v2040 = vld [vmem:[%s5 + $0x618] sm:$0xff]
  %v2041 = vld [vmem:[%s5 + $0x620] sm:$0xff]
  %v2042 = vld [vmem:[%s5 + $0x628] sm:$0xff]
  %v2043 = vld [vmem:[%s5 + $0x630] sm:$0xff]
  %v2044 = vld [vmem:[%s5 + $0x638] sm:$0xff]
  %v2045 = vld [vmem:[%s5 + $0x640] sm:$0xff]
  %v2046 = vld [vmem:[%s5 + $0x648] sm:$0xff]
  %v2047 = vld [vmem:[%s5 + $0x650] sm:$0xff]
  %v2048 = vld [vmem:[%s5 + $0x658] sm:$0xff]
  %v2049 = vld [vmem:[%s5 + $0x660] sm:$0xff]
  %v2050 = vld [vmem:[%s5 + $0x668] sm:$0xff]
  %v2051 = vld [vmem:[%s5 + $0x670] sm:$0xff]
  %v2052 = vld [vmem:[%s5 + $0x678] sm:$0xff]
  %v2053 = vld [vmem:[%s5 + $0x680] sm:$0xff]
  %v2054 = vld [vmem:[%s5 + $0x688] sm:$0xff]
  %v2055 = vld [vmem:[%s5 + $0x690] sm:$0xff]
  %v2056 = vld [vmem:[%s5 + $0x698] sm:$0xff]
  %v2057 = vld [vmem:[%s5 + $0x6a0] sm:$0xff]
  %v2058 = vld [vmem:[%s5 + $0x6a8] sm:$0xff]
  %v2059 = vld [vmem:[%s5 + $0x6b0] sm:$0xff]
  %v2060 = vld [vmem:[%s5 + $0x6b8] sm:$0xff]
  %v2061 = vld [vmem:[%s5 + $0x6c0] sm:$0xff]
  %v2062 = vld [vmem:[%s5 + $0x6c8] sm:$0xff]
  %v2063 = vld [vmem:[%s5 + $0x6d0] sm:$0xff]
  %v2064 = vld [vmem:[%s5 + $0x6d8] sm:$0xff]
  %v2065 = vld [vmem:[%s5 + $0x6e0] sm:$0xff]
  %v2066 = vld [vmem:[%s5 + $0x6e8] sm:$0xff]
  %v2067 = vld [vmem:[%s5 + $0x6f0] sm:$0xff]
  %v2068 = vld [vmem:[%s5 + $0x6f8] sm:$0xff]
  %v2069 = vld [vmem:[%s5 + $0x700] sm:$0xff]
  %v2070 = vld [vmem:[%s5 + $0x708] sm:$0xff]
  %v2071 = vld [vmem:[%s5 + $0x710] sm:$0xff]
  %v2072 = vld [vmem:[%s5 + $0x718] sm:$0xff]
  %v2073 = vld [vmem:[%s5 + $0x720] sm:$0xff]
  %v2074 = vld [vmem:[%s5 + $0x728] sm:$0xff]
  %v2075 = vld [vmem:[%s5 + $0x730] sm:$0xff]
  %v2076 = vld [vmem:[%s5 + $0x738] sm:$0xff]
  %v2077 = vld [vmem:[%s5 + $0x740] sm:$0xff]
  %v2078 = vld [vmem:[%s5 + $0x748] sm:$0xff]
  %v2079 = vld [vmem:[%s5 + $0x750] sm:$0xff]
  %v2080 = vld [vmem:[%s5 + $0x758] sm:$0xff]
  %v2081 = vld [vmem:[%s5 + $0x760] sm:$0xff]
  %v2082 = vld [vmem:[%s5 + $0x768] sm:$0xff]
  %v2083 = vld [vmem:[%s5 + $0x770] sm:$0xff]
  %v2084 = vld [vmem:[%s5 + $0x778] sm:$0xff]
  %v2085 = vld [vmem:[%s5 + $0x780] sm:$0xff]
  %v2086 = vld [vmem:[%s5 + $0x788] sm:$0xff]
  %v2087 = vld [vmem:[%s5 + $0x790] sm:$0xff]
  %v2088 = vld [vmem:[%s5 + $0x798] sm:$0xff]
  %v2089 = vld [vmem:[%s5 + $0x7a0] sm:$0xff]
  %v2090 = vld [vmem:[%s5 + $0x7a8] sm:$0xff]
  %v2091 = vld [vmem:[%s5 + $0x7b0] sm:$0xff]
  %v2092 = vld [vmem:[%s5 + $0x7b8] sm:$0xff]
  %v2093 = vld [vmem:[%s5 + $0x7c0] sm:$0xff]
  %v2094 = vld [vmem:[%s5 + $0x7c8] sm:$0xff]
  %v2095 = vld [vmem:[%s5 + $0x7d0] sm:$0xff]
  %v2096 = vld [vmem:[%s5 + $0x7d8] sm:$0xff]
  %v2097 = vld [vmem:[%s5 + $0x7e0] sm:$0xff]
  %v2098 = vld [vmem:[%s5 + $0x7e8] sm:$0xff]
  %v2099 = vld [vmem:[%s5 + $0x7f0] sm:$0xff]
  %v2100 = vld [vmem:[%s5 + $0x7f8] sm:$0xff]
  %v2101 = vld [vmem:[%s5 + $0x800] sm:$0xff]
  %v2102 = vld [vmem:[%s5 + $0x808] sm:$0xff]
  %v2103 = vld [vmem:[%s5 + $0x810] sm:$0xff]
  %v2104 = vld [vmem:[%s5 + $0x818] sm:$0xff]
  %v2105 = vld [vmem:[%s5 + $0x820] sm:$0xff]
  %v2106 = vld [vmem:[%s5 + $0x828] sm:$0xff]
  %v2107 = vld [vmem:[%s5 + $0x830] sm:$0xff]
  %v2108 = vld [vmem:[%s5 + $0x838] sm:$0xff]
  %v2109 = vld [vmem:[%s5 + $0x840] sm:$0xff]
  %v2110 = vld [vmem:[%s5 + $0x848] sm:$0xff]
  %v2111 = vld [vmem:[%s5 + $0x850] sm:$0xff]
  %v2112 = vld [vmem:[%s5 + $0x858] sm:$0xff]
  %v2113 = vld [vmem:[%s5 + $0x860] sm:$0xff]
  %v2114 = vld [vmem:[%s5 + $0x868] sm:$0xff]
  %v2115 = vld [vmem:[%s5 + $0x870] sm:$0xff]
  %v2116 = vld [vmem:[%s5 + $0x878] sm:$0xff]
  %v2117 = vld [vmem:[%s5 + $0x880] sm:$0xff]
  %v2118 = vld [vmem:[%s5 + $0x888] sm:$0xff]
  %v2119 = vld [vmem:[%s5 + $0x890] sm:$0xff]
  %v2120 = vld [vmem:[%s5 + $0x898] sm:$0xff]
  %v2121 = vld [vmem:[%s5 + $0x8a0] sm:$0xff]
  %v2122 = vld [vmem:[%s5 + $0x8a8] sm:$0xff]
  %v2123 = vld [vmem:[%s5 + $0x8b0] sm:$0xff]
  %v2124 = vld [vmem:[%s5 + $0x8b8] sm:$0xff]
  %v2125 = vld [vmem:[%s5 + $0x8c0] sm:$0xff]
  %v2126 = vld [vmem:[%s5 + $0x8c8] sm:$0xff]
  %v2127 = vld [vmem:[%s5 + $0x8d0] sm:$0xff]
  %v2128 = vld [vmem:[%s5 + $0x8d8] sm:$0xff]
  %v2129 = vld [vmem:[%s5 + $0x8e0] sm:$0xff]
  %v2130 = vld [vmem:[%s5 + $0x8e8] sm:$0xff]
  %v2131 = vld [vmem:[%s5 + $0x8f0] sm:$0xff]
  %v2132 = vld [vmem:[%s5 + $0x8f8] sm:$0xff]
  %v2133 = vld [vmem:[%s5 + $0x900] sm:$0xff]
  %v2134 = vld [vmem:[%s5 + $0x908] sm:$0xff]
  %v2135 = vld [vmem:[%s5 + $0x910] sm:$0xff]
  %v2136 = vld [vmem:[%s5 + $0x918] sm:$0xff]
  %v2137 = vld [vmem:[%s5 + $0x920] sm:$0xff]
  %v2138 = vld [vmem:[%s5 + $0x928] sm:$0xff]
  %v2139 = vld [vmem:[%s5 + $0x930] sm:$0xff]
  %v2140 = vld [vmem:[%s5 + $0x938] sm:$0xff]
  %v2141 = vld [vmem:[%s5 + $0x940] sm:$0xff]
  %v2142 = vld [vmem:[%s5 + $0x948] sm:$0xff]
  %v2143 = vld [vmem:[%s5 + $0x950] sm:$0xff]
  %v2144 = vld [vmem:[%s5 + $0x958] sm:$0xff]
  %v2145 = vld [vmem:[%s5 + $0x960] sm:$0xff]
  %v2146 = vld [vmem:[%s5 + $0x968] sm:$0xff]
  %v2147 = vld [vmem:[%s5 + $0x970] sm:$0xff]
  %v2148 = vld [vmem:[%s5 + $0x978] sm:$0xff]
  %v2149 = vld [vmem:[%s5 + $0x980] sm:$0xff]
  %v2150 = vld [vmem:[%s5 + $0x988] sm:$0xff]
  %v2151 = vld [vmem:[%s5 + $0x990] sm:$0xff]
  %v2152 = vld [vmem:[%s5 + $0x998] sm:$0xff]
  %v2153 = vld [vmem:[%s5 + $0x9a0] sm:$0xff]
  %v2154 = vld [vmem:[%s5 + $0x9a8] sm:$0xff]
  %v2155 = vld [vmem:[%s5 + $0x9b0] sm:$0xff]
  %v2156 = vld [vmem:[%s5 + $0x9b8] sm:$0xff]
  %v2157 = vld [vmem:[%s5 + $0x9c0] sm:$0xff]
  %v2158 = vld [vmem:[%s5 + $0x9c8] sm:$0xff]
  %v2159 = vld [vmem:[%s5 + $0x9d0] sm:$0xff]
  %v2160 = vld [vmem:[%s5 + $0x9d8] sm:$0xff]
  %v2161 = vld [vmem:[%s5 + $0x9e0] sm:$0xff]
  %v2162 = vld [vmem:[%s5 + $0x9e8] sm:$0xff]
  %v2163 = vld [vmem:[%s5 + $0x9f0] sm:$0xff]
  %v2164 = vld [vmem:[%s5 + $0x9f8] sm:$0xff]
  %v2165 = vld [vmem:[%s5 + $0xa00] sm:$0xff]
  %v2166 = vld [vmem:[%s5 + $0xa08] sm:$0xff]
  %v2167 = vld [vmem:[%s5 + $0xa10] sm:$0xff]
  %v2168 = vld [vmem:[%s5 + $0xa18] sm:$0xff]
  %v2169 = vld [vmem:[%s5 + $0xa20] sm:$0xff]
  %v2170 = vld [vmem:[%s5 + $0xa28] sm:$0xff]
  %v2171 = vld [vmem:[%s5 + $0xa30] sm:$0xff]
  %v2172 = vld [vmem:[%s5 + $0xa38] sm:$0xff]
  %v2173 = vld [vmem:[%s5 + $0xa40] sm:$0xff]
  %v2174 = vld [vmem:[%s5 + $0xa48] sm:$0xff]
  %v2175 = vld [vmem:[%s5 + $0xa50] sm:$0xff]
  %v2176 = vld [vmem:[%s5 + $0xa58] sm:$0xff]
  %v2177 = vld [vmem:[%s5 + $0xa60] sm:$0xff]
  %v2178 = vld [vmem:[%s5 + $0xa68] sm:$0xff]
  %v2179 = vld [vmem:[%s5 + $0xa70] sm:$0xff]
  %v2180 = vld [vmem:[%s5 + $0xa78] sm:$0xff]
  %v2181 = vld [vmem:[%s5 + $0xa80] sm:$0xff]
  %v2182 = vld [vmem:[%s5 + $0xa88] sm:$0xff]
  %v2183 = vld [vmem:[%s5 + $0xa90] sm:$0xff]
  %v2184 = vld [vmem:[%s5 + $0xa98] sm:$0xff]
  %v2185 = vld [vmem:[%s5 + $0xaa0] sm:$0xff]
  %v2186 = vld [vmem:[%s5 + $0xaa8] sm:$0xff]
  %v2187 = vld [vmem:[%s5 + $0xab0] sm:$0xff]
  %v2188 = vld [vmem:[%s5 + $0xab8] sm:$0xff]
  %v2189 = vld [vmem:[%s5 + $0xac0] sm:$0xff]
  %v2190 = vld [vmem:[%s5 + $0xac8] sm:$0xff]
  %v2191 = vld [vmem:[%s5 + $0xad0] sm:$0xff]
  %v2192 = vld [vmem:[%s5 + $0xad8] sm:$0xff]
  %v2193 = vld [vmem:[%s5 + $0xae0] sm:$0xff]
  %v2194 = vld [vmem:[%s5 + $0xae8] sm:$0xff]
  %v2195 = vld [vmem:[%s5 + $0xaf0] sm:$0xff]
  %v2196 = vld [vmem:[%s5 + $0xaf8] sm:$0xff]
  %v2197 = vld [vmem:[%s5 + $0xb00] sm:$0xff]
  %v2198 = vld [vmem:[%s5 + $0xb08] sm:$0xff]
  %v2199 = vld [vmem:[%s5 + $0xb10] sm:$0xff]
  %v2200 = vld [vmem:[%s5 + $0xb18] sm:$0xff]
  %v2201 = vld [vmem:[%s5 + $0xb20] sm:$0xff]
  %v2202 = vld [vmem:[%s5 + $0xb28] sm:$0xff]
  %v2203 = vld [vmem:[%s5 + $0xb30] sm:$0xff]
  %v2204 = vld [vmem:[%s5 + $0xb38] sm:$0xff]
  %v2205 = vld [vmem:[%s5 + $0xb40] sm:$0xff]
  %v2206 = vld [vmem:[%s5 + $0xb48] sm:$0xff]
  %v2207 = vld [vmem:[%s5 + $0xb50] sm:$0xff]
  %v2208 = vld [vmem:[%s5 + $0xb58] sm:$0xff]
  %v2209 = vld [vmem:[%s5 + $0xb60] sm:$0xff]
  %v2210 = vld [vmem:[%s5 + $0xb68] sm:$0xff]
  %v2211 = vld [vmem:[%s5 + $0xb70] sm:$0xff]
  %v2212 = vld [vmem:[%s5 + $0xb78] sm:$0xff]
  %v2213 = vld [vmem:[%s5 + $0xb80] sm:$0xff]
  %v2214 = vld [vmem:[%s5 + $0xb88] sm:$0xff]
  %v2215 = vld [vmem:[%s5 + $0xb90] sm:$0xff]
  %v2216 = vld [vmem:[%s5 + $0xb98] sm:$0xff]
  %v2217 = vld [vmem:[%s5 + $0xba0] sm:$0xff]
  %v2218 = vld [vmem:[%s5 + $0xba8] sm:$0xff]
  %v2219 = vld [vmem:[%s5 + $0xbb0] sm:$0xff]
  %v2220 = vld [vmem:[%s5 + $0xbb8] sm:$0xff]
  %v2221 = vld [vmem:[%s5 + $0xbc0] sm:$0xff]
  %v2222 = vld [vmem:[%s5 + $0xbc8] sm:$0xff]
  %v2223 = vld [vmem:[%s5 + $0xbd0] sm:$0xff]
  %v2224 = vld [vmem:[%s5 + $0xbd8] sm:$0xff]
  %v2225 = vld [vmem:[%s5 + $0xbe0] sm:$0xff]
  %v2226 = vld [vmem:[%s5 + $0xbe8] sm:$0xff]
  %v2227 = vld [vmem:[%s5 + $0xbf0] sm:$0xff]
  %v2228 = vld [vmem:[%s5 + $0xbf8] sm:$0xff]
  %v2229 = vld [vmem:[%s5 + $0xc00] sm:$0xff]
  %v2230 = vld [vmem:[%s5 + $0xc08] sm:$0xff]
  %v2231 = vld [vmem:[%s5 + $0xc10] sm:$0xff]
  %v2232 = vld [vmem:[%s5 + $0xc18] sm:$0xff]
  %v2233 = vld [vmem:[%s5 + $0xc20] sm:$0xff]
  %v2234 = vld [vmem:[%s5 + $0xc28] sm:$0xff]
  %v2235 = vld [vmem:[%s5 + $0xc30] sm:$0xff]
  %v2236 = vld [vmem:[%s5 + $0xc38] sm:$0xff]
  %v2237 = vld [vmem:[%s5 + $0xc40] sm:$0xff]
  %v2238 = vld [vmem:[%s5 + $0xc48] sm:$0xff]
  %v2239 = vld [vmem:[%s5 + $0xc50] sm:$0xff]
  %v2240 = vld [vmem:[%s5 + $0xc58] sm:$0xff]
  %v2241 = vld [vmem:[%s5 + $0xc60] sm:$0xff]
  %v2242 = vld [vmem:[%s5 + $0xc68] sm:$0xff]
  %v2243 = vld [vmem:[%s5 + $0xc70] sm:$0xff]
  %v2244 = vld [vmem:[%s5 + $0xc78] sm:$0xff]
  %v2245 = vld [vmem:[%s5 + $0xc80] sm:$0xff]
  %v2246 = vld [vmem:[%s5 + $0xc88] sm:$0xff]
  %v2247 = vld [vmem:[%s5 + $0xc90] sm:$0xff]
  %v2248 = vld [vmem:[%s5 + $0xc98] sm:$0xff]
  %v2249 = vld [vmem:[%s5 + $0xca0] sm:$0xff]
  %v2250 = vld [vmem:[%s5 + $0xca8] sm:$0xff]
  %v2251 = vld [vmem:[%s5 + $0xcb0] sm:$0xff]
  %v2252 = vld [vmem:[%s5 + $0xcb8] sm:$0xff]
  %v2253 = vld [vmem:[%s5 + $0xcc0] sm:$0xff]
  %v2254 = vld [vmem:[%s5 + $0xcc8] sm:$0xff]
  %v2255 = vld [vmem:[%s5 + $0xcd0] sm:$0xff]
  %v2256 = vld [vmem:[%s5 + $0xcd8] sm:$0xff]
  %v2257 = vld [vmem:[%s5 + $0xce0] sm:$0xff]
  %v2258 = vld [vmem:[%s5 + $0xce8] sm:$0xff]
  %v2259 = vld [vmem:[%s5 + $0xcf0] sm:$0xff]
  %v2260 = vld [vmem:[%s5 + $0xcf8] sm:$0xff]
  %v2261 = vld [vmem:[%s5 + $0xd00] sm:$0xff]
  %v2262 = vld [vmem:[%s5 + $0xd08] sm:$0xff]
  %v2263 = vld [vmem:[%s5 + $0xd10] sm:$0xff]
  %v2264 = vld [vmem:[%s5 + $0xd18] sm:$0xff]
  %v2265 = vld [vmem:[%s5 + $0xd20] sm:$0xff]
  %v2266 = vld [vmem:[%s5 + $0xd28] sm:$0xff]
  %v2267 = vld [vmem:[%s5 + $0xd30] sm:$0xff]
  %v2268 = vld [vmem:[%s5 + $0xd38] sm:$0xff]
  %v2269 = vld [vmem:[%s5 + $0xd40] sm:$0xff]
  %v2270 = vld [vmem:[%s5 + $0xd48] sm:$0xff]
  %v2271 = vld [vmem:[%s5 + $0xd50] sm:$0xff]
  %v2272 = vld [vmem:[%s5 + $0xd58] sm:$0xff]
  %v2273 = vld [vmem:[%s5 + $0xd60] sm:$0xff]
  %v2274 = vld [vmem:[%s5 + $0xd68] sm:$0xff]
  %v2275 = vld [vmem:[%s5 + $0xd70] sm:$0xff]
  %v2276 = vld [vmem:[%s5 + $0xd78] sm:$0xff]
  %v2277 = vld [vmem:[%s5 + $0xd80] sm:$0xff]
  %v2278 = vld [vmem:[%s5 + $0xd88] sm:$0xff]
  %v2279 = vld [vmem:[%s5 + $0xd90] sm:$0xff]
  %v2280 = vld [vmem:[%s5 + $0xd98] sm:$0xff]
  %v2281 = vld [vmem:[%s5 + $0xda0] sm:$0xff]
  %v2282 = vld [vmem:[%s5 + $0xda8] sm:$0xff]
  %v2283 = vld [vmem:[%s5 + $0xdb0] sm:$0xff]
  %v2284 = vld [vmem:[%s5 + $0xdb8] sm:$0xff]
  %v2285 = vld [vmem:[%s5 + $0xdc0] sm:$0xff]
  %v2286 = vld [vmem:[%s5 + $0xdc8] sm:$0xff]
  %v2287 = vld [vmem:[%s5 + $0xdd0] sm:$0xff]
  %v2288 = vld [vmem:[%s5 + $0xdd8] sm:$0xff]
  %v2289 = vld [vmem:[%s5 + $0xde0] sm:$0xff]
  %v2290 = vld [vmem:[%s5 + $0xde8] sm:$0xff]
  %v2291 = vld [vmem:[%s5 + $0xdf0] sm:$0xff]
  %v2292 = vld [vmem:[%s5 + $0xdf8] sm:$0xff]
  %v2293 = vld [vmem:[%s5 + $0xe00] sm:$0xff]
  %v2294 = vld [vmem:[%s5 + $0xe08] sm:$0xff]
  %v2295 = vld [vmem:[%s5 + $0xe10] sm:$0xff]
  %v2296 = vld [vmem:[%s5 + $0xe18] sm:$0xff]
  %v2297 = vld [vmem:[%s5 + $0xe20] sm:$0xff]
  %v2298 = vld [vmem:[%s5 + $0xe28] sm:$0xff]
  %v2299 = vld [vmem:[%s5 + $0xe30] sm:$0xff]
  %v2300 = vld [vmem:[%s5 + $0xe38] sm:$0xff]
  %v2301 = vld [vmem:[%s5 + $0xe40] sm:$0xff]
  %v2302 = vld [vmem:[%s5 + $0xe48] sm:$0xff]
  %v2303 = vld [vmem:[%s5 + $0xe50] sm:$0xff]
  %v2304 = vld [vmem:[%s5 + $0xe58] sm:$0xff]
  %v2305 = vld [vmem:[%s5 + $0xe60] sm:$0xff]
  %v2306 = vld [vmem:[%s5 + $0xe68] sm:$0xff]
  %v2307 = vld [vmem:[%s5 + $0xe70] sm:$0xff]
  %v2308 = vld [vmem:[%s5 + $0xe78] sm:$0xff]
  %v2309 = vld [vmem:[%s5 + $0xe80] sm:$0xff]
  %v2310 = vld [vmem:[%s5 + $0xe88] sm:$0xff]
  %v2311 = vld [vmem:[%s5 + $0xe90] sm:$0xff]
  %v2312 = vld [vmem:[%s5 + $0xe98] sm:$0xff]
  %v2313 = vld [vmem:[%s5 + $0xea0] sm:$0xff]
  %v2314 = vld [vmem:[%s5 + $0xea8] sm:$0xff]
  %v2315 = vld [vmem:[%s5 + $0xeb0] sm:$0xff]
  %v2316 = vld [vmem:[%s5 + $0xeb8] sm:$0xff]
  %v2317 = vld [vmem:[%s5 + $0xec0] sm:$0xff]
  %v2318 = vld [vmem:[%s5 + $0xec8] sm:$0xff]
  %v2319 = vld [vmem:[%s5 + $0xed0] sm:$0xff]
  %v2320 = vld [vmem:[%s5 + $0xed8] sm:$0xff]
  %v2321 = vld [vmem:[%s5 + $0xee0] sm:$0xff]
  %v2322 = vld [vmem:[%s5 + $0xee8] sm:$0xff]
  %v2323 = vld [vmem:[%s5 + $0xef0] sm:$0xff]
  %v2324 = vld [vmem:[%s5 + $0xef8] sm:$0xff]
  %v2325 = vld [vmem:[%s5 + $0xf00] sm:$0xff]
  %v2326 = vld [vmem:[%s5 + $0xf08] sm:$0xff]
  %v2327 = vld [vmem:[%s5 + $0xf10] sm:$0xff]
  %v2328 = vld [vmem:[%s5 + $0xf18] sm:$0xff]
  %v2329 = vld [vmem:[%s5 + $0xf20] sm:$0xff]
  %v2330 = vld [vmem:[%s5 + $0xf28] sm:$0xff]
  %v2331 = vld [vmem:[%s5 + $0xf30] sm:$0xff]
  %v2332 = vld [vmem:[%s5 + $0xf38] sm:$0xff]
  %v2333 = vld [vmem:[%s5 + $0xf40] sm:$0xff]
  %v2334 = vld [vmem:[%s5 + $0xf48] sm:$0xff]
  %v2335 = vld [vmem:[%s5 + $0xf50] sm:$0xff]
  %v2336 = vld [vmem:[%s5 + $0xf58] sm:$0xff]
  %v2337 = vld [vmem:[%s5 + $0xf60] sm:$0xff]
  %v2338 = vld [vmem:[%s5 + $0xf68] sm:$0xff]
  %v2339 = vld [vmem:[%s5 + $0xf70] sm:$0xff]
  %v2340 = vld [vmem:[%s5 + $0xf78] sm:$0xff]
  %v2341 = vld [vmem:[%s5 + $0xf80] sm:$0xff]
  %v2342 = vld [vmem:[%s5 + $0xf88] sm:$0xff]
  %v2343 = vld [vmem:[%s5 + $0xf90] sm:$0xff]
  %v2344 = vld [vmem:[%s5 + $0xf98] sm:$0xff]
  %v2345 = vld [vmem:[%s5 + $0xfa0] sm:$0xff]
  %v2346 = vld [vmem:[%s5 + $0xfa8] sm:$0xff]
  %v2347 = vld [vmem:[%s5 + $0xfb0] sm:$0xff]
  %v2348 = vld [vmem:[%s5 + $0xfb8] sm:$0xff]
  %v2349 = vld [vmem:[%s5 + $0xfc0] sm:$0xff]
  %v2350 = vld [vmem:[%s5 + $0xfc8] sm:$0xff]
  %v2351 = vld [vmem:[%s5 + $0xfd0] sm:$0xff]
  %v2352 = vld [vmem:[%s5 + $0xfd8] sm:$0xff]
  %v2353 = vld [vmem:[%s5 + $0xfe0] sm:$0xff]
  %v2354 = vld [vmem:[%s5 + $0xfe8] sm:$0xff]
  %v2355 = vld [vmem:[%s5 + $0xff0] sm:$0xff]
  %v2356 = vld [vmem:[%s5 + $0xff8] sm:$0xff]
  %v2357 = vld [vmem:[%s5 + $0x1000] sm:$0xff]
  %v2358 = vld [vmem:[%s5 + $0x1008] sm:$0xff]
  %v2359 = vld [vmem:[%s5 + $0x1010] sm:$0xff]
  %v2360 = vld [vmem:[%s5 + $0x1018] sm:$0xff]
  %v2361 = vld [vmem:[%s5 + $0x1020] sm:$0xff]
  %v2362 = vld [vmem:[%s5 + $0x1028] sm:$0xff]
  %v2363 = vld [vmem:[%s5 + $0x1030] sm:$0xff]
  %v2364 = vld [vmem:[%s5 + $0x1038] sm:$0xff]
  %v2365 = vld [vmem:[%s5 + $0x1040] sm:$0xff]
  %v2366 = vld [vmem:[%s5 + $0x1048] sm:$0xff]
  %v2367 = vld [vmem:[%s5 + $0x1050] sm:$0xff]
  %v2368 = vld [vmem:[%s5 + $0x1058] sm:$0xff]
  %v2369 = vld [vmem:[%s5 + $0x1060] sm:$0xff]
  %v2370 = vld [vmem:[%s5 + $0x1068] sm:$0xff]
  %v2371 = vld [vmem:[%s5 + $0x1070] sm:$0xff]
  %v2372 = vld [vmem:[%s5 + $0x1078] sm:$0xff]
  %v2373 = vld [vmem:[%s5 + $0x1080] sm:$0xff]
  %v2374 = vld [vmem:[%s5 + $0x1088] sm:$0xff]
  %v2375 = vld [vmem:[%s5 + $0x1090] sm:$0xff]
  %v2376 = vld [vmem:[%s5 + $0x1098] sm:$0xff]
  %v2377 = vld [vmem:[%s5 + $0x10a0] sm:$0xff]
  %v2378 = vld [vmem:[%s5 + $0x10a8] sm:$0xff]
  %v2379 = vld [vmem:[%s5 + $0x10b0] sm:$0xff]
  %v2380 = vld [vmem:[%s5 + $0x10b8] sm:$0xff]
  %v2381 = vld [vmem:[%s5 + $0x10c0] sm:$0xff]
  %v2382 = vld [vmem:[%s5 + $0x10c8] sm:$0xff]
  %v2383 = vld [vmem:[%s5 + $0x10d0] sm:$0xff]
  %v2384 = vld [vmem:[%s5 + $0x10d8] sm:$0xff]
  %v2385 = vld [vmem:[%s5 + $0x10e0] sm:$0xff]
  %v2386 = vld [vmem:[%s5 + $0x10e8] sm:$0xff]
  %v2387 = vld [vmem:[%s5 + $0x10f0] sm:$0xff]
  %v2388 = vld [vmem:[%s5 + $0x10f8] sm:$0xff]
  %v2389 = vld [vmem:[%s5 + $0x1100] sm:$0xff]
  %v2390 = vld [vmem:[%s5 + $0x1108] sm:$0xff]
  %v2391 = vld [vmem:[%s5 + $0x1110] sm:$0xff]
  %v2392 = vld [vmem:[%s5 + $0x1118] sm:$0xff]
  %v2393 = vld [vmem:[%s5 + $0x1120] sm:$0xff]
  %v2394 = vld [vmem:[%s5 + $0x1128] sm:$0xff]
  %v2395 = vld [vmem:[%s5 + $0x1130] sm:$0xff]
  %v2396 = vld [vmem:[%s5 + $0x1138] sm:$0xff]
  %v2397 = vld [vmem:[%s5 + $0x1140] sm:$0xff]
  %v2398 = vld [vmem:[%s5 + $0x1148] sm:$0xff]
  %v2399 = vld [vmem:[%s5 + $0x1150] sm:$0xff]
  %v2400 = vld [vmem:[%s5 + $0x1158] sm:$0xff]
  %v2401 = vld [vmem:[%s5 + $0x1160] sm:$0xff]
  %v2402 = vld [vmem:[%s5 + $0x1168] sm:$0xff]
  %v2403 = vld [vmem:[%s5 + $0x1170] sm:$0xff]
  %v2404 = vld [vmem:[%s5 + $0x1178] sm:$0xff]
  %v2405 = vld [vmem:[%s5 + $0x1180] sm:$0xff]
  %v2406 = vld [vmem:[%s5 + $0x1188] sm:$0xff]
  %v2407 = vld [vmem:[%s5 + $0x1190] sm:$0xff]
  %v2408 = vld [vmem:[%s5 + $0x1198] sm:$0xff]
  %v2409 = vld [vmem:[%s5 + $0x11a0] sm:$0xff]
  %v2410 = vld [vmem:[%s5 + $0x11a8] sm:$0xff]
  %v2411 = vld [vmem:[%s5 + $0x11b0] sm:$0xff]
  %v2412 = vld [vmem:[%s5 + $0x11b8] sm:$0xff]
  %v2413 = vld [vmem:[%s5 + $0x11c0] sm:$0xff]
  %v2414 = vld [vmem:[%s5 + $0x11c8] sm:$0xff]
  %v2415 = vld [vmem:[%s5 + $0x11d0] sm:$0xff]
  %v2416 = vld [vmem:[%s5 + $0x11d8] sm:$0xff]
  %v2417 = vld [vmem:[%s5 + $0x11e0] sm:$0xff]
  %v2418 = vld [vmem:[%s5 + $0x11e8] sm:$0xff]
  %v2419 = vld [vmem:[%s5 + $0x11f0] sm:$0xff]
  %v2420 = vld [vmem:[%s5 + $0x11f8] sm:$0xff]
  %v2421 = vld [vmem:[%s5 + $0x1200] sm:$0xff]
  %v2422 = vld [vmem:[%s5 + $0x1208] sm:$0xff]
  %v2423 = vld [vmem:[%s5 + $0x1210] sm:$0xff]
  %v2424 = vld [vmem:[%s5 + $0x1218] sm:$0xff]
  %v2425 = vld [vmem:[%s5 + $0x1220] sm:$0xff]
  %v2426 = vld [vmem:[%s5 + $0x1228] sm:$0xff]
  %v2427 = vld [vmem:[%s5 + $0x1230] sm:$0xff]
  %v2428 = vld [vmem:[%s5 + $0x1238] sm:$0xff]
  %v2429 = vld [vmem:[%s5 + $0x1240] sm:$0xff]
  %v2430 = vld [vmem:[%s5 + $0x1248] sm:$0xff]
  %v2431 = vld [vmem:[%s5 + $0x1250] sm:$0xff]
  %v2432 = vld [vmem:[%s5 + $0x1258] sm:$0xff]
  %v2433 = vld [vmem:[%s5 + $0x1260] sm:$0xff]
  %v2434 = vld [vmem:[%s5 + $0x1268] sm:$0xff]
  %v2435 = vld [vmem:[%s5 + $0x1270] sm:$0xff]
  %v2436 = vld [vmem:[%s5 + $0x1278] sm:$0xff]
  %v2437 = vld [vmem:[%s5 + $0x1280] sm:$0xff]
  %v2438 = vld [vmem:[%s5 + $0x1288] sm:$0xff]
  %v2439 = vld [vmem:[%s5 + $0x1290] sm:$0xff]
  %v2440 = vld [vmem:[%s5 + $0x1298] sm:$0xff]
  %v2441 = vld [vmem:[%s5 + $0x12a0] sm:$0xff]
  %v2442 = vld [vmem:[%s5 + $0x12a8] sm:$0xff]
  %v2443 = vld [vmem:[%s5 + $0x12b0] sm:$0xff]
  %v2444 = vld [vmem:[%s5 + $0x12b8] sm:$0xff]
  %v2445 = vld [vmem:[%s5 + $0x12c0] sm:$0xff]
  %v2446 = vld [vmem:[%s5 + $0x12c8] sm:$0xff]
  %v2447 = vld [vmem:[%s5 + $0x12d0] sm:$0xff]
  %v2448 = vld [vmem:[%s5 + $0x12d8] sm:$0xff]
  %v2449 = vld [vmem:[%s5 + $0x12e0] sm:$0xff]
  %v2450 = vld [vmem:[%s5 + $0x12e8] sm:$0xff]
  %v2451 = vld [vmem:[%s5 + $0x12f0] sm:$0xff]
  %v2452 = vld [vmem:[%s5 + $0x12f8] sm:$0xff]
  %v2453 = vld [vmem:[%s5 + $0x1300] sm:$0xff]
  %v2454 = vld [vmem:[%s5 + $0x1308] sm:$0xff]
  %v2455 = vld [vmem:[%s5 + $0x1310] sm:$0xff]
  %v2456 = vld [vmem:[%s5 + $0x1318] sm:$0xff]
  %v2457 = vld [vmem:[%s5 + $0x1320] sm:$0xff]
  %v2458 = vld [vmem:[%s5 + $0x1328] sm:$0xff]
  %v2459 = vld [vmem:[%s5 + $0x1330] sm:$0xff]
  %v2460 = vld [vmem:[%s5 + $0x1338] sm:$0xff]
  %v2461 = vld [vmem:[%s5 + $0x1340] sm:$0xff]
  %v2462 = vld [vmem:[%s5 + $0x1348] sm:$0xff]
  %v2463 = vld [vmem:[%s5 + $0x1350] sm:$0xff]
  %v2464 = vld [vmem:[%s5 + $0x1358] sm:$0xff]
  %v2465 = vld [vmem:[%s5 + $0x1360] sm:$0xff]
  %v2466 = vld [vmem:[%s5 + $0x1368] sm:$0xff]
  %v2467 = vld [vmem:[%s5 + $0x1370] sm:$0xff]
  %v2468 = vld [vmem:[%s5 + $0x1378] sm:$0xff]
  %v2469 = vld [vmem:[%s5 + $0x1380] sm:$0xff]
  %v2470 = vld [vmem:[%s5 + $0x1388] sm:$0xff]
  %v2471 = vld [vmem:[%s5 + $0x1390] sm:$0xff]
  %v2472 = vld [vmem:[%s5 + $0x1398] sm:$0xff]
  %v2473 = vld [vmem:[%s5 + $0x13a0] sm:$0xff]
  %v2474 = vld [vmem:[%s5 + $0x13a8] sm:$0xff]
  %v2475 = vld [vmem:[%s5 + $0x13b0] sm:$0xff]
  %v2476 = vld [vmem:[%s5 + $0x13b8] sm:$0xff]
  %v2477 = vld [vmem:[%s5 + $0x13c0] sm:$0xff]
  %v2478 = vld [vmem:[%s5 + $0x13c8] sm:$0xff]
  %v2479 = vld [vmem:[%s5 + $0x13d0] sm:$0xff]
  %v2480 = vld [vmem:[%s5 + $0x13d8] sm:$0xff]
  %v2481 = vld [vmem:[%s5 + $0x13e0] sm:$0xff]
  %v2482 = vld [vmem:[%s5 + $0x13e8] sm:$0xff]
  %v2483 = vld [vmem:[%s5 + $0x13f0] sm:$0xff]
  %v2484 = vld [vmem:[%s5 + $0x13f8] sm:$0xff]
  %v2485 = vld [vmem:[%s5 + $0x1400] sm:$0xff]
  %v2486 = vld [vmem:[%s5 + $0x1408] sm:$0xff]
  %v2487 = vld [vmem:[%s5 + $0x1410] sm:$0xff]
  %v2488 = vld [vmem:[%s5 + $0x1418] sm:$0xff]
  %v2489 = vld [vmem:[%s5 + $0x1420] sm:$0xff]
  %v2490 = vld [vmem:[%s5 + $0x1428] sm:$0xff]
  %v2491 = vld [vmem:[%s5 + $0x1430] sm:$0xff]
  %v2492 = vld [vmem:[%s5 + $0x1438] sm:$0xff]
  %v2493 = vld [vmem:[%s5 + $0x1440] sm:$0xff]
  %v2494 = vld [vmem:[%s5 + $0x1448] sm:$0xff]
  %v2495 = vld [vmem:[%s5 + $0x1450] sm:$0xff]
  %v2496 = vld [vmem:[%s5 + $0x1458] sm:$0xff]
  %v2497 = vld [vmem:[%s5 + $0x1460] sm:$0xff]
  %v2498 = vld [vmem:[%s5 + $0x1468] sm:$0xff]
  %v2499 = vld [vmem:[%s5 + $0x1470] sm:$0xff]
  %v2500 = vld [vmem:[%s5 + $0x1478] sm:$0xff]
  %v2501 = vld [vmem:[%s5 + $0x1480] sm:$0xff]
  %v2502 = vld [vmem:[%s5 + $0x1488] sm:$0xff]
  %v2503 = vld [vmem:[%s5 + $0x1490] sm:$0xff]
  %v2504 = vld [vmem:[%s5 + $0x1498] sm:$0xff]
  %v2505 = vld [vmem:[%s5 + $0x14a0] sm:$0xff]
  %v2506 = vld [vmem:[%s5 + $0x14a8] sm:$0xff]
  %v2507 = vld [vmem:[%s5 + $0x14b0] sm:$0xff]
  %v2508 = vld [vmem:[%s5 + $0x14b8] sm:$0xff]
  %v2509 = vld [vmem:[%s5 + $0x14c0] sm:$0xff]
  %v2510 = vld [vmem:[%s5 + $0x14c8] sm:$0xff]
  %v2511 = vld [vmem:[%s5 + $0x14d0] sm:$0xff]
  %v2512 = vld [vmem:[%s5 + $0x14d8] sm:$0xff]
  %v2513 = vld [vmem:[%s5 + $0x14e0] sm:$0xff]
  %v2514 = vld [vmem:[%s5 + $0x14e8] sm:$0xff]
  %v2515 = vld [vmem:[%s5 + $0x14f0] sm:$0xff]
  %v2516 = vld [vmem:[%s5 + $0x14f8] sm:$0xff]
  %v2517 = vld [vmem:[%s5 + $0x1500] sm:$0xff]
  %v2518 = vld [vmem:[%s5 + $0x1508] sm:$0xff]
  %v2519 = vld [vmem:[%s5 + $0x1510] sm:$0xff]
  %v2520 = vld [vmem:[%s5 + $0x1518] sm:$0xff]
  %v2521 = vld [vmem:[%s5 + $0x1520] sm:$0xff]
  %v2522 = vld [vmem:[%s5 + $0x1528] sm:$0xff]
  %v2523 = vld [vmem:[%s5 + $0x1530] sm:$0xff]
  %v2524 = vld [vmem:[%s5 + $0x1538] sm:$0xff]
  %v2525 = vld [vmem:[%s5 + $0x1540] sm:$0xff]
  %v2526 = vld [vmem:[%s5 + $0x1548] sm:$0xff]
  %v2527 = vld [vmem:[%s5 + $0x1550] sm:$0xff]
  %v2528 = vld [vmem:[%s5 + $0x1558] sm:$0xff]
  %v2529 = vld [vmem:[%s5 + $0x1560] sm:$0xff]
  %v2530 = vld [vmem:[%s5 + $0x1568] sm:$0xff]
  %v2531 = vld [vmem:[%s5 + $0x1570] sm:$0xff]
  %v2532 = vld [vmem:[%s5 + $0x1578] sm:$0xff]
  %v2533 = vld [vmem:[%s5 + $0x1580] sm:$0xff]
  %v2534 = vld [vmem:[%s5 + $0x1588] sm:$0xff]
  %v2535 = vld [vmem:[%s5 + $0x1590] sm:$0xff]
  %v2536 = vld [vmem:[%s5 + $0x1598] sm:$0xff]
  %v2537 = vld [vmem:[%s5 + $0x15a0] sm:$0xff]
  %v2538 = vld [vmem:[%s5 + $0x15a8] sm:$0xff]
  %v2539 = vld [vmem:[%s5 + $0x15b0] sm:$0xff]
  %v2540 = vld [vmem:[%s5 + $0x15b8] sm:$0xff]
  %v2541 = vld [vmem:[%s5 + $0x15c0] sm:$0xff]
  %v2542 = vld [vmem:[%s5 + $0x15c8] sm:$0xff]
  %v2543 = vld [vmem:[%s5 + $0x15d0] sm:$0xff]
  %v2544 = vld [vmem:[%s5 + $0x15d8] sm:$0xff]
  %v2545 = vld [vmem:[%s5 + $0x15e0] sm:$0xff]
  %v2546 = vld [vmem:[%s5 + $0x15e8] sm:$0xff]
  %v2547 = vld [vmem:[%s5 + $0x15f0] sm:$0xff]
  %v2548 = vld [vmem:[%s5 + $0x15f8] sm:$0xff]
  %v2549 = vld [vmem:[%s5 + $0x1600] sm:$0xff]
  %v2550 = vld [vmem:[%s5 + $0x1608] sm:$0xff]
  %v2551 = vld [vmem:[%s5 + $0x1610] sm:$0xff]
  %v2552 = vld [vmem:[%s5 + $0x1618] sm:$0xff]
  %v2553 = vld [vmem:[%s5 + $0x1620] sm:$0xff]
  %v2554 = vld [vmem:[%s5 + $0x1628] sm:$0xff]
  %v2555 = vld [vmem:[%s5 + $0x1630] sm:$0xff]
  %v2556 = vld [vmem:[%s5 + $0x1638] sm:$0xff]
  %v2557 = vld [vmem:[%s5 + $0x1640] sm:$0xff]
  %v2558 = vld [vmem:[%s5 + $0x1648] sm:$0xff]
  %v2559 = vld [vmem:[%s5 + $0x1650] sm:$0xff]
  %v2560 = vld [vmem:[%s5 + $0x1658] sm:$0xff]
  %v2561 = vld [vmem:[%s5 + $0x1660] sm:$0xff]
  %v2562 = vld [vmem:[%s5 + $0x1668] sm:$0xff]
  %v2563 = vld [vmem:[%s5 + $0x1670] sm:$0xff]
  %v2564 = vld [vmem:[%s5 + $0x1678] sm:$0xff]
  %v2565 = vld [vmem:[%s5 + $0x1680] sm:$0xff]
  %v2566 = vld [vmem:[%s5 + $0x1688] sm:$0xff]
  %v2567 = vld [vmem:[%s5 + $0x1690] sm:$0xff]
  %v2568 = vld [vmem:[%s5 + $0x1698] sm:$0xff]
  %v2569 = vld [vmem:[%s5 + $0x16a0] sm:$0xff]
  %v2570 = vld [vmem:[%s5 + $0x16a8] sm:$0xff]
  %v2571 = vld [vmem:[%s5 + $0x16b0] sm:$0xff]
  %v2572 = vld [vmem:[%s5 + $0x16b8] sm:$0xff]
  %v2573 = vld [vmem:[%s5 + $0x16c0] sm:$0xff]
  %v2574 = vld [vmem:[%s5 + $0x16c8] sm:$0xff]
  %v2575 = vld [vmem:[%s5 + $0x16d0] sm:$0xff]
  %v2576 = vld [vmem:[%s5 + $0x16d8] sm:$0xff]
  %v2577 = vld [vmem:[%s5 + $0x16e0] sm:$0xff]
  %v2578 = vld [vmem:[%s5 + $0x16e8] sm:$0xff]
  %v2579 = vld [vmem:[%s5 + $0x16f0] sm:$0xff]
  %v2580 = vld [vmem:[%s5 + $0x16f8] sm:$0xff]
  %v2581 = vld [vmem:[%s5 + $0x1700] sm:$0xff]
  %v2582 = vld [vmem:[%s5 + $0x1708] sm:$0xff]
  %v2583 = vld [vmem:[%s5 + $0x1710] sm:$0xff]
  %v2584 = vld [vmem:[%s5 + $0x1718] sm:$0xff]
  %v2585 = vld [vmem:[%s5 + $0x1720] sm:$0xff]
  %v2586 = vld [vmem:[%s5 + $0x1728] sm:$0xff]
  %v2587 = vld [vmem:[%s5 + $0x1730] sm:$0xff]
  %v2588 = vld [vmem:[%s5 + $0x1738] sm:$0xff]
  %v2589 = vld [vmem:[%s5 + $0x1740] sm:$0xff]
  %v2590 = vld [vmem:[%s5 + $0x1748] sm:$0xff]
  %v2591 = vld [vmem:[%s5 + $0x1750] sm:$0xff]
  %v2592 = vld [vmem:[%s5 + $0x1758] sm:$0xff]
  %v2593 = vld [vmem:[%s5 + $0x1760] sm:$0xff]
  %v2594 = vld [vmem:[%s5 + $0x1768] sm:$0xff]
  %v2595 = vld [vmem:[%s5 + $0x1770] sm:$0xff]
  %v2596 = vld [vmem:[%s5 + $0x1778] sm:$0xff]
  %v2597 = vld [vmem:[%s5 + $0x1780] sm:$0xff]
  %v2598 = vld [vmem:[%s5 + $0x1788] sm:$0xff]
  %v2599 = vld [vmem:[%s5 + $0x1790] sm:$0xff]
  %v2600 = vld [vmem:[%s5 + $0x1798] sm:$0xff]
  %v2601 = vld [vmem:[%s5 + $0x17a0] sm:$0xff]
  %v2602 = vld [vmem:[%s5 + $0x17a8] sm:$0xff]
  %v2603 = vld [vmem:[%s5 + $0x17b0] sm:$0xff]
  %v2604 = vld [vmem:[%s5 + $0x17b8] sm:$0xff]
  %v2605 = vld [vmem:[%s5 + $0x17c0] sm:$0xff]
  %v2606 = vld [vmem:[%s5 + $0x17c8] sm:$0xff]
  %v2607 = vld [vmem:[%s5 + $0x17d0] sm:$0xff]
  %v2608 = vld [vmem:[%s5 + $0x17d8] sm:$0xff]
  %v2609 = vld [vmem:[%s5 + $0x17e0] sm:$0xff]
  %v2610 = vld [vmem:[%s5 + $0x17e8] sm:$0xff]
  %v2611 = vld [vmem:[%s5 + $0x17f0] sm:$0xff]
  %v2612 = vld [vmem:[%s5 + $0x17f8] sm:$0xff]
  %v2613 = vld [vmem:[%s5 + $0x1800] sm:$0xff]
  %v2614 = vld [vmem:[%s5 + $0x1808] sm:$0xff]
  %v2615 = vld [vmem:[%s5 + $0x1810] sm:$0xff]
  %v2616 = vld [vmem:[%s5 + $0x1818] sm:$0xff]
  %v2617 = vld [vmem:[%s5 + $0x1820] sm:$0xff]
  %v2618 = vld [vmem:[%s5 + $0x1828] sm:$0xff]
  %v2619 = vld [vmem:[%s5 + $0x1830] sm:$0xff]
  %v2620 = vld [vmem:[%s5 + $0x1838] sm:$0xff]
  %v2621 = vld [vmem:[%s5 + $0x1840] sm:$0xff]
  %v2622 = vld [vmem:[%s5 + $0x1848] sm:$0xff]
  %v2623 = vld [vmem:[%s5 + $0x1850] sm:$0xff]
  %v2624 = vld [vmem:[%s5 + $0x1858] sm:$0xff]
  %v2625 = vld [vmem:[%s5 + $0x1860] sm:$0xff]
  %v2626 = vld [vmem:[%s5 + $0x1868] sm:$0xff]
  %v2627 = vld [vmem:[%s5 + $0x1870] sm:$0xff]
  %v2628 = vld [vmem:[%s5 + $0x1878] sm:$0xff]
  %v2629 = vld [vmem:[%s5 + $0x1880] sm:$0xff]
  %v2630 = vld [vmem:[%s5 + $0x1888] sm:$0xff]
  %v2631 = vld [vmem:[%s5 + $0x1890] sm:$0xff]
  %v2632 = vld [vmem:[%s5 + $0x1898] sm:$0xff]
  %v2633 = vld [vmem:[%s5 + $0x18a0] sm:$0xff]
  %v2634 = vld [vmem:[%s5 + $0x18a8] sm:$0xff]
  %v2635 = vld [vmem:[%s5 + $0x18b0] sm:$0xff]
  %v2636 = vld [vmem:[%s5 + $0x18b8] sm:$0xff]
  %v2637 = vld [vmem:[%s5 + $0x18c0] sm:$0xff]
  %v2638 = vld [vmem:[%s5 + $0x18c8] sm:$0xff]
  %v2639 = vld [vmem:[%s5 + $0x18d0] sm:$0xff]
  %v2640 = vld [vmem:[%s5 + $0x18d8] sm:$0xff]
  %v2641 = vld [vmem:[%s5 + $0x18e0] sm:$0xff]
  %v2642 = vld [vmem:[%s5 + $0x18e8] sm:$0xff]
  %v2643 = vld [vmem:[%s5 + $0x18f0] sm:$0xff]
  %v2644 = vld [vmem:[%s5 + $0x18f8] sm:$0xff]
  %v2645 = vld [vmem:[%s5 + $0x1900] sm:$0xff]
  %v2646 = vld [vmem:[%s5 + $0x1908] sm:$0xff]
  %v2647 = vld [vmem:[%s5 + $0x1910] sm:$0xff]
  %v2648 = vld [vmem:[%s5 + $0x1918] sm:$0xff]
  %v2649 = vld [vmem:[%s5 + $0x1920] sm:$0xff]
  %v2650 = vld [vmem:[%s5 + $0x1928] sm:$0xff]
  %v2651 = vld [vmem:[%s5 + $0x1930] sm:$0xff]
  %v2652 = vld [vmem:[%s5 + $0x1938] sm:$0xff]
  %v2653 = vld [vmem:[%s5 + $0x1940] sm:$0xff]
  %v2654 = vld [vmem:[%s5 + $0x1948] sm:$0xff]
  %v2655 = vld [vmem:[%s5 + $0x1950] sm:$0xff]
  %v2656 = vld [vmem:[%s5 + $0x1958] sm:$0xff]
  %v2657 = vld [vmem:[%s5 + $0x1960] sm:$0xff]
  %v2658 = vld [vmem:[%s5 + $0x1968] sm:$0xff]
  %v2659 = vld [vmem:[%s5 + $0x1970] sm:$0xff]
  %v2660 = vld [vmem:[%s5 + $0x1978] sm:$0xff]
  %v2661 = vld [vmem:[%s5 + $0x1980] sm:$0xff]
  %v2662 = vld [vmem:[%s5 + $0x1988] sm:$0xff]
  %v2663 = vld [vmem:[%s5 + $0x1990] sm:$0xff]
  %v2664 = vld [vmem:[%s5 + $0x1998] sm:$0xff]
  %v2665 = vld [vmem:[%s5 + $0x19a0] sm:$0xff]
  %v2666 = vld [vmem:[%s5 + $0x19a8] sm:$0xff]
  %v2667 = vld [vmem:[%s5 + $0x19b0] sm:$0xff]
  %v2668 = vld [vmem:[%s5 + $0x19b8] sm:$0xff]
  %v2669 = vld [vmem:[%s5 + $0x19c0] sm:$0xff]
  %v2670 = vld [vmem:[%s5 + $0x19c8] sm:$0xff]
  %v2671 = vld [vmem:[%s5 + $0x19d0] sm:$0xff]
  %v2672 = vld [vmem:[%s5 + $0x19d8] sm:$0xff]
  %v2673 = vld [vmem:[%s5 + $0x19e0] sm:$0xff]
  %v2674 = vld [vmem:[%s5 + $0x19e8] sm:$0xff]
  %v2675 = vld [vmem:[%s5 + $0x19f0] sm:$0xff]
  %v2676 = vld [vmem:[%s5 + $0x19f8] sm:$0xff]
  %v2677 = vld [vmem:[%s5 + $0x1a00] sm:$0xff]
  %v2678 = vld [vmem:[%s5 + $0x1a08] sm:$0xff]
  %v2679 = vld [vmem:[%s5 + $0x1a10] sm:$0xff]
  %v2680 = vld [vmem:[%s5 + $0x1a18] sm:$0xff]
  %v2681 = vld [vmem:[%s5 + $0x1a20] sm:$0xff]
  %v2682 = vld [vmem:[%s5 + $0x1a28] sm:$0xff]
  %v2683 = vld [vmem:[%s5 + $0x1a30] sm:$0xff]
  %v2684 = vld [vmem:[%s5 + $0x1a38] sm:$0xff]
  %v2685 = vld [vmem:[%s5 + $0x1a40] sm:$0xff]
  %v2686 = vld [vmem:[%s5 + $0x1a48] sm:$0xff]
  %v2687 = vld [vmem:[%s5 + $0x1a50] sm:$0xff]
  %v2688 = vld [vmem:[%s5 + $0x1a58] sm:$0xff]
  %v2689 = vld [vmem:[%s5 + $0x1a60] sm:$0xff]
  %v2690 = vld [vmem:[%s5 + $0x1a68] sm:$0xff]
  %v2691 = vld [vmem:[%s5 + $0x1a70] sm:$0xff]
  %v2692 = vld [vmem:[%s5 + $0x1a78] sm:$0xff]
  %v2693 = vld [vmem:[%s5 + $0x1a80] sm:$0xff]
  %v2694 = vld [vmem:[%s5 + $0x1a88] sm:$0xff]
  %v2695 = vld [vmem:[%s5 + $0x1a90] sm:$0xff]
  %v2696 = vld [vmem:[%s5 + $0x1a98] sm:$0xff]
  %v2697 = vld [vmem:[%s5 + $0x1aa0] sm:$0xff]
  %v2698 = vld [vmem:[%s5 + $0x1aa8] sm:$0xff]
  %v2699 = vld [vmem:[%s5 + $0x1ab0] sm:$0xff]
  %v2700 = vld [vmem:[%s5 + $0x1ab8] sm:$0xff]
  %v2701 = vld [vmem:[%s5 + $0x1ac0] sm:$0xff]
  %v2702 = vld [vmem:[%s5 + $0x1ac8] sm:$0xff]
  %v2703 = vld [vmem:[%s5 + $0x1ad0] sm:$0xff]
  %v2704 = vld [vmem:[%s5 + $0x1ad8] sm:$0xff]
  %v2705 = vld [vmem:[%s5 + $0x1ae0] sm:$0xff]
  %v2706 = vld [vmem:[%s5 + $0x1ae8] sm:$0xff]
  %v2707 = vld [vmem:[%s5 + $0x1af0] sm:$0xff]
  %v2708 = vld [vmem:[%s5 + $0x1af8] sm:$0xff]
  %v2709 = vld [vmem:[%s5 + $0x1b00] sm:$0xff]
  %v2710 = vld [vmem:[%s5 + $0x1b08] sm:$0xff]
  %v2711 = vld [vmem:[%s5 + $0x1b10] sm:$0xff]
  %v2712 = vld [vmem:[%s5 + $0x1b18] sm:$0xff]
  %v2713 = vld [vmem:[%s5 + $0x1b20] sm:$0xff]
  %v2714 = vld [vmem:[%s5 + $0x1b28] sm:$0xff]
  %v2715 = vld [vmem:[%s5 + $0x1b30] sm:$0xff]
  %v2716 = vld [vmem:[%s5 + $0x1b38] sm:$0xff]
  %v2717 = vld [vmem:[%s5 + $0x1b40] sm:$0xff]
  %v2718 = vld [vmem:[%s5 + $0x1b48] sm:$0xff]
  %v2719 = vld [vmem:[%s5 + $0x1b50] sm:$0xff]
  %v2720 = vld [vmem:[%s5 + $0x1b58] sm:$0xff]
  %v2721 = vld [vmem:[%s5 + $0x1b60] sm:$0xff]
  %v2722 = vld [vmem:[%s5 + $0x1b68] sm:$0xff]
  %v2723 = vld [vmem:[%s5 + $0x1b70] sm:$0xff]
  %v2724 = vld [vmem:[%s5 + $0x1b78] sm:$0xff]
  %v2725 = vld [vmem:[%s5 + $0x1b80] sm:$0xff]
  %v2726 = vld [vmem:[%s5 + $0x1b88] sm:$0xff]
  %v2727 = vld [vmem:[%s5 + $0x1b90] sm:$0xff]
  %v2728 = vld [vmem:[%s5 + $0x1b98] sm:$0xff]
  %v2729 = vld [vmem:[%s5 + $0x1ba0] sm:$0xff]
  %v2730 = vld [vmem:[%s5 + $0x1ba8] sm:$0xff]
  %v2731 = vld [vmem:[%s5 + $0x1bb0] sm:$0xff]
  %v2732 = vld [vmem:[%s5 + $0x1bb8] sm:$0xff]
  %v2733 = vld [vmem:[%s5 + $0x1bc0] sm:$0xff]
  %v2734 = vld [vmem:[%s5 + $0x1bc8] sm:$0xff]
  %v2735 = vld [vmem:[%s5 + $0x1bd0] sm:$0xff]
  %v2736 = vld [vmem:[%s5 + $0x1bd8] sm:$0xff]
  %v2737 = vld [vmem:[%s5 + $0x1be0] sm:$0xff]
  %v2738 = vld [vmem:[%s5 + $0x1be8] sm:$0xff]
  %v2739 = vld [vmem:[%s5 + $0x1bf0] sm:$0xff]
  %v2740 = vld [vmem:[%s5 + $0x1bf8] sm:$0xff]
  %v2741 = vld [vmem:[%s5 + $0x1c00] sm:$0xff]
  %v2742 = vld [vmem:[%s5 + $0x1c08] sm:$0xff]
  %v2743 = vld [vmem:[%s5 + $0x1c10] sm:$0xff]
  %v2744 = vld [vmem:[%s5 + $0x1c18] sm:$0xff]
  %v2745 = vld [vmem:[%s5 + $0x1c20] sm:$0xff]
  %v2746 = vld [vmem:[%s5 + $0x1c28] sm:$0xff]
  %v2747 = vld [vmem:[%s5 + $0x1c30] sm:$0xff]
  %v2748 = vld [vmem:[%s5 + $0x1c38] sm:$0xff]
  %v2749 = vld [vmem:[%s5 + $0x1c40] sm:$0xff]
  %v2750 = vld [vmem:[%s5 + $0x1c48] sm:$0xff]
  %v2751 = vld [vmem:[%s5 + $0x1c50] sm:$0xff]
  %v2752 = vld [vmem:[%s5 + $0x1c58] sm:$0xff]
  %v2753 = vld [vmem:[%s5 + $0x1c60] sm:$0xff]
  %v2754 = vld [vmem:[%s5 + $0x1c68] sm:$0xff]
  %v2755 = vld [vmem:[%s5 + $0x1c70] sm:$0xff]
  %v2756 = vld [vmem:[%s5 + $0x1c78] sm:$0xff]
  %v2757 = vld [vmem:[%s5 + $0x1c80] sm:$0xff]
  %v2758 = vld [vmem:[%s5 + $0x1c88] sm:$0xff]
  %v2759 = vld [vmem:[%s5 + $0x1c90] sm:$0xff]
  %v2760 = vld [vmem:[%s5 + $0x1c98] sm:$0xff]
  %v2761 = vld [vmem:[%s5 + $0x1ca0] sm:$0xff]
  %v2762 = vld [vmem:[%s5 + $0x1ca8] sm:$0xff]
  %v2763 = vld [vmem:[%s5 + $0x1cb0] sm:$0xff]
  %v2764 = vld [vmem:[%s5 + $0x1cb8] sm:$0xff]
  %v2765 = vld [vmem:[%s5 + $0x1cc0] sm:$0xff]
  %v2766 = vld [vmem:[%s5 + $0x1cc8] sm:$0xff]
  %v2767 = vld [vmem:[%s5 + $0x1cd0] sm:$0xff]
  %v2768 = vld [vmem:[%s5 + $0x1cd8] sm:$0xff]
  %v2769 = vld [vmem:[%s5 + $0x1ce0] sm:$0xff]
  %v2770 = vld [vmem:[%s5 + $0x1ce8] sm:$0xff]
  %v2771 = vld [vmem:[%s5 + $0x1cf0] sm:$0xff]
  %v2772 = vld [vmem:[%s5 + $0x1cf8] sm:$0xff]
  %v2773 = vld [vmem:[%s5 + $0x1d00] sm:$0xff]
  %v2774 = vld [vmem:[%s5 + $0x1d08] sm:$0xff]
  %v2775 = vld [vmem:[%s5 + $0x1d10] sm:$0xff]
  %v2776 = vld [vmem:[%s5 + $0x1d18] sm:$0xff]
  %v2777 = vld [vmem:[%s5 + $0x1d20] sm:$0xff]
  %v2778 = vld [vmem:[%s5 + $0x1d28] sm:$0xff]
  %v2779 = vld [vmem:[%s5 + $0x1d30] sm:$0xff]
  %v2780 = vld [vmem:[%s5 + $0x1d38] sm:$0xff]
  %v2781 = vld [vmem:[%s5 + $0x1d40] sm:$0xff]
  %v2782 = vld [vmem:[%s5 + $0x1d48] sm:$0xff]
  %v2783 = vld [vmem:[%s5 + $0x1d50] sm:$0xff]
  %v2784 = vld [vmem:[%s5 + $0x1d58] sm:$0xff]
  %v2785 = vld [vmem:[%s5 + $0x1d60] sm:$0xff]
  %v2786 = vld [vmem:[%s5 + $0x1d68] sm:$0xff]
  %v2787 = vld [vmem:[%s5 + $0x1d70] sm:$0xff]
  %v2788 = vld [vmem:[%s5 + $0x1d78] sm:$0xff]
  %v2789 = vld [vmem:[%s5 + $0x1d80] sm:$0xff]
  %v2790 = vld [vmem:[%s5 + $0x1d88] sm:$0xff]
  %v2791 = vld [vmem:[%s5 + $0x1d90] sm:$0xff]
  %v2792 = vld [vmem:[%s5 + $0x1d98] sm:$0xff]
  %v2793 = vld [vmem:[%s5 + $0x1da0] sm:$0xff]
  %v2794 = vld [vmem:[%s5 + $0x1da8] sm:$0xff]
  %v2795 = vld [vmem:[%s5 + $0x1db0] sm:$0xff]
  %v2796 = vld [vmem:[%s5 + $0x1db8] sm:$0xff]
  %v2797 = vld [vmem:[%s5 + $0x1dc0] sm:$0xff]
  %v2798 = vld [vmem:[%s5 + $0x1dc8] sm:$0xff]
  %v2799 = vld [vmem:[%s5 + $0x1dd0] sm:$0xff]
  %v2800 = vld [vmem:[%s5 + $0x1dd8] sm:$0xff]
  %v2801 = vld [vmem:[%s5 + $0x1de0] sm:$0xff]
  %v2802 = vld [vmem:[%s5 + $0x1de8] sm:$0xff]
  %v2803 = vld [vmem:[%s5 + $0x1df0] sm:$0xff]
  %v2804 = vld [vmem:[%s5 + $0x1df8] sm:$0xff]
  %v2805 = vld [vmem:[%s5 + $0x1e00] sm:$0xff]
  %v2806 = vld [vmem:[%s5 + $0x1e08] sm:$0xff]
  %v2807 = vld [vmem:[%s5 + $0x1e10] sm:$0xff]
  %v2808 = vld [vmem:[%s5 + $0x1e18] sm:$0xff]
  %v2809 = vld [vmem:[%s5 + $0x1e20] sm:$0xff]
  %v2810 = vld [vmem:[%s5 + $0x1e28] sm:$0xff]
  %v2811 = vld [vmem:[%s5 + $0x1e30] sm:$0xff]
  %v2812 = vld [vmem:[%s5 + $0x1e38] sm:$0xff]
  %v2813 = vld [vmem:[%s5 + $0x1e40] sm:$0xff]
  %v2814 = vld [vmem:[%s5 + $0x1e48] sm:$0xff]
  %v2815 = vld [vmem:[%s5 + $0x1e50] sm:$0xff]
  %v2816 = vld [vmem:[%s5 + $0x1e58] sm:$0xff]
  %v2817 = vld [vmem:[%s5 + $0x1e60] sm:$0xff]
  %v2818 = vld [vmem:[%s5 + $0x1e68] sm:$0xff]
  %v2819 = vld [vmem:[%s5 + $0x1e70] sm:$0xff]
  %v2820 = vld [vmem:[%s5 + $0x1e78] sm:$0xff]
  %v2821 = vld [vmem:[%s5 + $0x1e80] sm:$0xff]
  %v2822 = vld [vmem:[%s5 + $0x1e88] sm:$0xff]
  %v2823 = vld [vmem:[%s5 + $0x1e90] sm:$0xff]
  %v2824 = vld [vmem:[%s5 + $0x1e98] sm:$0xff]
  %v2825 = vld [vmem:[%s5 + $0x1ea0] sm:$0xff]
  %v2826 = vld [vmem:[%s5 + $0x1ea8] sm:$0xff]
  %v2827 = vld [vmem:[%s5 + $0x1eb0] sm:$0xff]
  %v2828 = vld [vmem:[%s5 + $0x1eb8] sm:$0xff]
  %v2829 = vld [vmem:[%s5 + $0x1ec0] sm:$0xff]
  %v2830 = vld [vmem:[%s5 + $0x1ec8] sm:$0xff]
  %v2831 = vld [vmem:[%s5 + $0x1ed0] sm:$0xff]
  %v2832 = vld [vmem:[%s5 + $0x1ed8] sm:$0xff]
  %v2833 = vld [vmem:[%s5 + $0x1ee0] sm:$0xff]
  %v2834 = vld [vmem:[%s5 + $0x1ee8] sm:$0xff]
  %v2835 = vld [vmem:[%s5 + $0x1ef0] sm:$0xff]
  %v2836 = vld [vmem:[%s5 + $0x1ef8] sm:$0xff]
  %v2837 = vld [vmem:[%s5 + $0x1f00] sm:$0xff]
  %v2838 = vld [vmem:[%s5 + $0x1f08] sm:$0xff]
  %v2839 = vld [vmem:[%s5 + $0x1f10] sm:$0xff]
  %v2840 = vld [vmem:[%s5 + $0x1f18] sm:$0xff]
  %v2841 = vld [vmem:[%s5 + $0x1f20] sm:$0xff]
  %v2842 = vld [vmem:[%s5 + $0x1f28] sm:$0xff]
  %v2843 = vld [vmem:[%s5 + $0x1f30] sm:$0xff]
  %v2844 = vld [vmem:[%s5 + $0x1f38] sm:$0xff]
  %v2845 = vld [vmem:[%s5 + $0x1f40] sm:$0xff]
  %v2846 = vld [vmem:[%s5 + $0x1f48] sm:$0xff]
  %v2847 = vld [vmem:[%s5 + $0x1f50] sm:$0xff]
  %v2848 = vld [vmem:[%s5 + $0x1f58] sm:$0xff]
  %v2849 = vld [vmem:[%s5 + $0x1f60] sm:$0xff]
  %v2850 = vld [vmem:[%s5 + $0x1f68] sm:$0xff]
  %v2851 = vld [vmem:[%s5 + $0x1f70] sm:$0xff]
  %v2852 = vld [vmem:[%s5 + $0x1f78] sm:$0xff]
  %v2853 = vld [vmem:[%s5 + $0x1f80] sm:$0xff]
  %v2854 = vld [vmem:[%s5 + $0x1f88] sm:$0xff]
  %v2855 = vld [vmem:[%s5 + $0x1f90] sm:$0xff]
  %v2856 = vld [vmem:[%s5 + $0x1f98] sm:$0xff]
  %v2857 = vld [vmem:[%s5 + $0x1fa0] sm:$0xff]
  %v2858 = vld [vmem:[%s5 + $0x1fa8] sm:$0xff]
  %v2859 = vld [vmem:[%s5 + $0x1fb0] sm:$0xff]
  %v2860 = vld [vmem:[%s5 + $0x1fb8] sm:$0xff]
  %v2861 = vld [vmem:[%s5 + $0x1fc0] sm:$0xff]
  %v2862 = vld [vmem:[%s5 + $0x1fc8] sm:$0xff]
  %v2863 = vld [vmem:[%s5 + $0x1fd0] sm:$0xff]
  %v2864 = vld [vmem:[%s5 + $0x1fd8] sm:$0xff]
  %v2865 = vld [vmem:[%s5 + $0x1fe0] sm:$0xff]
  %v2866 = vld [vmem:[%s5 + $0x1fe8] sm:$0xff]
  %v2867 = vld [vmem:[%s5 + $0x1ff0] sm:$0xff]
  %v2868 = vld [vmem:[%s5 + $0x1ff8] sm:$0xff]
  %v2869 = vld [vmem:[%s5 + $0x2000] sm:$0xff]
  %v2870 = vld [vmem:[%s5 + $0x2008] sm:$0xff]
  %v2871 = vld [vmem:[%s5 + $0x2010] sm:$0xff]
  %v2872 = vld [vmem:[%s5 + $0x2018] sm:$0xff]
  %v2873 = vld [vmem:[%s5 + $0x2020] sm:$0xff]
  %v2874 = vld [vmem:[%s5 + $0x2028] sm:$0xff]
  %v2875 = vld [vmem:[%s5 + $0x2030] sm:$0xff]
  %v2876 = vld [vmem:[%s5 + $0x2038] sm:$0xff]
  %v2877 = vld [vmem:[%s5 + $0x2040] sm:$0xff]
  %v2878 = vld [vmem:[%s5 + $0x2048] sm:$0xff]
  %v2879 = vld [vmem:[%s5 + $0x2050] sm:$0xff]
  %v2880 = vld [vmem:[%s5 + $0x2058] sm:$0xff]
  %v2881 = vld [vmem:[%s5 + $0x2060] sm:$0xff]
  %v2882 = vld [vmem:[%s5 + $0x2068] sm:$0xff]
  %v2883 = vld [vmem:[%s5 + $0x2070] sm:$0xff]
  %v2884 = vld [vmem:[%s5 + $0x2078] sm:$0xff]
  %v2885 = vld [vmem:[%s5 + $0x2080] sm:$0xff]
  %v2886 = vld [vmem:[%s5 + $0x2088] sm:$0xff]
  %v2887 = vld [vmem:[%s5 + $0x2090] sm:$0xff]
  %v2888 = vld [vmem:[%s5 + $0x2098] sm:$0xff]
  %v2889 = vld [vmem:[%s5 + $0x20a0] sm:$0xff]
  %v2890 = vld [vmem:[%s5 + $0x20a8] sm:$0xff]
  %v2891 = vld [vmem:[%s5 + $0x20b0] sm:$0xff]
  %v2892 = vld [vmem:[%s5 + $0x20b8] sm:$0xff]
  %v2893 = vld [vmem:[%s5 + $0x20c0] sm:$0xff]
  %v2894 = vld [vmem:[%s5 + $0x20c8] sm:$0xff]
  %v2895 = vld [vmem:[%s5 + $0x20d0] sm:$0xff]
  %v2896 = vld [vmem:[%s5 + $0x20d8] sm:$0xff]
  %v2897 = vld [vmem:[%s5 + $0x20e0] sm:$0xff]
  %v2898 = vld [vmem:[%s5 + $0x20e8] sm:$0xff]
  %v2899 = vld [vmem:[%s5 + $0x20f0] sm:$0xff]
  %v2900 = vld [vmem:[%s5 + $0x20f8] sm:$0xff]
  %v2901 = vld [vmem:[%s5 + $0x2100] sm:$0xff]
  %v2902 = vld [vmem:[%s5 + $0x2108] sm:$0xff]
  %v2903 = vld [vmem:[%s5 + $0x2110] sm:$0xff]
  %v2904 = vld [vmem:[%s5 + $0x2118] sm:$0xff]
  %v2905 = vld [vmem:[%s5 + $0x2120] sm:$0xff]
  %v2906 = vld [vmem:[%s5 + $0x2128] sm:$0xff]
  %v2907 = vld [vmem:[%s5 + $0x2130] sm:$0xff]
  %v2908 = vld [vmem:[%s5 + $0x2138] sm:$0xff]
  %v2909 = vld [vmem:[%s5 + $0x2140] sm:$0xff]
  %v2910 = vld [vmem:[%s5 + $0x2148] sm:$0xff]
  %v2911 = vld [vmem:[%s5 + $0x2150] sm:$0xff]
  %v2912 = vld [vmem:[%s5 + $0x2158] sm:$0xff]
  %v2913 = vld [vmem:[%s5 + $0x2160] sm:$0xff]
  %v2914 = vld [vmem:[%s5 + $0x2168] sm:$0xff]
  %v2915 = vld [vmem:[%s5 + $0x2170] sm:$0xff]
  %v2916 = vld [vmem:[%s5 + $0x2178] sm:$0xff]
  %v2917 = vld [vmem:[%s5 + $0x2180] sm:$0xff]
  %v2918 = vld [vmem:[%s5 + $0x2188] sm:$0xff]
  %v2919 = vld [vmem:[%s5 + $0x2190] sm:$0xff]
  %v2920 = vld [vmem:[%s5 + $0x2198] sm:$0xff]
  %v2921 = vld [vmem:[%s5 + $0x21a0] sm:$0xff]
  %v2922 = vld [vmem:[%s5 + $0x21a8] sm:$0xff]
  %v2923 = vld [vmem:[%s5 + $0x21b0] sm:$0xff]
  %v2924 = vld [vmem:[%s5 + $0x21b8] sm:$0xff]
  %v2925 = vld [vmem:[%s5 + $0x21c0] sm:$0xff]
  %v2926 = vld [vmem:[%s5 + $0x21c8] sm:$0xff]
  %v2927 = vld [vmem:[%s5 + $0x21d0] sm:$0xff]
  %v2928 = vld [vmem:[%s5 + $0x21d8] sm:$0xff]
  %v2929 = vld [vmem:[%s5 + $0x21e0] sm:$0xff]
  %v2930 = vld [vmem:[%s5 + $0x21e8] sm:$0xff]
  %v2931 = vld [vmem:[%s5 + $0x21f0] sm:$0xff]
  %v2932 = vld [vmem:[%s5 + $0x21f8] sm:$0xff]
  %v2933 = vld [vmem:[%s5 + $0x2200] sm:$0xff]
  %v2934 = vld [vmem:[%s5 + $0x2208] sm:$0xff]
  %v2935 = vld [vmem:[%s5 + $0x2210] sm:$0xff]
  %v2936 = vld [vmem:[%s5 + $0x2218] sm:$0xff]
  %v2937 = vld [vmem:[%s5 + $0x2220] sm:$0xff]
  %v2938 = vld [vmem:[%s5 + $0x2228] sm:$0xff]
  %v2939 = vld [vmem:[%s5 + $0x2230] sm:$0xff]
  %v2940 = vld [vmem:[%s5 + $0x2238] sm:$0xff]
  %v2941 = vld [vmem:[%s5 + $0x2240] sm:$0xff]
  %v2942 = vld [vmem:[%s5 + $0x2248] sm:$0xff]
  %v2943 = vld [vmem:[%s5 + $0x2250] sm:$0xff]
  %v2944 = vld [vmem:[%s5 + $0x2258] sm:$0xff]
  %v2945 = vld [vmem:[%s5 + $0x2260] sm:$0xff]
  %v2946 = vld [vmem:[%s5 + $0x2268] sm:$0xff]
  %v2947 = vld [vmem:[%s5 + $0x2270] sm:$0xff]
  %v2948 = vld [vmem:[%s5 + $0x2278] sm:$0xff]
  %v2949 = vld [vmem:[%s5 + $0x2280] sm:$0xff]
  %v2950 = vld [vmem:[%s5 + $0x2288] sm:$0xff]
  %v2951 = vld [vmem:[%s5 + $0x2290] sm:$0xff]
  %v2952 = vld [vmem:[%s5 + $0x2298] sm:$0xff]
  %v2953 = vld [vmem:[%s5 + $0x22a0] sm:$0xff]
  %v2954 = vld [vmem:[%s5 + $0x22a8] sm:$0xff]
  %v2955 = vld [vmem:[%s5 + $0x22b0] sm:$0xff]
  %v2956 = vld [vmem:[%s5 + $0x22b8] sm:$0xff]
  %v2957 = vld [vmem:[%s5 + $0x22c0] sm:$0xff]
  %v2958 = vld [vmem:[%s5 + $0x22c8] sm:$0xff]
  %v2959 = vld [vmem:[%s5 + $0x22d0] sm:$0xff]
  %v2960 = vld [vmem:[%s5 + $0x22d8] sm:$0xff]
  %v2961 = vld [vmem:[%s5 + $0x22e0] sm:$0xff]
  %v2962 = vld [vmem:[%s5 + $0x22e8] sm:$0xff]
  %v2963 = vld [vmem:[%s5 + $0x22f0] sm:$0xff]
  %v2964 = vld [vmem:[%s5 + $0x22f8] sm:$0xff]
  %v2965 = vld [vmem:[%s5 + $0x2300] sm:$0xff]
  %v2966 = vld [vmem:[%s5 + $0x2308] sm:$0xff]
  %v2967 = vld [vmem:[%s5 + $0x2310] sm:$0xff]
  %v2968 = vld [vmem:[%s5 + $0x2318] sm:$0xff]
  %v2969 = vld [vmem:[%s5 + $0x2320] sm:$0xff]
  %v2970 = vld [vmem:[%s5 + $0x2328] sm:$0xff]
  %v2971 = vld [vmem:[%s5 + $0x2330] sm:$0xff]
  %v2972 = vld [vmem:[%s5 + $0x2338] sm:$0xff]
  %v2973 = vld [vmem:[%s5 + $0x2340] sm:$0xff]
  %v2974 = vld [vmem:[%s5 + $0x2348] sm:$0xff]
  %v2975 = vld [vmem:[%s5 + $0x2350] sm:$0xff]
  %v2976 = vld [vmem:[%s5 + $0x2358] sm:$0xff]
  %v2977 = vld [vmem:[%s5 + $0x2360] sm:$0xff]
  %v2978 = vld [vmem:[%s5 + $0x2368] sm:$0xff]
  %v2979 = vld [vmem:[%s5 + $0x2370] sm:$0xff]
  %v2980 = vld [vmem:[%s5 + $0x2378] sm:$0xff]
  %v2981 = vld [vmem:[%s5 + $0x2380] sm:$0xff]
  %v2982 = vld [vmem:[%s5 + $0x2388] sm:$0xff]
  %v2983 = vld [vmem:[%s5 + $0x2390] sm:$0xff]
  %v2984 = vld [vmem:[%s5 + $0x2398] sm:$0xff]
  %v2985 = vld [vmem:[%s5 + $0x23a0] sm:$0xff]
  %v2986 = vld [vmem:[%s5 + $0x23a8] sm:$0xff]
  %v2987 = vld [vmem:[%s5 + $0x23b0] sm:$0xff]
  %v2988 = vld [vmem:[%s5 + $0x23b8] sm:$0xff]
  %v2989 = vld [vmem:[%s5 + $0x23c0] sm:$0xff]
  %v2990 = vld [vmem:[%s5 + $0x23c8] sm:$0xff]
  %v2991 = vld [vmem:[%s5 + $0x23d0] sm:$0xff]
  %v2992 = vld [vmem:[%s5 + $0x23d8] sm:$0xff]
  %v2993 = vld [vmem:[%s5 + $0x23e0] sm:$0xff]
  %v2994 = vld [vmem:[%s5 + $0x23e8] sm:$0xff]
  %v2995 = vld [vmem:[%s5 + $0x23f0] sm:$0xff]
  %v2996 = vld [vmem:[%s5 + $0x23f8] sm:$0xff]
  %v2998 = vlaneseq
  %v2999 = vshrl.u32 %v2998, 7
  %v3000 = vsub.s32 0, %v2999
  %v3001 = vrot.slane %v93, %v3000
  %v3002 = vlaneseq
  %v3003 = vshrl.u32 %v3002, 7
  %v3004 = vsub.s32 1, %v3003
  %v3005 = vrot.slane %v93, %v3004
  %v3006 = vlaneseq
  %v3007 = vshrl.u32 %v3006, 7
  %v3008 = vsub.s32 2, %v3007
  %v3009 = vrot.slane %v93, %v3008
  %v3010 = vlaneseq
  %v3011 = vshrl.u32 %v3010, 7
  %v3012 = vsub.s32 3, %v3011
  %v3013 = vrot.slane %v93, %v3012
  %v3090 = vunpack.c.l.b16 %v1773
  %v3091 = vunpack.c.h.b16 %v1773
  %v3092 = vunpack.c.l.b16 %v1774
  %v3093 = vunpack.c.h.b16 %v1774
  %v3094 = vunpack.c.l.b16 %v1775
  %v3095 = vunpack.c.h.b16 %v1775
  %v3096 = vunpack.c.l.b16 %v1776
  %v3097 = vunpack.c.h.b16 %v1776
  %v3098 = vunpack.c.l.b16 %v1777
  %v3099 = vunpack.c.h.b16 %v1777
  %v3100 = vunpack.c.l.b16 %v1778
  %v3101 = vunpack.c.h.b16 %v1778
  %v3102 = vunpack.c.l.b16 %v1779
  %v3103 = vunpack.c.h.b16 %v1779
  %v3104 = vunpack.c.l.b16 %v1780
  %v3105 = vunpack.c.h.b16 %v1780
  %v3106 = vunpack.c.l.b16 %v1781
  %v3107 = vunpack.c.h.b16 %v1781
  %v3108 = vunpack.c.l.b16 %v1782
  %v3109 = vunpack.c.h.b16 %v1782
  %v3110 = vunpack.c.l.b16 %v1783
  %v3111 = vunpack.c.h.b16 %v1783
  %v3112 = vunpack.c.l.b16 %v1784
  %v3113 = vunpack.c.h.b16 %v1784
  %v3114 = vunpack.c.l.b16 %v1785
  %v3115 = vunpack.c.h.b16 %v1785
  %v3116 = vunpack.c.l.b16 %v1786
  %v3117 = vunpack.c.h.b16 %v1786
  %v3118 = vunpack.c.l.b16 %v1787
  %v3119 = vunpack.c.h.b16 %v1787
  %v3120 = vunpack.c.l.b16 %v1788
  %v3121 = vunpack.c.h.b16 %v1788
  %v3122 = vunpack.c.l.b16 %v1789
  %v3123 = vunpack.c.h.b16 %v1789
  %v3124 = vunpack.c.l.b16 %v1790
  %v3125 = vunpack.c.h.b16 %v1790
  %v3126 = vunpack.c.l.b16 %v1791
  %v3127 = vunpack.c.h.b16 %v1791
  %v3128 = vunpack.c.l.b16 %v1792
  %v3129 = vunpack.c.h.b16 %v1792
  %v3130 = vunpack.c.l.b16 %v1793
  %v3131 = vunpack.c.h.b16 %v1793
  %v3132 = vunpack.c.l.b16 %v1794
  %v3133 = vunpack.c.h.b16 %v1794
  %v3134 = vunpack.c.l.b16 %v1795
  %v3135 = vunpack.c.h.b16 %v1795
  %v3136 = vunpack.c.l.b16 %v1796
  %v3137 = vunpack.c.h.b16 %v1796
  %v3138 = vunpack.c.l.b16 %v1797
  %v3139 = vunpack.c.h.b16 %v1797
  %v3140 = vunpack.c.l.b16 %v1798
  %v3141 = vunpack.c.h.b16 %v1798
  %v3142 = vunpack.c.l.b16 %v1799
  %v3143 = vunpack.c.h.b16 %v1799
  %v3144 = vunpack.c.l.b16 %v1800
  %v3145 = vunpack.c.h.b16 %v1800
  %v3146 = vunpack.c.l.b16 %v1801
  %v3147 = vunpack.c.h.b16 %v1801
  %v3148 = vunpack.c.l.b16 %v1802
  %v3149 = vunpack.c.h.b16 %v1802
  %v3150 = vunpack.c.l.b16 %v1803
  %v3151 = vunpack.c.h.b16 %v1803
  %v3152 = vunpack.c.l.b16 %v1804
  %v3153 = vunpack.c.h.b16 %v1804
  %v3154 = vunpack.c.l.b16 %v1805
  %v3155 = vunpack.c.h.b16 %v1805
  %v3156 = vunpack.c.l.b16 %v1806
  %v3157 = vunpack.c.h.b16 %v1806
  %v3158 = vunpack.c.l.b16 %v1807
  %v3159 = vunpack.c.h.b16 %v1807
  %v3160 = vunpack.c.l.b16 %v1808
  %v3161 = vunpack.c.h.b16 %v1808
  %v3162 = vunpack.c.l.b16 %v1809
  %v3163 = vunpack.c.h.b16 %v1809
  %v3164 = vunpack.c.l.b16 %v1810
  %v3165 = vunpack.c.h.b16 %v1810
  %v3166 = vunpack.c.l.b16 %v1811
  %v3167 = vunpack.c.h.b16 %v1811
  %v3168 = vunpack.c.l.b16 %v1812
  %v3169 = vunpack.c.h.b16 %v1812
  %v3170 = vunpack.c.l.b16 %v1813
  %v3171 = vunpack.c.h.b16 %v1813
  %v3172 = vunpack.c.l.b16 %v1814
  %v3173 = vunpack.c.h.b16 %v1814
  %v3174 = vunpack.c.l.b16 %v1815
  %v3175 = vunpack.c.h.b16 %v1815
  %v3176 = vunpack.c.l.b16 %v1816
  %v3177 = vunpack.c.h.b16 %v1816
  %v3178 = vunpack.c.l.b16 %v1817
  %v3179 = vunpack.c.h.b16 %v1817
  %v3180 = vunpack.c.l.b16 %v1818
  %v3181 = vunpack.c.h.b16 %v1818
  %v3182 = vunpack.c.l.b16 %v1819
  %v3183 = vunpack.c.h.b16 %v1819
  %v3184 = vunpack.c.l.b16 %v1820
  %v3185 = vunpack.c.h.b16 %v1820
  %v3186 = vunpack.c.l.b16 %v1821
  %v3187 = vunpack.c.h.b16 %v1821
  %v3188 = vunpack.c.l.b16 %v1822
  %v3189 = vunpack.c.h.b16 %v1822
  %v3190 = vunpack.c.l.b16 %v1823
  %v3191 = vunpack.c.h.b16 %v1823
  %v3192 = vunpack.c.l.b16 %v1824
  %v3193 = vunpack.c.h.b16 %v1824
  %v3194 = vunpack.c.l.b16 %v1825
  %v3195 = vunpack.c.h.b16 %v1825
  %v3196 = vunpack.c.l.b16 %v1826
  %v3197 = vunpack.c.h.b16 %v1826
  %v3198 = vunpack.c.l.b16 %v1827
  %v3199 = vunpack.c.h.b16 %v1827
  %v3200 = vunpack.c.l.b16 %v1828
  %v3201 = vunpack.c.h.b16 %v1828
  %v3202 = vunpack.c.l.b16 %v1829
  %v3203 = vunpack.c.h.b16 %v1829
  %v3204 = vunpack.c.l.b16 %v1830
  %v3205 = vunpack.c.h.b16 %v1830
  %v3206 = vunpack.c.l.b16 %v1831
  %v3207 = vunpack.c.h.b16 %v1831
  %v3208 = vunpack.c.l.b16 %v1832
  %v3209 = vunpack.c.h.b16 %v1832
  %v3210 = vunpack.c.l.b16 %v1833
  %v3211 = vunpack.c.h.b16 %v1833
  %v3212 = vunpack.c.l.b16 %v1834
  %v3213 = vunpack.c.h.b16 %v1834
  %v3214 = vunpack.c.l.b16 %v1835
  %v3215 = vunpack.c.h.b16 %v1835
  %v3216 = vunpack.c.l.b16 %v1836
  %v3217 = vunpack.c.h.b16 %v1836
  %v3218 = vunpack.c.l.b16 %v1837
  %v3219 = vunpack.c.h.b16 %v1837
  %v3220 = vunpack.c.l.b16 %v1838
  %v3221 = vunpack.c.h.b16 %v1838
  %v3222 = vunpack.c.l.b16 %v1839
  %v3223 = vunpack.c.h.b16 %v1839
  %v3224 = vunpack.c.l.b16 %v1840
  %v3225 = vunpack.c.h.b16 %v1840
  %v3226 = vunpack.c.l.b16 %v1841
  %v3227 = vunpack.c.h.b16 %v1841
  %v3228 = vunpack.c.l.b16 %v1842
  %v3229 = vunpack.c.h.b16 %v1842
  %v3230 = vunpack.c.l.b16 %v1843
  %v3231 = vunpack.c.h.b16 %v1843
  %v3232 = vunpack.c.l.b16 %v1844
  %v3233 = vunpack.c.h.b16 %v1844
  %v3234 = vpack.c.b16 %v3126, %v3090
  %v3235 = vpack.c.b16 %v3127, %v3091
  %v3236 = vpack.c.b16 %v3128, %v3092
  %v3237 = vpack.c.b16 %v3129, %v3093
  %v3238 = vpack.c.b16 %v3130, %v3094
  %v3239 = vpack.c.b16 %v3131, %v3095
  %v3240 = vpack.c.b16 %v3132, %v3096
  %v3241 = vpack.c.b16 %v3133, %v3097
  %v3242 = vpack.c.b16 %v3134, %v3098
  %v3243 = vpack.c.b16 %v3135, %v3099
  %v3244 = vpack.c.b16 %v3136, %v3100
  %v3245 = vpack.c.b16 %v3137, %v3101
  %v3246 = vpack.c.b16 %v3138, %v3102
  %v3247 = vpack.c.b16 %v3139, %v3103
  %v3248 = vpack.c.b16 %v3140, %v3104
  %v3249 = vpack.c.b16 %v3141, %v3105
  %v3250 = vpack.c.b16 %v3142, %v3106
  %v3251 = vpack.c.b16 %v3143, %v3107
  %v3252 = vpack.c.b16 %v3144, %v3108
  %v3253 = vpack.c.b16 %v3145, %v3109
  %v3254 = vpack.c.b16 %v3146, %v3110
  %v3255 = vpack.c.b16 %v3147, %v3111
  %v3256 = vpack.c.b16 %v3148, %v3112
  %v3257 = vpack.c.b16 %v3149, %v3113
  %v3258 = vpack.c.b16 %v3150, %v3114
  %v3259 = vpack.c.b16 %v3151, %v3115
  %v3260 = vpack.c.b16 %v3152, %v3116
  %v3261 = vpack.c.b16 %v3153, %v3117
  %v3262 = vpack.c.b16 %v3154, %v3118
  %v3263 = vpack.c.b16 %v3155, %v3119
  %v3264 = vpack.c.b16 %v3156, %v3120
  %v3265 = vpack.c.b16 %v3157, %v3121
  %v3266 = vpack.c.b16 %v3158, %v3122
  %v3267 = vpack.c.b16 %v3159, %v3123
  %v3268 = vpack.c.b16 %v3160, %v3124
  %v3269 = vpack.c.b16 %v3161, %v3125
  %v3270 = vpack.c.b16 %v3198, %v3162
  %v3271 = vpack.c.b16 %v3199, %v3163
  %v3272 = vpack.c.b16 %v3200, %v3164
  %v3273 = vpack.c.b16 %v3201, %v3165
  %v3274 = vpack.c.b16 %v3202, %v3166
  %v3275 = vpack.c.b16 %v3203, %v3167
  %v3276 = vpack.c.b16 %v3204, %v3168
  %v3277 = vpack.c.b16 %v3205, %v3169
  %v3278 = vpack.c.b16 %v3206, %v3170
  %v3279 = vpack.c.b16 %v3207, %v3171
  %v3280 = vpack.c.b16 %v3208, %v3172
  %v3281 = vpack.c.b16 %v3209, %v3173
  %v3282 = vpack.c.b16 %v3210, %v3174
  %v3283 = vpack.c.b16 %v3211, %v3175
  %v3284 = vpack.c.b16 %v3212, %v3176
  %v3285 = vpack.c.b16 %v3213, %v3177
  %v3286 = vpack.c.b16 %v3214, %v3178
  %v3287 = vpack.c.b16 %v3215, %v3179
  %v3288 = vpack.c.b16 %v3216, %v3180
  %v3289 = vpack.c.b16 %v3217, %v3181
  %v3290 = vpack.c.b16 %v3218, %v3182
  %v3291 = vpack.c.b16 %v3219, %v3183
  %v3292 = vpack.c.b16 %v3220, %v3184
  %v3293 = vpack.c.b16 %v3221, %v3185
  %v3294 = vpack.c.b16 %v3222, %v3186
  %v3295 = vpack.c.b16 %v3223, %v3187
  %v3296 = vpack.c.b16 %v3224, %v3188
  %v3297 = vpack.c.b16 %v3225, %v3189
  %v3298 = vpack.c.b16 %v3226, %v3190
  %v3299 = vpack.c.b16 %v3227, %v3191
  %v3300 = vpack.c.b16 %v3228, %v3192
  %v3301 = vpack.c.b16 %v3229, %v3193
  %v3302 = vpack.c.b16 %v3230, %v3194
  %v3303 = vpack.c.b16 %v3231, %v3195
  %v3304 = vpack.c.b16 %v3232, %v3196
  %v3305 = vpack.c.b16 %v3233, %v3197
  %v4530 = vunpack.c.l.b16 %v1845
  %v4531 = vunpack.c.h.b16 %v1845
  %v4532 = vunpack.c.l.b16 %v1846
  %v4533 = vunpack.c.h.b16 %v1846
  %v4534 = vunpack.c.l.b16 %v1847
  %v4535 = vunpack.c.h.b16 %v1847
  %v4536 = vunpack.c.l.b16 %v1848
  %v4537 = vunpack.c.h.b16 %v1848
  %v4538 = vunpack.c.l.b16 %v1849
  %v4539 = vunpack.c.h.b16 %v1849
  %v4540 = vunpack.c.l.b16 %v1850
  %v4541 = vunpack.c.h.b16 %v1850
  %v4542 = vunpack.c.l.b16 %v1851
  %v4543 = vunpack.c.h.b16 %v1851
  %v4544 = vunpack.c.l.b16 %v1852
  %v4545 = vunpack.c.h.b16 %v1852
  %v4546 = vunpack.c.l.b16 %v1853
  %v4547 = vunpack.c.h.b16 %v1853
  %v4548 = vunpack.c.l.b16 %v1854
  %v4549 = vunpack.c.h.b16 %v1854
  %v4550 = vunpack.c.l.b16 %v1855
  %v4551 = vunpack.c.h.b16 %v1855
  %v4552 = vunpack.c.l.b16 %v1856
  %v4553 = vunpack.c.h.b16 %v1856
  %v4554 = vunpack.c.l.b16 %v1857
  %v4555 = vunpack.c.h.b16 %v1857
  %v4556 = vunpack.c.l.b16 %v1858
  %v4557 = vunpack.c.h.b16 %v1858
  %v4558 = vunpack.c.l.b16 %v1859
  %v4559 = vunpack.c.h.b16 %v1859
  %v4560 = vunpack.c.l.b16 %v1860
  %v4561 = vunpack.c.h.b16 %v1860
  %v4562 = vunpack.c.l.b16 %v1861
  %v4563 = vunpack.c.h.b16 %v1861
  %v4564 = vunpack.c.l.b16 %v1862
  %v4565 = vunpack.c.h.b16 %v1862
  %v4566 = vunpack.c.l.b16 %v1863
  %v4567 = vunpack.c.h.b16 %v1863
  %v4568 = vunpack.c.l.b16 %v1864
  %v4569 = vunpack.c.h.b16 %v1864
  %v4570 = vunpack.c.l.b16 %v1865
  %v4571 = vunpack.c.h.b16 %v1865
  %v4572 = vunpack.c.l.b16 %v1866
  %v4573 = vunpack.c.h.b16 %v1866
  %v4574 = vunpack.c.l.b16 %v1867
  %v4575 = vunpack.c.h.b16 %v1867
  %v4576 = vunpack.c.l.b16 %v1868
  %v4577 = vunpack.c.h.b16 %v1868
  %v4578 = vunpack.c.l.b16 %v1869
  %v4579 = vunpack.c.h.b16 %v1869
  %v4580 = vunpack.c.l.b16 %v1870
  %v4581 = vunpack.c.h.b16 %v1870
  %v4582 = vunpack.c.l.b16 %v1871
  %v4583 = vunpack.c.h.b16 %v1871
  %v4584 = vunpack.c.l.b16 %v1872
  %v4585 = vunpack.c.h.b16 %v1872
  %v4586 = vunpack.c.l.b16 %v1873
  %v4587 = vunpack.c.h.b16 %v1873
  %v4588 = vunpack.c.l.b16 %v1874
  %v4589 = vunpack.c.h.b16 %v1874
  %v4590 = vunpack.c.l.b16 %v1875
  %v4591 = vunpack.c.h.b16 %v1875
  %v4592 = vunpack.c.l.b16 %v1876
  %v4593 = vunpack.c.h.b16 %v1876
  %v4594 = vunpack.c.l.b16 %v1877
  %v4595 = vunpack.c.h.b16 %v1877
  %v4596 = vunpack.c.l.b16 %v1878
  %v4597 = vunpack.c.h.b16 %v1878
  %v4598 = vunpack.c.l.b16 %v1879
  %v4599 = vunpack.c.h.b16 %v1879
  %v4600 = vunpack.c.l.b16 %v1880
  %v4601 = vunpack.c.h.b16 %v1880
  %v4602 = vunpack.c.l.b16 %v1881
  %v4603 = vunpack.c.h.b16 %v1881
  %v4604 = vunpack.c.l.b16 %v1882
  %v4605 = vunpack.c.h.b16 %v1882
  %v4606 = vunpack.c.l.b16 %v1883
  %v4607 = vunpack.c.h.b16 %v1883
  %v4608 = vunpack.c.l.b16 %v1884
  %v4609 = vunpack.c.h.b16 %v1884
  %v4610 = vunpack.c.l.b16 %v1885
  %v4611 = vunpack.c.h.b16 %v1885
  %v4612 = vunpack.c.l.b16 %v1886
  %v4613 = vunpack.c.h.b16 %v1886
  %v4614 = vunpack.c.l.b16 %v1887
  %v4615 = vunpack.c.h.b16 %v1887
  %v4616 = vunpack.c.l.b16 %v1888
  %v4617 = vunpack.c.h.b16 %v1888
  %v4618 = vunpack.c.l.b16 %v1889
  %v4619 = vunpack.c.h.b16 %v1889
  %v4620 = vunpack.c.l.b16 %v1890
  %v4621 = vunpack.c.h.b16 %v1890
  %v4622 = vunpack.c.l.b16 %v1891
  %v4623 = vunpack.c.h.b16 %v1891
  %v4624 = vunpack.c.l.b16 %v1892
  %v4625 = vunpack.c.h.b16 %v1892
  %v4626 = vunpack.c.l.b16 %v1893
  %v4627 = vunpack.c.h.b16 %v1893
  %v4628 = vunpack.c.l.b16 %v1894
  %v4629 = vunpack.c.h.b16 %v1894
  %v4630 = vunpack.c.l.b16 %v1895
  %v4631 = vunpack.c.h.b16 %v1895
  %v4632 = vunpack.c.l.b16 %v1896
  %v4633 = vunpack.c.h.b16 %v1896
  %v4634 = vunpack.c.l.b16 %v1897
  %v4635 = vunpack.c.h.b16 %v1897
  %v4636 = vunpack.c.l.b16 %v1898
  %v4637 = vunpack.c.h.b16 %v1898
  %v4638 = vunpack.c.l.b16 %v1899
  %v4639 = vunpack.c.h.b16 %v1899
  %v4640 = vunpack.c.l.b16 %v1900
  %v4641 = vunpack.c.h.b16 %v1900
  %v4642 = vunpack.c.l.b16 %v1901
  %v4643 = vunpack.c.h.b16 %v1901
  %v4644 = vunpack.c.l.b16 %v1902
  %v4645 = vunpack.c.h.b16 %v1902
  %v4646 = vunpack.c.l.b16 %v1903
  %v4647 = vunpack.c.h.b16 %v1903
  %v4648 = vunpack.c.l.b16 %v1904
  %v4649 = vunpack.c.h.b16 %v1904
  %v4650 = vunpack.c.l.b16 %v1905
  %v4651 = vunpack.c.h.b16 %v1905
  %v4652 = vunpack.c.l.b16 %v1906
  %v4653 = vunpack.c.h.b16 %v1906
  %v4654 = vunpack.c.l.b16 %v1907
  %v4655 = vunpack.c.h.b16 %v1907
  %v4656 = vunpack.c.l.b16 %v1908
  %v4657 = vunpack.c.h.b16 %v1908
  %v4658 = vunpack.c.l.b16 %v1909
  %v4659 = vunpack.c.h.b16 %v1909
  %v4660 = vunpack.c.l.b16 %v1910
  %v4661 = vunpack.c.h.b16 %v1910
  %v4662 = vunpack.c.l.b16 %v1911
  %v4663 = vunpack.c.h.b16 %v1911
  %v4664 = vunpack.c.l.b16 %v1912
  %v4665 = vunpack.c.h.b16 %v1912
  %v4666 = vunpack.c.l.b16 %v1913
  %v4667 = vunpack.c.h.b16 %v1913
  %v4668 = vunpack.c.l.b16 %v1914
  %v4669 = vunpack.c.h.b16 %v1914
  %v4670 = vunpack.c.l.b16 %v1915
  %v4671 = vunpack.c.h.b16 %v1915
  %v4672 = vunpack.c.l.b16 %v1916
  %v4673 = vunpack.c.h.b16 %v1916
  %v4674 = vunpack.c.l.b16 %v1917
  %v4675 = vunpack.c.h.b16 %v1917
  %v4676 = vunpack.c.l.b16 %v1918
  %v4677 = vunpack.c.h.b16 %v1918
  %v4678 = vunpack.c.l.b16 %v1919
  %v4679 = vunpack.c.h.b16 %v1919
  %v4680 = vunpack.c.l.b16 %v1920
  %v4681 = vunpack.c.h.b16 %v1920
  %v4682 = vunpack.c.l.b16 %v1921
  %v4683 = vunpack.c.h.b16 %v1921
  %v4684 = vunpack.c.l.b16 %v1922
  %v4685 = vunpack.c.h.b16 %v1922
  %v4686 = vunpack.c.l.b16 %v1923
  %v4687 = vunpack.c.h.b16 %v1923
  %v4688 = vunpack.c.l.b16 %v1924
  %v4689 = vunpack.c.h.b16 %v1924
  %v4690 = vunpack.c.l.b16 %v1925
  %v4691 = vunpack.c.h.b16 %v1925
  %v4692 = vunpack.c.l.b16 %v1926
  %v4693 = vunpack.c.h.b16 %v1926
  %v4694 = vunpack.c.l.b16 %v1927
  %v4695 = vunpack.c.h.b16 %v1927
  %v4696 = vunpack.c.l.b16 %v1928
  %v4697 = vunpack.c.h.b16 %v1928
  %v4698 = vunpack.c.l.b16 %v1929
  %v4699 = vunpack.c.h.b16 %v1929
  %v4700 = vunpack.c.l.b16 %v1930
  %v4701 = vunpack.c.h.b16 %v1930
  %v4702 = vunpack.c.l.b16 %v1931
  %v4703 = vunpack.c.h.b16 %v1931
  %v4704 = vunpack.c.l.b16 %v1932
  %v4705 = vunpack.c.h.b16 %v1932
  %v4706 = vunpack.c.l.b16 %v1933
  %v4707 = vunpack.c.h.b16 %v1933
  %v4708 = vunpack.c.l.b16 %v1934
  %v4709 = vunpack.c.h.b16 %v1934
  %v4710 = vunpack.c.l.b16 %v1935
  %v4711 = vunpack.c.h.b16 %v1935
  %v4712 = vunpack.c.l.b16 %v1936
  %v4713 = vunpack.c.h.b16 %v1936
  %v4714 = vunpack.c.l.b16 %v1937
  %v4715 = vunpack.c.h.b16 %v1937
  %v4716 = vunpack.c.l.b16 %v1938
  %v4717 = vunpack.c.h.b16 %v1938
  %v4718 = vunpack.c.l.b16 %v1939
  %v4719 = vunpack.c.h.b16 %v1939
  %v4720 = vunpack.c.l.b16 %v1940
  %v4721 = vunpack.c.h.b16 %v1940
  %v4722 = vunpack.c.l.b16 %v1941
  %v4723 = vunpack.c.h.b16 %v1941
  %v4724 = vunpack.c.l.b16 %v1942
  %v4725 = vunpack.c.h.b16 %v1942
  %v4726 = vunpack.c.l.b16 %v1943
  %v4727 = vunpack.c.h.b16 %v1943
  %v4728 = vunpack.c.l.b16 %v1944
  %v4729 = vunpack.c.h.b16 %v1944
  %v4730 = vunpack.c.l.b16 %v1945
  %v4731 = vunpack.c.h.b16 %v1945
  %v4732 = vunpack.c.l.b16 %v1946
  %v4733 = vunpack.c.h.b16 %v1946
  %v4734 = vunpack.c.l.b16 %v1947
  %v4735 = vunpack.c.h.b16 %v1947
  %v4736 = vunpack.c.l.b16 %v1948
  %v4737 = vunpack.c.h.b16 %v1948
  %v4738 = vunpack.c.l.b16 %v1949
  %v4739 = vunpack.c.h.b16 %v1949
  %v4740 = vunpack.c.l.b16 %v1950
  %v4741 = vunpack.c.h.b16 %v1950
  %v4742 = vunpack.c.l.b16 %v1951
  %v4743 = vunpack.c.h.b16 %v1951
  %v4744 = vunpack.c.l.b16 %v1952
  %v4745 = vunpack.c.h.b16 %v1952
  %v4746 = vunpack.c.l.b16 %v1953
  %v4747 = vunpack.c.h.b16 %v1953
  %v4748 = vunpack.c.l.b16 %v1954
  %v4749 = vunpack.c.h.b16 %v1954
  %v4750 = vunpack.c.l.b16 %v1955
  %v4751 = vunpack.c.h.b16 %v1955
  %v4752 = vunpack.c.l.b16 %v1956
  %v4753 = vunpack.c.h.b16 %v1956
  %v4754 = vunpack.c.l.b16 %v1957
  %v4755 = vunpack.c.h.b16 %v1957
  %v4756 = vunpack.c.l.b16 %v1958
  %v4757 = vunpack.c.h.b16 %v1958
  %v4758 = vunpack.c.l.b16 %v1959
  %v4759 = vunpack.c.h.b16 %v1959
  %v4760 = vunpack.c.l.b16 %v1960
  %v4761 = vunpack.c.h.b16 %v1960
  %v4762 = vunpack.c.l.b16 %v1961
  %v4763 = vunpack.c.h.b16 %v1961
  %v4764 = vunpack.c.l.b16 %v1962
  %v4765 = vunpack.c.h.b16 %v1962
  %v4766 = vunpack.c.l.b16 %v1963
  %v4767 = vunpack.c.h.b16 %v1963
  %v4768 = vunpack.c.l.b16 %v1964
  %v4769 = vunpack.c.h.b16 %v1964
  %v4770 = vunpack.c.l.b16 %v1965
  %v4771 = vunpack.c.h.b16 %v1965
  %v4772 = vunpack.c.l.b16 %v1966
  %v4773 = vunpack.c.h.b16 %v1966
  %v4774 = vunpack.c.l.b16 %v1967
  %v4775 = vunpack.c.h.b16 %v1967
  %v4776 = vunpack.c.l.b16 %v1968
  %v4777 = vunpack.c.h.b16 %v1968
  %v4778 = vunpack.c.l.b16 %v1969
  %v4779 = vunpack.c.h.b16 %v1969
  %v4780 = vunpack.c.l.b16 %v1970
  %v4781 = vunpack.c.h.b16 %v1970
  %v4782 = vunpack.c.l.b16 %v1971
  %v4783 = vunpack.c.h.b16 %v1971
  %v4784 = vunpack.c.l.b16 %v1972
  %v4785 = vunpack.c.h.b16 %v1972
  %v4786 = vunpack.c.l.b16 %v1973
  %v4787 = vunpack.c.h.b16 %v1973
  %v4788 = vunpack.c.l.b16 %v1974
  %v4789 = vunpack.c.h.b16 %v1974
  %v4790 = vunpack.c.l.b16 %v1975
  %v4791 = vunpack.c.h.b16 %v1975
  %v4792 = vunpack.c.l.b16 %v1976
  %v4793 = vunpack.c.h.b16 %v1976
  %v4794 = vunpack.c.l.b16 %v1977
  %v4795 = vunpack.c.h.b16 %v1977
  %v4796 = vunpack.c.l.b16 %v1978
  %v4797 = vunpack.c.h.b16 %v1978
  %v4798 = vunpack.c.l.b16 %v1979
  %v4799 = vunpack.c.h.b16 %v1979
  %v4800 = vunpack.c.l.b16 %v1980
  %v4801 = vunpack.c.h.b16 %v1980
  %v4802 = vunpack.c.l.b16 %v1981
  %v4803 = vunpack.c.h.b16 %v1981
  %v4804 = vunpack.c.l.b16 %v1982
  %v4805 = vunpack.c.h.b16 %v1982
  %v4806 = vunpack.c.l.b16 %v1983
  %v4807 = vunpack.c.h.b16 %v1983
  %v4808 = vunpack.c.l.b16 %v1984
  %v4809 = vunpack.c.h.b16 %v1984
  %v4810 = vunpack.c.l.b16 %v1985
  %v4811 = vunpack.c.h.b16 %v1985
  %v4812 = vunpack.c.l.b16 %v1986
  %v4813 = vunpack.c.h.b16 %v1986
  %v4814 = vunpack.c.l.b16 %v1987
  %v4815 = vunpack.c.h.b16 %v1987
  %v4816 = vunpack.c.l.b16 %v1988
  %v4817 = vunpack.c.h.b16 %v1988
  %v4818 = vunpack.c.l.b16 %v1989
  %v4819 = vunpack.c.h.b16 %v1989
  %v4820 = vunpack.c.l.b16 %v1990
  %v4821 = vunpack.c.h.b16 %v1990
  %v4822 = vunpack.c.l.b16 %v1991
  %v4823 = vunpack.c.h.b16 %v1991
  %v4824 = vunpack.c.l.b16 %v1992
  %v4825 = vunpack.c.h.b16 %v1992
  %v4826 = vunpack.c.l.b16 %v1993
  %v4827 = vunpack.c.h.b16 %v1993
  %v4828 = vunpack.c.l.b16 %v1994
  %v4829 = vunpack.c.h.b16 %v1994
  %v4830 = vunpack.c.l.b16 %v1995
  %v4831 = vunpack.c.h.b16 %v1995
  %v4832 = vunpack.c.l.b16 %v1996
  %v4833 = vunpack.c.h.b16 %v1996
  %v4834 = vunpack.c.l.b16 %v1997
  %v4835 = vunpack.c.h.b16 %v1997
  %v4836 = vunpack.c.l.b16 %v1998
  %v4837 = vunpack.c.h.b16 %v1998
  %v4838 = vunpack.c.l.b16 %v1999
  %v4839 = vunpack.c.h.b16 %v1999
  %v4840 = vunpack.c.l.b16 %v2000
  %v4841 = vunpack.c.h.b16 %v2000
  %v4842 = vunpack.c.l.b16 %v2001
  %v4843 = vunpack.c.h.b16 %v2001
  %v4844 = vunpack.c.l.b16 %v2002
  %v4845 = vunpack.c.h.b16 %v2002
  %v4846 = vunpack.c.l.b16 %v2003
  %v4847 = vunpack.c.h.b16 %v2003
  %v4848 = vunpack.c.l.b16 %v2004
  %v4849 = vunpack.c.h.b16 %v2004
  %v4850 = vunpack.c.l.b16 %v2005
  %v4851 = vunpack.c.h.b16 %v2005
  %v4852 = vunpack.c.l.b16 %v2006
  %v4853 = vunpack.c.h.b16 %v2006
  %v4854 = vunpack.c.l.b16 %v2007
  %v4855 = vunpack.c.h.b16 %v2007
  %v4856 = vunpack.c.l.b16 %v2008
  %v4857 = vunpack.c.h.b16 %v2008
  %v4858 = vunpack.c.l.b16 %v2009
  %v4859 = vunpack.c.h.b16 %v2009
  %v4860 = vunpack.c.l.b16 %v2010
  %v4861 = vunpack.c.h.b16 %v2010
  %v4862 = vunpack.c.l.b16 %v2011
  %v4863 = vunpack.c.h.b16 %v2011
  %v4864 = vunpack.c.l.b16 %v2012
  %v4865 = vunpack.c.h.b16 %v2012
  %v4866 = vunpack.c.l.b16 %v2013
  %v4867 = vunpack.c.h.b16 %v2013
  %v4868 = vunpack.c.l.b16 %v2014
  %v4869 = vunpack.c.h.b16 %v2014
  %v4870 = vunpack.c.l.b16 %v2015
  %v4871 = vunpack.c.h.b16 %v2015
  %v4872 = vunpack.c.l.b16 %v2016
  %v4873 = vunpack.c.h.b16 %v2016
  %v4874 = vunpack.c.l.b16 %v2017
  %v4875 = vunpack.c.h.b16 %v2017
  %v4876 = vunpack.c.l.b16 %v2018
  %v4877 = vunpack.c.h.b16 %v2018
  %v4878 = vunpack.c.l.b16 %v2019
  %v4879 = vunpack.c.h.b16 %v2019
  %v4880 = vunpack.c.l.b16 %v2020
  %v4881 = vunpack.c.h.b16 %v2020
  %v4882 = vunpack.c.l.b16 %v2021
  %v4883 = vunpack.c.h.b16 %v2021
  %v4884 = vunpack.c.l.b16 %v2022
  %v4885 = vunpack.c.h.b16 %v2022
  %v4886 = vunpack.c.l.b16 %v2023
  %v4887 = vunpack.c.h.b16 %v2023
  %v4888 = vunpack.c.l.b16 %v2024
  %v4889 = vunpack.c.h.b16 %v2024
  %v4890 = vunpack.c.l.b16 %v2025
  %v4891 = vunpack.c.h.b16 %v2025
  %v4892 = vunpack.c.l.b16 %v2026
  %v4893 = vunpack.c.h.b16 %v2026
  %v4894 = vunpack.c.l.b16 %v2027
  %v4895 = vunpack.c.h.b16 %v2027
  %v4896 = vunpack.c.l.b16 %v2028
  %v4897 = vunpack.c.h.b16 %v2028
  %v4898 = vunpack.c.l.b16 %v2029
  %v4899 = vunpack.c.h.b16 %v2029
  %v4900 = vunpack.c.l.b16 %v2030
  %v4901 = vunpack.c.h.b16 %v2030
  %v4902 = vunpack.c.l.b16 %v2031
  %v4903 = vunpack.c.h.b16 %v2031
  %v4904 = vunpack.c.l.b16 %v2032
  %v4905 = vunpack.c.h.b16 %v2032
  %v4906 = vunpack.c.l.b16 %v2033
  %v4907 = vunpack.c.h.b16 %v2033
  %v4908 = vunpack.c.l.b16 %v2034
  %v4909 = vunpack.c.h.b16 %v2034
  %v4910 = vunpack.c.l.b16 %v2035
  %v4911 = vunpack.c.h.b16 %v2035
  %v4912 = vunpack.c.l.b16 %v2036
  %v4913 = vunpack.c.h.b16 %v2036
  %v4914 = vunpack.c.l.b16 %v2037
  %v4915 = vunpack.c.h.b16 %v2037
  %v4916 = vunpack.c.l.b16 %v2038
  %v4917 = vunpack.c.h.b16 %v2038
  %v4918 = vunpack.c.l.b16 %v2039
  %v4919 = vunpack.c.h.b16 %v2039
  %v4920 = vunpack.c.l.b16 %v2040
  %v4921 = vunpack.c.h.b16 %v2040
  %v4922 = vunpack.c.l.b16 %v2041
  %v4923 = vunpack.c.h.b16 %v2041
  %v4924 = vunpack.c.l.b16 %v2042
  %v4925 = vunpack.c.h.b16 %v2042
  %v4926 = vunpack.c.l.b16 %v2043
  %v4927 = vunpack.c.h.b16 %v2043
  %v4928 = vunpack.c.l.b16 %v2044
  %v4929 = vunpack.c.h.b16 %v2044
  %v4930 = vunpack.c.l.b16 %v2045
  %v4931 = vunpack.c.h.b16 %v2045
  %v4932 = vunpack.c.l.b16 %v2046
  %v4933 = vunpack.c.h.b16 %v2046
  %v4934 = vunpack.c.l.b16 %v2047
  %v4935 = vunpack.c.h.b16 %v2047
  %v4936 = vunpack.c.l.b16 %v2048
  %v4937 = vunpack.c.h.b16 %v2048
  %v4938 = vunpack.c.l.b16 %v2049
  %v4939 = vunpack.c.h.b16 %v2049
  %v4940 = vunpack.c.l.b16 %v2050
  %v4941 = vunpack.c.h.b16 %v2050
  %v4942 = vunpack.c.l.b16 %v2051
  %v4943 = vunpack.c.h.b16 %v2051
  %v4944 = vunpack.c.l.b16 %v2052
  %v4945 = vunpack.c.h.b16 %v2052
  %v4946 = vunpack.c.l.b16 %v2053
  %v4947 = vunpack.c.h.b16 %v2053
  %v4948 = vunpack.c.l.b16 %v2054
  %v4949 = vunpack.c.h.b16 %v2054
  %v4950 = vunpack.c.l.b16 %v2055
  %v4951 = vunpack.c.h.b16 %v2055
  %v4952 = vunpack.c.l.b16 %v2056
  %v4953 = vunpack.c.h.b16 %v2056
  %v4954 = vunpack.c.l.b16 %v2057
  %v4955 = vunpack.c.h.b16 %v2057
  %v4956 = vunpack.c.l.b16 %v2058
  %v4957 = vunpack.c.h.b16 %v2058
  %v4958 = vunpack.c.l.b16 %v2059
  %v4959 = vunpack.c.h.b16 %v2059
  %v4960 = vunpack.c.l.b16 %v2060
  %v4961 = vunpack.c.h.b16 %v2060
  %v4962 = vunpack.c.l.b16 %v2061
  %v4963 = vunpack.c.h.b16 %v2061
  %v4964 = vunpack.c.l.b16 %v2062
  %v4965 = vunpack.c.h.b16 %v2062
  %v4966 = vunpack.c.l.b16 %v2063
  %v4967 = vunpack.c.h.b16 %v2063
  %v4968 = vunpack.c.l.b16 %v2064
  %v4969 = vunpack.c.h.b16 %v2064
  %v4970 = vunpack.c.l.b16 %v2065
  %v4971 = vunpack.c.h.b16 %v2065
  %v4972 = vunpack.c.l.b16 %v2066
  %v4973 = vunpack.c.h.b16 %v2066
  %v4974 = vunpack.c.l.b16 %v2067
  %v4975 = vunpack.c.h.b16 %v2067
  %v4976 = vunpack.c.l.b16 %v2068
  %v4977 = vunpack.c.h.b16 %v2068
  %v4978 = vunpack.c.l.b16 %v2069
  %v4979 = vunpack.c.h.b16 %v2069
  %v4980 = vunpack.c.l.b16 %v2070
  %v4981 = vunpack.c.h.b16 %v2070
  %v4982 = vunpack.c.l.b16 %v2071
  %v4983 = vunpack.c.h.b16 %v2071
  %v4984 = vunpack.c.l.b16 %v2072
  %v4985 = vunpack.c.h.b16 %v2072
  %v4986 = vunpack.c.l.b16 %v2073
  %v4987 = vunpack.c.h.b16 %v2073
  %v4988 = vunpack.c.l.b16 %v2074
  %v4989 = vunpack.c.h.b16 %v2074
  %v4990 = vunpack.c.l.b16 %v2075
  %v4991 = vunpack.c.h.b16 %v2075
  %v4992 = vunpack.c.l.b16 %v2076
  %v4993 = vunpack.c.h.b16 %v2076
  %v4994 = vunpack.c.l.b16 %v2077
  %v4995 = vunpack.c.h.b16 %v2077
  %v4996 = vunpack.c.l.b16 %v2078
  %v4997 = vunpack.c.h.b16 %v2078
  %v4998 = vunpack.c.l.b16 %v2079
  %v4999 = vunpack.c.h.b16 %v2079
  %v5000 = vunpack.c.l.b16 %v2080
  %v5001 = vunpack.c.h.b16 %v2080
  %v5002 = vunpack.c.l.b16 %v2081
  %v5003 = vunpack.c.h.b16 %v2081
  %v5004 = vunpack.c.l.b16 %v2082
  %v5005 = vunpack.c.h.b16 %v2082
  %v5006 = vunpack.c.l.b16 %v2083
  %v5007 = vunpack.c.h.b16 %v2083
  %v5008 = vunpack.c.l.b16 %v2084
  %v5009 = vunpack.c.h.b16 %v2084
  %v5010 = vunpack.c.l.b16 %v2085
  %v5011 = vunpack.c.h.b16 %v2085
  %v5012 = vunpack.c.l.b16 %v2086
  %v5013 = vunpack.c.h.b16 %v2086
  %v5014 = vunpack.c.l.b16 %v2087
  %v5015 = vunpack.c.h.b16 %v2087
  %v5016 = vunpack.c.l.b16 %v2088
  %v5017 = vunpack.c.h.b16 %v2088
  %v5018 = vunpack.c.l.b16 %v2089
  %v5019 = vunpack.c.h.b16 %v2089
  %v5020 = vunpack.c.l.b16 %v2090
  %v5021 = vunpack.c.h.b16 %v2090
  %v5022 = vunpack.c.l.b16 %v2091
  %v5023 = vunpack.c.h.b16 %v2091
  %v5024 = vunpack.c.l.b16 %v2092
  %v5025 = vunpack.c.h.b16 %v2092
  %v5026 = vunpack.c.l.b16 %v2093
  %v5027 = vunpack.c.h.b16 %v2093
  %v5028 = vunpack.c.l.b16 %v2094
  %v5029 = vunpack.c.h.b16 %v2094
  %v5030 = vunpack.c.l.b16 %v2095
  %v5031 = vunpack.c.h.b16 %v2095
  %v5032 = vunpack.c.l.b16 %v2096
  %v5033 = vunpack.c.h.b16 %v2096
  %v5034 = vunpack.c.l.b16 %v2097
  %v5035 = vunpack.c.h.b16 %v2097
  %v5036 = vunpack.c.l.b16 %v2098
  %v5037 = vunpack.c.h.b16 %v2098
  %v5038 = vunpack.c.l.b16 %v2099
  %v5039 = vunpack.c.h.b16 %v2099
  %v5040 = vunpack.c.l.b16 %v2100
  %v5041 = vunpack.c.h.b16 %v2100
  %v5042 = vunpack.c.l.b16 %v2101
  %v5043 = vunpack.c.h.b16 %v2101
  %v5044 = vunpack.c.l.b16 %v2102
  %v5045 = vunpack.c.h.b16 %v2102
  %v5046 = vunpack.c.l.b16 %v2103
  %v5047 = vunpack.c.h.b16 %v2103
  %v5048 = vunpack.c.l.b16 %v2104
  %v5049 = vunpack.c.h.b16 %v2104
  %v5050 = vunpack.c.l.b16 %v2105
  %v5051 = vunpack.c.h.b16 %v2105
  %v5052 = vunpack.c.l.b16 %v2106
  %v5053 = vunpack.c.h.b16 %v2106
  %v5054 = vunpack.c.l.b16 %v2107
  %v5055 = vunpack.c.h.b16 %v2107
  %v5056 = vunpack.c.l.b16 %v2108
  %v5057 = vunpack.c.h.b16 %v2108
  %v5058 = vunpack.c.l.b16 %v2109
  %v5059 = vunpack.c.h.b16 %v2109
  %v5060 = vunpack.c.l.b16 %v2110
  %v5061 = vunpack.c.h.b16 %v2110
  %v5062 = vunpack.c.l.b16 %v2111
  %v5063 = vunpack.c.h.b16 %v2111
  %v5064 = vunpack.c.l.b16 %v2112
  %v5065 = vunpack.c.h.b16 %v2112
  %v5066 = vunpack.c.l.b16 %v2113
  %v5067 = vunpack.c.h.b16 %v2113
  %v5068 = vunpack.c.l.b16 %v2114
  %v5069 = vunpack.c.h.b16 %v2114
  %v5070 = vunpack.c.l.b16 %v2115
  %v5071 = vunpack.c.h.b16 %v2115
  %v5072 = vunpack.c.l.b16 %v2116
  %v5073 = vunpack.c.h.b16 %v2116
  %v5074 = vunpack.c.l.b16 %v2117
  %v5075 = vunpack.c.h.b16 %v2117
  %v5076 = vunpack.c.l.b16 %v2118
  %v5077 = vunpack.c.h.b16 %v2118
  %v5078 = vunpack.c.l.b16 %v2119
  %v5079 = vunpack.c.h.b16 %v2119
  %v5080 = vunpack.c.l.b16 %v2120
  %v5081 = vunpack.c.h.b16 %v2120
  %v5082 = vunpack.c.l.b16 %v2121
  %v5083 = vunpack.c.h.b16 %v2121
  %v5084 = vunpack.c.l.b16 %v2122
  %v5085 = vunpack.c.h.b16 %v2122
  %v5086 = vunpack.c.l.b16 %v2123
  %v5087 = vunpack.c.h.b16 %v2123
  %v5088 = vunpack.c.l.b16 %v2124
  %v5089 = vunpack.c.h.b16 %v2124
  %v5090 = vunpack.c.l.b16 %v2125
  %v5091 = vunpack.c.h.b16 %v2125
  %v5092 = vunpack.c.l.b16 %v2126
  %v5093 = vunpack.c.h.b16 %v2126
  %v5094 = vunpack.c.l.b16 %v2127
  %v5095 = vunpack.c.h.b16 %v2127
  %v5096 = vunpack.c.l.b16 %v2128
  %v5097 = vunpack.c.h.b16 %v2128
  %v5098 = vunpack.c.l.b16 %v2129
  %v5099 = vunpack.c.h.b16 %v2129
  %v5100 = vunpack.c.l.b16 %v2130
  %v5101 = vunpack.c.h.b16 %v2130
  %v5102 = vunpack.c.l.b16 %v2131
  %v5103 = vunpack.c.h.b16 %v2131
  %v5104 = vunpack.c.l.b16 %v2132
  %v5105 = vunpack.c.h.b16 %v2132
  %v5106 = vunpack.c.l.b16 %v2133
  %v5107 = vunpack.c.h.b16 %v2133
  %v5108 = vunpack.c.l.b16 %v2134
  %v5109 = vunpack.c.h.b16 %v2134
  %v5110 = vunpack.c.l.b16 %v2135
  %v5111 = vunpack.c.h.b16 %v2135
  %v5112 = vunpack.c.l.b16 %v2136
  %v5113 = vunpack.c.h.b16 %v2136
  %v5114 = vunpack.c.l.b16 %v2137
  %v5115 = vunpack.c.h.b16 %v2137
  %v5116 = vunpack.c.l.b16 %v2138
  %v5117 = vunpack.c.h.b16 %v2138
  %v5118 = vunpack.c.l.b16 %v2139
  %v5119 = vunpack.c.h.b16 %v2139
  %v5120 = vunpack.c.l.b16 %v2140
  %v5121 = vunpack.c.h.b16 %v2140
  %v5122 = vunpack.c.l.b16 %v2141
  %v5123 = vunpack.c.h.b16 %v2141
  %v5124 = vunpack.c.l.b16 %v2142
  %v5125 = vunpack.c.h.b16 %v2142
  %v5126 = vunpack.c.l.b16 %v2143
  %v5127 = vunpack.c.h.b16 %v2143
  %v5128 = vunpack.c.l.b16 %v2144
  %v5129 = vunpack.c.h.b16 %v2144
  %v5130 = vunpack.c.l.b16 %v2145
  %v5131 = vunpack.c.h.b16 %v2145
  %v5132 = vunpack.c.l.b16 %v2146
  %v5133 = vunpack.c.h.b16 %v2146
  %v5134 = vunpack.c.l.b16 %v2147
  %v5135 = vunpack.c.h.b16 %v2147
  %v5136 = vunpack.c.l.b16 %v2148
  %v5137 = vunpack.c.h.b16 %v2148
  %v5138 = vunpack.c.l.b16 %v2149
  %v5139 = vunpack.c.h.b16 %v2149
  %v5140 = vunpack.c.l.b16 %v2150
  %v5141 = vunpack.c.h.b16 %v2150
  %v5142 = vunpack.c.l.b16 %v2151
  %v5143 = vunpack.c.h.b16 %v2151
  %v5144 = vunpack.c.l.b16 %v2152
  %v5145 = vunpack.c.h.b16 %v2152
  %v5146 = vunpack.c.l.b16 %v2153
  %v5147 = vunpack.c.h.b16 %v2153
  %v5148 = vunpack.c.l.b16 %v2154
  %v5149 = vunpack.c.h.b16 %v2154
  %v5150 = vunpack.c.l.b16 %v2155
  %v5151 = vunpack.c.h.b16 %v2155
  %v5152 = vunpack.c.l.b16 %v2156
  %v5153 = vunpack.c.h.b16 %v2156
  %v5154 = vunpack.c.l.b16 %v2157
  %v5155 = vunpack.c.h.b16 %v2157
  %v5156 = vunpack.c.l.b16 %v2158
  %v5157 = vunpack.c.h.b16 %v2158
  %v5158 = vunpack.c.l.b16 %v2159
  %v5159 = vunpack.c.h.b16 %v2159
  %v5160 = vunpack.c.l.b16 %v2160
  %v5161 = vunpack.c.h.b16 %v2160
  %v5162 = vunpack.c.l.b16 %v2161
  %v5163 = vunpack.c.h.b16 %v2161
  %v5164 = vunpack.c.l.b16 %v2162
  %v5165 = vunpack.c.h.b16 %v2162
  %v5166 = vunpack.c.l.b16 %v2163
  %v5167 = vunpack.c.h.b16 %v2163
  %v5168 = vunpack.c.l.b16 %v2164
  %v5169 = vunpack.c.h.b16 %v2164
  %v5170 = vunpack.c.l.b16 %v2165
  %v5171 = vunpack.c.h.b16 %v2165
  %v5172 = vunpack.c.l.b16 %v2166
  %v5173 = vunpack.c.h.b16 %v2166
  %v5174 = vunpack.c.l.b16 %v2167
  %v5175 = vunpack.c.h.b16 %v2167
  %v5176 = vunpack.c.l.b16 %v2168
  %v5177 = vunpack.c.h.b16 %v2168
  %v5178 = vunpack.c.l.b16 %v2169
  %v5179 = vunpack.c.h.b16 %v2169
  %v5180 = vunpack.c.l.b16 %v2170
  %v5181 = vunpack.c.h.b16 %v2170
  %v5182 = vunpack.c.l.b16 %v2171
  %v5183 = vunpack.c.h.b16 %v2171
  %v5184 = vunpack.c.l.b16 %v2172
  %v5185 = vunpack.c.h.b16 %v2172
  %v5186 = vunpack.c.l.b16 %v2173
  %v5187 = vunpack.c.h.b16 %v2173
  %v5188 = vunpack.c.l.b16 %v2174
  %v5189 = vunpack.c.h.b16 %v2174
  %v5190 = vunpack.c.l.b16 %v2175
  %v5191 = vunpack.c.h.b16 %v2175
  %v5192 = vunpack.c.l.b16 %v2176
  %v5193 = vunpack.c.h.b16 %v2176
  %v5194 = vunpack.c.l.b16 %v2177
  %v5195 = vunpack.c.h.b16 %v2177
  %v5196 = vunpack.c.l.b16 %v2178
  %v5197 = vunpack.c.h.b16 %v2178
  %v5198 = vunpack.c.l.b16 %v2179
  %v5199 = vunpack.c.h.b16 %v2179
  %v5200 = vunpack.c.l.b16 %v2180
  %v5201 = vunpack.c.h.b16 %v2180
  %v5202 = vunpack.c.l.b16 %v2181
  %v5203 = vunpack.c.h.b16 %v2181
  %v5204 = vunpack.c.l.b16 %v2182
  %v5205 = vunpack.c.h.b16 %v2182
  %v5206 = vunpack.c.l.b16 %v2183
  %v5207 = vunpack.c.h.b16 %v2183
  %v5208 = vunpack.c.l.b16 %v2184
  %v5209 = vunpack.c.h.b16 %v2184
  %v5210 = vunpack.c.l.b16 %v2185
  %v5211 = vunpack.c.h.b16 %v2185
  %v5212 = vunpack.c.l.b16 %v2186
  %v5213 = vunpack.c.h.b16 %v2186
  %v5214 = vunpack.c.l.b16 %v2187
  %v5215 = vunpack.c.h.b16 %v2187
  %v5216 = vunpack.c.l.b16 %v2188
  %v5217 = vunpack.c.h.b16 %v2188
  %v5218 = vunpack.c.l.b16 %v2189
  %v5219 = vunpack.c.h.b16 %v2189
  %v5220 = vunpack.c.l.b16 %v2190
  %v5221 = vunpack.c.h.b16 %v2190
  %v5222 = vunpack.c.l.b16 %v2191
  %v5223 = vunpack.c.h.b16 %v2191
  %v5224 = vunpack.c.l.b16 %v2192
  %v5225 = vunpack.c.h.b16 %v2192
  %v5226 = vunpack.c.l.b16 %v2193
  %v5227 = vunpack.c.h.b16 %v2193
  %v5228 = vunpack.c.l.b16 %v2194
  %v5229 = vunpack.c.h.b16 %v2194
  %v5230 = vunpack.c.l.b16 %v2195
  %v5231 = vunpack.c.h.b16 %v2195
  %v5232 = vunpack.c.l.b16 %v2196
  %v5233 = vunpack.c.h.b16 %v2196
  %v5234 = vunpack.c.l.b16 %v2197
  %v5235 = vunpack.c.h.b16 %v2197
  %v5236 = vunpack.c.l.b16 %v2198
  %v5237 = vunpack.c.h.b16 %v2198
  %v5238 = vunpack.c.l.b16 %v2199
  %v5239 = vunpack.c.h.b16 %v2199
  %v5240 = vunpack.c.l.b16 %v2200
  %v5241 = vunpack.c.h.b16 %v2200
  %v5242 = vunpack.c.l.b16 %v2201
  %v5243 = vunpack.c.h.b16 %v2201
  %v5244 = vunpack.c.l.b16 %v2202
  %v5245 = vunpack.c.h.b16 %v2202
  %v5246 = vunpack.c.l.b16 %v2203
  %v5247 = vunpack.c.h.b16 %v2203
  %v5248 = vunpack.c.l.b16 %v2204
  %v5249 = vunpack.c.h.b16 %v2204
  %v5250 = vunpack.c.l.b16 %v2205
  %v5251 = vunpack.c.h.b16 %v2205
  %v5252 = vunpack.c.l.b16 %v2206
  %v5253 = vunpack.c.h.b16 %v2206
  %v5254 = vunpack.c.l.b16 %v2207
  %v5255 = vunpack.c.h.b16 %v2207
  %v5256 = vunpack.c.l.b16 %v2208
  %v5257 = vunpack.c.h.b16 %v2208
  %v5258 = vunpack.c.l.b16 %v2209
  %v5259 = vunpack.c.h.b16 %v2209
  %v5260 = vunpack.c.l.b16 %v2210
  %v5261 = vunpack.c.h.b16 %v2210
  %v5262 = vunpack.c.l.b16 %v2211
  %v5263 = vunpack.c.h.b16 %v2211
  %v5264 = vunpack.c.l.b16 %v2212
  %v5265 = vunpack.c.h.b16 %v2212
  %v5266 = vunpack.c.l.b16 %v2213
  %v5267 = vunpack.c.h.b16 %v2213
  %v5268 = vunpack.c.l.b16 %v2214
  %v5269 = vunpack.c.h.b16 %v2214
  %v5270 = vunpack.c.l.b16 %v2215
  %v5271 = vunpack.c.h.b16 %v2215
  %v5272 = vunpack.c.l.b16 %v2216
  %v5273 = vunpack.c.h.b16 %v2216
  %v5274 = vunpack.c.l.b16 %v2217
  %v5275 = vunpack.c.h.b16 %v2217
  %v5276 = vunpack.c.l.b16 %v2218
  %v5277 = vunpack.c.h.b16 %v2218
  %v5278 = vunpack.c.l.b16 %v2219
  %v5279 = vunpack.c.h.b16 %v2219
  %v5280 = vunpack.c.l.b16 %v2220
  %v5281 = vunpack.c.h.b16 %v2220
  %v5282 = vunpack.c.l.b16 %v2221
  %v5283 = vunpack.c.h.b16 %v2221
  %v5284 = vunpack.c.l.b16 %v2222
  %v5285 = vunpack.c.h.b16 %v2222
  %v5286 = vunpack.c.l.b16 %v2223
  %v5287 = vunpack.c.h.b16 %v2223
  %v5288 = vunpack.c.l.b16 %v2224
  %v5289 = vunpack.c.h.b16 %v2224
  %v5290 = vunpack.c.l.b16 %v2225
  %v5291 = vunpack.c.h.b16 %v2225
  %v5292 = vunpack.c.l.b16 %v2226
  %v5293 = vunpack.c.h.b16 %v2226
  %v5294 = vunpack.c.l.b16 %v2227
  %v5295 = vunpack.c.h.b16 %v2227
  %v5296 = vunpack.c.l.b16 %v2228
  %v5297 = vunpack.c.h.b16 %v2228
  %v5298 = vunpack.c.l.b16 %v2229
  %v5299 = vunpack.c.h.b16 %v2229
  %v5300 = vunpack.c.l.b16 %v2230
  %v5301 = vunpack.c.h.b16 %v2230
  %v5302 = vunpack.c.l.b16 %v2231
  %v5303 = vunpack.c.h.b16 %v2231
  %v5304 = vunpack.c.l.b16 %v2232
  %v5305 = vunpack.c.h.b16 %v2232
  %v5306 = vunpack.c.l.b16 %v2233
  %v5307 = vunpack.c.h.b16 %v2233
  %v5308 = vunpack.c.l.b16 %v2234
  %v5309 = vunpack.c.h.b16 %v2234
  %v5310 = vunpack.c.l.b16 %v2235
  %v5311 = vunpack.c.h.b16 %v2235
  %v5312 = vunpack.c.l.b16 %v2236
  %v5313 = vunpack.c.h.b16 %v2236
  %v5314 = vunpack.c.l.b16 %v2237
  %v5315 = vunpack.c.h.b16 %v2237
  %v5316 = vunpack.c.l.b16 %v2238
  %v5317 = vunpack.c.h.b16 %v2238
  %v5318 = vunpack.c.l.b16 %v2239
  %v5319 = vunpack.c.h.b16 %v2239
  %v5320 = vunpack.c.l.b16 %v2240
  %v5321 = vunpack.c.h.b16 %v2240
  %v5322 = vunpack.c.l.b16 %v2241
  %v5323 = vunpack.c.h.b16 %v2241
  %v5324 = vunpack.c.l.b16 %v2242
  %v5325 = vunpack.c.h.b16 %v2242
  %v5326 = vunpack.c.l.b16 %v2243
  %v5327 = vunpack.c.h.b16 %v2243
  %v5328 = vunpack.c.l.b16 %v2244
  %v5329 = vunpack.c.h.b16 %v2244
  %v5330 = vunpack.c.l.b16 %v2245
  %v5331 = vunpack.c.h.b16 %v2245
  %v5332 = vunpack.c.l.b16 %v2246
  %v5333 = vunpack.c.h.b16 %v2246
  %v5334 = vunpack.c.l.b16 %v2247
  %v5335 = vunpack.c.h.b16 %v2247
  %v5336 = vunpack.c.l.b16 %v2248
  %v5337 = vunpack.c.h.b16 %v2248
  %v5338 = vunpack.c.l.b16 %v2249
  %v5339 = vunpack.c.h.b16 %v2249
  %v5340 = vunpack.c.l.b16 %v2250
  %v5341 = vunpack.c.h.b16 %v2250
  %v5342 = vunpack.c.l.b16 %v2251
  %v5343 = vunpack.c.h.b16 %v2251
  %v5344 = vunpack.c.l.b16 %v2252
  %v5345 = vunpack.c.h.b16 %v2252
  %v5346 = vunpack.c.l.b16 %v2253
  %v5347 = vunpack.c.h.b16 %v2253
  %v5348 = vunpack.c.l.b16 %v2254
  %v5349 = vunpack.c.h.b16 %v2254
  %v5350 = vunpack.c.l.b16 %v2255
  %v5351 = vunpack.c.h.b16 %v2255
  %v5352 = vunpack.c.l.b16 %v2256
  %v5353 = vunpack.c.h.b16 %v2256
  %v5354 = vunpack.c.l.b16 %v2257
  %v5355 = vunpack.c.h.b16 %v2257
  %v5356 = vunpack.c.l.b16 %v2258
  %v5357 = vunpack.c.h.b16 %v2258
  %v5358 = vunpack.c.l.b16 %v2259
  %v5359 = vunpack.c.h.b16 %v2259
  %v5360 = vunpack.c.l.b16 %v2260
  %v5361 = vunpack.c.h.b16 %v2260
  %v5362 = vunpack.c.l.b16 %v2261
  %v5363 = vunpack.c.h.b16 %v2261
  %v5364 = vunpack.c.l.b16 %v2262
  %v5365 = vunpack.c.h.b16 %v2262
  %v5366 = vunpack.c.l.b16 %v2263
  %v5367 = vunpack.c.h.b16 %v2263
  %v5368 = vunpack.c.l.b16 %v2264
  %v5369 = vunpack.c.h.b16 %v2264
  %v5370 = vunpack.c.l.b16 %v2265
  %v5371 = vunpack.c.h.b16 %v2265
  %v5372 = vunpack.c.l.b16 %v2266
  %v5373 = vunpack.c.h.b16 %v2266
  %v5374 = vunpack.c.l.b16 %v2267
  %v5375 = vunpack.c.h.b16 %v2267
  %v5376 = vunpack.c.l.b16 %v2268
  %v5377 = vunpack.c.h.b16 %v2268
  %v5378 = vunpack.c.l.b16 %v2269
  %v5379 = vunpack.c.h.b16 %v2269
  %v5380 = vunpack.c.l.b16 %v2270
  %v5381 = vunpack.c.h.b16 %v2270
  %v5382 = vunpack.c.l.b16 %v2271
  %v5383 = vunpack.c.h.b16 %v2271
  %v5384 = vunpack.c.l.b16 %v2272
  %v5385 = vunpack.c.h.b16 %v2272
  %v5386 = vunpack.c.l.b16 %v2273
  %v5387 = vunpack.c.h.b16 %v2273
  %v5388 = vunpack.c.l.b16 %v2274
  %v5389 = vunpack.c.h.b16 %v2274
  %v5390 = vunpack.c.l.b16 %v2275
  %v5391 = vunpack.c.h.b16 %v2275
  %v5392 = vunpack.c.l.b16 %v2276
  %v5393 = vunpack.c.h.b16 %v2276
  %v5394 = vunpack.c.l.b16 %v2277
  %v5395 = vunpack.c.h.b16 %v2277
  %v5396 = vunpack.c.l.b16 %v2278
  %v5397 = vunpack.c.h.b16 %v2278
  %v5398 = vunpack.c.l.b16 %v2279
  %v5399 = vunpack.c.h.b16 %v2279
  %v5400 = vunpack.c.l.b16 %v2280
  %v5401 = vunpack.c.h.b16 %v2280
  %v5402 = vunpack.c.l.b16 %v2281
  %v5403 = vunpack.c.h.b16 %v2281
  %v5404 = vunpack.c.l.b16 %v2282
  %v5405 = vunpack.c.h.b16 %v2282
  %v5406 = vunpack.c.l.b16 %v2283
  %v5407 = vunpack.c.h.b16 %v2283
  %v5408 = vunpack.c.l.b16 %v2284
  %v5409 = vunpack.c.h.b16 %v2284
  %v5410 = vunpack.c.l.b16 %v2285
  %v5411 = vunpack.c.h.b16 %v2285
  %v5412 = vunpack.c.l.b16 %v2286
  %v5413 = vunpack.c.h.b16 %v2286
  %v5414 = vunpack.c.l.b16 %v2287
  %v5415 = vunpack.c.h.b16 %v2287
  %v5416 = vunpack.c.l.b16 %v2288
  %v5417 = vunpack.c.h.b16 %v2288
  %v5418 = vunpack.c.l.b16 %v2289
  %v5419 = vunpack.c.h.b16 %v2289
  %v5420 = vunpack.c.l.b16 %v2290
  %v5421 = vunpack.c.h.b16 %v2290
  %v5422 = vunpack.c.l.b16 %v2291
  %v5423 = vunpack.c.h.b16 %v2291
  %v5424 = vunpack.c.l.b16 %v2292
  %v5425 = vunpack.c.h.b16 %v2292
  %v5426 = vunpack.c.l.b16 %v2293
  %v5427 = vunpack.c.h.b16 %v2293
  %v5428 = vunpack.c.l.b16 %v2294
  %v5429 = vunpack.c.h.b16 %v2294
  %v5430 = vunpack.c.l.b16 %v2295
  %v5431 = vunpack.c.h.b16 %v2295
  %v5432 = vunpack.c.l.b16 %v2296
  %v5433 = vunpack.c.h.b16 %v2296
  %v5434 = vunpack.c.l.b16 %v2297
  %v5435 = vunpack.c.h.b16 %v2297
  %v5436 = vunpack.c.l.b16 %v2298
  %v5437 = vunpack.c.h.b16 %v2298
  %v5438 = vunpack.c.l.b16 %v2299
  %v5439 = vunpack.c.h.b16 %v2299
  %v5440 = vunpack.c.l.b16 %v2300
  %v5441 = vunpack.c.h.b16 %v2300
  %v5442 = vunpack.c.l.b16 %v2301
  %v5443 = vunpack.c.h.b16 %v2301
  %v5444 = vunpack.c.l.b16 %v2302
  %v5445 = vunpack.c.h.b16 %v2302
  %v5446 = vunpack.c.l.b16 %v2303
  %v5447 = vunpack.c.h.b16 %v2303
  %v5448 = vunpack.c.l.b16 %v2304
  %v5449 = vunpack.c.h.b16 %v2304
  %v5450 = vunpack.c.l.b16 %v2305
  %v5451 = vunpack.c.h.b16 %v2305
  %v5452 = vunpack.c.l.b16 %v2306
  %v5453 = vunpack.c.h.b16 %v2306
  %v5454 = vunpack.c.l.b16 %v2307
  %v5455 = vunpack.c.h.b16 %v2307
  %v5456 = vunpack.c.l.b16 %v2308
  %v5457 = vunpack.c.h.b16 %v2308
  %v5458 = vunpack.c.l.b16 %v2309
  %v5459 = vunpack.c.h.b16 %v2309
  %v5460 = vunpack.c.l.b16 %v2310
  %v5461 = vunpack.c.h.b16 %v2310
  %v5462 = vunpack.c.l.b16 %v2311
  %v5463 = vunpack.c.h.b16 %v2311
  %v5464 = vunpack.c.l.b16 %v2312
  %v5465 = vunpack.c.h.b16 %v2312
  %v5466 = vunpack.c.l.b16 %v2313
  %v5467 = vunpack.c.h.b16 %v2313
  %v5468 = vunpack.c.l.b16 %v2314
  %v5469 = vunpack.c.h.b16 %v2314
  %v5470 = vunpack.c.l.b16 %v2315
  %v5471 = vunpack.c.h.b16 %v2315
  %v5472 = vunpack.c.l.b16 %v2316
  %v5473 = vunpack.c.h.b16 %v2316
  %v5474 = vunpack.c.l.b16 %v2317
  %v5475 = vunpack.c.h.b16 %v2317
  %v5476 = vunpack.c.l.b16 %v2318
  %v5477 = vunpack.c.h.b16 %v2318
  %v5478 = vunpack.c.l.b16 %v2319
  %v5479 = vunpack.c.h.b16 %v2319
  %v5480 = vunpack.c.l.b16 %v2320
  %v5481 = vunpack.c.h.b16 %v2320
  %v5482 = vunpack.c.l.b16 %v2321
  %v5483 = vunpack.c.h.b16 %v2321
  %v5484 = vunpack.c.l.b16 %v2322
  %v5485 = vunpack.c.h.b16 %v2322
  %v5486 = vunpack.c.l.b16 %v2323
  %v5487 = vunpack.c.h.b16 %v2323
  %v5488 = vunpack.c.l.b16 %v2324
  %v5489 = vunpack.c.h.b16 %v2324
  %v5490 = vunpack.c.l.b16 %v2325
  %v5491 = vunpack.c.h.b16 %v2325
  %v5492 = vunpack.c.l.b16 %v2326
  %v5493 = vunpack.c.h.b16 %v2326
  %v5494 = vunpack.c.l.b16 %v2327
  %v5495 = vunpack.c.h.b16 %v2327
  %v5496 = vunpack.c.l.b16 %v2328
  %v5497 = vunpack.c.h.b16 %v2328
  %v5498 = vunpack.c.l.b16 %v2329
  %v5499 = vunpack.c.h.b16 %v2329
  %v5500 = vunpack.c.l.b16 %v2330
  %v5501 = vunpack.c.h.b16 %v2330
  %v5502 = vunpack.c.l.b16 %v2331
  %v5503 = vunpack.c.h.b16 %v2331
  %v5504 = vunpack.c.l.b16 %v2332
  %v5505 = vunpack.c.h.b16 %v2332
  %v5506 = vunpack.c.l.b16 %v2333
  %v5507 = vunpack.c.h.b16 %v2333
  %v5508 = vunpack.c.l.b16 %v2334
  %v5509 = vunpack.c.h.b16 %v2334
  %v5510 = vunpack.c.l.b16 %v2335
  %v5511 = vunpack.c.h.b16 %v2335
  %v5512 = vunpack.c.l.b16 %v2336
  %v5513 = vunpack.c.h.b16 %v2336
  %v5514 = vunpack.c.l.b16 %v2337
  %v5515 = vunpack.c.h.b16 %v2337
  %v5516 = vunpack.c.l.b16 %v2338
  %v5517 = vunpack.c.h.b16 %v2338
  %v5518 = vunpack.c.l.b16 %v2339
  %v5519 = vunpack.c.h.b16 %v2339
  %v5520 = vunpack.c.l.b16 %v2340
  %v5521 = vunpack.c.h.b16 %v2340
  %v5522 = vunpack.c.l.b16 %v2341
  %v5523 = vunpack.c.h.b16 %v2341
  %v5524 = vunpack.c.l.b16 %v2342
  %v5525 = vunpack.c.h.b16 %v2342
  %v5526 = vunpack.c.l.b16 %v2343
  %v5527 = vunpack.c.h.b16 %v2343
  %v5528 = vunpack.c.l.b16 %v2344
  %v5529 = vunpack.c.h.b16 %v2344
  %v5530 = vunpack.c.l.b16 %v2345
  %v5531 = vunpack.c.h.b16 %v2345
  %v5532 = vunpack.c.l.b16 %v2346
  %v5533 = vunpack.c.h.b16 %v2346
  %v5534 = vunpack.c.l.b16 %v2347
  %v5535 = vunpack.c.h.b16 %v2347
  %v5536 = vunpack.c.l.b16 %v2348
  %v5537 = vunpack.c.h.b16 %v2348
  %v5538 = vunpack.c.l.b16 %v2349
  %v5539 = vunpack.c.h.b16 %v2349
  %v5540 = vunpack.c.l.b16 %v2350
  %v5541 = vunpack.c.h.b16 %v2350
  %v5542 = vunpack.c.l.b16 %v2351
  %v5543 = vunpack.c.h.b16 %v2351
  %v5544 = vunpack.c.l.b16 %v2352
  %v5545 = vunpack.c.h.b16 %v2352
  %v5546 = vunpack.c.l.b16 %v2353
  %v5547 = vunpack.c.h.b16 %v2353
  %v5548 = vunpack.c.l.b16 %v2354
  %v5549 = vunpack.c.h.b16 %v2354
  %v5550 = vunpack.c.l.b16 %v2355
  %v5551 = vunpack.c.h.b16 %v2355
  %v5552 = vunpack.c.l.b16 %v2356
  %v5553 = vunpack.c.h.b16 %v2356
  %v5554 = vunpack.c.l.b16 %v2357
  %v5555 = vunpack.c.h.b16 %v2357
  %v5556 = vunpack.c.l.b16 %v2358
  %v5557 = vunpack.c.h.b16 %v2358
  %v5558 = vunpack.c.l.b16 %v2359
  %v5559 = vunpack.c.h.b16 %v2359
  %v5560 = vunpack.c.l.b16 %v2360
  %v5561 = vunpack.c.h.b16 %v2360
  %v5562 = vunpack.c.l.b16 %v2361
  %v5563 = vunpack.c.h.b16 %v2361
  %v5564 = vunpack.c.l.b16 %v2362
  %v5565 = vunpack.c.h.b16 %v2362
  %v5566 = vunpack.c.l.b16 %v2363
  %v5567 = vunpack.c.h.b16 %v2363
  %v5568 = vunpack.c.l.b16 %v2364
  %v5569 = vunpack.c.h.b16 %v2364
  %v5570 = vunpack.c.l.b16 %v2365
  %v5571 = vunpack.c.h.b16 %v2365
  %v5572 = vunpack.c.l.b16 %v2366
  %v5573 = vunpack.c.h.b16 %v2366
  %v5574 = vunpack.c.l.b16 %v2367
  %v5575 = vunpack.c.h.b16 %v2367
  %v5576 = vunpack.c.l.b16 %v2368
  %v5577 = vunpack.c.h.b16 %v2368
  %v5578 = vunpack.c.l.b16 %v2369
  %v5579 = vunpack.c.h.b16 %v2369
  %v5580 = vunpack.c.l.b16 %v2370
  %v5581 = vunpack.c.h.b16 %v2370
  %v5582 = vunpack.c.l.b16 %v2371
  %v5583 = vunpack.c.h.b16 %v2371
  %v5584 = vunpack.c.l.b16 %v2372
  %v5585 = vunpack.c.h.b16 %v2372
  %v5586 = vunpack.c.l.b16 %v2373
  %v5587 = vunpack.c.h.b16 %v2373
  %v5588 = vunpack.c.l.b16 %v2374
  %v5589 = vunpack.c.h.b16 %v2374
  %v5590 = vunpack.c.l.b16 %v2375
  %v5591 = vunpack.c.h.b16 %v2375
  %v5592 = vunpack.c.l.b16 %v2376
  %v5593 = vunpack.c.h.b16 %v2376
  %v5594 = vunpack.c.l.b16 %v2377
  %v5595 = vunpack.c.h.b16 %v2377
  %v5596 = vunpack.c.l.b16 %v2378
  %v5597 = vunpack.c.h.b16 %v2378
  %v5598 = vunpack.c.l.b16 %v2379
  %v5599 = vunpack.c.h.b16 %v2379
  %v5600 = vunpack.c.l.b16 %v2380
  %v5601 = vunpack.c.h.b16 %v2380
  %v5602 = vunpack.c.l.b16 %v2381
  %v5603 = vunpack.c.h.b16 %v2381
  %v5604 = vunpack.c.l.b16 %v2382
  %v5605 = vunpack.c.h.b16 %v2382
  %v5606 = vunpack.c.l.b16 %v2383
  %v5607 = vunpack.c.h.b16 %v2383
  %v5608 = vunpack.c.l.b16 %v2384
  %v5609 = vunpack.c.h.b16 %v2384
  %v5610 = vunpack.c.l.b16 %v2385
  %v5611 = vunpack.c.h.b16 %v2385
  %v5612 = vunpack.c.l.b16 %v2386
  %v5613 = vunpack.c.h.b16 %v2386
  %v5614 = vunpack.c.l.b16 %v2387
  %v5615 = vunpack.c.h.b16 %v2387
  %v5616 = vunpack.c.l.b16 %v2388
  %v5617 = vunpack.c.h.b16 %v2388
  %v5618 = vunpack.c.l.b16 %v2389
  %v5619 = vunpack.c.h.b16 %v2389
  %v5620 = vunpack.c.l.b16 %v2390
  %v5621 = vunpack.c.h.b16 %v2390
  %v5622 = vunpack.c.l.b16 %v2391
  %v5623 = vunpack.c.h.b16 %v2391
  %v5624 = vunpack.c.l.b16 %v2392
  %v5625 = vunpack.c.h.b16 %v2392
  %v5626 = vunpack.c.l.b16 %v2393
  %v5627 = vunpack.c.h.b16 %v2393
  %v5628 = vunpack.c.l.b16 %v2394
  %v5629 = vunpack.c.h.b16 %v2394
  %v5630 = vunpack.c.l.b16 %v2395
  %v5631 = vunpack.c.h.b16 %v2395
  %v5632 = vunpack.c.l.b16 %v2396
  %v5633 = vunpack.c.h.b16 %v2396
  %v5634 = vunpack.c.l.b16 %v2397
  %v5635 = vunpack.c.h.b16 %v2397
  %v5636 = vunpack.c.l.b16 %v2398
  %v5637 = vunpack.c.h.b16 %v2398
  %v5638 = vunpack.c.l.b16 %v2399
  %v5639 = vunpack.c.h.b16 %v2399
  %v5640 = vunpack.c.l.b16 %v2400
  %v5641 = vunpack.c.h.b16 %v2400
  %v5642 = vunpack.c.l.b16 %v2401
  %v5643 = vunpack.c.h.b16 %v2401
  %v5644 = vunpack.c.l.b16 %v2402
  %v5645 = vunpack.c.h.b16 %v2402
  %v5646 = vunpack.c.l.b16 %v2403
  %v5647 = vunpack.c.h.b16 %v2403
  %v5648 = vunpack.c.l.b16 %v2404
  %v5649 = vunpack.c.h.b16 %v2404
  %v5650 = vunpack.c.l.b16 %v2405
  %v5651 = vunpack.c.h.b16 %v2405
  %v5652 = vunpack.c.l.b16 %v2406
  %v5653 = vunpack.c.h.b16 %v2406
  %v5654 = vunpack.c.l.b16 %v2407
  %v5655 = vunpack.c.h.b16 %v2407
  %v5656 = vunpack.c.l.b16 %v2408
  %v5657 = vunpack.c.h.b16 %v2408
  %v5658 = vunpack.c.l.b16 %v2409
  %v5659 = vunpack.c.h.b16 %v2409
  %v5660 = vunpack.c.l.b16 %v2410
  %v5661 = vunpack.c.h.b16 %v2410
  %v5662 = vunpack.c.l.b16 %v2411
  %v5663 = vunpack.c.h.b16 %v2411
  %v5664 = vunpack.c.l.b16 %v2412
  %v5665 = vunpack.c.h.b16 %v2412
  %v5666 = vunpack.c.l.b16 %v2413
  %v5667 = vunpack.c.h.b16 %v2413
  %v5668 = vunpack.c.l.b16 %v2414
  %v5669 = vunpack.c.h.b16 %v2414
  %v5670 = vunpack.c.l.b16 %v2415
  %v5671 = vunpack.c.h.b16 %v2415
  %v5672 = vunpack.c.l.b16 %v2416
  %v5673 = vunpack.c.h.b16 %v2416
  %v5674 = vunpack.c.l.b16 %v2417
  %v5675 = vunpack.c.h.b16 %v2417
  %v5676 = vunpack.c.l.b16 %v2418
  %v5677 = vunpack.c.h.b16 %v2418
  %v5678 = vunpack.c.l.b16 %v2419
  %v5679 = vunpack.c.h.b16 %v2419
  %v5680 = vunpack.c.l.b16 %v2420
  %v5681 = vunpack.c.h.b16 %v2420
  %v5682 = vunpack.c.l.b16 %v2421
  %v5683 = vunpack.c.h.b16 %v2421
  %v5684 = vunpack.c.l.b16 %v2422
  %v5685 = vunpack.c.h.b16 %v2422
  %v5686 = vunpack.c.l.b16 %v2423
  %v5687 = vunpack.c.h.b16 %v2423
  %v5688 = vunpack.c.l.b16 %v2424
  %v5689 = vunpack.c.h.b16 %v2424
  %v5690 = vunpack.c.l.b16 %v2425
  %v5691 = vunpack.c.h.b16 %v2425
  %v5692 = vunpack.c.l.b16 %v2426
  %v5693 = vunpack.c.h.b16 %v2426
  %v5694 = vunpack.c.l.b16 %v2427
  %v5695 = vunpack.c.h.b16 %v2427
  %v5696 = vunpack.c.l.b16 %v2428
  %v5697 = vunpack.c.h.b16 %v2428
  %v5698 = vunpack.c.l.b16 %v2429
  %v5699 = vunpack.c.h.b16 %v2429
  %v5700 = vunpack.c.l.b16 %v2430
  %v5701 = vunpack.c.h.b16 %v2430
  %v5702 = vunpack.c.l.b16 %v2431
  %v5703 = vunpack.c.h.b16 %v2431
  %v5704 = vunpack.c.l.b16 %v2432
  %v5705 = vunpack.c.h.b16 %v2432
  %v5706 = vunpack.c.l.b16 %v2433
  %v5707 = vunpack.c.h.b16 %v2433
  %v5708 = vunpack.c.l.b16 %v2434
  %v5709 = vunpack.c.h.b16 %v2434
  %v5710 = vunpack.c.l.b16 %v2435
  %v5711 = vunpack.c.h.b16 %v2435
  %v5712 = vunpack.c.l.b16 %v2436
  %v5713 = vunpack.c.h.b16 %v2436
  %v5714 = vunpack.c.l.b16 %v2437
  %v5715 = vunpack.c.h.b16 %v2437
  %v5716 = vunpack.c.l.b16 %v2438
  %v5717 = vunpack.c.h.b16 %v2438
  %v5718 = vunpack.c.l.b16 %v2439
  %v5719 = vunpack.c.h.b16 %v2439
  %v5720 = vunpack.c.l.b16 %v2440
  %v5721 = vunpack.c.h.b16 %v2440
  %v5722 = vunpack.c.l.b16 %v2441
  %v5723 = vunpack.c.h.b16 %v2441
  %v5724 = vunpack.c.l.b16 %v2442
  %v5725 = vunpack.c.h.b16 %v2442
  %v5726 = vunpack.c.l.b16 %v2443
  %v5727 = vunpack.c.h.b16 %v2443
  %v5728 = vunpack.c.l.b16 %v2444
  %v5729 = vunpack.c.h.b16 %v2444
  %v5730 = vunpack.c.l.b16 %v2445
  %v5731 = vunpack.c.h.b16 %v2445
  %v5732 = vunpack.c.l.b16 %v2446
  %v5733 = vunpack.c.h.b16 %v2446
  %v5734 = vunpack.c.l.b16 %v2447
  %v5735 = vunpack.c.h.b16 %v2447
  %v5736 = vunpack.c.l.b16 %v2448
  %v5737 = vunpack.c.h.b16 %v2448
  %v5738 = vunpack.c.l.b16 %v2449
  %v5739 = vunpack.c.h.b16 %v2449
  %v5740 = vunpack.c.l.b16 %v2450
  %v5741 = vunpack.c.h.b16 %v2450
  %v5742 = vunpack.c.l.b16 %v2451
  %v5743 = vunpack.c.h.b16 %v2451
  %v5744 = vunpack.c.l.b16 %v2452
  %v5745 = vunpack.c.h.b16 %v2452
  %v5746 = vunpack.c.l.b16 %v2453
  %v5747 = vunpack.c.h.b16 %v2453
  %v5748 = vunpack.c.l.b16 %v2454
  %v5749 = vunpack.c.h.b16 %v2454
  %v5750 = vunpack.c.l.b16 %v2455
  %v5751 = vunpack.c.h.b16 %v2455
  %v5752 = vunpack.c.l.b16 %v2456
  %v5753 = vunpack.c.h.b16 %v2456
  %v5754 = vunpack.c.l.b16 %v2457
  %v5755 = vunpack.c.h.b16 %v2457
  %v5756 = vunpack.c.l.b16 %v2458
  %v5757 = vunpack.c.h.b16 %v2458
  %v5758 = vunpack.c.l.b16 %v2459
  %v5759 = vunpack.c.h.b16 %v2459
  %v5760 = vunpack.c.l.b16 %v2460
  %v5761 = vunpack.c.h.b16 %v2460
  %v5762 = vunpack.c.l.b16 %v2461
  %v5763 = vunpack.c.h.b16 %v2461
  %v5764 = vunpack.c.l.b16 %v2462
  %v5765 = vunpack.c.h.b16 %v2462
  %v5766 = vunpack.c.l.b16 %v2463
  %v5767 = vunpack.c.h.b16 %v2463
  %v5768 = vunpack.c.l.b16 %v2464
  %v5769 = vunpack.c.h.b16 %v2464
  %v5770 = vunpack.c.l.b16 %v2465
  %v5771 = vunpack.c.h.b16 %v2465
  %v5772 = vunpack.c.l.b16 %v2466
  %v5773 = vunpack.c.h.b16 %v2466
  %v5774 = vunpack.c.l.b16 %v2467
  %v5775 = vunpack.c.h.b16 %v2467
  %v5776 = vunpack.c.l.b16 %v2468
  %v5777 = vunpack.c.h.b16 %v2468
  %v5778 = vunpack.c.l.b16 %v2469
  %v5779 = vunpack.c.h.b16 %v2469
  %v5780 = vunpack.c.l.b16 %v2470
  %v5781 = vunpack.c.h.b16 %v2470
  %v5782 = vunpack.c.l.b16 %v2471
  %v5783 = vunpack.c.h.b16 %v2471
  %v5784 = vunpack.c.l.b16 %v2472
  %v5785 = vunpack.c.h.b16 %v2472
  %v5786 = vunpack.c.l.b16 %v2473
  %v5787 = vunpack.c.h.b16 %v2473
  %v5788 = vunpack.c.l.b16 %v2474
  %v5789 = vunpack.c.h.b16 %v2474
  %v5790 = vunpack.c.l.b16 %v2475
  %v5791 = vunpack.c.h.b16 %v2475
  %v5792 = vunpack.c.l.b16 %v2476
  %v5793 = vunpack.c.h.b16 %v2476
  %v5794 = vunpack.c.l.b16 %v2477
  %v5795 = vunpack.c.h.b16 %v2477
  %v5796 = vunpack.c.l.b16 %v2478
  %v5797 = vunpack.c.h.b16 %v2478
  %v5798 = vunpack.c.l.b16 %v2479
  %v5799 = vunpack.c.h.b16 %v2479
  %v5800 = vunpack.c.l.b16 %v2480
  %v5801 = vunpack.c.h.b16 %v2480
  %v5802 = vunpack.c.l.b16 %v2481
  %v5803 = vunpack.c.h.b16 %v2481
  %v5804 = vunpack.c.l.b16 %v2482
  %v5805 = vunpack.c.h.b16 %v2482
  %v5806 = vunpack.c.l.b16 %v2483
  %v5807 = vunpack.c.h.b16 %v2483
  %v5808 = vunpack.c.l.b16 %v2484
  %v5809 = vunpack.c.h.b16 %v2484
  %v5810 = vunpack.c.l.b16 %v2485
  %v5811 = vunpack.c.h.b16 %v2485
  %v5812 = vunpack.c.l.b16 %v2486
  %v5813 = vunpack.c.h.b16 %v2486
  %v5814 = vunpack.c.l.b16 %v2487
  %v5815 = vunpack.c.h.b16 %v2487
  %v5816 = vunpack.c.l.b16 %v2488
  %v5817 = vunpack.c.h.b16 %v2488
  %v5818 = vunpack.c.l.b16 %v2489
  %v5819 = vunpack.c.h.b16 %v2489
  %v5820 = vunpack.c.l.b16 %v2490
  %v5821 = vunpack.c.h.b16 %v2490
  %v5822 = vunpack.c.l.b16 %v2491
  %v5823 = vunpack.c.h.b16 %v2491
  %v5824 = vunpack.c.l.b16 %v2492
  %v5825 = vunpack.c.h.b16 %v2492
  %v5826 = vunpack.c.l.b16 %v2493
  %v5827 = vunpack.c.h.b16 %v2493
  %v5828 = vunpack.c.l.b16 %v2494
  %v5829 = vunpack.c.h.b16 %v2494
  %v5830 = vunpack.c.l.b16 %v2495
  %v5831 = vunpack.c.h.b16 %v2495
  %v5832 = vunpack.c.l.b16 %v2496
  %v5833 = vunpack.c.h.b16 %v2496
  %v5834 = vunpack.c.l.b16 %v2497
  %v5835 = vunpack.c.h.b16 %v2497
  %v5836 = vunpack.c.l.b16 %v2498
  %v5837 = vunpack.c.h.b16 %v2498
  %v5838 = vunpack.c.l.b16 %v2499
  %v5839 = vunpack.c.h.b16 %v2499
  %v5840 = vunpack.c.l.b16 %v2500
  %v5841 = vunpack.c.h.b16 %v2500
  %v5842 = vunpack.c.l.b16 %v2501
  %v5843 = vunpack.c.h.b16 %v2501
  %v5844 = vunpack.c.l.b16 %v2502
  %v5845 = vunpack.c.h.b16 %v2502
  %v5846 = vunpack.c.l.b16 %v2503
  %v5847 = vunpack.c.h.b16 %v2503
  %v5848 = vunpack.c.l.b16 %v2504
  %v5849 = vunpack.c.h.b16 %v2504
  %v5850 = vunpack.c.l.b16 %v2505
  %v5851 = vunpack.c.h.b16 %v2505
  %v5852 = vunpack.c.l.b16 %v2506
  %v5853 = vunpack.c.h.b16 %v2506
  %v5854 = vunpack.c.l.b16 %v2507
  %v5855 = vunpack.c.h.b16 %v2507
  %v5856 = vunpack.c.l.b16 %v2508
  %v5857 = vunpack.c.h.b16 %v2508
  %v5858 = vunpack.c.l.b16 %v2509
  %v5859 = vunpack.c.h.b16 %v2509
  %v5860 = vunpack.c.l.b16 %v2510
  %v5861 = vunpack.c.h.b16 %v2510
  %v5862 = vunpack.c.l.b16 %v2511
  %v5863 = vunpack.c.h.b16 %v2511
  %v5864 = vunpack.c.l.b16 %v2512
  %v5865 = vunpack.c.h.b16 %v2512
  %v5866 = vunpack.c.l.b16 %v2513
  %v5867 = vunpack.c.h.b16 %v2513
  %v5868 = vunpack.c.l.b16 %v2514
  %v5869 = vunpack.c.h.b16 %v2514
  %v5870 = vunpack.c.l.b16 %v2515
  %v5871 = vunpack.c.h.b16 %v2515
  %v5872 = vunpack.c.l.b16 %v2516
  %v5873 = vunpack.c.h.b16 %v2516
  %v5874 = vunpack.c.l.b16 %v2517
  %v5875 = vunpack.c.h.b16 %v2517
  %v5876 = vunpack.c.l.b16 %v2518
  %v5877 = vunpack.c.h.b16 %v2518
  %v5878 = vunpack.c.l.b16 %v2519
  %v5879 = vunpack.c.h.b16 %v2519
  %v5880 = vunpack.c.l.b16 %v2520
  %v5881 = vunpack.c.h.b16 %v2520
  %v5882 = vunpack.c.l.b16 %v2521
  %v5883 = vunpack.c.h.b16 %v2521
  %v5884 = vunpack.c.l.b16 %v2522
  %v5885 = vunpack.c.h.b16 %v2522
  %v5886 = vunpack.c.l.b16 %v2523
  %v5887 = vunpack.c.h.b16 %v2523
  %v5888 = vunpack.c.l.b16 %v2524
  %v5889 = vunpack.c.h.b16 %v2524
  %v5890 = vunpack.c.l.b16 %v2525
  %v5891 = vunpack.c.h.b16 %v2525
  %v5892 = vunpack.c.l.b16 %v2526
  %v5893 = vunpack.c.h.b16 %v2526
  %v5894 = vunpack.c.l.b16 %v2527
  %v5895 = vunpack.c.h.b16 %v2527
  %v5896 = vunpack.c.l.b16 %v2528
  %v5897 = vunpack.c.h.b16 %v2528
  %v5898 = vunpack.c.l.b16 %v2529
  %v5899 = vunpack.c.h.b16 %v2529
  %v5900 = vunpack.c.l.b16 %v2530
  %v5901 = vunpack.c.h.b16 %v2530
  %v5902 = vunpack.c.l.b16 %v2531
  %v5903 = vunpack.c.h.b16 %v2531
  %v5904 = vunpack.c.l.b16 %v2532
  %v5905 = vunpack.c.h.b16 %v2532
  %v5906 = vunpack.c.l.b16 %v2533
  %v5907 = vunpack.c.h.b16 %v2533
  %v5908 = vunpack.c.l.b16 %v2534
  %v5909 = vunpack.c.h.b16 %v2534
  %v5910 = vunpack.c.l.b16 %v2535
  %v5911 = vunpack.c.h.b16 %v2535
  %v5912 = vunpack.c.l.b16 %v2536
  %v5913 = vunpack.c.h.b16 %v2536
  %v5914 = vunpack.c.l.b16 %v2537
  %v5915 = vunpack.c.h.b16 %v2537
  %v5916 = vunpack.c.l.b16 %v2538
  %v5917 = vunpack.c.h.b16 %v2538
  %v5918 = vunpack.c.l.b16 %v2539
  %v5919 = vunpack.c.h.b16 %v2539
  %v5920 = vunpack.c.l.b16 %v2540
  %v5921 = vunpack.c.h.b16 %v2540
  %v5922 = vunpack.c.l.b16 %v2541
  %v5923 = vunpack.c.h.b16 %v2541
  %v5924 = vunpack.c.l.b16 %v2542
  %v5925 = vunpack.c.h.b16 %v2542
  %v5926 = vunpack.c.l.b16 %v2543
  %v5927 = vunpack.c.h.b16 %v2543
  %v5928 = vunpack.c.l.b16 %v2544
  %v5929 = vunpack.c.h.b16 %v2544
  %v5930 = vunpack.c.l.b16 %v2545
  %v5931 = vunpack.c.h.b16 %v2545
  %v5932 = vunpack.c.l.b16 %v2546
  %v5933 = vunpack.c.h.b16 %v2546
  %v5934 = vunpack.c.l.b16 %v2547
  %v5935 = vunpack.c.h.b16 %v2547
  %v5936 = vunpack.c.l.b16 %v2548
  %v5937 = vunpack.c.h.b16 %v2548
  %v5938 = vunpack.c.l.b16 %v2549
  %v5939 = vunpack.c.h.b16 %v2549
  %v5940 = vunpack.c.l.b16 %v2550
  %v5941 = vunpack.c.h.b16 %v2550
  %v5942 = vunpack.c.l.b16 %v2551
  %v5943 = vunpack.c.h.b16 %v2551
  %v5944 = vunpack.c.l.b16 %v2552
  %v5945 = vunpack.c.h.b16 %v2552
  %v5946 = vunpack.c.l.b16 %v2553
  %v5947 = vunpack.c.h.b16 %v2553
  %v5948 = vunpack.c.l.b16 %v2554
  %v5949 = vunpack.c.h.b16 %v2554
  %v5950 = vunpack.c.l.b16 %v2555
  %v5951 = vunpack.c.h.b16 %v2555
  %v5952 = vunpack.c.l.b16 %v2556
  %v5953 = vunpack.c.h.b16 %v2556
  %v5954 = vunpack.c.l.b16 %v2557
  %v5955 = vunpack.c.h.b16 %v2557
  %v5956 = vunpack.c.l.b16 %v2558
  %v5957 = vunpack.c.h.b16 %v2558
  %v5958 = vunpack.c.l.b16 %v2559
  %v5959 = vunpack.c.h.b16 %v2559
  %v5960 = vunpack.c.l.b16 %v2560
  %v5961 = vunpack.c.h.b16 %v2560
  %v5962 = vunpack.c.l.b16 %v2561
  %v5963 = vunpack.c.h.b16 %v2561
  %v5964 = vunpack.c.l.b16 %v2562
  %v5965 = vunpack.c.h.b16 %v2562
  %v5966 = vunpack.c.l.b16 %v2563
  %v5967 = vunpack.c.h.b16 %v2563
  %v5968 = vunpack.c.l.b16 %v2564
  %v5969 = vunpack.c.h.b16 %v2564
  %v5970 = vunpack.c.l.b16 %v2565
  %v5971 = vunpack.c.h.b16 %v2565
  %v5972 = vunpack.c.l.b16 %v2566
  %v5973 = vunpack.c.h.b16 %v2566
  %v5974 = vunpack.c.l.b16 %v2567
  %v5975 = vunpack.c.h.b16 %v2567
  %v5976 = vunpack.c.l.b16 %v2568
  %v5977 = vunpack.c.h.b16 %v2568
  %v5978 = vunpack.c.l.b16 %v2569
  %v5979 = vunpack.c.h.b16 %v2569
  %v5980 = vunpack.c.l.b16 %v2570
  %v5981 = vunpack.c.h.b16 %v2570
  %v5982 = vunpack.c.l.b16 %v2571
  %v5983 = vunpack.c.h.b16 %v2571
  %v5984 = vunpack.c.l.b16 %v2572
  %v5985 = vunpack.c.h.b16 %v2572
  %v5986 = vunpack.c.l.b16 %v2573
  %v5987 = vunpack.c.h.b16 %v2573
  %v5988 = vunpack.c.l.b16 %v2574
  %v5989 = vunpack.c.h.b16 %v2574
  %v5990 = vunpack.c.l.b16 %v2575
  %v5991 = vunpack.c.h.b16 %v2575
  %v5992 = vunpack.c.l.b16 %v2576
  %v5993 = vunpack.c.h.b16 %v2576
  %v5994 = vunpack.c.l.b16 %v2577
  %v5995 = vunpack.c.h.b16 %v2577
  %v5996 = vunpack.c.l.b16 %v2578
  %v5997 = vunpack.c.h.b16 %v2578
  %v5998 = vunpack.c.l.b16 %v2579
  %v5999 = vunpack.c.h.b16 %v2579
  %v6000 = vunpack.c.l.b16 %v2580
  %v6001 = vunpack.c.h.b16 %v2580
  %v6002 = vunpack.c.l.b16 %v2581
  %v6003 = vunpack.c.h.b16 %v2581
  %v6004 = vunpack.c.l.b16 %v2582
  %v6005 = vunpack.c.h.b16 %v2582
  %v6006 = vunpack.c.l.b16 %v2583
  %v6007 = vunpack.c.h.b16 %v2583
  %v6008 = vunpack.c.l.b16 %v2584
  %v6009 = vunpack.c.h.b16 %v2584
  %v6010 = vunpack.c.l.b16 %v2585
  %v6011 = vunpack.c.h.b16 %v2585
  %v6012 = vunpack.c.l.b16 %v2586
  %v6013 = vunpack.c.h.b16 %v2586
  %v6014 = vunpack.c.l.b16 %v2587
  %v6015 = vunpack.c.h.b16 %v2587
  %v6016 = vunpack.c.l.b16 %v2588
  %v6017 = vunpack.c.h.b16 %v2588
  %v6018 = vunpack.c.l.b16 %v2589
  %v6019 = vunpack.c.h.b16 %v2589
  %v6020 = vunpack.c.l.b16 %v2590
  %v6021 = vunpack.c.h.b16 %v2590
  %v6022 = vunpack.c.l.b16 %v2591
  %v6023 = vunpack.c.h.b16 %v2591
  %v6024 = vunpack.c.l.b16 %v2592
  %v6025 = vunpack.c.h.b16 %v2592
  %v6026 = vunpack.c.l.b16 %v2593
  %v6027 = vunpack.c.h.b16 %v2593
  %v6028 = vunpack.c.l.b16 %v2594
  %v6029 = vunpack.c.h.b16 %v2594
  %v6030 = vunpack.c.l.b16 %v2595
  %v6031 = vunpack.c.h.b16 %v2595
  %v6032 = vunpack.c.l.b16 %v2596
  %v6033 = vunpack.c.h.b16 %v2596
  %v6034 = vunpack.c.l.b16 %v2597
  %v6035 = vunpack.c.h.b16 %v2597
  %v6036 = vunpack.c.l.b16 %v2598
  %v6037 = vunpack.c.h.b16 %v2598
  %v6038 = vunpack.c.l.b16 %v2599
  %v6039 = vunpack.c.h.b16 %v2599
  %v6040 = vunpack.c.l.b16 %v2600
  %v6041 = vunpack.c.h.b16 %v2600
  %v6042 = vunpack.c.l.b16 %v2601
  %v6043 = vunpack.c.h.b16 %v2601
  %v6044 = vunpack.c.l.b16 %v2602
  %v6045 = vunpack.c.h.b16 %v2602
  %v6046 = vunpack.c.l.b16 %v2603
  %v6047 = vunpack.c.h.b16 %v2603
  %v6048 = vunpack.c.l.b16 %v2604
  %v6049 = vunpack.c.h.b16 %v2604
  %v6050 = vunpack.c.l.b16 %v2605
  %v6051 = vunpack.c.h.b16 %v2605
  %v6052 = vunpack.c.l.b16 %v2606
  %v6053 = vunpack.c.h.b16 %v2606
  %v6054 = vunpack.c.l.b16 %v2607
  %v6055 = vunpack.c.h.b16 %v2607
  %v6056 = vunpack.c.l.b16 %v2608
  %v6057 = vunpack.c.h.b16 %v2608
  %v6058 = vunpack.c.l.b16 %v2609
  %v6059 = vunpack.c.h.b16 %v2609
  %v6060 = vunpack.c.l.b16 %v2610
  %v6061 = vunpack.c.h.b16 %v2610
  %v6062 = vunpack.c.l.b16 %v2611
  %v6063 = vunpack.c.h.b16 %v2611
  %v6064 = vunpack.c.l.b16 %v2612
  %v6065 = vunpack.c.h.b16 %v2612
  %v6066 = vunpack.c.l.b16 %v2613
  %v6067 = vunpack.c.h.b16 %v2613
  %v6068 = vunpack.c.l.b16 %v2614
  %v6069 = vunpack.c.h.b16 %v2614
  %v6070 = vunpack.c.l.b16 %v2615
  %v6071 = vunpack.c.h.b16 %v2615
  %v6072 = vunpack.c.l.b16 %v2616
  %v6073 = vunpack.c.h.b16 %v2616
  %v6074 = vunpack.c.l.b16 %v2617
  %v6075 = vunpack.c.h.b16 %v2617
  %v6076 = vunpack.c.l.b16 %v2618
  %v6077 = vunpack.c.h.b16 %v2618
  %v6078 = vunpack.c.l.b16 %v2619
  %v6079 = vunpack.c.h.b16 %v2619
  %v6080 = vunpack.c.l.b16 %v2620
  %v6081 = vunpack.c.h.b16 %v2620
  %v6082 = vunpack.c.l.b16 %v2621
  %v6083 = vunpack.c.h.b16 %v2621
  %v6084 = vunpack.c.l.b16 %v2622
  %v6085 = vunpack.c.h.b16 %v2622
  %v6086 = vunpack.c.l.b16 %v2623
  %v6087 = vunpack.c.h.b16 %v2623
  %v6088 = vunpack.c.l.b16 %v2624
  %v6089 = vunpack.c.h.b16 %v2624
  %v6090 = vunpack.c.l.b16 %v2625
  %v6091 = vunpack.c.h.b16 %v2625
  %v6092 = vunpack.c.l.b16 %v2626
  %v6093 = vunpack.c.h.b16 %v2626
  %v6094 = vunpack.c.l.b16 %v2627
  %v6095 = vunpack.c.h.b16 %v2627
  %v6096 = vunpack.c.l.b16 %v2628
  %v6097 = vunpack.c.h.b16 %v2628
  %v6098 = vunpack.c.l.b16 %v2629
  %v6099 = vunpack.c.h.b16 %v2629
  %v6100 = vunpack.c.l.b16 %v2630
  %v6101 = vunpack.c.h.b16 %v2630
  %v6102 = vunpack.c.l.b16 %v2631
  %v6103 = vunpack.c.h.b16 %v2631
  %v6104 = vunpack.c.l.b16 %v2632
  %v6105 = vunpack.c.h.b16 %v2632
  %v6106 = vunpack.c.l.b16 %v2633
  %v6107 = vunpack.c.h.b16 %v2633
  %v6108 = vunpack.c.l.b16 %v2634
  %v6109 = vunpack.c.h.b16 %v2634
  %v6110 = vunpack.c.l.b16 %v2635
  %v6111 = vunpack.c.h.b16 %v2635
  %v6112 = vunpack.c.l.b16 %v2636
  %v6113 = vunpack.c.h.b16 %v2636
  %v6114 = vunpack.c.l.b16 %v2637
  %v6115 = vunpack.c.h.b16 %v2637
  %v6116 = vunpack.c.l.b16 %v2638
  %v6117 = vunpack.c.h.b16 %v2638
  %v6118 = vunpack.c.l.b16 %v2639
  %v6119 = vunpack.c.h.b16 %v2639
  %v6120 = vunpack.c.l.b16 %v2640
  %v6121 = vunpack.c.h.b16 %v2640
  %v6122 = vunpack.c.l.b16 %v2641
  %v6123 = vunpack.c.h.b16 %v2641
  %v6124 = vunpack.c.l.b16 %v2642
  %v6125 = vunpack.c.h.b16 %v2642
  %v6126 = vunpack.c.l.b16 %v2643
  %v6127 = vunpack.c.h.b16 %v2643
  %v6128 = vunpack.c.l.b16 %v2644
  %v6129 = vunpack.c.h.b16 %v2644
  %v6130 = vunpack.c.l.b16 %v2645
  %v6131 = vunpack.c.h.b16 %v2645
  %v6132 = vunpack.c.l.b16 %v2646
  %v6133 = vunpack.c.h.b16 %v2646
  %v6134 = vunpack.c.l.b16 %v2647
  %v6135 = vunpack.c.h.b16 %v2647
  %v6136 = vunpack.c.l.b16 %v2648
  %v6137 = vunpack.c.h.b16 %v2648
  %v6138 = vunpack.c.l.b16 %v2649
  %v6139 = vunpack.c.h.b16 %v2649
  %v6140 = vunpack.c.l.b16 %v2650
  %v6141 = vunpack.c.h.b16 %v2650
  %v6142 = vunpack.c.l.b16 %v2651
  %v6143 = vunpack.c.h.b16 %v2651
  %v6144 = vunpack.c.l.b16 %v2652
  %v6145 = vunpack.c.h.b16 %v2652
  %v6146 = vunpack.c.l.b16 %v2653
  %v6147 = vunpack.c.h.b16 %v2653
  %v6148 = vunpack.c.l.b16 %v2654
  %v6149 = vunpack.c.h.b16 %v2654
  %v6150 = vunpack.c.l.b16 %v2655
  %v6151 = vunpack.c.h.b16 %v2655
  %v6152 = vunpack.c.l.b16 %v2656
  %v6153 = vunpack.c.h.b16 %v2656
  %v6154 = vunpack.c.l.b16 %v2657
  %v6155 = vunpack.c.h.b16 %v2657
  %v6156 = vunpack.c.l.b16 %v2658
  %v6157 = vunpack.c.h.b16 %v2658
  %v6158 = vunpack.c.l.b16 %v2659
  %v6159 = vunpack.c.h.b16 %v2659
  %v6160 = vunpack.c.l.b16 %v2660
  %v6161 = vunpack.c.h.b16 %v2660
  %v6162 = vunpack.c.l.b16 %v2661
  %v6163 = vunpack.c.h.b16 %v2661
  %v6164 = vunpack.c.l.b16 %v2662
  %v6165 = vunpack.c.h.b16 %v2662
  %v6166 = vunpack.c.l.b16 %v2663
  %v6167 = vunpack.c.h.b16 %v2663
  %v6168 = vunpack.c.l.b16 %v2664
  %v6169 = vunpack.c.h.b16 %v2664
  %v6170 = vunpack.c.l.b16 %v2665
  %v6171 = vunpack.c.h.b16 %v2665
  %v6172 = vunpack.c.l.b16 %v2666
  %v6173 = vunpack.c.h.b16 %v2666
  %v6174 = vunpack.c.l.b16 %v2667
  %v6175 = vunpack.c.h.b16 %v2667
  %v6176 = vunpack.c.l.b16 %v2668
  %v6177 = vunpack.c.h.b16 %v2668
  %v6178 = vunpack.c.l.b16 %v2669
  %v6179 = vunpack.c.h.b16 %v2669
  %v6180 = vunpack.c.l.b16 %v2670
  %v6181 = vunpack.c.h.b16 %v2670
  %v6182 = vunpack.c.l.b16 %v2671
  %v6183 = vunpack.c.h.b16 %v2671
  %v6184 = vunpack.c.l.b16 %v2672
  %v6185 = vunpack.c.h.b16 %v2672
  %v6186 = vunpack.c.l.b16 %v2673
  %v6187 = vunpack.c.h.b16 %v2673
  %v6188 = vunpack.c.l.b16 %v2674
  %v6189 = vunpack.c.h.b16 %v2674
  %v6190 = vunpack.c.l.b16 %v2675
  %v6191 = vunpack.c.h.b16 %v2675
  %v6192 = vunpack.c.l.b16 %v2676
  %v6193 = vunpack.c.h.b16 %v2676
  %v6194 = vunpack.c.l.b16 %v2677
  %v6195 = vunpack.c.h.b16 %v2677
  %v6196 = vunpack.c.l.b16 %v2678
  %v6197 = vunpack.c.h.b16 %v2678
  %v6198 = vunpack.c.l.b16 %v2679
  %v6199 = vunpack.c.h.b16 %v2679
  %v6200 = vunpack.c.l.b16 %v2680
  %v6201 = vunpack.c.h.b16 %v2680
  %v6202 = vunpack.c.l.b16 %v2681
  %v6203 = vunpack.c.h.b16 %v2681
  %v6204 = vunpack.c.l.b16 %v2682
  %v6205 = vunpack.c.h.b16 %v2682
  %v6206 = vunpack.c.l.b16 %v2683
  %v6207 = vunpack.c.h.b16 %v2683
  %v6208 = vunpack.c.l.b16 %v2684
  %v6209 = vunpack.c.h.b16 %v2684
  %v6210 = vunpack.c.l.b16 %v2685
  %v6211 = vunpack.c.h.b16 %v2685
  %v6212 = vunpack.c.l.b16 %v2686
  %v6213 = vunpack.c.h.b16 %v2686
  %v6214 = vunpack.c.l.b16 %v2687
  %v6215 = vunpack.c.h.b16 %v2687
  %v6216 = vunpack.c.l.b16 %v2688
  %v6217 = vunpack.c.h.b16 %v2688
  %v6218 = vunpack.c.l.b16 %v2689
  %v6219 = vunpack.c.h.b16 %v2689
  %v6220 = vunpack.c.l.b16 %v2690
  %v6221 = vunpack.c.h.b16 %v2690
  %v6222 = vunpack.c.l.b16 %v2691
  %v6223 = vunpack.c.h.b16 %v2691
  %v6224 = vunpack.c.l.b16 %v2692
  %v6225 = vunpack.c.h.b16 %v2692
  %v6226 = vunpack.c.l.b16 %v2693
  %v6227 = vunpack.c.h.b16 %v2693
  %v6228 = vunpack.c.l.b16 %v2694
  %v6229 = vunpack.c.h.b16 %v2694
  %v6230 = vunpack.c.l.b16 %v2695
  %v6231 = vunpack.c.h.b16 %v2695
  %v6232 = vunpack.c.l.b16 %v2696
  %v6233 = vunpack.c.h.b16 %v2696
  %v6234 = vunpack.c.l.b16 %v2697
  %v6235 = vunpack.c.h.b16 %v2697
  %v6236 = vunpack.c.l.b16 %v2698
  %v6237 = vunpack.c.h.b16 %v2698
  %v6238 = vunpack.c.l.b16 %v2699
  %v6239 = vunpack.c.h.b16 %v2699
  %v6240 = vunpack.c.l.b16 %v2700
  %v6241 = vunpack.c.h.b16 %v2700
  %v6242 = vunpack.c.l.b16 %v2701
  %v6243 = vunpack.c.h.b16 %v2701
  %v6244 = vunpack.c.l.b16 %v2702
  %v6245 = vunpack.c.h.b16 %v2702
  %v6246 = vunpack.c.l.b16 %v2703
  %v6247 = vunpack.c.h.b16 %v2703
  %v6248 = vunpack.c.l.b16 %v2704
  %v6249 = vunpack.c.h.b16 %v2704
  %v6250 = vunpack.c.l.b16 %v2705
  %v6251 = vunpack.c.h.b16 %v2705
  %v6252 = vunpack.c.l.b16 %v2706
  %v6253 = vunpack.c.h.b16 %v2706
  %v6254 = vunpack.c.l.b16 %v2707
  %v6255 = vunpack.c.h.b16 %v2707
  %v6256 = vunpack.c.l.b16 %v2708
  %v6257 = vunpack.c.h.b16 %v2708
  %v6258 = vunpack.c.l.b16 %v2709
  %v6259 = vunpack.c.h.b16 %v2709
  %v6260 = vunpack.c.l.b16 %v2710
  %v6261 = vunpack.c.h.b16 %v2710
  %v6262 = vunpack.c.l.b16 %v2711
  %v6263 = vunpack.c.h.b16 %v2711
  %v6264 = vunpack.c.l.b16 %v2712
  %v6265 = vunpack.c.h.b16 %v2712
  %v6266 = vunpack.c.l.b16 %v2713
  %v6267 = vunpack.c.h.b16 %v2713
  %v6268 = vunpack.c.l.b16 %v2714
  %v6269 = vunpack.c.h.b16 %v2714
  %v6270 = vunpack.c.l.b16 %v2715
  %v6271 = vunpack.c.h.b16 %v2715
  %v6272 = vunpack.c.l.b16 %v2716
  %v6273 = vunpack.c.h.b16 %v2716
  %v6274 = vunpack.c.l.b16 %v2717
  %v6275 = vunpack.c.h.b16 %v2717
  %v6276 = vunpack.c.l.b16 %v2718
  %v6277 = vunpack.c.h.b16 %v2718
  %v6278 = vunpack.c.l.b16 %v2719
  %v6279 = vunpack.c.h.b16 %v2719
  %v6280 = vunpack.c.l.b16 %v2720
  %v6281 = vunpack.c.h.b16 %v2720
  %v6282 = vunpack.c.l.b16 %v2721
  %v6283 = vunpack.c.h.b16 %v2721
  %v6284 = vunpack.c.l.b16 %v2722
  %v6285 = vunpack.c.h.b16 %v2722
  %v6286 = vunpack.c.l.b16 %v2723
  %v6287 = vunpack.c.h.b16 %v2723
  %v6288 = vunpack.c.l.b16 %v2724
  %v6289 = vunpack.c.h.b16 %v2724
  %v6290 = vunpack.c.l.b16 %v2725
  %v6291 = vunpack.c.h.b16 %v2725
  %v6292 = vunpack.c.l.b16 %v2726
  %v6293 = vunpack.c.h.b16 %v2726
  %v6294 = vunpack.c.l.b16 %v2727
  %v6295 = vunpack.c.h.b16 %v2727
  %v6296 = vunpack.c.l.b16 %v2728
  %v6297 = vunpack.c.h.b16 %v2728
  %v6298 = vunpack.c.l.b16 %v2729
  %v6299 = vunpack.c.h.b16 %v2729
  %v6300 = vunpack.c.l.b16 %v2730
  %v6301 = vunpack.c.h.b16 %v2730
  %v6302 = vunpack.c.l.b16 %v2731
  %v6303 = vunpack.c.h.b16 %v2731
  %v6304 = vunpack.c.l.b16 %v2732
  %v6305 = vunpack.c.h.b16 %v2732
  %v6306 = vunpack.c.l.b16 %v2733
  %v6307 = vunpack.c.h.b16 %v2733
  %v6308 = vunpack.c.l.b16 %v2734
  %v6309 = vunpack.c.h.b16 %v2734
  %v6310 = vunpack.c.l.b16 %v2735
  %v6311 = vunpack.c.h.b16 %v2735
  %v6312 = vunpack.c.l.b16 %v2736
  %v6313 = vunpack.c.h.b16 %v2736
  %v6314 = vunpack.c.l.b16 %v2737
  %v6315 = vunpack.c.h.b16 %v2737
  %v6316 = vunpack.c.l.b16 %v2738
  %v6317 = vunpack.c.h.b16 %v2738
  %v6318 = vunpack.c.l.b16 %v2739
  %v6319 = vunpack.c.h.b16 %v2739
  %v6320 = vunpack.c.l.b16 %v2740
  %v6321 = vunpack.c.h.b16 %v2740
  %v6322 = vunpack.c.l.b16 %v2741
  %v6323 = vunpack.c.h.b16 %v2741
  %v6324 = vunpack.c.l.b16 %v2742
  %v6325 = vunpack.c.h.b16 %v2742
  %v6326 = vunpack.c.l.b16 %v2743
  %v6327 = vunpack.c.h.b16 %v2743
  %v6328 = vunpack.c.l.b16 %v2744
  %v6329 = vunpack.c.h.b16 %v2744
  %v6330 = vunpack.c.l.b16 %v2745
  %v6331 = vunpack.c.h.b16 %v2745
  %v6332 = vunpack.c.l.b16 %v2746
  %v6333 = vunpack.c.h.b16 %v2746
  %v6334 = vunpack.c.l.b16 %v2747
  %v6335 = vunpack.c.h.b16 %v2747
  %v6336 = vunpack.c.l.b16 %v2748
  %v6337 = vunpack.c.h.b16 %v2748
  %v6338 = vunpack.c.l.b16 %v2749
  %v6339 = vunpack.c.h.b16 %v2749
  %v6340 = vunpack.c.l.b16 %v2750
  %v6341 = vunpack.c.h.b16 %v2750
  %v6342 = vunpack.c.l.b16 %v2751
  %v6343 = vunpack.c.h.b16 %v2751
  %v6344 = vunpack.c.l.b16 %v2752
  %v6345 = vunpack.c.h.b16 %v2752
  %v6346 = vunpack.c.l.b16 %v2753
  %v6347 = vunpack.c.h.b16 %v2753
  %v6348 = vunpack.c.l.b16 %v2754
  %v6349 = vunpack.c.h.b16 %v2754
  %v6350 = vunpack.c.l.b16 %v2755
  %v6351 = vunpack.c.h.b16 %v2755
  %v6352 = vunpack.c.l.b16 %v2756
  %v6353 = vunpack.c.h.b16 %v2756
  %v6354 = vunpack.c.l.b16 %v2757
  %v6355 = vunpack.c.h.b16 %v2757
  %v6356 = vunpack.c.l.b16 %v2758
  %v6357 = vunpack.c.h.b16 %v2758
  %v6358 = vunpack.c.l.b16 %v2759
  %v6359 = vunpack.c.h.b16 %v2759
  %v6360 = vunpack.c.l.b16 %v2760
  %v6361 = vunpack.c.h.b16 %v2760
  %v6362 = vunpack.c.l.b16 %v2761
  %v6363 = vunpack.c.h.b16 %v2761
  %v6364 = vunpack.c.l.b16 %v2762
  %v6365 = vunpack.c.h.b16 %v2762
  %v6366 = vunpack.c.l.b16 %v2763
  %v6367 = vunpack.c.h.b16 %v2763
  %v6368 = vunpack.c.l.b16 %v2764
  %v6369 = vunpack.c.h.b16 %v2764
  %v6370 = vunpack.c.l.b16 %v2765
  %v6371 = vunpack.c.h.b16 %v2765
  %v6372 = vunpack.c.l.b16 %v2766
  %v6373 = vunpack.c.h.b16 %v2766
  %v6374 = vunpack.c.l.b16 %v2767
  %v6375 = vunpack.c.h.b16 %v2767
  %v6376 = vunpack.c.l.b16 %v2768
  %v6377 = vunpack.c.h.b16 %v2768
  %v6378 = vunpack.c.l.b16 %v2769
  %v6379 = vunpack.c.h.b16 %v2769
  %v6380 = vunpack.c.l.b16 %v2770
  %v6381 = vunpack.c.h.b16 %v2770
  %v6382 = vunpack.c.l.b16 %v2771
  %v6383 = vunpack.c.h.b16 %v2771
  %v6384 = vunpack.c.l.b16 %v2772
  %v6385 = vunpack.c.h.b16 %v2772
  %v6386 = vunpack.c.l.b16 %v2773
  %v6387 = vunpack.c.h.b16 %v2773
  %v6388 = vunpack.c.l.b16 %v2774
  %v6389 = vunpack.c.h.b16 %v2774
  %v6390 = vunpack.c.l.b16 %v2775
  %v6391 = vunpack.c.h.b16 %v2775
  %v6392 = vunpack.c.l.b16 %v2776
  %v6393 = vunpack.c.h.b16 %v2776
  %v6394 = vunpack.c.l.b16 %v2777
  %v6395 = vunpack.c.h.b16 %v2777
  %v6396 = vunpack.c.l.b16 %v2778
  %v6397 = vunpack.c.h.b16 %v2778
  %v6398 = vunpack.c.l.b16 %v2779
  %v6399 = vunpack.c.h.b16 %v2779
  %v6400 = vunpack.c.l.b16 %v2780
  %v6401 = vunpack.c.h.b16 %v2780
  %v6402 = vunpack.c.l.b16 %v2781
  %v6403 = vunpack.c.h.b16 %v2781
  %v6404 = vunpack.c.l.b16 %v2782
  %v6405 = vunpack.c.h.b16 %v2782
  %v6406 = vunpack.c.l.b16 %v2783
  %v6407 = vunpack.c.h.b16 %v2783
  %v6408 = vunpack.c.l.b16 %v2784
  %v6409 = vunpack.c.h.b16 %v2784
  %v6410 = vunpack.c.l.b16 %v2785
  %v6411 = vunpack.c.h.b16 %v2785
  %v6412 = vunpack.c.l.b16 %v2786
  %v6413 = vunpack.c.h.b16 %v2786
  %v6414 = vunpack.c.l.b16 %v2787
  %v6415 = vunpack.c.h.b16 %v2787
  %v6416 = vunpack.c.l.b16 %v2788
  %v6417 = vunpack.c.h.b16 %v2788
  %v6418 = vunpack.c.l.b16 %v2789
  %v6419 = vunpack.c.h.b16 %v2789
  %v6420 = vunpack.c.l.b16 %v2790
  %v6421 = vunpack.c.h.b16 %v2790
  %v6422 = vunpack.c.l.b16 %v2791
  %v6423 = vunpack.c.h.b16 %v2791
  %v6424 = vunpack.c.l.b16 %v2792
  %v6425 = vunpack.c.h.b16 %v2792
  %v6426 = vunpack.c.l.b16 %v2793
  %v6427 = vunpack.c.h.b16 %v2793
  %v6428 = vunpack.c.l.b16 %v2794
  %v6429 = vunpack.c.h.b16 %v2794
  %v6430 = vunpack.c.l.b16 %v2795
  %v6431 = vunpack.c.h.b16 %v2795
  %v6432 = vunpack.c.l.b16 %v2796
  %v6433 = vunpack.c.h.b16 %v2796
  %v6434 = vunpack.c.l.b16 %v2797
  %v6435 = vunpack.c.h.b16 %v2797
  %v6436 = vunpack.c.l.b16 %v2798
  %v6437 = vunpack.c.h.b16 %v2798
  %v6438 = vunpack.c.l.b16 %v2799
  %v6439 = vunpack.c.h.b16 %v2799
  %v6440 = vunpack.c.l.b16 %v2800
  %v6441 = vunpack.c.h.b16 %v2800
  %v6442 = vunpack.c.l.b16 %v2801
  %v6443 = vunpack.c.h.b16 %v2801
  %v6444 = vunpack.c.l.b16 %v2802
  %v6445 = vunpack.c.h.b16 %v2802
  %v6446 = vunpack.c.l.b16 %v2803
  %v6447 = vunpack.c.h.b16 %v2803
  %v6448 = vunpack.c.l.b16 %v2804
  %v6449 = vunpack.c.h.b16 %v2804
  %v6450 = vunpack.c.l.b16 %v2805
  %v6451 = vunpack.c.h.b16 %v2805
  %v6452 = vunpack.c.l.b16 %v2806
  %v6453 = vunpack.c.h.b16 %v2806
  %v6454 = vunpack.c.l.b16 %v2807
  %v6455 = vunpack.c.h.b16 %v2807
  %v6456 = vunpack.c.l.b16 %v2808
  %v6457 = vunpack.c.h.b16 %v2808
  %v6458 = vunpack.c.l.b16 %v2809
  %v6459 = vunpack.c.h.b16 %v2809
  %v6460 = vunpack.c.l.b16 %v2810
  %v6461 = vunpack.c.h.b16 %v2810
  %v6462 = vunpack.c.l.b16 %v2811
  %v6463 = vunpack.c.h.b16 %v2811
  %v6464 = vunpack.c.l.b16 %v2812
  %v6465 = vunpack.c.h.b16 %v2812
  %v6466 = vunpack.c.l.b16 %v2813
  %v6467 = vunpack.c.h.b16 %v2813
  %v6468 = vunpack.c.l.b16 %v2814
  %v6469 = vunpack.c.h.b16 %v2814
  %v6470 = vunpack.c.l.b16 %v2815
  %v6471 = vunpack.c.h.b16 %v2815
  %v6472 = vunpack.c.l.b16 %v2816
  %v6473 = vunpack.c.h.b16 %v2816
  %v6474 = vunpack.c.l.b16 %v2817
  %v6475 = vunpack.c.h.b16 %v2817
  %v6476 = vunpack.c.l.b16 %v2818
  %v6477 = vunpack.c.h.b16 %v2818
  %v6478 = vunpack.c.l.b16 %v2819
  %v6479 = vunpack.c.h.b16 %v2819
  %v6480 = vunpack.c.l.b16 %v2820
  %v6481 = vunpack.c.h.b16 %v2820
  %v6482 = vunpack.c.l.b16 %v2821
  %v6483 = vunpack.c.h.b16 %v2821
  %v6484 = vunpack.c.l.b16 %v2822
  %v6485 = vunpack.c.h.b16 %v2822
  %v6486 = vunpack.c.l.b16 %v2823
  %v6487 = vunpack.c.h.b16 %v2823
  %v6488 = vunpack.c.l.b16 %v2824
  %v6489 = vunpack.c.h.b16 %v2824
  %v6490 = vunpack.c.l.b16 %v2825
  %v6491 = vunpack.c.h.b16 %v2825
  %v6492 = vunpack.c.l.b16 %v2826
  %v6493 = vunpack.c.h.b16 %v2826
  %v6494 = vunpack.c.l.b16 %v2827
  %v6495 = vunpack.c.h.b16 %v2827
  %v6496 = vunpack.c.l.b16 %v2828
  %v6497 = vunpack.c.h.b16 %v2828
  %v6498 = vunpack.c.l.b16 %v2829
  %v6499 = vunpack.c.h.b16 %v2829
  %v6500 = vunpack.c.l.b16 %v2830
  %v6501 = vunpack.c.h.b16 %v2830
  %v6502 = vunpack.c.l.b16 %v2831
  %v6503 = vunpack.c.h.b16 %v2831
  %v6504 = vunpack.c.l.b16 %v2832
  %v6505 = vunpack.c.h.b16 %v2832
  %v6506 = vunpack.c.l.b16 %v2833
  %v6507 = vunpack.c.h.b16 %v2833
  %v6508 = vunpack.c.l.b16 %v2834
  %v6509 = vunpack.c.h.b16 %v2834
  %v6510 = vunpack.c.l.b16 %v2835
  %v6511 = vunpack.c.h.b16 %v2835
  %v6512 = vunpack.c.l.b16 %v2836
  %v6513 = vunpack.c.h.b16 %v2836
  %v6514 = vunpack.c.l.b16 %v2837
  %v6515 = vunpack.c.h.b16 %v2837
  %v6516 = vunpack.c.l.b16 %v2838
  %v6517 = vunpack.c.h.b16 %v2838
  %v6518 = vunpack.c.l.b16 %v2839
  %v6519 = vunpack.c.h.b16 %v2839
  %v6520 = vunpack.c.l.b16 %v2840
  %v6521 = vunpack.c.h.b16 %v2840
  %v6522 = vunpack.c.l.b16 %v2841
  %v6523 = vunpack.c.h.b16 %v2841
  %v6524 = vunpack.c.l.b16 %v2842
  %v6525 = vunpack.c.h.b16 %v2842
  %v6526 = vunpack.c.l.b16 %v2843
  %v6527 = vunpack.c.h.b16 %v2843
  %v6528 = vunpack.c.l.b16 %v2844
  %v6529 = vunpack.c.h.b16 %v2844
  %v6530 = vunpack.c.l.b16 %v2845
  %v6531 = vunpack.c.h.b16 %v2845
  %v6532 = vunpack.c.l.b16 %v2846
  %v6533 = vunpack.c.h.b16 %v2846
  %v6534 = vunpack.c.l.b16 %v2847
  %v6535 = vunpack.c.h.b16 %v2847
  %v6536 = vunpack.c.l.b16 %v2848
  %v6537 = vunpack.c.h.b16 %v2848
  %v6538 = vunpack.c.l.b16 %v2849
  %v6539 = vunpack.c.h.b16 %v2849
  %v6540 = vunpack.c.l.b16 %v2850
  %v6541 = vunpack.c.h.b16 %v2850
  %v6542 = vunpack.c.l.b16 %v2851
  %v6543 = vunpack.c.h.b16 %v2851
  %v6544 = vunpack.c.l.b16 %v2852
  %v6545 = vunpack.c.h.b16 %v2852
  %v6546 = vunpack.c.l.b16 %v2853
  %v6547 = vunpack.c.h.b16 %v2853
  %v6548 = vunpack.c.l.b16 %v2854
  %v6549 = vunpack.c.h.b16 %v2854
  %v6550 = vunpack.c.l.b16 %v2855
  %v6551 = vunpack.c.h.b16 %v2855
  %v6552 = vunpack.c.l.b16 %v2856
  %v6553 = vunpack.c.h.b16 %v2856
  %v6554 = vunpack.c.l.b16 %v2857
  %v6555 = vunpack.c.h.b16 %v2857
  %v6556 = vunpack.c.l.b16 %v2858
  %v6557 = vunpack.c.h.b16 %v2858
  %v6558 = vunpack.c.l.b16 %v2859
  %v6559 = vunpack.c.h.b16 %v2859
  %v6560 = vunpack.c.l.b16 %v2860
  %v6561 = vunpack.c.h.b16 %v2860
  %v6562 = vunpack.c.l.b16 %v2861
  %v6563 = vunpack.c.h.b16 %v2861
  %v6564 = vunpack.c.l.b16 %v2862
  %v6565 = vunpack.c.h.b16 %v2862
  %v6566 = vunpack.c.l.b16 %v2863
  %v6567 = vunpack.c.h.b16 %v2863
  %v6568 = vunpack.c.l.b16 %v2864
  %v6569 = vunpack.c.h.b16 %v2864
  %v6570 = vunpack.c.l.b16 %v2865
  %v6571 = vunpack.c.h.b16 %v2865
  %v6572 = vunpack.c.l.b16 %v2866
  %v6573 = vunpack.c.h.b16 %v2866
  %v6574 = vunpack.c.l.b16 %v2867
  %v6575 = vunpack.c.h.b16 %v2867
  %v6576 = vunpack.c.l.b16 %v2868
  %v6577 = vunpack.c.h.b16 %v2868
  %v6578 = vunpack.c.l.b16 %v2869
  %v6579 = vunpack.c.h.b16 %v2869
  %v6580 = vunpack.c.l.b16 %v2870
  %v6581 = vunpack.c.h.b16 %v2870
  %v6582 = vunpack.c.l.b16 %v2871
  %v6583 = vunpack.c.h.b16 %v2871
  %v6584 = vunpack.c.l.b16 %v2872
  %v6585 = vunpack.c.h.b16 %v2872
  %v6586 = vunpack.c.l.b16 %v2873
  %v6587 = vunpack.c.h.b16 %v2873
  %v6588 = vunpack.c.l.b16 %v2874
  %v6589 = vunpack.c.h.b16 %v2874
  %v6590 = vunpack.c.l.b16 %v2875
  %v6591 = vunpack.c.h.b16 %v2875
  %v6592 = vunpack.c.l.b16 %v2876
  %v6593 = vunpack.c.h.b16 %v2876
  %v6594 = vunpack.c.l.b16 %v2877
  %v6595 = vunpack.c.h.b16 %v2877
  %v6596 = vunpack.c.l.b16 %v2878
  %v6597 = vunpack.c.h.b16 %v2878
  %v6598 = vunpack.c.l.b16 %v2879
  %v6599 = vunpack.c.h.b16 %v2879
  %v6600 = vunpack.c.l.b16 %v2880
  %v6601 = vunpack.c.h.b16 %v2880
  %v6602 = vunpack.c.l.b16 %v2881
  %v6603 = vunpack.c.h.b16 %v2881
  %v6604 = vunpack.c.l.b16 %v2882
  %v6605 = vunpack.c.h.b16 %v2882
  %v6606 = vunpack.c.l.b16 %v2883
  %v6607 = vunpack.c.h.b16 %v2883
  %v6608 = vunpack.c.l.b16 %v2884
  %v6609 = vunpack.c.h.b16 %v2884
  %v6610 = vunpack.c.l.b16 %v2885
  %v6611 = vunpack.c.h.b16 %v2885
  %v6612 = vunpack.c.l.b16 %v2886
  %v6613 = vunpack.c.h.b16 %v2886
  %v6614 = vunpack.c.l.b16 %v2887
  %v6615 = vunpack.c.h.b16 %v2887
  %v6616 = vunpack.c.l.b16 %v2888
  %v6617 = vunpack.c.h.b16 %v2888
  %v6618 = vunpack.c.l.b16 %v2889
  %v6619 = vunpack.c.h.b16 %v2889
  %v6620 = vunpack.c.l.b16 %v2890
  %v6621 = vunpack.c.h.b16 %v2890
  %v6622 = vunpack.c.l.b16 %v2891
  %v6623 = vunpack.c.h.b16 %v2891
  %v6624 = vunpack.c.l.b16 %v2892
  %v6625 = vunpack.c.h.b16 %v2892
  %v6626 = vunpack.c.l.b16 %v2893
  %v6627 = vunpack.c.h.b16 %v2893
  %v6628 = vunpack.c.l.b16 %v2894
  %v6629 = vunpack.c.h.b16 %v2894
  %v6630 = vunpack.c.l.b16 %v2895
  %v6631 = vunpack.c.h.b16 %v2895
  %v6632 = vunpack.c.l.b16 %v2896
  %v6633 = vunpack.c.h.b16 %v2896
  %v6634 = vunpack.c.l.b16 %v2897
  %v6635 = vunpack.c.h.b16 %v2897
  %v6636 = vunpack.c.l.b16 %v2898
  %v6637 = vunpack.c.h.b16 %v2898
  %v6638 = vunpack.c.l.b16 %v2899
  %v6639 = vunpack.c.h.b16 %v2899
  %v6640 = vunpack.c.l.b16 %v2900
  %v6641 = vunpack.c.h.b16 %v2900
  %v6642 = vunpack.c.l.b16 %v2901
  %v6643 = vunpack.c.h.b16 %v2901
  %v6644 = vunpack.c.l.b16 %v2902
  %v6645 = vunpack.c.h.b16 %v2902
  %v6646 = vunpack.c.l.b16 %v2903
  %v6647 = vunpack.c.h.b16 %v2903
  %v6648 = vunpack.c.l.b16 %v2904
  %v6649 = vunpack.c.h.b16 %v2904
  %v6650 = vunpack.c.l.b16 %v2905
  %v6651 = vunpack.c.h.b16 %v2905
  %v6652 = vunpack.c.l.b16 %v2906
  %v6653 = vunpack.c.h.b16 %v2906
  %v6654 = vunpack.c.l.b16 %v2907
  %v6655 = vunpack.c.h.b16 %v2907
  %v6656 = vunpack.c.l.b16 %v2908
  %v6657 = vunpack.c.h.b16 %v2908
  %v6658 = vunpack.c.l.b16 %v2909
  %v6659 = vunpack.c.h.b16 %v2909
  %v6660 = vunpack.c.l.b16 %v2910
  %v6661 = vunpack.c.h.b16 %v2910
  %v6662 = vunpack.c.l.b16 %v2911
  %v6663 = vunpack.c.h.b16 %v2911
  %v6664 = vunpack.c.l.b16 %v2912
  %v6665 = vunpack.c.h.b16 %v2912
  %v6666 = vunpack.c.l.b16 %v2913
  %v6667 = vunpack.c.h.b16 %v2913
  %v6668 = vunpack.c.l.b16 %v2914
  %v6669 = vunpack.c.h.b16 %v2914
  %v6670 = vunpack.c.l.b16 %v2915
  %v6671 = vunpack.c.h.b16 %v2915
  %v6672 = vunpack.c.l.b16 %v2916
  %v6673 = vunpack.c.h.b16 %v2916
  %v6674 = vunpack.c.l.b16 %v2917
  %v6675 = vunpack.c.h.b16 %v2917
  %v6676 = vunpack.c.l.b16 %v2918
  %v6677 = vunpack.c.h.b16 %v2918
  %v6678 = vunpack.c.l.b16 %v2919
  %v6679 = vunpack.c.h.b16 %v2919
  %v6680 = vunpack.c.l.b16 %v2920
  %v6681 = vunpack.c.h.b16 %v2920
  %v6682 = vunpack.c.l.b16 %v2921
  %v6683 = vunpack.c.h.b16 %v2921
  %v6684 = vunpack.c.l.b16 %v2922
  %v6685 = vunpack.c.h.b16 %v2922
  %v6686 = vunpack.c.l.b16 %v2923
  %v6687 = vunpack.c.h.b16 %v2923
  %v6688 = vunpack.c.l.b16 %v2924
  %v6689 = vunpack.c.h.b16 %v2924
  %v6690 = vunpack.c.l.b16 %v2925
  %v6691 = vunpack.c.h.b16 %v2925
  %v6692 = vunpack.c.l.b16 %v2926
  %v6693 = vunpack.c.h.b16 %v2926
  %v6694 = vunpack.c.l.b16 %v2927
  %v6695 = vunpack.c.h.b16 %v2927
  %v6696 = vunpack.c.l.b16 %v2928
  %v6697 = vunpack.c.h.b16 %v2928
  %v6698 = vunpack.c.l.b16 %v2929
  %v6699 = vunpack.c.h.b16 %v2929
  %v6700 = vunpack.c.l.b16 %v2930
  %v6701 = vunpack.c.h.b16 %v2930
  %v6702 = vunpack.c.l.b16 %v2931
  %v6703 = vunpack.c.h.b16 %v2931
  %v6704 = vunpack.c.l.b16 %v2932
  %v6705 = vunpack.c.h.b16 %v2932
  %v6706 = vunpack.c.l.b16 %v2933
  %v6707 = vunpack.c.h.b16 %v2933
  %v6708 = vunpack.c.l.b16 %v2934
  %v6709 = vunpack.c.h.b16 %v2934
  %v6710 = vunpack.c.l.b16 %v2935
  %v6711 = vunpack.c.h.b16 %v2935
  %v6712 = vunpack.c.l.b16 %v2936
  %v6713 = vunpack.c.h.b16 %v2936
  %v6714 = vunpack.c.l.b16 %v2937
  %v6715 = vunpack.c.h.b16 %v2937
  %v6716 = vunpack.c.l.b16 %v2938
  %v6717 = vunpack.c.h.b16 %v2938
  %v6718 = vunpack.c.l.b16 %v2939
  %v6719 = vunpack.c.h.b16 %v2939
  %v6720 = vunpack.c.l.b16 %v2940
  %v6721 = vunpack.c.h.b16 %v2940
  %v6722 = vunpack.c.l.b16 %v2941
  %v6723 = vunpack.c.h.b16 %v2941
  %v6724 = vunpack.c.l.b16 %v2942
  %v6725 = vunpack.c.h.b16 %v2942
  %v6726 = vunpack.c.l.b16 %v2943
  %v6727 = vunpack.c.h.b16 %v2943
  %v6728 = vunpack.c.l.b16 %v2944
  %v6729 = vunpack.c.h.b16 %v2944
  %v6730 = vunpack.c.l.b16 %v2945
  %v6731 = vunpack.c.h.b16 %v2945
  %v6732 = vunpack.c.l.b16 %v2946
  %v6733 = vunpack.c.h.b16 %v2946
  %v6734 = vunpack.c.l.b16 %v2947
  %v6735 = vunpack.c.h.b16 %v2947
  %v6736 = vunpack.c.l.b16 %v2948
  %v6737 = vunpack.c.h.b16 %v2948
  %v6738 = vunpack.c.l.b16 %v2949
  %v6739 = vunpack.c.h.b16 %v2949
  %v6740 = vunpack.c.l.b16 %v2950
  %v6741 = vunpack.c.h.b16 %v2950
  %v6742 = vunpack.c.l.b16 %v2951
  %v6743 = vunpack.c.h.b16 %v2951
  %v6744 = vunpack.c.l.b16 %v2952
  %v6745 = vunpack.c.h.b16 %v2952
  %v6746 = vunpack.c.l.b16 %v2953
  %v6747 = vunpack.c.h.b16 %v2953
  %v6748 = vunpack.c.l.b16 %v2954
  %v6749 = vunpack.c.h.b16 %v2954
  %v6750 = vunpack.c.l.b16 %v2955
  %v6751 = vunpack.c.h.b16 %v2955
  %v6752 = vunpack.c.l.b16 %v2956
  %v6753 = vunpack.c.h.b16 %v2956
  %v6754 = vunpack.c.l.b16 %v2957
  %v6755 = vunpack.c.h.b16 %v2957
  %v6756 = vunpack.c.l.b16 %v2958
  %v6757 = vunpack.c.h.b16 %v2958
  %v6758 = vunpack.c.l.b16 %v2959
  %v6759 = vunpack.c.h.b16 %v2959
  %v6760 = vunpack.c.l.b16 %v2960
  %v6761 = vunpack.c.h.b16 %v2960
  %v6762 = vunpack.c.l.b16 %v2961
  %v6763 = vunpack.c.h.b16 %v2961
  %v6764 = vunpack.c.l.b16 %v2962
  %v6765 = vunpack.c.h.b16 %v2962
  %v6766 = vunpack.c.l.b16 %v2963
  %v6767 = vunpack.c.h.b16 %v2963
  %v6768 = vunpack.c.l.b16 %v2964
  %v6769 = vunpack.c.h.b16 %v2964
  %v6770 = vunpack.c.l.b16 %v2965
  %v6771 = vunpack.c.h.b16 %v2965
  %v6772 = vunpack.c.l.b16 %v2966
  %v6773 = vunpack.c.h.b16 %v2966
  %v6774 = vunpack.c.l.b16 %v2967
  %v6775 = vunpack.c.h.b16 %v2967
  %v6776 = vunpack.c.l.b16 %v2968
  %v6777 = vunpack.c.h.b16 %v2968
  %v6778 = vunpack.c.l.b16 %v2969
  %v6779 = vunpack.c.h.b16 %v2969
  %v6780 = vunpack.c.l.b16 %v2970
  %v6781 = vunpack.c.h.b16 %v2970
  %v6782 = vunpack.c.l.b16 %v2971
  %v6783 = vunpack.c.h.b16 %v2971
  %v6784 = vunpack.c.l.b16 %v2972
  %v6785 = vunpack.c.h.b16 %v2972
  %v6786 = vunpack.c.l.b16 %v2973
  %v6787 = vunpack.c.h.b16 %v2973
  %v6788 = vunpack.c.l.b16 %v2974
  %v6789 = vunpack.c.h.b16 %v2974
  %v6790 = vunpack.c.l.b16 %v2975
  %v6791 = vunpack.c.h.b16 %v2975
  %v6792 = vunpack.c.l.b16 %v2976
  %v6793 = vunpack.c.h.b16 %v2976
  %v6794 = vunpack.c.l.b16 %v2977
  %v6795 = vunpack.c.h.b16 %v2977
  %v6796 = vunpack.c.l.b16 %v2978
  %v6797 = vunpack.c.h.b16 %v2978
  %v6798 = vunpack.c.l.b16 %v2979
  %v6799 = vunpack.c.h.b16 %v2979
  %v6800 = vunpack.c.l.b16 %v2980
  %v6801 = vunpack.c.h.b16 %v2980
  %v6802 = vunpack.c.l.b16 %v2981
  %v6803 = vunpack.c.h.b16 %v2981
  %v6804 = vunpack.c.l.b16 %v2982
  %v6805 = vunpack.c.h.b16 %v2982
  %v6806 = vunpack.c.l.b16 %v2983
  %v6807 = vunpack.c.h.b16 %v2983
  %v6808 = vunpack.c.l.b16 %v2984
  %v6809 = vunpack.c.h.b16 %v2984
  %v6810 = vunpack.c.l.b16 %v2985
  %v6811 = vunpack.c.h.b16 %v2985
  %v6812 = vunpack.c.l.b16 %v2986
  %v6813 = vunpack.c.h.b16 %v2986
  %v6814 = vunpack.c.l.b16 %v2987
  %v6815 = vunpack.c.h.b16 %v2987
  %v6816 = vunpack.c.l.b16 %v2988
  %v6817 = vunpack.c.h.b16 %v2988
  %v6818 = vunpack.c.l.b16 %v2989
  %v6819 = vunpack.c.h.b16 %v2989
  %v6820 = vunpack.c.l.b16 %v2990
  %v6821 = vunpack.c.h.b16 %v2990
  %v6822 = vunpack.c.l.b16 %v2991
  %v6823 = vunpack.c.h.b16 %v2991
  %v6824 = vunpack.c.l.b16 %v2992
  %v6825 = vunpack.c.h.b16 %v2992
  %v6826 = vunpack.c.l.b16 %v2993
  %v6827 = vunpack.c.h.b16 %v2993
  %v6828 = vunpack.c.l.b16 %v2994
  %v6829 = vunpack.c.h.b16 %v2994
  %v6830 = vunpack.c.l.b16 %v2995
  %v6831 = vunpack.c.h.b16 %v2995
  %v6832 = vunpack.c.l.b16 %v2996
  %v6833 = vunpack.c.h.b16 %v2996
  %v6834 = vpack.c.b16 %v4534, %v4530
  %v6835 = vpack.c.b16 %v4535, %v4531
  %v6836 = vpack.c.b16 %v4536, %v4532
  %v6837 = vpack.c.b16 %v4537, %v4533
  %v6838 = vpack.c.b16 %v4542, %v4538
  %v6839 = vpack.c.b16 %v4543, %v4539
  %v6840 = vpack.c.b16 %v4544, %v4540
  %v6841 = vpack.c.b16 %v4545, %v4541
  %v6842 = vpack.c.b16 %v4550, %v4546
  %v6843 = vpack.c.b16 %v4551, %v4547
  %v6844 = vpack.c.b16 %v4552, %v4548
  %v6845 = vpack.c.b16 %v4553, %v4549
  %v6846 = vpack.c.b16 %v4558, %v4554
  %v6847 = vpack.c.b16 %v4559, %v4555
  %v6848 = vpack.c.b16 %v4560, %v4556
  %v6849 = vpack.c.b16 %v4561, %v4557
  %v6850 = vpack.c.b16 %v4566, %v4562
  %v6851 = vpack.c.b16 %v4567, %v4563
  %v6852 = vpack.c.b16 %v4568, %v4564
  %v6853 = vpack.c.b16 %v4569, %v4565
  %v6854 = vpack.c.b16 %v4574, %v4570
  %v6855 = vpack.c.b16 %v4575, %v4571
  %v6856 = vpack.c.b16 %v4576, %v4572
  %v6857 = vpack.c.b16 %v4577, %v4573
  %v6858 = vpack.c.b16 %v4582, %v4578
  %v6859 = vpack.c.b16 %v4583, %v4579
  %v6860 = vpack.c.b16 %v4584, %v4580
  %v6861 = vpack.c.b16 %v4585, %v4581
  %v6862 = vpack.c.b16 %v4590, %v4586
  %v6863 = vpack.c.b16 %v4591, %v4587
  %v6864 = vpack.c.b16 %v4592, %v4588
  %v6865 = vpack.c.b16 %v4593, %v4589
  %v6866 = vpack.c.b16 %v4598, %v4594
  %v6867 = vpack.c.b16 %v4599, %v4595
  %v6868 = vpack.c.b16 %v4600, %v4596
  %v6869 = vpack.c.b16 %v4601, %v4597
  %v6870 = vpack.c.b16 %v4606, %v4602
  %v6871 = vpack.c.b16 %v4607, %v4603
  %v6872 = vpack.c.b16 %v4608, %v4604
  %v6873 = vpack.c.b16 %v4609, %v4605
  %v6874 = vpack.c.b16 %v4614, %v4610
  %v6875 = vpack.c.b16 %v4615, %v4611
  %v6876 = vpack.c.b16 %v4616, %v4612
  %v6877 = vpack.c.b16 %v4617, %v4613
  %v6878 = vpack.c.b16 %v4622, %v4618
  %v6879 = vpack.c.b16 %v4623, %v4619
  %v6880 = vpack.c.b16 %v4624, %v4620
  %v6881 = vpack.c.b16 %v4625, %v4621
  %v6882 = vpack.c.b16 %v4630, %v4626
  %v6883 = vpack.c.b16 %v4631, %v4627
  %v6884 = vpack.c.b16 %v4632, %v4628
  %v6885 = vpack.c.b16 %v4633, %v4629
  %v6886 = vpack.c.b16 %v4638, %v4634
  %v6887 = vpack.c.b16 %v4639, %v4635
  %v6888 = vpack.c.b16 %v4640, %v4636
  %v6889 = vpack.c.b16 %v4641, %v4637
  %v6890 = vpack.c.b16 %v4646, %v4642
  %v6891 = vpack.c.b16 %v4647, %v4643
  %v6892 = vpack.c.b16 %v4648, %v4644
  %v6893 = vpack.c.b16 %v4649, %v4645
  %v6894 = vpack.c.b16 %v4654, %v4650
  %v6895 = vpack.c.b16 %v4655, %v4651
  %v6896 = vpack.c.b16 %v4656, %v4652
  %v6897 = vpack.c.b16 %v4657, %v4653
  %v6898 = vpack.c.b16 %v4662, %v4658
  %v6899 = vpack.c.b16 %v4663, %v4659
  %v6900 = vpack.c.b16 %v4664, %v4660
  %v6901 = vpack.c.b16 %v4665, %v4661
  %v6902 = vpack.c.b16 %v4670, %v4666
  %v6903 = vpack.c.b16 %v4671, %v4667
  %v6904 = vpack.c.b16 %v4672, %v4668
  %v6905 = vpack.c.b16 %v4673, %v4669
  %v6906 = vpack.c.b16 %v4678, %v4674
  %v6907 = vpack.c.b16 %v4679, %v4675
  %v6908 = vpack.c.b16 %v4680, %v4676
  %v6909 = vpack.c.b16 %v4681, %v4677
  %v6910 = vpack.c.b16 %v4686, %v4682
  %v6911 = vpack.c.b16 %v4687, %v4683
  %v6912 = vpack.c.b16 %v4688, %v4684
  %v6913 = vpack.c.b16 %v4689, %v4685
  %v6914 = vpack.c.b16 %v4694, %v4690
  %v6915 = vpack.c.b16 %v4695, %v4691
  %v6916 = vpack.c.b16 %v4696, %v4692
  %v6917 = vpack.c.b16 %v4697, %v4693
  %v6918 = vpack.c.b16 %v4702, %v4698
  %v6919 = vpack.c.b16 %v4703, %v4699
  %v6920 = vpack.c.b16 %v4704, %v4700
  %v6921 = vpack.c.b16 %v4705, %v4701
  %v6922 = vpack.c.b16 %v4710, %v4706
  %v6923 = vpack.c.b16 %v4711, %v4707
  %v6924 = vpack.c.b16 %v4712, %v4708
  %v6925 = vpack.c.b16 %v4713, %v4709
  %v6926 = vpack.c.b16 %v4718, %v4714
  %v6927 = vpack.c.b16 %v4719, %v4715
  %v6928 = vpack.c.b16 %v4720, %v4716
  %v6929 = vpack.c.b16 %v4721, %v4717
  %v6930 = vpack.c.b16 %v4726, %v4722
  %v6931 = vpack.c.b16 %v4727, %v4723
  %v6932 = vpack.c.b16 %v4728, %v4724
  %v6933 = vpack.c.b16 %v4729, %v4725
  %v6934 = vpack.c.b16 %v4734, %v4730
  %v6935 = vpack.c.b16 %v4735, %v4731
  %v6936 = vpack.c.b16 %v4736, %v4732
  %v6937 = vpack.c.b16 %v4737, %v4733
  %v6938 = vpack.c.b16 %v4742, %v4738
  %v6939 = vpack.c.b16 %v4743, %v4739
  %v6940 = vpack.c.b16 %v4744, %v4740
  %v6941 = vpack.c.b16 %v4745, %v4741
  %v6942 = vpack.c.b16 %v4750, %v4746
  %v6943 = vpack.c.b16 %v4751, %v4747
  %v6944 = vpack.c.b16 %v4752, %v4748
  %v6945 = vpack.c.b16 %v4753, %v4749
  %v6946 = vpack.c.b16 %v4758, %v4754
  %v6947 = vpack.c.b16 %v4759, %v4755
  %v6948 = vpack.c.b16 %v4760, %v4756
  %v6949 = vpack.c.b16 %v4761, %v4757
  %v6950 = vpack.c.b16 %v4766, %v4762
  %v6951 = vpack.c.b16 %v4767, %v4763
  %v6952 = vpack.c.b16 %v4768, %v4764
  %v6953 = vpack.c.b16 %v4769, %v4765
  %v6954 = vpack.c.b16 %v4774, %v4770
  %v6955 = vpack.c.b16 %v4775, %v4771
  %v6956 = vpack.c.b16 %v4776, %v4772
  %v6957 = vpack.c.b16 %v4777, %v4773
  %v6958 = vpack.c.b16 %v4782, %v4778
  %v6959 = vpack.c.b16 %v4783, %v4779
  %v6960 = vpack.c.b16 %v4784, %v4780
  %v6961 = vpack.c.b16 %v4785, %v4781
  %v6962 = vpack.c.b16 %v4790, %v4786
  %v6963 = vpack.c.b16 %v4791, %v4787
  %v6964 = vpack.c.b16 %v4792, %v4788
  %v6965 = vpack.c.b16 %v4793, %v4789
  %v6966 = vpack.c.b16 %v4798, %v4794
  %v6967 = vpack.c.b16 %v4799, %v4795
  %v6968 = vpack.c.b16 %v4800, %v4796
  %v6969 = vpack.c.b16 %v4801, %v4797
  %v6970 = vpack.c.b16 %v4806, %v4802
  %v6971 = vpack.c.b16 %v4807, %v4803
  %v6972 = vpack.c.b16 %v4808, %v4804
  %v6973 = vpack.c.b16 %v4809, %v4805
  %v6974 = vpack.c.b16 %v4814, %v4810
  %v6975 = vpack.c.b16 %v4815, %v4811
  %v6976 = vpack.c.b16 %v4816, %v4812
  %v6977 = vpack.c.b16 %v4817, %v4813
  %v6978 = vpack.c.b16 %v4822, %v4818
  %v6979 = vpack.c.b16 %v4823, %v4819
  %v6980 = vpack.c.b16 %v4824, %v4820
  %v6981 = vpack.c.b16 %v4825, %v4821
  %v6982 = vpack.c.b16 %v4830, %v4826
  %v6983 = vpack.c.b16 %v4831, %v4827
  %v6984 = vpack.c.b16 %v4832, %v4828
  %v6985 = vpack.c.b16 %v4833, %v4829
  %v6986 = vpack.c.b16 %v4838, %v4834
  %v6987 = vpack.c.b16 %v4839, %v4835
  %v6988 = vpack.c.b16 %v4840, %v4836
  %v6989 = vpack.c.b16 %v4841, %v4837
  %v6990 = vpack.c.b16 %v4846, %v4842
  %v6991 = vpack.c.b16 %v4847, %v4843
  %v6992 = vpack.c.b16 %v4848, %v4844
  %v6993 = vpack.c.b16 %v4849, %v4845
  %v6994 = vpack.c.b16 %v4854, %v4850
  %v6995 = vpack.c.b16 %v4855, %v4851
  %v6996 = vpack.c.b16 %v4856, %v4852
  %v6997 = vpack.c.b16 %v4857, %v4853
  %v6998 = vpack.c.b16 %v4862, %v4858
  %v6999 = vpack.c.b16 %v4863, %v4859
  %v7000 = vpack.c.b16 %v4864, %v4860
  %v7001 = vpack.c.b16 %v4865, %v4861
  %v7002 = vpack.c.b16 %v4870, %v4866
  %v7003 = vpack.c.b16 %v4871, %v4867
  %v7004 = vpack.c.b16 %v4872, %v4868
  %v7005 = vpack.c.b16 %v4873, %v4869
  %v7006 = vpack.c.b16 %v4878, %v4874
  %v7007 = vpack.c.b16 %v4879, %v4875
  %v7008 = vpack.c.b16 %v4880, %v4876
  %v7009 = vpack.c.b16 %v4881, %v4877
  %v7010 = vpack.c.b16 %v4886, %v4882
  %v7011 = vpack.c.b16 %v4887, %v4883
  %v7012 = vpack.c.b16 %v4888, %v4884
  %v7013 = vpack.c.b16 %v4889, %v4885
  %v7014 = vpack.c.b16 %v4894, %v4890
  %v7015 = vpack.c.b16 %v4895, %v4891
  %v7016 = vpack.c.b16 %v4896, %v4892
  %v7017 = vpack.c.b16 %v4897, %v4893
  %v7018 = vpack.c.b16 %v4902, %v4898
  %v7019 = vpack.c.b16 %v4903, %v4899
  %v7020 = vpack.c.b16 %v4904, %v4900
  %v7021 = vpack.c.b16 %v4905, %v4901
  %v7022 = vpack.c.b16 %v4910, %v4906
  %v7023 = vpack.c.b16 %v4911, %v4907
  %v7024 = vpack.c.b16 %v4912, %v4908
  %v7025 = vpack.c.b16 %v4913, %v4909
  %v7026 = vpack.c.b16 %v4918, %v4914
  %v7027 = vpack.c.b16 %v4919, %v4915
  %v7028 = vpack.c.b16 %v4920, %v4916
  %v7029 = vpack.c.b16 %v4921, %v4917
  %v7030 = vpack.c.b16 %v4926, %v4922
  %v7031 = vpack.c.b16 %v4927, %v4923
  %v7032 = vpack.c.b16 %v4928, %v4924
  %v7033 = vpack.c.b16 %v4929, %v4925
  %v7034 = vpack.c.b16 %v4934, %v4930
  %v7035 = vpack.c.b16 %v4935, %v4931
  %v7036 = vpack.c.b16 %v4936, %v4932
  %v7037 = vpack.c.b16 %v4937, %v4933
  %v7038 = vpack.c.b16 %v4942, %v4938
  %v7039 = vpack.c.b16 %v4943, %v4939
  %v7040 = vpack.c.b16 %v4944, %v4940
  %v7041 = vpack.c.b16 %v4945, %v4941
  %v7042 = vpack.c.b16 %v4950, %v4946
  %v7043 = vpack.c.b16 %v4951, %v4947
  %v7044 = vpack.c.b16 %v4952, %v4948
  %v7045 = vpack.c.b16 %v4953, %v4949
  %v7046 = vpack.c.b16 %v4958, %v4954
  %v7047 = vpack.c.b16 %v4959, %v4955
  %v7048 = vpack.c.b16 %v4960, %v4956
  %v7049 = vpack.c.b16 %v4961, %v4957
  %v7050 = vpack.c.b16 %v4966, %v4962
  %v7051 = vpack.c.b16 %v4967, %v4963
  %v7052 = vpack.c.b16 %v4968, %v4964
  %v7053 = vpack.c.b16 %v4969, %v4965
  %v7054 = vpack.c.b16 %v4974, %v4970
  %v7055 = vpack.c.b16 %v4975, %v4971
  %v7056 = vpack.c.b16 %v4976, %v4972
  %v7057 = vpack.c.b16 %v4977, %v4973
  %v7058 = vpack.c.b16 %v4982, %v4978
  %v7059 = vpack.c.b16 %v4983, %v4979
  %v7060 = vpack.c.b16 %v4984, %v4980
  %v7061 = vpack.c.b16 %v4985, %v4981
  %v7062 = vpack.c.b16 %v4990, %v4986
  %v7063 = vpack.c.b16 %v4991, %v4987
  %v7064 = vpack.c.b16 %v4992, %v4988
  %v7065 = vpack.c.b16 %v4993, %v4989
  %v7066 = vpack.c.b16 %v4998, %v4994
  %v7067 = vpack.c.b16 %v4999, %v4995
  %v7068 = vpack.c.b16 %v5000, %v4996
  %v7069 = vpack.c.b16 %v5001, %v4997
  %v7070 = vpack.c.b16 %v5006, %v5002
  %v7071 = vpack.c.b16 %v5007, %v5003
  %v7072 = vpack.c.b16 %v5008, %v5004
  %v7073 = vpack.c.b16 %v5009, %v5005
  %v7074 = vpack.c.b16 %v5014, %v5010
  %v7075 = vpack.c.b16 %v5015, %v5011
  %v7076 = vpack.c.b16 %v5016, %v5012
  %v7077 = vpack.c.b16 %v5017, %v5013
  %v7078 = vpack.c.b16 %v5022, %v5018
  %v7079 = vpack.c.b16 %v5023, %v5019
  %v7080 = vpack.c.b16 %v5024, %v5020
  %v7081 = vpack.c.b16 %v5025, %v5021
  %v7082 = vpack.c.b16 %v5030, %v5026
  %v7083 = vpack.c.b16 %v5031, %v5027
  %v7084 = vpack.c.b16 %v5032, %v5028
  %v7085 = vpack.c.b16 %v5033, %v5029
  %v7086 = vpack.c.b16 %v5038, %v5034
  %v7087 = vpack.c.b16 %v5039, %v5035
  %v7088 = vpack.c.b16 %v5040, %v5036
  %v7089 = vpack.c.b16 %v5041, %v5037
  %v7090 = vpack.c.b16 %v5046, %v5042
  %v7091 = vpack.c.b16 %v5047, %v5043
  %v7092 = vpack.c.b16 %v5048, %v5044
  %v7093 = vpack.c.b16 %v5049, %v5045
  %v7094 = vpack.c.b16 %v5054, %v5050
  %v7095 = vpack.c.b16 %v5055, %v5051
  %v7096 = vpack.c.b16 %v5056, %v5052
  %v7097 = vpack.c.b16 %v5057, %v5053
  %v7098 = vpack.c.b16 %v5062, %v5058
  %v7099 = vpack.c.b16 %v5063, %v5059
  %v7100 = vpack.c.b16 %v5064, %v5060
  %v7101 = vpack.c.b16 %v5065, %v5061
  %v7102 = vpack.c.b16 %v5070, %v5066
  %v7103 = vpack.c.b16 %v5071, %v5067
  %v7104 = vpack.c.b16 %v5072, %v5068
  %v7105 = vpack.c.b16 %v5073, %v5069
  %v7106 = vpack.c.b16 %v5078, %v5074
  %v7107 = vpack.c.b16 %v5079, %v5075
  %v7108 = vpack.c.b16 %v5080, %v5076
  %v7109 = vpack.c.b16 %v5081, %v5077
  %v7110 = vpack.c.b16 %v5086, %v5082
  %v7111 = vpack.c.b16 %v5087, %v5083
  %v7112 = vpack.c.b16 %v5088, %v5084
  %v7113 = vpack.c.b16 %v5089, %v5085
  %v7114 = vpack.c.b16 %v5094, %v5090
  %v7115 = vpack.c.b16 %v5095, %v5091
  %v7116 = vpack.c.b16 %v5096, %v5092
  %v7117 = vpack.c.b16 %v5097, %v5093
  %v7118 = vpack.c.b16 %v5102, %v5098
  %v7119 = vpack.c.b16 %v5103, %v5099
  %v7120 = vpack.c.b16 %v5104, %v5100
  %v7121 = vpack.c.b16 %v5105, %v5101
  %v7122 = vpack.c.b16 %v5110, %v5106
  %v7123 = vpack.c.b16 %v5111, %v5107
  %v7124 = vpack.c.b16 %v5112, %v5108
  %v7125 = vpack.c.b16 %v5113, %v5109
  %v7126 = vpack.c.b16 %v5118, %v5114
  %v7127 = vpack.c.b16 %v5119, %v5115
  %v7128 = vpack.c.b16 %v5120, %v5116
  %v7129 = vpack.c.b16 %v5121, %v5117
  %v7130 = vpack.c.b16 %v5126, %v5122
  %v7131 = vpack.c.b16 %v5127, %v5123
  %v7132 = vpack.c.b16 %v5128, %v5124
  %v7133 = vpack.c.b16 %v5129, %v5125
  %v7134 = vpack.c.b16 %v5134, %v5130
  %v7135 = vpack.c.b16 %v5135, %v5131
  %v7136 = vpack.c.b16 %v5136, %v5132
  %v7137 = vpack.c.b16 %v5137, %v5133
  %v7138 = vpack.c.b16 %v5142, %v5138
  %v7139 = vpack.c.b16 %v5143, %v5139
  %v7140 = vpack.c.b16 %v5144, %v5140
  %v7141 = vpack.c.b16 %v5145, %v5141
  %v7142 = vpack.c.b16 %v5150, %v5146
  %v7143 = vpack.c.b16 %v5151, %v5147
  %v7144 = vpack.c.b16 %v5152, %v5148
  %v7145 = vpack.c.b16 %v5153, %v5149
  %v7146 = vpack.c.b16 %v5158, %v5154
  %v7147 = vpack.c.b16 %v5159, %v5155
  %v7148 = vpack.c.b16 %v5160, %v5156
  %v7149 = vpack.c.b16 %v5161, %v5157
  %v7150 = vpack.c.b16 %v5166, %v5162
  %v7151 = vpack.c.b16 %v5167, %v5163
  %v7152 = vpack.c.b16 %v5168, %v5164
  %v7153 = vpack.c.b16 %v5169, %v5165
  %v7154 = vpack.c.b16 %v5174, %v5170
  %v7155 = vpack.c.b16 %v5175, %v5171
  %v7156 = vpack.c.b16 %v5176, %v5172
  %v7157 = vpack.c.b16 %v5177, %v5173
  %v7158 = vpack.c.b16 %v5182, %v5178
  %v7159 = vpack.c.b16 %v5183, %v5179
  %v7160 = vpack.c.b16 %v5184, %v5180
  %v7161 = vpack.c.b16 %v5185, %v5181
  %v7162 = vpack.c.b16 %v5190, %v5186
  %v7163 = vpack.c.b16 %v5191, %v5187
  %v7164 = vpack.c.b16 %v5192, %v5188
  %v7165 = vpack.c.b16 %v5193, %v5189
  %v7166 = vpack.c.b16 %v5198, %v5194
  %v7167 = vpack.c.b16 %v5199, %v5195
  %v7168 = vpack.c.b16 %v5200, %v5196
  %v7169 = vpack.c.b16 %v5201, %v5197
  %v7170 = vpack.c.b16 %v5206, %v5202
  %v7171 = vpack.c.b16 %v5207, %v5203
  %v7172 = vpack.c.b16 %v5208, %v5204
  %v7173 = vpack.c.b16 %v5209, %v5205
  %v7174 = vpack.c.b16 %v5214, %v5210
  %v7175 = vpack.c.b16 %v5215, %v5211
  %v7176 = vpack.c.b16 %v5216, %v5212
  %v7177 = vpack.c.b16 %v5217, %v5213
  %v7178 = vpack.c.b16 %v5222, %v5218
  %v7179 = vpack.c.b16 %v5223, %v5219
  %v7180 = vpack.c.b16 %v5224, %v5220
  %v7181 = vpack.c.b16 %v5225, %v5221
  %v7182 = vpack.c.b16 %v5230, %v5226
  %v7183 = vpack.c.b16 %v5231, %v5227
  %v7184 = vpack.c.b16 %v5232, %v5228
  %v7185 = vpack.c.b16 %v5233, %v5229
  %v7186 = vpack.c.b16 %v5238, %v5234
  %v7187 = vpack.c.b16 %v5239, %v5235
  %v7188 = vpack.c.b16 %v5240, %v5236
  %v7189 = vpack.c.b16 %v5241, %v5237
  %v7190 = vpack.c.b16 %v5246, %v5242
  %v7191 = vpack.c.b16 %v5247, %v5243
  %v7192 = vpack.c.b16 %v5248, %v5244
  %v7193 = vpack.c.b16 %v5249, %v5245
  %v7194 = vpack.c.b16 %v5254, %v5250
  %v7195 = vpack.c.b16 %v5255, %v5251
  %v7196 = vpack.c.b16 %v5256, %v5252
  %v7197 = vpack.c.b16 %v5257, %v5253
  %v7198 = vpack.c.b16 %v5262, %v5258
  %v7199 = vpack.c.b16 %v5263, %v5259
  %v7200 = vpack.c.b16 %v5264, %v5260
  %v7201 = vpack.c.b16 %v5265, %v5261
  %v7202 = vpack.c.b16 %v5270, %v5266
  %v7203 = vpack.c.b16 %v5271, %v5267
  %v7204 = vpack.c.b16 %v5272, %v5268
  %v7205 = vpack.c.b16 %v5273, %v5269
  %v7206 = vpack.c.b16 %v5278, %v5274
  %v7207 = vpack.c.b16 %v5279, %v5275
  %v7208 = vpack.c.b16 %v5280, %v5276
  %v7209 = vpack.c.b16 %v5281, %v5277
  %v7210 = vpack.c.b16 %v5286, %v5282
  %v7211 = vpack.c.b16 %v5287, %v5283
  %v7212 = vpack.c.b16 %v5288, %v5284
  %v7213 = vpack.c.b16 %v5289, %v5285
  %v7214 = vpack.c.b16 %v5294, %v5290
  %v7215 = vpack.c.b16 %v5295, %v5291
  %v7216 = vpack.c.b16 %v5296, %v5292
  %v7217 = vpack.c.b16 %v5297, %v5293
  %v7218 = vpack.c.b16 %v5302, %v5298
  %v7219 = vpack.c.b16 %v5303, %v5299
  %v7220 = vpack.c.b16 %v5304, %v5300
  %v7221 = vpack.c.b16 %v5305, %v5301
  %v7222 = vpack.c.b16 %v5310, %v5306
  %v7223 = vpack.c.b16 %v5311, %v5307
  %v7224 = vpack.c.b16 %v5312, %v5308
  %v7225 = vpack.c.b16 %v5313, %v5309
  %v7226 = vpack.c.b16 %v5318, %v5314
  %v7227 = vpack.c.b16 %v5319, %v5315
  %v7228 = vpack.c.b16 %v5320, %v5316
  %v7229 = vpack.c.b16 %v5321, %v5317
  %v7230 = vpack.c.b16 %v5326, %v5322
  %v7231 = vpack.c.b16 %v5327, %v5323
  %v7232 = vpack.c.b16 %v5328, %v5324
  %v7233 = vpack.c.b16 %v5329, %v5325
  %v7234 = vpack.c.b16 %v5334, %v5330
  %v7235 = vpack.c.b16 %v5335, %v5331
  %v7236 = vpack.c.b16 %v5336, %v5332
  %v7237 = vpack.c.b16 %v5337, %v5333
  %v7238 = vpack.c.b16 %v5342, %v5338
  %v7239 = vpack.c.b16 %v5343, %v5339
  %v7240 = vpack.c.b16 %v5344, %v5340
  %v7241 = vpack.c.b16 %v5345, %v5341
  %v7242 = vpack.c.b16 %v5350, %v5346
  %v7243 = vpack.c.b16 %v5351, %v5347
  %v7244 = vpack.c.b16 %v5352, %v5348
  %v7245 = vpack.c.b16 %v5353, %v5349
  %v7246 = vpack.c.b16 %v5358, %v5354
  %v7247 = vpack.c.b16 %v5359, %v5355
  %v7248 = vpack.c.b16 %v5360, %v5356
  %v7249 = vpack.c.b16 %v5361, %v5357
  %v7250 = vpack.c.b16 %v5366, %v5362
  %v7251 = vpack.c.b16 %v5367, %v5363
  %v7252 = vpack.c.b16 %v5368, %v5364
  %v7253 = vpack.c.b16 %v5369, %v5365
  %v7254 = vpack.c.b16 %v5374, %v5370
  %v7255 = vpack.c.b16 %v5375, %v5371
  %v7256 = vpack.c.b16 %v5376, %v5372
  %v7257 = vpack.c.b16 %v5377, %v5373
  %v7258 = vpack.c.b16 %v5382, %v5378
  %v7259 = vpack.c.b16 %v5383, %v5379
  %v7260 = vpack.c.b16 %v5384, %v5380
  %v7261 = vpack.c.b16 %v5385, %v5381
  %v7262 = vpack.c.b16 %v5390, %v5386
  %v7263 = vpack.c.b16 %v5391, %v5387
  %v7264 = vpack.c.b16 %v5392, %v5388
  %v7265 = vpack.c.b16 %v5393, %v5389
  %v7266 = vpack.c.b16 %v5398, %v5394
  %v7267 = vpack.c.b16 %v5399, %v5395
  %v7268 = vpack.c.b16 %v5400, %v5396
  %v7269 = vpack.c.b16 %v5401, %v5397
  %v7270 = vpack.c.b16 %v5406, %v5402
  %v7271 = vpack.c.b16 %v5407, %v5403
  %v7272 = vpack.c.b16 %v5408, %v5404
  %v7273 = vpack.c.b16 %v5409, %v5405
  %v7274 = vpack.c.b16 %v5414, %v5410
  %v7275 = vpack.c.b16 %v5415, %v5411
  %v7276 = vpack.c.b16 %v5416, %v5412
  %v7277 = vpack.c.b16 %v5417, %v5413
  %v7278 = vpack.c.b16 %v5422, %v5418
  %v7279 = vpack.c.b16 %v5423, %v5419
  %v7280 = vpack.c.b16 %v5424, %v5420
  %v7281 = vpack.c.b16 %v5425, %v5421
  %v7282 = vpack.c.b16 %v5430, %v5426
  %v7283 = vpack.c.b16 %v5431, %v5427
  %v7284 = vpack.c.b16 %v5432, %v5428
  %v7285 = vpack.c.b16 %v5433, %v5429
  %v7286 = vpack.c.b16 %v5438, %v5434
  %v7287 = vpack.c.b16 %v5439, %v5435
  %v7288 = vpack.c.b16 %v5440, %v5436
  %v7289 = vpack.c.b16 %v5441, %v5437
  %v7290 = vpack.c.b16 %v5446, %v5442
  %v7291 = vpack.c.b16 %v5447, %v5443
  %v7292 = vpack.c.b16 %v5448, %v5444
  %v7293 = vpack.c.b16 %v5449, %v5445
  %v7294 = vpack.c.b16 %v5454, %v5450
  %v7295 = vpack.c.b16 %v5455, %v5451
  %v7296 = vpack.c.b16 %v5456, %v5452
  %v7297 = vpack.c.b16 %v5457, %v5453
  %v7298 = vpack.c.b16 %v5462, %v5458
  %v7299 = vpack.c.b16 %v5463, %v5459
  %v7300 = vpack.c.b16 %v5464, %v5460
  %v7301 = vpack.c.b16 %v5465, %v5461
  %v7302 = vpack.c.b16 %v5470, %v5466
  %v7303 = vpack.c.b16 %v5471, %v5467
  %v7304 = vpack.c.b16 %v5472, %v5468
  %v7305 = vpack.c.b16 %v5473, %v5469
  %v7306 = vpack.c.b16 %v5478, %v5474
  %v7307 = vpack.c.b16 %v5479, %v5475
  %v7308 = vpack.c.b16 %v5480, %v5476
  %v7309 = vpack.c.b16 %v5481, %v5477
  %v7310 = vpack.c.b16 %v5486, %v5482
  %v7311 = vpack.c.b16 %v5487, %v5483
  %v7312 = vpack.c.b16 %v5488, %v5484
  %v7313 = vpack.c.b16 %v5489, %v5485
  %v7314 = vpack.c.b16 %v5494, %v5490
  %v7315 = vpack.c.b16 %v5495, %v5491
  %v7316 = vpack.c.b16 %v5496, %v5492
  %v7317 = vpack.c.b16 %v5497, %v5493
  %v7318 = vpack.c.b16 %v5502, %v5498
  %v7319 = vpack.c.b16 %v5503, %v5499
  %v7320 = vpack.c.b16 %v5504, %v5500
  %v7321 = vpack.c.b16 %v5505, %v5501
  %v7322 = vpack.c.b16 %v5510, %v5506
  %v7323 = vpack.c.b16 %v5511, %v5507
  %v7324 = vpack.c.b16 %v5512, %v5508
  %v7325 = vpack.c.b16 %v5513, %v5509
  %v7326 = vpack.c.b16 %v5518, %v5514
  %v7327 = vpack.c.b16 %v5519, %v5515
  %v7328 = vpack.c.b16 %v5520, %v5516
  %v7329 = vpack.c.b16 %v5521, %v5517
  %v7330 = vpack.c.b16 %v5526, %v5522
  %v7331 = vpack.c.b16 %v5527, %v5523
  %v7332 = vpack.c.b16 %v5528, %v5524
  %v7333 = vpack.c.b16 %v5529, %v5525
  %v7334 = vpack.c.b16 %v5534, %v5530
  %v7335 = vpack.c.b16 %v5535, %v5531
  %v7336 = vpack.c.b16 %v5536, %v5532
  %v7337 = vpack.c.b16 %v5537, %v5533
  %v7338 = vpack.c.b16 %v5542, %v5538
  %v7339 = vpack.c.b16 %v5543, %v5539
  %v7340 = vpack.c.b16 %v5544, %v5540
  %v7341 = vpack.c.b16 %v5545, %v5541
  %v7342 = vpack.c.b16 %v5550, %v5546
  %v7343 = vpack.c.b16 %v5551, %v5547
  %v7344 = vpack.c.b16 %v5552, %v5548
  %v7345 = vpack.c.b16 %v5553, %v5549
  %v7346 = vpack.c.b16 %v5558, %v5554
  %v7347 = vpack.c.b16 %v5559, %v5555
  %v7348 = vpack.c.b16 %v5560, %v5556
  %v7349 = vpack.c.b16 %v5561, %v5557
  %v7350 = vpack.c.b16 %v5566, %v5562
  %v7351 = vpack.c.b16 %v5567, %v5563
  %v7352 = vpack.c.b16 %v5568, %v5564
  %v7353 = vpack.c.b16 %v5569, %v5565
  %v7354 = vpack.c.b16 %v5574, %v5570
  %v7355 = vpack.c.b16 %v5575, %v5571
  %v7356 = vpack.c.b16 %v5576, %v5572
  %v7357 = vpack.c.b16 %v5577, %v5573
  %v7358 = vpack.c.b16 %v5582, %v5578
  %v7359 = vpack.c.b16 %v5583, %v5579
  %v7360 = vpack.c.b16 %v5584, %v5580
  %v7361 = vpack.c.b16 %v5585, %v5581
  %v7362 = vpack.c.b16 %v5590, %v5586
  %v7363 = vpack.c.b16 %v5591, %v5587
  %v7364 = vpack.c.b16 %v5592, %v5588
  %v7365 = vpack.c.b16 %v5593, %v5589
  %v7366 = vpack.c.b16 %v5598, %v5594
  %v7367 = vpack.c.b16 %v5599, %v5595
  %v7368 = vpack.c.b16 %v5600, %v5596
  %v7369 = vpack.c.b16 %v5601, %v5597
  %v7370 = vpack.c.b16 %v5606, %v5602
  %v7371 = vpack.c.b16 %v5607, %v5603
  %v7372 = vpack.c.b16 %v5608, %v5604
  %v7373 = vpack.c.b16 %v5609, %v5605
  %v7374 = vpack.c.b16 %v5614, %v5610
  %v7375 = vpack.c.b16 %v5615, %v5611
  %v7376 = vpack.c.b16 %v5616, %v5612
  %v7377 = vpack.c.b16 %v5617, %v5613
  %v7378 = vpack.c.b16 %v5622, %v5618
  %v7379 = vpack.c.b16 %v5623, %v5619
  %v7380 = vpack.c.b16 %v5624, %v5620
  %v7381 = vpack.c.b16 %v5625, %v5621
  %v7382 = vpack.c.b16 %v5630, %v5626
  %v7383 = vpack.c.b16 %v5631, %v5627
  %v7384 = vpack.c.b16 %v5632, %v5628
  %v7385 = vpack.c.b16 %v5633, %v5629
  %v7386 = vpack.c.b16 %v5638, %v5634
  %v7387 = vpack.c.b16 %v5639, %v5635
  %v7388 = vpack.c.b16 %v5640, %v5636
  %v7389 = vpack.c.b16 %v5641, %v5637
  %v7390 = vpack.c.b16 %v5646, %v5642
  %v7391 = vpack.c.b16 %v5647, %v5643
  %v7392 = vpack.c.b16 %v5648, %v5644
  %v7393 = vpack.c.b16 %v5649, %v5645
  %v7394 = vpack.c.b16 %v5654, %v5650
  %v7395 = vpack.c.b16 %v5655, %v5651
  %v7396 = vpack.c.b16 %v5656, %v5652
  %v7397 = vpack.c.b16 %v5657, %v5653
  %v7398 = vpack.c.b16 %v5662, %v5658
  %v7399 = vpack.c.b16 %v5663, %v5659
  %v7400 = vpack.c.b16 %v5664, %v5660
  %v7401 = vpack.c.b16 %v5665, %v5661
  %v7402 = vpack.c.b16 %v5670, %v5666
  %v7403 = vpack.c.b16 %v5671, %v5667
  %v7404 = vpack.c.b16 %v5672, %v5668
  %v7405 = vpack.c.b16 %v5673, %v5669
  %v7406 = vpack.c.b16 %v5678, %v5674
  %v7407 = vpack.c.b16 %v5679, %v5675
  %v7408 = vpack.c.b16 %v5680, %v5676
  %v7409 = vpack.c.b16 %v5681, %v5677
  %v7410 = vpack.c.b16 %v5686, %v5682
  %v7411 = vpack.c.b16 %v5687, %v5683
  %v7412 = vpack.c.b16 %v5688, %v5684
  %v7413 = vpack.c.b16 %v5689, %v5685
  %v7414 = vpack.c.b16 %v5694, %v5690
  %v7415 = vpack.c.b16 %v5695, %v5691
  %v7416 = vpack.c.b16 %v5696, %v5692
  %v7417 = vpack.c.b16 %v5697, %v5693
  %v7418 = vpack.c.b16 %v5702, %v5698
  %v7419 = vpack.c.b16 %v5703, %v5699
  %v7420 = vpack.c.b16 %v5704, %v5700
  %v7421 = vpack.c.b16 %v5705, %v5701
  %v7422 = vpack.c.b16 %v5710, %v5706
  %v7423 = vpack.c.b16 %v5711, %v5707
  %v7424 = vpack.c.b16 %v5712, %v5708
  %v7425 = vpack.c.b16 %v5713, %v5709
  %v7426 = vpack.c.b16 %v5718, %v5714
  %v7427 = vpack.c.b16 %v5719, %v5715
  %v7428 = vpack.c.b16 %v5720, %v5716
  %v7429 = vpack.c.b16 %v5721, %v5717
  %v7430 = vpack.c.b16 %v5726, %v5722
  %v7431 = vpack.c.b16 %v5727, %v5723
  %v7432 = vpack.c.b16 %v5728, %v5724
  %v7433 = vpack.c.b16 %v5729, %v5725
  %v7434 = vpack.c.b16 %v5734, %v5730
  %v7435 = vpack.c.b16 %v5735, %v5731
  %v7436 = vpack.c.b16 %v5736, %v5732
  %v7437 = vpack.c.b16 %v5737, %v5733
  %v7438 = vpack.c.b16 %v5742, %v5738
  %v7439 = vpack.c.b16 %v5743, %v5739
  %v7440 = vpack.c.b16 %v5744, %v5740
  %v7441 = vpack.c.b16 %v5745, %v5741
  %v7442 = vpack.c.b16 %v5750, %v5746
  %v7443 = vpack.c.b16 %v5751, %v5747
  %v7444 = vpack.c.b16 %v5752, %v5748
  %v7445 = vpack.c.b16 %v5753, %v5749
  %v7446 = vpack.c.b16 %v5758, %v5754
  %v7447 = vpack.c.b16 %v5759, %v5755
  %v7448 = vpack.c.b16 %v5760, %v5756
  %v7449 = vpack.c.b16 %v5761, %v5757
  %v7450 = vpack.c.b16 %v5766, %v5762
  %v7451 = vpack.c.b16 %v5767, %v5763
  %v7452 = vpack.c.b16 %v5768, %v5764
  %v7453 = vpack.c.b16 %v5769, %v5765
  %v7454 = vpack.c.b16 %v5774, %v5770
  %v7455 = vpack.c.b16 %v5775, %v5771
  %v7456 = vpack.c.b16 %v5776, %v5772
  %v7457 = vpack.c.b16 %v5777, %v5773
  %v7458 = vpack.c.b16 %v5782, %v5778
  %v7459 = vpack.c.b16 %v5783, %v5779
  %v7460 = vpack.c.b16 %v5784, %v5780
  %v7461 = vpack.c.b16 %v5785, %v5781
  %v7462 = vpack.c.b16 %v5790, %v5786
  %v7463 = vpack.c.b16 %v5791, %v5787
  %v7464 = vpack.c.b16 %v5792, %v5788
  %v7465 = vpack.c.b16 %v5793, %v5789
  %v7466 = vpack.c.b16 %v5798, %v5794
  %v7467 = vpack.c.b16 %v5799, %v5795
  %v7468 = vpack.c.b16 %v5800, %v5796
  %v7469 = vpack.c.b16 %v5801, %v5797
  %v7470 = vpack.c.b16 %v5806, %v5802
  %v7471 = vpack.c.b16 %v5807, %v5803
  %v7472 = vpack.c.b16 %v5808, %v5804
  %v7473 = vpack.c.b16 %v5809, %v5805
  %v7474 = vpack.c.b16 %v5814, %v5810
  %v7475 = vpack.c.b16 %v5815, %v5811
  %v7476 = vpack.c.b16 %v5816, %v5812
  %v7477 = vpack.c.b16 %v5817, %v5813
  %v7478 = vpack.c.b16 %v5822, %v5818
  %v7479 = vpack.c.b16 %v5823, %v5819
  %v7480 = vpack.c.b16 %v5824, %v5820
  %v7481 = vpack.c.b16 %v5825, %v5821
  %v7482 = vpack.c.b16 %v5830, %v5826
  %v7483 = vpack.c.b16 %v5831, %v5827
  %v7484 = vpack.c.b16 %v5832, %v5828
  %v7485 = vpack.c.b16 %v5833, %v5829
  %v7486 = vpack.c.b16 %v5838, %v5834
  %v7487 = vpack.c.b16 %v5839, %v5835
  %v7488 = vpack.c.b16 %v5840, %v5836
  %v7489 = vpack.c.b16 %v5841, %v5837
  %v7490 = vpack.c.b16 %v5846, %v5842
  %v7491 = vpack.c.b16 %v5847, %v5843
  %v7492 = vpack.c.b16 %v5848, %v5844
  %v7493 = vpack.c.b16 %v5849, %v5845
  %v7494 = vpack.c.b16 %v5854, %v5850
  %v7495 = vpack.c.b16 %v5855, %v5851
  %v7496 = vpack.c.b16 %v5856, %v5852
  %v7497 = vpack.c.b16 %v5857, %v5853
  %v7498 = vpack.c.b16 %v5862, %v5858
  %v7499 = vpack.c.b16 %v5863, %v5859
  %v7500 = vpack.c.b16 %v5864, %v5860
  %v7501 = vpack.c.b16 %v5865, %v5861
  %v7502 = vpack.c.b16 %v5870, %v5866
  %v7503 = vpack.c.b16 %v5871, %v5867
  %v7504 = vpack.c.b16 %v5872, %v5868
  %v7505 = vpack.c.b16 %v5873, %v5869
  %v7506 = vpack.c.b16 %v5878, %v5874
  %v7507 = vpack.c.b16 %v5879, %v5875
  %v7508 = vpack.c.b16 %v5880, %v5876
  %v7509 = vpack.c.b16 %v5881, %v5877
  %v7510 = vpack.c.b16 %v5886, %v5882
  %v7511 = vpack.c.b16 %v5887, %v5883
  %v7512 = vpack.c.b16 %v5888, %v5884
  %v7513 = vpack.c.b16 %v5889, %v5885
  %v7514 = vpack.c.b16 %v5894, %v5890
  %v7515 = vpack.c.b16 %v5895, %v5891
  %v7516 = vpack.c.b16 %v5896, %v5892
  %v7517 = vpack.c.b16 %v5897, %v5893
  %v7518 = vpack.c.b16 %v5902, %v5898
  %v7519 = vpack.c.b16 %v5903, %v5899
  %v7520 = vpack.c.b16 %v5904, %v5900
  %v7521 = vpack.c.b16 %v5905, %v5901
  %v7522 = vpack.c.b16 %v5910, %v5906
  %v7523 = vpack.c.b16 %v5911, %v5907
  %v7524 = vpack.c.b16 %v5912, %v5908
  %v7525 = vpack.c.b16 %v5913, %v5909
  %v7526 = vpack.c.b16 %v5918, %v5914
  %v7527 = vpack.c.b16 %v5919, %v5915
  %v7528 = vpack.c.b16 %v5920, %v5916
  %v7529 = vpack.c.b16 %v5921, %v5917
  %v7530 = vpack.c.b16 %v5926, %v5922
  %v7531 = vpack.c.b16 %v5927, %v5923
  %v7532 = vpack.c.b16 %v5928, %v5924
  %v7533 = vpack.c.b16 %v5929, %v5925
  %v7534 = vpack.c.b16 %v5934, %v5930
  %v7535 = vpack.c.b16 %v5935, %v5931
  %v7536 = vpack.c.b16 %v5936, %v5932
  %v7537 = vpack.c.b16 %v5937, %v5933
  %v7538 = vpack.c.b16 %v5942, %v5938
  %v7539 = vpack.c.b16 %v5943, %v5939
  %v7540 = vpack.c.b16 %v5944, %v5940
  %v7541 = vpack.c.b16 %v5945, %v5941
  %v7542 = vpack.c.b16 %v5950, %v5946
  %v7543 = vpack.c.b16 %v5951, %v5947
  %v7544 = vpack.c.b16 %v5952, %v5948
  %v7545 = vpack.c.b16 %v5953, %v5949
  %v7546 = vpack.c.b16 %v5958, %v5954
  %v7547 = vpack.c.b16 %v5959, %v5955
  %v7548 = vpack.c.b16 %v5960, %v5956
  %v7549 = vpack.c.b16 %v5961, %v5957
  %v7550 = vpack.c.b16 %v5966, %v5962
  %v7551 = vpack.c.b16 %v5967, %v5963
  %v7552 = vpack.c.b16 %v5968, %v5964
  %v7553 = vpack.c.b16 %v5969, %v5965
  %v7554 = vpack.c.b16 %v5974, %v5970
  %v7555 = vpack.c.b16 %v5975, %v5971
  %v7556 = vpack.c.b16 %v5976, %v5972
  %v7557 = vpack.c.b16 %v5977, %v5973
  %v7558 = vpack.c.b16 %v5982, %v5978
  %v7559 = vpack.c.b16 %v5983, %v5979
  %v7560 = vpack.c.b16 %v5984, %v5980
  %v7561 = vpack.c.b16 %v5985, %v5981
  %v7562 = vpack.c.b16 %v5990, %v5986
  %v7563 = vpack.c.b16 %v5991, %v5987
  %v7564 = vpack.c.b16 %v5992, %v5988
  %v7565 = vpack.c.b16 %v5993, %v5989
  %v7566 = vpack.c.b16 %v5998, %v5994
  %v7567 = vpack.c.b16 %v5999, %v5995
  %v7568 = vpack.c.b16 %v6000, %v5996
  %v7569 = vpack.c.b16 %v6001, %v5997
  %v7570 = vpack.c.b16 %v6006, %v6002
  %v7571 = vpack.c.b16 %v6007, %v6003
  %v7572 = vpack.c.b16 %v6008, %v6004
  %v7573 = vpack.c.b16 %v6009, %v6005
  %v7574 = vpack.c.b16 %v6014, %v6010
  %v7575 = vpack.c.b16 %v6015, %v6011
  %v7576 = vpack.c.b16 %v6016, %v6012
  %v7577 = vpack.c.b16 %v6017, %v6013
  %v7578 = vpack.c.b16 %v6022, %v6018
  %v7579 = vpack.c.b16 %v6023, %v6019
  %v7580 = vpack.c.b16 %v6024, %v6020
  %v7581 = vpack.c.b16 %v6025, %v6021
  %v7582 = vpack.c.b16 %v6030, %v6026
  %v7583 = vpack.c.b16 %v6031, %v6027
  %v7584 = vpack.c.b16 %v6032, %v6028
  %v7585 = vpack.c.b16 %v6033, %v6029
  %v7586 = vpack.c.b16 %v6038, %v6034
  %v7587 = vpack.c.b16 %v6039, %v6035
  %v7588 = vpack.c.b16 %v6040, %v6036
  %v7589 = vpack.c.b16 %v6041, %v6037
  %v7590 = vpack.c.b16 %v6046, %v6042
  %v7591 = vpack.c.b16 %v6047, %v6043
  %v7592 = vpack.c.b16 %v6048, %v6044
  %v7593 = vpack.c.b16 %v6049, %v6045
  %v7594 = vpack.c.b16 %v6054, %v6050
  %v7595 = vpack.c.b16 %v6055, %v6051
  %v7596 = vpack.c.b16 %v6056, %v6052
  %v7597 = vpack.c.b16 %v6057, %v6053
  %v7598 = vpack.c.b16 %v6062, %v6058
  %v7599 = vpack.c.b16 %v6063, %v6059
  %v7600 = vpack.c.b16 %v6064, %v6060
  %v7601 = vpack.c.b16 %v6065, %v6061
  %v7602 = vpack.c.b16 %v6070, %v6066
  %v7603 = vpack.c.b16 %v6071, %v6067
  %v7604 = vpack.c.b16 %v6072, %v6068
  %v7605 = vpack.c.b16 %v6073, %v6069
  %v7606 = vpack.c.b16 %v6078, %v6074
  %v7607 = vpack.c.b16 %v6079, %v6075
  %v7608 = vpack.c.b16 %v6080, %v6076
  %v7609 = vpack.c.b16 %v6081, %v6077
  %v7610 = vpack.c.b16 %v6086, %v6082
  %v7611 = vpack.c.b16 %v6087, %v6083
  %v7612 = vpack.c.b16 %v6088, %v6084
  %v7613 = vpack.c.b16 %v6089, %v6085
  %v7614 = vpack.c.b16 %v6094, %v6090
  %v7615 = vpack.c.b16 %v6095, %v6091
  %v7616 = vpack.c.b16 %v6096, %v6092
  %v7617 = vpack.c.b16 %v6097, %v6093
  %v7618 = vpack.c.b16 %v6102, %v6098
  %v7619 = vpack.c.b16 %v6103, %v6099
  %v7620 = vpack.c.b16 %v6104, %v6100
  %v7621 = vpack.c.b16 %v6105, %v6101
  %v7622 = vpack.c.b16 %v6110, %v6106
  %v7623 = vpack.c.b16 %v6111, %v6107
  %v7624 = vpack.c.b16 %v6112, %v6108
  %v7625 = vpack.c.b16 %v6113, %v6109
  %v7626 = vpack.c.b16 %v6118, %v6114
  %v7627 = vpack.c.b16 %v6119, %v6115
  %v7628 = vpack.c.b16 %v6120, %v6116
  %v7629 = vpack.c.b16 %v6121, %v6117
  %v7630 = vpack.c.b16 %v6126, %v6122
  %v7631 = vpack.c.b16 %v6127, %v6123
  %v7632 = vpack.c.b16 %v6128, %v6124
  %v7633 = vpack.c.b16 %v6129, %v6125
  %v7634 = vpack.c.b16 %v6134, %v6130
  %v7635 = vpack.c.b16 %v6135, %v6131
  %v7636 = vpack.c.b16 %v6136, %v6132
  %v7637 = vpack.c.b16 %v6137, %v6133
  %v7638 = vpack.c.b16 %v6142, %v6138
  %v7639 = vpack.c.b16 %v6143, %v6139
  %v7640 = vpack.c.b16 %v6144, %v6140
  %v7641 = vpack.c.b16 %v6145, %v6141
  %v7642 = vpack.c.b16 %v6150, %v6146
  %v7643 = vpack.c.b16 %v6151, %v6147
  %v7644 = vpack.c.b16 %v6152, %v6148
  %v7645 = vpack.c.b16 %v6153, %v6149
  %v7646 = vpack.c.b16 %v6158, %v6154
  %v7647 = vpack.c.b16 %v6159, %v6155
  %v7648 = vpack.c.b16 %v6160, %v6156
  %v7649 = vpack.c.b16 %v6161, %v6157
  %v7650 = vpack.c.b16 %v6166, %v6162
  %v7651 = vpack.c.b16 %v6167, %v6163
  %v7652 = vpack.c.b16 %v6168, %v6164
  %v7653 = vpack.c.b16 %v6169, %v6165
  %v7654 = vpack.c.b16 %v6174, %v6170
  %v7655 = vpack.c.b16 %v6175, %v6171
  %v7656 = vpack.c.b16 %v6176, %v6172
  %v7657 = vpack.c.b16 %v6177, %v6173
  %v7658 = vpack.c.b16 %v6182, %v6178
  %v7659 = vpack.c.b16 %v6183, %v6179
  %v7660 = vpack.c.b16 %v6184, %v6180
  %v7661 = vpack.c.b16 %v6185, %v6181
  %v7662 = vpack.c.b16 %v6190, %v6186
  %v7663 = vpack.c.b16 %v6191, %v6187
  %v7664 = vpack.c.b16 %v6192, %v6188
  %v7665 = vpack.c.b16 %v6193, %v6189
  %v7666 = vpack.c.b16 %v6198, %v6194
  %v7667 = vpack.c.b16 %v6199, %v6195
  %v7668 = vpack.c.b16 %v6200, %v6196
  %v7669 = vpack.c.b16 %v6201, %v6197
  %v7670 = vpack.c.b16 %v6206, %v6202
  %v7671 = vpack.c.b16 %v6207, %v6203
  %v7672 = vpack.c.b16 %v6208, %v6204
  %v7673 = vpack.c.b16 %v6209, %v6205
  %v7674 = vpack.c.b16 %v6214, %v6210
  %v7675 = vpack.c.b16 %v6215, %v6211
  %v7676 = vpack.c.b16 %v6216, %v6212
  %v7677 = vpack.c.b16 %v6217, %v6213
  %v7678 = vpack.c.b16 %v6222, %v6218
  %v7679 = vpack.c.b16 %v6223, %v6219
  %v7680 = vpack.c.b16 %v6224, %v6220
  %v7681 = vpack.c.b16 %v6225, %v6221
  %v7682 = vpack.c.b16 %v6230, %v6226
  %v7683 = vpack.c.b16 %v6231, %v6227
  %v7684 = vpack.c.b16 %v6232, %v6228
  %v7685 = vpack.c.b16 %v6233, %v6229
  %v7686 = vpack.c.b16 %v6238, %v6234
  %v7687 = vpack.c.b16 %v6239, %v6235
  %v7688 = vpack.c.b16 %v6240, %v6236
  %v7689 = vpack.c.b16 %v6241, %v6237
  %v7690 = vpack.c.b16 %v6246, %v6242
  %v7691 = vpack.c.b16 %v6247, %v6243
  %v7692 = vpack.c.b16 %v6248, %v6244
  %v7693 = vpack.c.b16 %v6249, %v6245
  %v7694 = vpack.c.b16 %v6254, %v6250
  %v7695 = vpack.c.b16 %v6255, %v6251
  %v7696 = vpack.c.b16 %v6256, %v6252
  %v7697 = vpack.c.b16 %v6257, %v6253
  %v7698 = vpack.c.b16 %v6262, %v6258
  %v7699 = vpack.c.b16 %v6263, %v6259
  %v7700 = vpack.c.b16 %v6264, %v6260
  %v7701 = vpack.c.b16 %v6265, %v6261
  %v7702 = vpack.c.b16 %v6270, %v6266
  %v7703 = vpack.c.b16 %v6271, %v6267
  %v7704 = vpack.c.b16 %v6272, %v6268
  %v7705 = vpack.c.b16 %v6273, %v6269
  %v7706 = vpack.c.b16 %v6278, %v6274
  %v7707 = vpack.c.b16 %v6279, %v6275
  %v7708 = vpack.c.b16 %v6280, %v6276
  %v7709 = vpack.c.b16 %v6281, %v6277
  %v7710 = vpack.c.b16 %v6286, %v6282
  %v7711 = vpack.c.b16 %v6287, %v6283
  %v7712 = vpack.c.b16 %v6288, %v6284
  %v7713 = vpack.c.b16 %v6289, %v6285
  %v7714 = vpack.c.b16 %v6294, %v6290
  %v7715 = vpack.c.b16 %v6295, %v6291
  %v7716 = vpack.c.b16 %v6296, %v6292
  %v7717 = vpack.c.b16 %v6297, %v6293
  %v7718 = vpack.c.b16 %v6302, %v6298
  %v7719 = vpack.c.b16 %v6303, %v6299
  %v7720 = vpack.c.b16 %v6304, %v6300
  %v7721 = vpack.c.b16 %v6305, %v6301
  %v7722 = vpack.c.b16 %v6310, %v6306
  %v7723 = vpack.c.b16 %v6311, %v6307
  %v7724 = vpack.c.b16 %v6312, %v6308
  %v7725 = vpack.c.b16 %v6313, %v6309
  %v7726 = vpack.c.b16 %v6318, %v6314
  %v7727 = vpack.c.b16 %v6319, %v6315
  %v7728 = vpack.c.b16 %v6320, %v6316
  %v7729 = vpack.c.b16 %v6321, %v6317
  %v7730 = vpack.c.b16 %v6326, %v6322
  %v7731 = vpack.c.b16 %v6327, %v6323
  %v7732 = vpack.c.b16 %v6328, %v6324
  %v7733 = vpack.c.b16 %v6329, %v6325
  %v7734 = vpack.c.b16 %v6334, %v6330
  %v7735 = vpack.c.b16 %v6335, %v6331
  %v7736 = vpack.c.b16 %v6336, %v6332
  %v7737 = vpack.c.b16 %v6337, %v6333
  %v7738 = vpack.c.b16 %v6342, %v6338
  %v7739 = vpack.c.b16 %v6343, %v6339
  %v7740 = vpack.c.b16 %v6344, %v6340
  %v7741 = vpack.c.b16 %v6345, %v6341
  %v7742 = vpack.c.b16 %v6350, %v6346
  %v7743 = vpack.c.b16 %v6351, %v6347
  %v7744 = vpack.c.b16 %v6352, %v6348
  %v7745 = vpack.c.b16 %v6353, %v6349
  %v7746 = vpack.c.b16 %v6358, %v6354
  %v7747 = vpack.c.b16 %v6359, %v6355
  %v7748 = vpack.c.b16 %v6360, %v6356
  %v7749 = vpack.c.b16 %v6361, %v6357
  %v7750 = vpack.c.b16 %v6366, %v6362
  %v7751 = vpack.c.b16 %v6367, %v6363
  %v7752 = vpack.c.b16 %v6368, %v6364
  %v7753 = vpack.c.b16 %v6369, %v6365
  %v7754 = vpack.c.b16 %v6374, %v6370
  %v7755 = vpack.c.b16 %v6375, %v6371
  %v7756 = vpack.c.b16 %v6376, %v6372
  %v7757 = vpack.c.b16 %v6377, %v6373
  %v7758 = vpack.c.b16 %v6382, %v6378
  %v7759 = vpack.c.b16 %v6383, %v6379
  %v7760 = vpack.c.b16 %v6384, %v6380
  %v7761 = vpack.c.b16 %v6385, %v6381
  %v7762 = vpack.c.b16 %v6390, %v6386
  %v7763 = vpack.c.b16 %v6391, %v6387
  %v7764 = vpack.c.b16 %v6392, %v6388
  %v7765 = vpack.c.b16 %v6393, %v6389
  %v7766 = vpack.c.b16 %v6398, %v6394
  %v7767 = vpack.c.b16 %v6399, %v6395
  %v7768 = vpack.c.b16 %v6400, %v6396
  %v7769 = vpack.c.b16 %v6401, %v6397
  %v7770 = vpack.c.b16 %v6406, %v6402
  %v7771 = vpack.c.b16 %v6407, %v6403
  %v7772 = vpack.c.b16 %v6408, %v6404
  %v7773 = vpack.c.b16 %v6409, %v6405
  %v7774 = vpack.c.b16 %v6414, %v6410
  %v7775 = vpack.c.b16 %v6415, %v6411
  %v7776 = vpack.c.b16 %v6416, %v6412
  %v7777 = vpack.c.b16 %v6417, %v6413
  %v7778 = vpack.c.b16 %v6422, %v6418
  %v7779 = vpack.c.b16 %v6423, %v6419
  %v7780 = vpack.c.b16 %v6424, %v6420
  %v7781 = vpack.c.b16 %v6425, %v6421
  %v7782 = vpack.c.b16 %v6430, %v6426
  %v7783 = vpack.c.b16 %v6431, %v6427
  %v7784 = vpack.c.b16 %v6432, %v6428
  %v7785 = vpack.c.b16 %v6433, %v6429
  %v7786 = vpack.c.b16 %v6438, %v6434
  %v7787 = vpack.c.b16 %v6439, %v6435
  %v7788 = vpack.c.b16 %v6440, %v6436
  %v7789 = vpack.c.b16 %v6441, %v6437
  %v7790 = vpack.c.b16 %v6446, %v6442
  %v7791 = vpack.c.b16 %v6447, %v6443
  %v7792 = vpack.c.b16 %v6448, %v6444
  %v7793 = vpack.c.b16 %v6449, %v6445
  %v7794 = vpack.c.b16 %v6454, %v6450
  %v7795 = vpack.c.b16 %v6455, %v6451
  %v7796 = vpack.c.b16 %v6456, %v6452
  %v7797 = vpack.c.b16 %v6457, %v6453
  %v7798 = vpack.c.b16 %v6462, %v6458
  %v7799 = vpack.c.b16 %v6463, %v6459
  %v7800 = vpack.c.b16 %v6464, %v6460
  %v7801 = vpack.c.b16 %v6465, %v6461
  %v7802 = vpack.c.b16 %v6470, %v6466
  %v7803 = vpack.c.b16 %v6471, %v6467
  %v7804 = vpack.c.b16 %v6472, %v6468
  %v7805 = vpack.c.b16 %v6473, %v6469
  %v7806 = vpack.c.b16 %v6478, %v6474
  %v7807 = vpack.c.b16 %v6479, %v6475
  %v7808 = vpack.c.b16 %v6480, %v6476
  %v7809 = vpack.c.b16 %v6481, %v6477
  %v7810 = vpack.c.b16 %v6486, %v6482
  %v7811 = vpack.c.b16 %v6487, %v6483
  %v7812 = vpack.c.b16 %v6488, %v6484
  %v7813 = vpack.c.b16 %v6489, %v6485
  %v7814 = vpack.c.b16 %v6494, %v6490
  %v7815 = vpack.c.b16 %v6495, %v6491
  %v7816 = vpack.c.b16 %v6496, %v6492
  %v7817 = vpack.c.b16 %v6497, %v6493
  %v7818 = vpack.c.b16 %v6502, %v6498
  %v7819 = vpack.c.b16 %v6503, %v6499
  %v7820 = vpack.c.b16 %v6504, %v6500
  %v7821 = vpack.c.b16 %v6505, %v6501
  %v7822 = vpack.c.b16 %v6510, %v6506
  %v7823 = vpack.c.b16 %v6511, %v6507
  %v7824 = vpack.c.b16 %v6512, %v6508
  %v7825 = vpack.c.b16 %v6513, %v6509
  %v7826 = vpack.c.b16 %v6518, %v6514
  %v7827 = vpack.c.b16 %v6519, %v6515
  %v7828 = vpack.c.b16 %v6520, %v6516
  %v7829 = vpack.c.b16 %v6521, %v6517
  %v7830 = vpack.c.b16 %v6526, %v6522
  %v7831 = vpack.c.b16 %v6527, %v6523
  %v7832 = vpack.c.b16 %v6528, %v6524
  %v7833 = vpack.c.b16 %v6529, %v6525
  %v7834 = vpack.c.b16 %v6534, %v6530
  %v7835 = vpack.c.b16 %v6535, %v6531
  %v7836 = vpack.c.b16 %v6536, %v6532
  %v7837 = vpack.c.b16 %v6537, %v6533
  %v7838 = vpack.c.b16 %v6542, %v6538
  %v7839 = vpack.c.b16 %v6543, %v6539
  %v7840 = vpack.c.b16 %v6544, %v6540
  %v7841 = vpack.c.b16 %v6545, %v6541
  %v7842 = vpack.c.b16 %v6550, %v6546
  %v7843 = vpack.c.b16 %v6551, %v6547
  %v7844 = vpack.c.b16 %v6552, %v6548
  %v7845 = vpack.c.b16 %v6553, %v6549
  %v7846 = vpack.c.b16 %v6558, %v6554
  %v7847 = vpack.c.b16 %v6559, %v6555
  %v7848 = vpack.c.b16 %v6560, %v6556
  %v7849 = vpack.c.b16 %v6561, %v6557
  %v7850 = vpack.c.b16 %v6566, %v6562
  %v7851 = vpack.c.b16 %v6567, %v6563
  %v7852 = vpack.c.b16 %v6568, %v6564
  %v7853 = vpack.c.b16 %v6569, %v6565
  %v7854 = vpack.c.b16 %v6574, %v6570
  %v7855 = vpack.c.b16 %v6575, %v6571
  %v7856 = vpack.c.b16 %v6576, %v6572
  %v7857 = vpack.c.b16 %v6577, %v6573
  %v7858 = vpack.c.b16 %v6582, %v6578
  %v7859 = vpack.c.b16 %v6583, %v6579
  %v7860 = vpack.c.b16 %v6584, %v6580
  %v7861 = vpack.c.b16 %v6585, %v6581
  %v7862 = vpack.c.b16 %v6590, %v6586
  %v7863 = vpack.c.b16 %v6591, %v6587
  %v7864 = vpack.c.b16 %v6592, %v6588
  %v7865 = vpack.c.b16 %v6593, %v6589
  %v7866 = vpack.c.b16 %v6598, %v6594
  %v7867 = vpack.c.b16 %v6599, %v6595
  %v7868 = vpack.c.b16 %v6600, %v6596
  %v7869 = vpack.c.b16 %v6601, %v6597
  %v7870 = vpack.c.b16 %v6606, %v6602
  %v7871 = vpack.c.b16 %v6607, %v6603
  %v7872 = vpack.c.b16 %v6608, %v6604
  %v7873 = vpack.c.b16 %v6609, %v6605
  %v7874 = vpack.c.b16 %v6614, %v6610
  %v7875 = vpack.c.b16 %v6615, %v6611
  %v7876 = vpack.c.b16 %v6616, %v6612
  %v7877 = vpack.c.b16 %v6617, %v6613
  %v7878 = vpack.c.b16 %v6622, %v6618
  %v7879 = vpack.c.b16 %v6623, %v6619
  %v7880 = vpack.c.b16 %v6624, %v6620
  %v7881 = vpack.c.b16 %v6625, %v6621
  %v7882 = vpack.c.b16 %v6630, %v6626
  %v7883 = vpack.c.b16 %v6631, %v6627
  %v7884 = vpack.c.b16 %v6632, %v6628
  %v7885 = vpack.c.b16 %v6633, %v6629
  %v7886 = vpack.c.b16 %v6638, %v6634
  %v7887 = vpack.c.b16 %v6639, %v6635
  %v7888 = vpack.c.b16 %v6640, %v6636
  %v7889 = vpack.c.b16 %v6641, %v6637
  %v7890 = vpack.c.b16 %v6646, %v6642
  %v7891 = vpack.c.b16 %v6647, %v6643
  %v7892 = vpack.c.b16 %v6648, %v6644
  %v7893 = vpack.c.b16 %v6649, %v6645
  %v7894 = vpack.c.b16 %v6654, %v6650
  %v7895 = vpack.c.b16 %v6655, %v6651
  %v7896 = vpack.c.b16 %v6656, %v6652
  %v7897 = vpack.c.b16 %v6657, %v6653
  %v7898 = vpack.c.b16 %v6662, %v6658
  %v7899 = vpack.c.b16 %v6663, %v6659
  %v7900 = vpack.c.b16 %v6664, %v6660
  %v7901 = vpack.c.b16 %v6665, %v6661
  %v7902 = vpack.c.b16 %v6670, %v6666
  %v7903 = vpack.c.b16 %v6671, %v6667
  %v7904 = vpack.c.b16 %v6672, %v6668
  %v7905 = vpack.c.b16 %v6673, %v6669
  %v7906 = vpack.c.b16 %v6678, %v6674
  %v7907 = vpack.c.b16 %v6679, %v6675
  %v7908 = vpack.c.b16 %v6680, %v6676
  %v7909 = vpack.c.b16 %v6681, %v6677
  %v7910 = vpack.c.b16 %v6686, %v6682
  %v7911 = vpack.c.b16 %v6687, %v6683
  %v7912 = vpack.c.b16 %v6688, %v6684
  %v7913 = vpack.c.b16 %v6689, %v6685
  %v7914 = vpack.c.b16 %v6694, %v6690
  %v7915 = vpack.c.b16 %v6695, %v6691
  %v7916 = vpack.c.b16 %v6696, %v6692
  %v7917 = vpack.c.b16 %v6697, %v6693
  %v7918 = vpack.c.b16 %v6702, %v6698
  %v7919 = vpack.c.b16 %v6703, %v6699
  %v7920 = vpack.c.b16 %v6704, %v6700
  %v7921 = vpack.c.b16 %v6705, %v6701
  %v7922 = vpack.c.b16 %v6710, %v6706
  %v7923 = vpack.c.b16 %v6711, %v6707
  %v7924 = vpack.c.b16 %v6712, %v6708
  %v7925 = vpack.c.b16 %v6713, %v6709
  %v7926 = vpack.c.b16 %v6718, %v6714
  %v7927 = vpack.c.b16 %v6719, %v6715
  %v7928 = vpack.c.b16 %v6720, %v6716
  %v7929 = vpack.c.b16 %v6721, %v6717
  %v7930 = vpack.c.b16 %v6726, %v6722
  %v7931 = vpack.c.b16 %v6727, %v6723
  %v7932 = vpack.c.b16 %v6728, %v6724
  %v7933 = vpack.c.b16 %v6729, %v6725
  %v7934 = vpack.c.b16 %v6734, %v6730
  %v7935 = vpack.c.b16 %v6735, %v6731
  %v7936 = vpack.c.b16 %v6736, %v6732
  %v7937 = vpack.c.b16 %v6737, %v6733
  %v7938 = vpack.c.b16 %v6742, %v6738
  %v7939 = vpack.c.b16 %v6743, %v6739
  %v7940 = vpack.c.b16 %v6744, %v6740
  %v7941 = vpack.c.b16 %v6745, %v6741
  %v7942 = vpack.c.b16 %v6750, %v6746
  %v7943 = vpack.c.b16 %v6751, %v6747
  %v7944 = vpack.c.b16 %v6752, %v6748
  %v7945 = vpack.c.b16 %v6753, %v6749
  %v7946 = vpack.c.b16 %v6758, %v6754
  %v7947 = vpack.c.b16 %v6759, %v6755
  %v7948 = vpack.c.b16 %v6760, %v6756
  %v7949 = vpack.c.b16 %v6761, %v6757
  %v7950 = vpack.c.b16 %v6766, %v6762
  %v7951 = vpack.c.b16 %v6767, %v6763
  %v7952 = vpack.c.b16 %v6768, %v6764
  %v7953 = vpack.c.b16 %v6769, %v6765
  %v7954 = vpack.c.b16 %v6774, %v6770
  %v7955 = vpack.c.b16 %v6775, %v6771
  %v7956 = vpack.c.b16 %v6776, %v6772
  %v7957 = vpack.c.b16 %v6777, %v6773
  %v7958 = vpack.c.b16 %v6782, %v6778
  %v7959 = vpack.c.b16 %v6783, %v6779
  %v7960 = vpack.c.b16 %v6784, %v6780
  %v7961 = vpack.c.b16 %v6785, %v6781
  %v7962 = vpack.c.b16 %v6790, %v6786
  %v7963 = vpack.c.b16 %v6791, %v6787
  %v7964 = vpack.c.b16 %v6792, %v6788
  %v7965 = vpack.c.b16 %v6793, %v6789
  %v7966 = vpack.c.b16 %v6798, %v6794
  %v7967 = vpack.c.b16 %v6799, %v6795
  %v7968 = vpack.c.b16 %v6800, %v6796
  %v7969 = vpack.c.b16 %v6801, %v6797
  %v7970 = vpack.c.b16 %v6806, %v6802
  %v7971 = vpack.c.b16 %v6807, %v6803
  %v7972 = vpack.c.b16 %v6808, %v6804
  %v7973 = vpack.c.b16 %v6809, %v6805
  %v7974 = vpack.c.b16 %v6814, %v6810
  %v7975 = vpack.c.b16 %v6815, %v6811
  %v7976 = vpack.c.b16 %v6816, %v6812
  %v7977 = vpack.c.b16 %v6817, %v6813
  %v7978 = vpack.c.b16 %v6822, %v6818
  %v7979 = vpack.c.b16 %v6823, %v6819
  %v7980 = vpack.c.b16 %v6824, %v6820
  %v7981 = vpack.c.b16 %v6825, %v6821
  %v7982 = vpack.c.b16 %v6830, %v6826
  %v7983 = vpack.c.b16 %v6831, %v6827
  %v7984 = vpack.c.b16 %v6832, %v6828
  %v7985 = vpack.c.b16 %v6833, %v6829
  %9138 = vmatprep.subr.bf16.mxu0 %v6835
  %9139 = vmatpush1.bf16.msra.mxu0 %v6834
  %9140 = vmatprep.subr.bf16.mxu0 %v6839
  %9141 = vmatpush1.bf16.msra.mxu0 %v6838
  %9142 = vmatprep.subr.bf16.mxu0 %v6843
  %9143 = vmatpush1.bf16.msra.mxu0 %v6842
  %9144 = vmatprep.subr.bf16.mxu0 %v6847
  %9145 = vmatpush1.bf16.msra.mxu0 %v6846
  %9146 = vmatprep.subr.bf16.mxu0 %v6851
  %9147 = vmatpush1.bf16.msra.mxu0 %v6850
  %9148 = vmatprep.subr.bf16.mxu0 %v6855
  %9149 = vmatpush1.bf16.msra.mxu0 %v6854
  %9150 = vmatprep.subr.bf16.mxu0 %v6859
  %9151 = vmatpush1.bf16.msra.mxu0 %v6858
  %9152 = vmatprep.subr.bf16.mxu0 %v6863
  %9153 = vmatpush1.bf16.msra.mxu0 %v6862
  %9154 = vmatprep.subr.bf16.mxu0 %v6867
  %9155 = vmatpush1.bf16.msra.mxu0 %v6866
  %9156 = vmatprep.subr.bf16.mxu0 %v6871
  %9157 = vmatpush1.bf16.msra.mxu0 %v6870
  %9158 = vmatprep.subr.bf16.mxu0 %v6875
  %9159 = vmatpush1.bf16.msra.mxu0 %v6874
  %9160 = vmatprep.subr.bf16.mxu0 %v6879
  %9161 = vmatpush1.bf16.msra.mxu0 %v6878
  %9162 = vmatprep.subr.bf16.mxu0 %v6883
  %9163 = vmatpush1.bf16.msra.mxu0 %v6882
  %9164 = vmatprep.subr.bf16.mxu0 %v6887
  %9165 = vmatpush1.bf16.msra.mxu0 %v6886
  %9166 = vmatprep.subr.bf16.mxu0 %v6891
  %9167 = vmatpush1.bf16.msra.mxu0 %v6890
  %9168 = vmatprep.subr.bf16.mxu0 %v6895
  %9169 = vmatpush1.bf16.msra.mxu0 %v6894
  %9170 = vmatprep.mubr.bf16.mxu0 %v3235
  %9171 = vmatmul.mubr.bf16.gmra.mrb[0].mxu0 %v3234
  %v9172 = vpop.f32.mrb[0].mxu0
  %v9173 = vadd.f32 %v3001, %v9172
  %v9174 = vpop.f32.mrb[0].mxu0
  %v9175 = vadd.f32 %v3005, %v9174
  %v9176 = vpop.f32.mrb[0].mxu0
  %v9177 = vadd.f32 %v3001, %v9176
  %v9178 = vpop.f32.mrb[0].mxu0
  %v9179 = vadd.f32 %v3005, %v9178
  %9180 = vmatprep.mubr.bf16.mxu0 %v3271
  %9181 = vmatmul.mubr.bf16.gmra.mrb[0].mxu0 %v3270
  %v9182 = vpop.f32.mrb[0].mxu0
  %v9183 = vadd.f32 %v3001, %v9182
  %v9184 = vpop.f32.mrb[0].mxu0
  %v9185 = vadd.f32 %v3005, %v9184
  %v9186 = vpop.f32.mrb[0].mxu0
  %v9187 = vadd.f32 %v3001, %v9186
  %v9188 = vpop.f32.mrb[0].mxu0
  %v9189 = vadd.f32 %v3005, %v9188
  %9190 = vdwg.mxu0
  %9191 = vmatprep.subr.bf16.mxu0 %v6899
  %9192 = vmatpush1.bf16.msra.mxu0 %v6898
  %9193 = vmatprep.subr.bf16.mxu0 %v6903
  %9194 = vmatpush1.bf16.msra.mxu0 %v6902
  %9195 = vmatprep.subr.bf16.mxu0 %v6907
  %9196 = vmatpush1.bf16.msra.mxu0 %v6906
  %9197 = vmatprep.subr.bf16.mxu0 %v6911
  %9198 = vmatpush1.bf16.msra.mxu0 %v6910
  %9199 = vmatprep.subr.bf16.mxu0 %v6915
  %9200 = vmatpush1.bf16.msra.mxu0 %v6914
  %9201 = vmatprep.subr.bf16.mxu0 %v6919
  %9202 = vmatpush1.bf16.msra.mxu0 %v6918
  %9203 = vmatprep.subr.bf16.mxu0 %v6923
  %9204 = vmatpush1.bf16.msra.mxu0 %v6922
  %9205 = vmatprep.subr.bf16.mxu0 %v6927
  %9206 = vmatpush1.bf16.msra.mxu0 %v6926
  %9207 = vmatprep.subr.bf16.mxu0 %v6931
  %9208 = vmatpush1.bf16.msra.mxu0 %v6930
  %9209 = vmatprep.subr.bf16.mxu0 %v6935
  %9210 = vmatpush1.bf16.msra.mxu0 %v6934
  %9211 = vmatprep.subr.bf16.mxu0 %v6939
  %9212 = vmatpush1.bf16.msra.mxu0 %v6938
  %9213 = vmatprep.subr.bf16.mxu0 %v6943
  %9214 = vmatpush1.bf16.msra.mxu0 %v6942
  %9215 = vmatprep.subr.bf16.mxu0 %v6947
  %9216 = vmatpush1.bf16.msra.mxu0 %v6946
  %9217 = vmatprep.subr.bf16.mxu0 %v6951
  %9218 = vmatpush1.bf16.msra.mxu0 %v6950
  %9219 = vmatprep.subr.bf16.mxu0 %v6955
  %9220 = vmatpush1.bf16.msra.mxu0 %v6954
  %9221 = vmatprep.subr.bf16.mxu0 %v6959
  %9222 = vmatpush1.bf16.msra.mxu0 %v6958
  %9223 = vmatprep.mubr.bf16.mxu0 %v3237
  %9224 = vmatmul.mubr.bf16.gmra.mrb[0].mxu0 %v3236
  %v9225 = vpop.f32.mrb[0].mxu0
  %v9226 = vadd.f32 %v9173, %v9225
  %v9227 = vpop.f32.mrb[0].mxu0
  %v9228 = vadd.f32 %v9175, %v9227
  %v9229 = vpop.f32.mrb[0].mxu0
  %v9230 = vadd.f32 %v9177, %v9229
  %v9231 = vpop.f32.mrb[0].mxu0
  %v9232 = vadd.f32 %v9179, %v9231
  %9233 = vmatprep.mubr.bf16.mxu0 %v3273
  %9234 = vmatmul.mubr.bf16.gmra.mrb[0].mxu0 %v3272
  %v9235 = vpop.f32.mrb[0].mxu0
  %v9236 = vadd.f32 %v9183, %v9235
  %v9237 = vpop.f32.mrb[0].mxu0
  %v9238 = vadd.f32 %v9185, %v9237
  %v9239 = vpop.f32.mrb[0].mxu0
  %v9240 = vadd.f32 %v9187, %v9239
  %v9241 = vpop.f32.mrb[0].mxu0
  %v9242 = vadd.f32 %v9189, %v9241
  %9243 = vdwg.mxu0
  %9244 = vmatprep.subr.bf16.mxu0 %v6963
  %9245 = vmatpush1.bf16.msra.mxu0 %v6962
  %9246 = vmatprep.subr.bf16.mxu0 %v6967
  %9247 = vmatpush1.bf16.msra.mxu0 %v6966
  %9248 = vmatprep.subr.bf16.mxu0 %v6971
  %9249 = vmatpush1.bf16.msra.mxu0 %v6970
  %9250 = vmatprep.subr.bf16.mxu0 %v6975
  %9251 = vmatpush1.bf16.msra.mxu0 %v6974
  %9252 = vmatprep.subr.bf16.mxu0 %v6979
  %9253 = vmatpush1.bf16.msra.mxu0 %v6978
  %9254 = vmatprep.subr.bf16.mxu0 %v6983
  %9255 = vmatpush1.bf16.msra.mxu0 %v6982
  %9256 = vmatprep.subr.bf16.mxu0 %v6987
  %9257 = vmatpush1.bf16.msra.mxu0 %v6986
  %9258 = vmatprep.subr.bf16.mxu0 %v6991
  %9259 = vmatpush1.bf16.msra.mxu0 %v6990
  %9260 = vmatprep.subr.bf16.mxu0 %v6995
  %9261 = vmatpush1.bf16.msra.mxu0 %v6994
  %9262 = vmatprep.subr.bf16.mxu0 %v6999
  %9263 = vmatpush1.bf16.msra.mxu0 %v6998
  %9264 = vmatprep.subr.bf16.mxu0 %v7003
  %9265 = vmatpush1.bf16.msra.mxu0 %v7002
  %9266 = vmatprep.subr.bf16.mxu0 %v7007
  %9267 = vmatpush1.bf16.msra.mxu0 %v7006
  %9268 = vmatprep.subr.bf16.mxu0 %v7011
  %9269 = vmatpush1.bf16.msra.mxu0 %v7010
  %9270 = vmatprep.subr.bf16.mxu0 %v7015
  %9271 = vmatpush1.bf16.msra.mxu0 %v7014
  %9272 = vmatprep.subr.bf16.mxu0 %v7019
  %9273 = vmatpush1.bf16.msra.mxu0 %v7018
  %9274 = vmatprep.subr.bf16.mxu0 %v7023
  %9275 = vmatpush1.bf16.msra.mxu0 %v7022
  %9276 = vmatprep.mubr.bf16.mxu0 %v3239
  %9277 = vmatmul.mubr.bf16.gmra.mrb[0].mxu0 %v3238
  %v9278 = vpop.f32.mrb[0].mxu0
  %v9279 = vadd.f32 %v9226, %v9278
  %v9280 = vpop.f32.mrb[0].mxu0
  %v9281 = vadd.f32 %v9228, %v9280
  %v9282 = vpop.f32.mrb[0].mxu0
  %v9283 = vadd.f32 %v9230, %v9282
  %v9284 = vpop.f32.mrb[0].mxu0
  %v9285 = vadd.f32 %v9232, %v9284
  %9286 = vmatprep.mubr.bf16.mxu0 %v3275
  %9287 = vmatmul.mubr.bf16.gmra.mrb[0].mxu0 %v3274
  %v9288 = vpop.f32.mrb[0].mxu0
  %v9289 = vadd.f32 %v9236, %v9288
  %v9290 = vpop.f32.mrb[0].mxu0
  %v9291 = vadd.f32 %v9238, %v9290
  %v9292 = vpop.f32.mrb[0].mxu0
  %v9293 = vadd.f32 %v9240, %v9292
  %v9294 = vpop.f32.mrb[0].mxu0
  %v9295 = vadd.f32 %v9242, %v9294
  %9296 = vdwg.mxu0
  %9297 = vmatprep.subr.bf16.mxu0 %v7027
  %9298 = vmatpush1.bf16.msra.mxu0 %v7026
  %9299 = vmatprep.subr.bf16.mxu0 %v7031
  %9300 = vmatpush1.bf16.msra.mxu0 %v7030
  %9301 = vmatprep.subr.bf16.mxu0 %v7035
  %9302 = vmatpush1.bf16.msra.mxu0 %v7034
  %9303 = vmatprep.subr.bf16.mxu0 %v7039
  %9304 = vmatpush1.bf16.msra.mxu0 %v7038
  %9305 = vmatprep.subr.bf16.mxu0 %v7043
  %9306 = vmatpush1.bf16.msra.mxu0 %v7042
  %9307 = vmatprep.subr.bf16.mxu0 %v7047
  %9308 = vmatpush1.bf16.msra.mxu0 %v7046
  %9309 = vmatprep.subr.bf16.mxu0 %v7051
  %9310 = vmatpush1.bf16.msra.mxu0 %v7050
  %9311 = vmatprep.subr.bf16.mxu0 %v7055
  %9312 = vmatpush1.bf16.msra.mxu0 %v7054
  %9313 = vmatprep.subr.bf16.mxu0 %v7059
  %9314 = vmatpush1.bf16.msra.mxu0 %v7058
  %9315 = vmatprep.subr.bf16.mxu0 %v7063
  %9316 = vmatpush1.bf16.msra.mxu0 %v7062
  %9317 = vmatprep.subr.bf16.mxu0 %v7067
  %9318 = vmatpush1.bf16.msra.mxu0 %v7066
  %9319 = vmatprep.subr.bf16.mxu0 %v7071
  %9320 = vmatpush1.bf16.msra.mxu0 %v7070
  %9321 = vmatprep.subr.bf16.mxu0 %v7075
  %9322 = vmatpush1.bf16.msra.mxu0 %v7074
  %9323 = vmatprep.subr.bf16.mxu0 %v7079
  %9324 = vmatpush1.bf16.msra.mxu0 %v7078
  %9325 = vmatprep.subr.bf16.mxu0 %v7083
  %9326 = vmatpush1.bf16.msra.mxu0 %v7082
  %9327 = vmatprep.subr.bf16.mxu0 %v7087
  %9328 = vmatpush1.bf16.msra.mxu0 %v7086
  %9329 = vmatprep.mubr.bf16.mxu0 %v3241
  %9330 = vmatmul.mubr.bf16.gmra.mrb[0].mxu0 %v3240
  %v9331 = vpop.f32.mrb[0].mxu0
  %v9332 = vadd.f32 %v9279, %v9331
  %v9333 = vpop.f32.mrb[0].mxu0
  %v9334 = vadd.f32 %v9281, %v9333
  %v9335 = vpop.f32.mrb[0].mxu0
  %v9336 = vadd.f32 %v9283, %v9335
  %v9337 = vpop.f32.mrb[0].mxu0
  %v9338 = vadd.f32 %v9285, %v9337
  %9339 = vmatprep.mubr.bf16.mxu0 %v3277
  %9340 = vmatmul.mubr.bf16.gmra.mrb[0].mxu0 %v3276
  %v9341 = vpop.f32.mrb[0].mxu0
  %v9342 = vadd.f32 %v9289, %v9341
  %v9343 = vpop.f32.mrb[0].mxu0
  %v9344 = vadd.f32 %v9291, %v9343
  %v9345 = vpop.f32.mrb[0].mxu0
  %v9346 = vadd.f32 %v9293, %v9345
  %v9347 = vpop.f32.mrb[0].mxu0
  %v9348 = vadd.f32 %v9295, %v9347
  %9349 = vdwg.mxu0
  %9350 = vmatprep.subr.bf16.mxu0 %v7091
  %9351 = vmatpush1.bf16.msra.mxu0 %v7090
  %9352 = vmatprep.subr.bf16.mxu0 %v7095
  %9353 = vmatpush1.bf16.msra.mxu0 %v7094
  %9354 = vmatprep.subr.bf16.mxu0 %v7099
  %9355 = vmatpush1.bf16.msra.mxu0 %v7098
  %9356 = vmatprep.subr.bf16.mxu0 %v7103
  %9357 = vmatpush1.bf16.msra.mxu0 %v7102
  %9358 = vmatprep.subr.bf16.mxu0 %v7107
  %9359 = vmatpush1.bf16.msra.mxu0 %v7106
  %9360 = vmatprep.subr.bf16.mxu0 %v7111
  %9361 = vmatpush1.bf16.msra.mxu0 %v7110
  %9362 = vmatprep.subr.bf16.mxu0 %v7115
  %9363 = vmatpush1.bf16.msra.mxu0 %v7114
  %9364 = vmatprep.subr.bf16.mxu0 %v7119
  %9365 = vmatpush1.bf16.msra.mxu0 %v7118
  %9366 = vmatprep.subr.bf16.mxu0 %v7123
  %9367 = vmatpush1.bf16.msra.mxu0 %v7122
  %9368 = vmatprep.subr.bf16.mxu0 %v7127
  %9369 = vmatpush1.bf16.msra.mxu0 %v7126
  %9370 = vmatprep.subr.bf16.mxu0 %v7131
  %9371 = vmatpush1.bf16.msra.mxu0 %v7130
  %9372 = vmatprep.subr.bf16.mxu0 %v7135
  %9373 = vmatpush1.bf16.msra.mxu0 %v7134
  %9374 = vmatprep.subr.bf16.mxu0 %v7139
  %9375 = vmatpush1.bf16.msra.mxu0 %v7138
  %9376 = vmatprep.subr.bf16.mxu0 %v7143
  %9377 = vmatpush1.bf16.msra.mxu0 %v7142
  %9378 = vmatprep.subr.bf16.mxu0 %v7147
  %9379 = vmatpush1.bf16.msra.mxu0 %v7146
  %9380 = vmatprep.subr.bf16.mxu0 %v7151
  %9381 = vmatpush1.bf16.msra.mxu0 %v7150
  %9382 = vmatprep.mubr.bf16.mxu0 %v3243
  %9383 = vmatmul.mubr.bf16.gmra.mrb[0].mxu0 %v3242
  %v9384 = vpop.f32.mrb[0].mxu0
  %v9385 = vadd.f32 %v9332, %v9384
  %v9386 = vpop.f32.mrb[0].mxu0
  %v9387 = vadd.f32 %v9334, %v9386
  %v9388 = vpop.f32.mrb[0].mxu0
  %v9389 = vadd.f32 %v9336, %v9388
  %v9390 = vpop.f32.mrb[0].mxu0
  %v9391 = vadd.f32 %v9338, %v9390
  %9392 = vmatprep.mubr.bf16.mxu0 %v3279
  %9393 = vmatmul.mubr.bf16.gmra.mrb[0].mxu0 %v3278
  %v9394 = vpop.f32.mrb[0].mxu0
  %v9395 = vadd.f32 %v9342, %v9394
  %v9396 = vpop.f32.mrb[0].mxu0
  %v9397 = vadd.f32 %v9344, %v9396
  %v9398 = vpop.f32.mrb[0].mxu0
  %v9399 = vadd.f32 %v9346, %v9398
  %v9400 = vpop.f32.mrb[0].mxu0
  %v9401 = vadd.f32 %v9348, %v9400
  %9402 = vdwg.mxu0
  %9403 = vmatprep.subr.bf16.mxu0 %v7155
  %9404 = vmatpush1.bf16.msra.mxu0 %v7154
  %9405 = vmatprep.subr.bf16.mxu0 %v7159
  %9406 = vmatpush1.bf16.msra.mxu0 %v7158
  %9407 = vmatprep.subr.bf16.mxu0 %v7163
  %9408 = vmatpush1.bf16.msra.mxu0 %v7162
  %9409 = vmatprep.subr.bf16.mxu0 %v7167
  %9410 = vmatpush1.bf16.msra.mxu0 %v7166
  %9411 = vmatprep.subr.bf16.mxu0 %v7171
  %9412 = vmatpush1.bf16.msra.mxu0 %v7170
  %9413 = vmatprep.subr.bf16.mxu0 %v7175
  %9414 = vmatpush1.bf16.msra.mxu0 %v7174
  %9415 = vmatprep.subr.bf16.mxu0 %v7179
  %9416 = vmatpush1.bf16.msra.mxu0 %v7178
  %9417 = vmatprep.subr.bf16.mxu0 %v7183
  %9418 = vmatpush1.bf16.msra.mxu0 %v7182
  %9419 = vmatprep.subr.bf16.mxu0 %v7187
  %9420 = vmatpush1.bf16.msra.mxu0 %v7186
  %9421 = vmatprep.subr.bf16.mxu0 %v7191
  %9422 = vmatpush1.bf16.msra.mxu0 %v7190
  %9423 = vmatprep.subr.bf16.mxu0 %v7195
  %9424 = vmatpush1.bf16.msra.mxu0 %v7194
  %9425 = vmatprep.subr.bf16.mxu0 %v7199
  %9426 = vmatpush1.bf16.msra.mxu0 %v7198
  %9427 = vmatprep.subr.bf16.mxu0 %v7203
  %9428 = vmatpush1.bf16.msra.mxu0 %v7202
  %9429 = vmatprep.subr.bf16.mxu0 %v7207
  %9430 = vmatpush1.bf16.msra.mxu0 %v7206
  %9431 = vmatprep.subr.bf16.mxu0 %v7211
  %9432 = vmatpush1.bf16.msra.mxu0 %v7210
  %9433 = vmatprep.subr.bf16.mxu0 %v7215
  %9434 = vmatpush1.bf16.msra.mxu0 %v7214
  %9435 = vmatprep.mubr.bf16.mxu0 %v3245
  %9436 = vmatmul.mubr.bf16.gmra.mrb[0].mxu0 %v3244
  %v9437 = vpop.f32.mrb[0].mxu0
  %v9438 = vadd.f32 %v9385, %v9437
  %v9439 = vpop.f32.mrb[0].mxu0
  %v9440 = vadd.f32 %v9387, %v9439
  %v9441 = vpop.f32.mrb[0].mxu0
  %v9442 = vadd.f32 %v9389, %v9441
  %v9443 = vpop.f32.mrb[0].mxu0
  %v9444 = vadd.f32 %v9391, %v9443
  %9445 = vmatprep.mubr.bf16.mxu0 %v3281
  %9446 = vmatmul.mubr.bf16.gmra.mrb[0].mxu0 %v3280
  %v9447 = vpop.f32.mrb[0].mxu0
  %v9448 = vadd.f32 %v9395, %v9447
  %v9449 = vpop.f32.mrb[0].mxu0
  %v9450 = vadd.f32 %v9397, %v9449
  %v9451 = vpop.f32.mrb[0].mxu0
  %v9452 = vadd.f32 %v9399, %v9451
  %v9453 = vpop.f32.mrb[0].mxu0
  %v9454 = vadd.f32 %v9401, %v9453
  %9455 = vdwg.mxu0
  %9456 = vmatprep.subr.bf16.mxu0 %v7219
  %9457 = vmatpush1.bf16.msra.mxu0 %v7218
  %9458 = vmatprep.subr.bf16.mxu0 %v7223
  %9459 = vmatpush1.bf16.msra.mxu0 %v7222
  %9460 = vmatprep.subr.bf16.mxu0 %v7227
  %9461 = vmatpush1.bf16.msra.mxu0 %v7226
  %9462 = vmatprep.subr.bf16.mxu0 %v7231
  %9463 = vmatpush1.bf16.msra.mxu0 %v7230
  %9464 = vmatprep.subr.bf16.mxu0 %v7235
  %9465 = vmatpush1.bf16.msra.mxu0 %v7234
  %9466 = vmatprep.subr.bf16.mxu0 %v7239
  %9467 = vmatpush1.bf16.msra.mxu0 %v7238
  %9468 = vmatprep.subr.bf16.mxu0 %v7243
  %9469 = vmatpush1.bf16.msra.mxu0 %v7242
  %9470 = vmatprep.subr.bf16.mxu0 %v7247
  %9471 = vmatpush1.bf16.msra.mxu0 %v7246
  %9472 = vmatprep.subr.bf16.mxu0 %v7251
  %9473 = vmatpush1.bf16.msra.mxu0 %v7250
  %9474 = vmatprep.subr.bf16.mxu0 %v7255
  %9475 = vmatpush1.bf16.msra.mxu0 %v7254
  %9476 = vmatprep.subr.bf16.mxu0 %v7259
  %9477 = vmatpush1.bf16.msra.mxu0 %v7258
  %9478 = vmatprep.subr.bf16.mxu0 %v7263
  %9479 = vmatpush1.bf16.msra.mxu0 %v7262
  %9480 = vmatprep.subr.bf16.mxu0 %v7267
  %9481 = vmatpush1.bf16.msra.mxu0 %v7266
  %9482 = vmatprep.subr.bf16.mxu0 %v7271
  %9483 = vmatpush1.bf16.msra.mxu0 %v7270
  %9484 = vmatprep.subr.bf16.mxu0 %v7275
  %9485 = vmatpush1.bf16.msra.mxu0 %v7274
  %9486 = vmatprep.subr.bf16.mxu0 %v7279
  %9487 = vmatpush1.bf16.msra.mxu0 %v7278
  %9488 = vmatprep.mubr.bf16.mxu0 %v3247
  %9489 = vmatmul.mubr.bf16.gmra.mrb[0].mxu0 %v3246
  %v9490 = vpop.f32.mrb[0].mxu0
  %v9491 = vadd.f32 %v9438, %v9490
  %v9492 = vpop.f32.mrb[0].mxu0
  %v9493 = vadd.f32 %v9440, %v9492
  %v9494 = vpop.f32.mrb[0].mxu0
  %v9495 = vadd.f32 %v9442, %v9494
  %v9496 = vpop.f32.mrb[0].mxu0
  %v9497 = vadd.f32 %v9444, %v9496
  %9498 = vmatprep.mubr.bf16.mxu0 %v3283
  %9499 = vmatmul.mubr.bf16.gmra.mrb[0].mxu0 %v3282
  %v9500 = vpop.f32.mrb[0].mxu0
  %v9501 = vadd.f32 %v9448, %v9500
  %v9502 = vpop.f32.mrb[0].mxu0
  %v9503 = vadd.f32 %v9450, %v9502
  %v9504 = vpop.f32.mrb[0].mxu0
  %v9505 = vadd.f32 %v9452, %v9504
  %v9506 = vpop.f32.mrb[0].mxu0
  %v9507 = vadd.f32 %v9454, %v9506
  %9508 = vdwg.mxu0
  %9509 = vmatprep.subr.bf16.mxu0 %v7283
  %9510 = vmatpush1.bf16.msra.mxu0 %v7282
  %9511 = vmatprep.subr.bf16.mxu0 %v7287
  %9512 = vmatpush1.bf16.msra.mxu0 %v7286
  %9513 = vmatprep.subr.bf16.mxu0 %v7291
  %9514 = vmatpush1.bf16.msra.mxu0 %v7290
  %9515 = vmatprep.subr.bf16.mxu0 %v7295
  %9516 = vmatpush1.bf16.msra.mxu0 %v7294
  %9517 = vmatprep.subr.bf16.mxu0 %v7299
  %9518 = vmatpush1.bf16.msra.mxu0 %v7298
  %9519 = vmatprep.subr.bf16.mxu0 %v7303
  %9520 = vmatpush1.bf16.msra.mxu0 %v7302
  %9521 = vmatprep.subr.bf16.mxu0 %v7307
  %9522 = vmatpush1.bf16.msra.mxu0 %v7306
  %9523 = vmatprep.subr.bf16.mxu0 %v7311
  %9524 = vmatpush1.bf16.msra.mxu0 %v7310
  %9525 = vmatprep.subr.bf16.mxu0 %v7315
  %9526 = vmatpush1.bf16.msra.mxu0 %v7314
  %9527 = vmatprep.subr.bf16.mxu0 %v7319
  %9528 = vmatpush1.bf16.msra.mxu0 %v7318
  %9529 = vmatprep.subr.bf16.mxu0 %v7323
  %9530 = vmatpush1.bf16.msra.mxu0 %v7322
  %9531 = vmatprep.subr.bf16.mxu0 %v7327
  %9532 = vmatpush1.bf16.msra.mxu0 %v7326
  %9533 = vmatprep.subr.bf16.mxu0 %v7331
  %9534 = vmatpush1.bf16.msra.mxu0 %v7330
  %9535 = vmatprep.subr.bf16.mxu0 %v7335
  %9536 = vmatpush1.bf16.msra.mxu0 %v7334
  %9537 = vmatprep.subr.bf16.mxu0 %v7339
  %9538 = vmatpush1.bf16.msra.mxu0 %v7338
  %9539 = vmatprep.subr.bf16.mxu0 %v7343
  %9540 = vmatpush1.bf16.msra.mxu0 %v7342
  %9541 = vmatprep.mubr.bf16.mxu0 %v3249
  %9542 = vmatmul.mubr.bf16.gmra.mrb[0].mxu0 %v3248
  %v9543 = vpop.f32.mrb[0].mxu0
  %v9544 = vadd.f32 %v9491, %v9543
  %v9545 = vpop.f32.mrb[0].mxu0
  %v9546 = vadd.f32 %v9493, %v9545
  %v9547 = vpop.f32.mrb[0].mxu0
  %v9548 = vadd.f32 %v9495, %v9547
  %v9549 = vpop.f32.mrb[0].mxu0
  %v9550 = vadd.f32 %v9497, %v9549
  %9551 = vmatprep.mubr.bf16.mxu0 %v3285
  %9552 = vmatmul.mubr.bf16.gmra.mrb[0].mxu0 %v3284
  %v9553 = vpop.f32.mrb[0].mxu0
  %v9554 = vadd.f32 %v9501, %v9553
  %v9555 = vpop.f32.mrb[0].mxu0
  %v9556 = vadd.f32 %v9503, %v9555
  %v9557 = vpop.f32.mrb[0].mxu0
  %v9558 = vadd.f32 %v9505, %v9557
  %v9559 = vpop.f32.mrb[0].mxu0
  %v9560 = vadd.f32 %v9507, %v9559
  %9561 = vdwg.mxu0
  %9562 = vmatprep.subr.bf16.mxu0 %v7347
  %9563 = vmatpush1.bf16.msra.mxu0 %v7346
  %9564 = vmatprep.subr.bf16.mxu0 %v7351
  %9565 = vmatpush1.bf16.msra.mxu0 %v7350
  %9566 = vmatprep.subr.bf16.mxu0 %v7355
  %9567 = vmatpush1.bf16.msra.mxu0 %v7354
  %9568 = vmatprep.subr.bf16.mxu0 %v7359
  %9569 = vmatpush1.bf16.msra.mxu0 %v7358
  %9570 = vmatprep.subr.bf16.mxu0 %v7363
  %9571 = vmatpush1.bf16.msra.mxu0 %v7362
  %9572 = vmatprep.subr.bf16.mxu0 %v7367
  %9573 = vmatpush1.bf16.msra.mxu0 %v7366
  %9574 = vmatprep.subr.bf16.mxu0 %v7371
  %9575 = vmatpush1.bf16.msra.mxu0 %v7370
  %9576 = vmatprep.subr.bf16.mxu0 %v7375
  %9577 = vmatpush1.bf16.msra.mxu0 %v7374
  %9578 = vmatprep.subr.bf16.mxu0 %v7379
  %9579 = vmatpush1.bf16.msra.mxu0 %v7378
  %9580 = vmatprep.subr.bf16.mxu0 %v7383
  %9581 = vmatpush1.bf16.msra.mxu0 %v7382
  %9582 = vmatprep.subr.bf16.mxu0 %v7387
  %9583 = vmatpush1.bf16.msra.mxu0 %v7386
  %9584 = vmatprep.subr.bf16.mxu0 %v7391
  %9585 = vmatpush1.bf16.msra.mxu0 %v7390
  %9586 = vmatprep.subr.bf16.mxu0 %v7395
  %9587 = vmatpush1.bf16.msra.mxu0 %v7394
  %9588 = vmatprep.subr.bf16.mxu0 %v7399
  %9589 = vmatpush1.bf16.msra.mxu0 %v7398
  %9590 = vmatprep.subr.bf16.mxu0 %v7403
  %9591 = vmatpush1.bf16.msra.mxu0 %v7402
  %9592 = vmatprep.subr.bf16.mxu0 %v7407
  %9593 = vmatpush1.bf16.msra.mxu0 %v7406
  %9594 = vmatprep.mubr.bf16.mxu0 %v3251
  %9595 = vmatmul.mubr.bf16.gmra.mrb[0].mxu0 %v3250
  %v9596 = vpop.f32.mrb[0].mxu0
  %v9597 = vadd.f32 %v9544, %v9596
  %v9598 = vpop.f32.mrb[0].mxu0
  %v9599 = vadd.f32 %v9546, %v9598
  %v9600 = vpop.f32.mrb[0].mxu0
  %v9601 = vadd.f32 %v9548, %v9600
  %v9602 = vpop.f32.mrb[0].mxu0
  %v9603 = vadd.f32 %v9550, %v9602
  %9604 = vmatprep.mubr.bf16.mxu0 %v3287
  %9605 = vmatmul.mubr.bf16.gmra.mrb[0].mxu0 %v3286
  %v9606 = vpop.f32.mrb[0].mxu0
  %v9607 = vadd.f32 %v9554, %v9606
  %v9608 = vpop.f32.mrb[0].mxu0
  %v9609 = vadd.f32 %v9556, %v9608
  %v9610 = vpop.f32.mrb[0].mxu0
  %v9611 = vadd.f32 %v9558, %v9610
  %v9612 = vpop.f32.mrb[0].mxu0
  %v9613 = vadd.f32 %v9560, %v9612
  %9614 = vdwg.mxu0
  %9615 = vmatprep.subr.bf16.mxu0 %v7411
  %9616 = vmatpush1.bf16.msra.mxu0 %v7410
  %9617 = vmatprep.subr.bf16.mxu0 %v7415
  %9618 = vmatpush1.bf16.msra.mxu0 %v7414
  %9619 = vmatprep.subr.bf16.mxu0 %v7419
  %9620 = vmatpush1.bf16.msra.mxu0 %v7418
  %9621 = vmatprep.subr.bf16.mxu0 %v7423
  %9622 = vmatpush1.bf16.msra.mxu0 %v7422
  %9623 = vmatprep.subr.bf16.mxu0 %v7427
  %9624 = vmatpush1.bf16.msra.mxu0 %v7426
  %9625 = vmatprep.subr.bf16.mxu0 %v7431
  %9626 = vmatpush1.bf16.msra.mxu0 %v7430
  %9627 = vmatprep.subr.bf16.mxu0 %v7435
  %9628 = vmatpush1.bf16.msra.mxu0 %v7434
  %9629 = vmatprep.subr.bf16.mxu0 %v7439
  %9630 = vmatpush1.bf16.msra.mxu0 %v7438
  %9631 = vmatprep.subr.bf16.mxu0 %v7443
  %9632 = vmatpush1.bf16.msra.mxu0 %v7442
  %9633 = vmatprep.subr.bf16.mxu0 %v7447
  %9634 = vmatpush1.bf16.msra.mxu0 %v7446
  %9635 = vmatprep.subr.bf16.mxu0 %v7451
  %9636 = vmatpush1.bf16.msra.mxu0 %v7450
  %9637 = vmatprep.subr.bf16.mxu0 %v7455
  %9638 = vmatpush1.bf16.msra.mxu0 %v7454
  %9639 = vmatprep.subr.bf16.mxu0 %v7459
  %9640 = vmatpush1.bf16.msra.mxu0 %v7458
  %9641 = vmatprep.subr.bf16.mxu0 %v7463
  %9642 = vmatpush1.bf16.msra.mxu0 %v7462
  %9643 = vmatprep.subr.bf16.mxu0 %v7467
  %9644 = vmatpush1.bf16.msra.mxu0 %v7466
  %9645 = vmatprep.subr.bf16.mxu0 %v7471
  %9646 = vmatpush1.bf16.msra.mxu0 %v7470
  %9647 = vmatprep.mubr.bf16.mxu0 %v3253
  %9648 = vmatmul.mubr.bf16.gmra.mrb[0].mxu0 %v3252
  %v9649 = vpop.f32.mrb[0].mxu0
  %v9650 = vadd.f32 %v9597, %v9649
  %v9651 = vpop.f32.mrb[0].mxu0
  %v9652 = vadd.f32 %v9599, %v9651
  %v9653 = vpop.f32.mrb[0].mxu0
  %v9654 = vadd.f32 %v9601, %v9653
  %v9655 = vpop.f32.mrb[0].mxu0
  %v9656 = vadd.f32 %v9603, %v9655
  %9657 = vmatprep.mubr.bf16.mxu0 %v3289
  %9658 = vmatmul.mubr.bf16.gmra.mrb[0].mxu0 %v3288
  %v9659 = vpop.f32.mrb[0].mxu0
  %v9660 = vadd.f32 %v9607, %v9659
  %v9661 = vpop.f32.mrb[0].mxu0
  %v9662 = vadd.f32 %v9609, %v9661
  %v9663 = vpop.f32.mrb[0].mxu0
  %v9664 = vadd.f32 %v9611, %v9663
  %v9665 = vpop.f32.mrb[0].mxu0
  %v9666 = vadd.f32 %v9613, %v9665
  %9667 = vdwg.mxu0
  %9668 = vmatprep.subr.bf16.mxu0 %v7475
  %9669 = vmatpush1.bf16.msra.mxu0 %v7474
  %9670 = vmatprep.subr.bf16.mxu0 %v7479
  %9671 = vmatpush1.bf16.msra.mxu0 %v7478
  %9672 = vmatprep.subr.bf16.mxu0 %v7483
  %9673 = vmatpush1.bf16.msra.mxu0 %v7482
  %9674 = vmatprep.subr.bf16.mxu0 %v7487
  %9675 = vmatpush1.bf16.msra.mxu0 %v7486
  %9676 = vmatprep.subr.bf16.mxu0 %v7491
  %9677 = vmatpush1.bf16.msra.mxu0 %v7490
  %9678 = vmatprep.subr.bf16.mxu0 %v7495
  %9679 = vmatpush1.bf16.msra.mxu0 %v7494
  %9680 = vmatprep.subr.bf16.mxu0 %v7499
  %9681 = vmatpush1.bf16.msra.mxu0 %v7498
  %9682 = vmatprep.subr.bf16.mxu0 %v7503
  %9683 = vmatpush1.bf16.msra.mxu0 %v7502
  %9684 = vmatprep.subr.bf16.mxu0 %v7507
  %9685 = vmatpush1.bf16.msra.mxu0 %v7506
  %9686 = vmatprep.subr.bf16.mxu0 %v7511
  %9687 = vmatpush1.bf16.msra.mxu0 %v7510
  %9688 = vmatprep.subr.bf16.mxu0 %v7515
  %9689 = vmatpush1.bf16.msra.mxu0 %v7514
  %9690 = vmatprep.subr.bf16.mxu0 %v7519
  %9691 = vmatpush1.bf16.msra.mxu0 %v7518
  %9692 = vmatprep.subr.bf16.mxu0 %v7523
  %9693 = vmatpush1.bf16.msra.mxu0 %v7522
  %9694 = vmatprep.subr.bf16.mxu0 %v7527
  %9695 = vmatpush1.bf16.msra.mxu0 %v7526
  %9696 = vmatprep.subr.bf16.mxu0 %v7531
  %9697 = vmatpush1.bf16.msra.mxu0 %v7530
  %9698 = vmatprep.subr.bf16.mxu0 %v7535
  %9699 = vmatpush1.bf16.msra.mxu0 %v7534
  %9700 = vmatprep.mubr.bf16.mxu0 %v3255
  %9701 = vmatmul.mubr.bf16.gmra.mrb[0].mxu0 %v3254
  %v9702 = vpop.f32.mrb[0].mxu0
  %v9703 = vadd.f32 %v9650, %v9702
  %v9704 = vpop.f32.mrb[0].mxu0
  %v9705 = vadd.f32 %v9652, %v9704
  %v9706 = vpop.f32.mrb[0].mxu0
  %v9707 = vadd.f32 %v9654, %v9706
  %v9708 = vpop.f32.mrb[0].mxu0
  %v9709 = vadd.f32 %v9656, %v9708
  %9710 = vmatprep.mubr.bf16.mxu0 %v3291
  %9711 = vmatmul.mubr.bf16.gmra.mrb[0].mxu0 %v3290
  %v9712 = vpop.f32.mrb[0].mxu0
  %v9713 = vadd.f32 %v9660, %v9712
  %v9714 = vpop.f32.mrb[0].mxu0
  %v9715 = vadd.f32 %v9662, %v9714
  %v9716 = vpop.f32.mrb[0].mxu0
  %v9717 = vadd.f32 %v9664, %v9716
  %v9718 = vpop.f32.mrb[0].mxu0
  %v9719 = vadd.f32 %v9666, %v9718
  %9720 = vdwg.mxu0
  %9721 = vmatprep.subr.bf16.mxu0 %v7539
  %9722 = vmatpush1.bf16.msra.mxu0 %v7538
  %9723 = vmatprep.subr.bf16.mxu0 %v7543
  %9724 = vmatpush1.bf16.msra.mxu0 %v7542
  %9725 = vmatprep.subr.bf16.mxu0 %v7547
  %9726 = vmatpush1.bf16.msra.mxu0 %v7546
  %9727 = vmatprep.subr.bf16.mxu0 %v7551
  %9728 = vmatpush1.bf16.msra.mxu0 %v7550
  %9729 = vmatprep.subr.bf16.mxu0 %v7555
  %9730 = vmatpush1.bf16.msra.mxu0 %v7554
  %9731 = vmatprep.subr.bf16.mxu0 %v7559
  %9732 = vmatpush1.bf16.msra.mxu0 %v7558
  %9733 = vmatprep.subr.bf16.mxu0 %v7563
  %9734 = vmatpush1.bf16.msra.mxu0 %v7562
  %9735 = vmatprep.subr.bf16.mxu0 %v7567
  %9736 = vmatpush1.bf16.msra.mxu0 %v7566
  %9737 = vmatprep.subr.bf16.mxu0 %v7571
  %9738 = vmatpush1.bf16.msra.mxu0 %v7570
  %9739 = vmatprep.subr.bf16.mxu0 %v7575
  %9740 = vmatpush1.bf16.msra.mxu0 %v7574
  %9741 = vmatprep.subr.bf16.mxu0 %v7579
  %9742 = vmatpush1.bf16.msra.mxu0 %v7578
  %9743 = vmatprep.subr.bf16.mxu0 %v7583
  %9744 = vmatpush1.bf16.msra.mxu0 %v7582
  %9745 = vmatprep.subr.bf16.mxu0 %v7587
  %9746 = vmatpush1.bf16.msra.mxu0 %v7586
  %9747 = vmatprep.subr.bf16.mxu0 %v7591
  %9748 = vmatpush1.bf16.msra.mxu0 %v7590
  %9749 = vmatprep.subr.bf16.mxu0 %v7595
  %9750 = vmatpush1.bf16.msra.mxu0 %v7594
  %9751 = vmatprep.subr.bf16.mxu0 %v7599
  %9752 = vmatpush1.bf16.msra.mxu0 %v7598
  %9753 = vmatprep.mubr.bf16.mxu0 %v3257
  %9754 = vmatmul.mubr.bf16.gmra.mrb[0].mxu0 %v3256
  %v9755 = vpop.f32.mrb[0].mxu0
  %v9756 = vadd.f32 %v9703, %v9755
  %v9757 = vpop.f32.mrb[0].mxu0
  %v9758 = vadd.f32 %v9705, %v9757
  %v9759 = vpop.f32.mrb[0].mxu0
  %v9760 = vadd.f32 %v9707, %v9759
  %v9761 = vpop.f32.mrb[0].mxu0
  %v9762 = vadd.f32 %v9709, %v9761
  %9763 = vmatprep.mubr.bf16.mxu0 %v3293
  %9764 = vmatmul.mubr.bf16.gmra.mrb[0].mxu0 %v3292
  %v9765 = vpop.f32.mrb[0].mxu0
  %v9766 = vadd.f32 %v9713, %v9765
  %v9767 = vpop.f32.mrb[0].mxu0
  %v9768 = vadd.f32 %v9715, %v9767
  %v9769 = vpop.f32.mrb[0].mxu0
  %v9770 = vadd.f32 %v9717, %v9769
  %v9771 = vpop.f32.mrb[0].mxu0
  %v9772 = vadd.f32 %v9719, %v9771
  %9773 = vdwg.mxu0
  %9774 = vmatprep.subr.bf16.mxu0 %v7603
  %9775 = vmatpush1.bf16.msra.mxu0 %v7602
  %9776 = vmatprep.subr.bf16.mxu0 %v7607
  %9777 = vmatpush1.bf16.msra.mxu0 %v7606
  %9778 = vmatprep.subr.bf16.mxu0 %v7611
  %9779 = vmatpush1.bf16.msra.mxu0 %v7610
  %9780 = vmatprep.subr.bf16.mxu0 %v7615
  %9781 = vmatpush1.bf16.msra.mxu0 %v7614
  %9782 = vmatprep.subr.bf16.mxu0 %v7619
  %9783 = vmatpush1.bf16.msra.mxu0 %v7618
  %9784 = vmatprep.subr.bf16.mxu0 %v7623
  %9785 = vmatpush1.bf16.msra.mxu0 %v7622
  %9786 = vmatprep.subr.bf16.mxu0 %v7627
  %9787 = vmatpush1.bf16.msra.mxu0 %v7626
  %9788 = vmatprep.subr.bf16.mxu0 %v7631
  %9789 = vmatpush1.bf16.msra.mxu0 %v7630
  %9790 = vmatprep.subr.bf16.mxu0 %v7635
  %9791 = vmatpush1.bf16.msra.mxu0 %v7634
  %9792 = vmatprep.subr.bf16.mxu0 %v7639
  %9793 = vmatpush1.bf16.msra.mxu0 %v7638
  %9794 = vmatprep.subr.bf16.mxu0 %v7643
  %9795 = vmatpush1.bf16.msra.mxu0 %v7642
  %9796 = vmatprep.subr.bf16.mxu0 %v7647
  %9797 = vmatpush1.bf16.msra.mxu0 %v7646
  %9798 = vmatprep.subr.bf16.mxu0 %v7651
  %9799 = vmatpush1.bf16.msra.mxu0 %v7650
  %9800 = vmatprep.subr.bf16.mxu0 %v7655
  %9801 = vmatpush1.bf16.msra.mxu0 %v7654
  %9802 = vmatprep.subr.bf16.mxu0 %v7659
  %9803 = vmatpush1.bf16.msra.mxu0 %v7658
  %9804 = vmatprep.subr.bf16.mxu0 %v7663
  %9805 = vmatpush1.bf16.msra.mxu0 %v7662
  %9806 = vmatprep.mubr.bf16.mxu0 %v3259
  %9807 = vmatmul.mubr.bf16.gmra.mrb[0].mxu0 %v3258
  %v9808 = vpop.f32.mrb[0].mxu0
  %v9809 = vadd.f32 %v9756, %v9808
  %v9810 = vpop.f32.mrb[0].mxu0
  %v9811 = vadd.f32 %v9758, %v9810
  %v9812 = vpop.f32.mrb[0].mxu0
  %v9813 = vadd.f32 %v9760, %v9812
  %v9814 = vpop.f32.mrb[0].mxu0
  %v9815 = vadd.f32 %v9762, %v9814
  %9816 = vmatprep.mubr.bf16.mxu0 %v3295
  %9817 = vmatmul.mubr.bf16.gmra.mrb[0].mxu0 %v3294
  %v9818 = vpop.f32.mrb[0].mxu0
  %v9819 = vadd.f32 %v9766, %v9818
  %v9820 = vpop.f32.mrb[0].mxu0
  %v9821 = vadd.f32 %v9768, %v9820
  %v9822 = vpop.f32.mrb[0].mxu0
  %v9823 = vadd.f32 %v9770, %v9822
  %v9824 = vpop.f32.mrb[0].mxu0
  %v9825 = vadd.f32 %v9772, %v9824
  %9826 = vdwg.mxu0
  %9827 = vmatprep.subr.bf16.mxu0 %v7667
  %9828 = vmatpush1.bf16.msra.mxu0 %v7666
  %9829 = vmatprep.subr.bf16.mxu0 %v7671
  %9830 = vmatpush1.bf16.msra.mxu0 %v7670
  %9831 = vmatprep.subr.bf16.mxu0 %v7675
  %9832 = vmatpush1.bf16.msra.mxu0 %v7674
  %9833 = vmatprep.subr.bf16.mxu0 %v7679
  %9834 = vmatpush1.bf16.msra.mxu0 %v7678
  %9835 = vmatprep.subr.bf16.mxu0 %v7683
  %9836 = vmatpush1.bf16.msra.mxu0 %v7682
  %9837 = vmatprep.subr.bf16.mxu0 %v7687
  %9838 = vmatpush1.bf16.msra.mxu0 %v7686
  %9839 = vmatprep.subr.bf16.mxu0 %v7691
  %9840 = vmatpush1.bf16.msra.mxu0 %v7690
  %9841 = vmatprep.subr.bf16.mxu0 %v7695
  %9842 = vmatpush1.bf16.msra.mxu0 %v7694
  %9843 = vmatprep.subr.bf16.mxu0 %v7699
  %9844 = vmatpush1.bf16.msra.mxu0 %v7698
  %9845 = vmatprep.subr.bf16.mxu0 %v7703
  %9846 = vmatpush1.bf16.msra.mxu0 %v7702
  %9847 = vmatprep.subr.bf16.mxu0 %v7707
  %9848 = vmatpush1.bf16.msra.mxu0 %v7706
  %9849 = vmatprep.subr.bf16.mxu0 %v7711
  %9850 = vmatpush1.bf16.msra.mxu0 %v7710
  %9851 = vmatprep.subr.bf16.mxu0 %v7715
  %9852 = vmatpush1.bf16.msra.mxu0 %v7714
  %9853 = vmatprep.subr.bf16.mxu0 %v7719
  %9854 = vmatpush1.bf16.msra.mxu0 %v7718
  %9855 = vmatprep.subr.bf16.mxu0 %v7723
  %9856 = vmatpush1.bf16.msra.mxu0 %v7722
  %9857 = vmatprep.subr.bf16.mxu0 %v7727
  %9858 = vmatpush1.bf16.msra.mxu0 %v7726
  %9859 = vmatprep.mubr.bf16.mxu0 %v3261
  %9860 = vmatmul.mubr.bf16.gmra.mrb[0].mxu0 %v3260
  %v9861 = vpop.f32.mrb[0].mxu0
  %v9862 = vadd.f32 %v9809, %v9861
  %v9863 = vpop.f32.mrb[0].mxu0
  %v9864 = vadd.f32 %v9811, %v9863
  %v9865 = vpop.f32.mrb[0].mxu0
  %v9866 = vadd.f32 %v9813, %v9865
  %v9867 = vpop.f32.mrb[0].mxu0
  %v9868 = vadd.f32 %v9815, %v9867
  %9869 = vmatprep.mubr.bf16.mxu0 %v3297
  %9870 = vmatmul.mubr.bf16.gmra.mrb[0].mxu0 %v3296
  %v9871 = vpop.f32.mrb[0].mxu0
  %v9872 = vadd.f32 %v9819, %v9871
  %v9873 = vpop.f32.mrb[0].mxu0
  %v9874 = vadd.f32 %v9821, %v9873
  %v9875 = vpop.f32.mrb[0].mxu0
  %v9876 = vadd.f32 %v9823, %v9875
  %v9877 = vpop.f32.mrb[0].mxu0
  %v9878 = vadd.f32 %v9825, %v9877
  %9879 = vdwg.mxu0
  %9880 = vmatprep.subr.bf16.mxu0 %v7731
  %9881 = vmatpush1.bf16.msra.mxu0 %v7730
  %9882 = vmatprep.subr.bf16.mxu0 %v7735
  %9883 = vmatpush1.bf16.msra.mxu0 %v7734
  %9884 = vmatprep.subr.bf16.mxu0 %v7739
  %9885 = vmatpush1.bf16.msra.mxu0 %v7738
  %9886 = vmatprep.subr.bf16.mxu0 %v7743
  %9887 = vmatpush1.bf16.msra.mxu0 %v7742
  %9888 = vmatprep.subr.bf16.mxu0 %v7747
  %9889 = vmatpush1.bf16.msra.mxu0 %v7746
  %9890 = vmatprep.subr.bf16.mxu0 %v7751
  %9891 = vmatpush1.bf16.msra.mxu0 %v7750
  %9892 = vmatprep.subr.bf16.mxu0 %v7755
  %9893 = vmatpush1.bf16.msra.mxu0 %v7754
  %9894 = vmatprep.subr.bf16.mxu0 %v7759
  %9895 = vmatpush1.bf16.msra.mxu0 %v7758
  %9896 = vmatprep.subr.bf16.mxu0 %v7763
  %9897 = vmatpush1.bf16.msra.mxu0 %v7762
  %9898 = vmatprep.subr.bf16.mxu0 %v7767
  %9899 = vmatpush1.bf16.msra.mxu0 %v7766
  %9900 = vmatprep.subr.bf16.mxu0 %v7771
  %9901 = vmatpush1.bf16.msra.mxu0 %v7770
  %9902 = vmatprep.subr.bf16.mxu0 %v7775
  %9903 = vmatpush1.bf16.msra.mxu0 %v7774
  %9904 = vmatprep.subr.bf16.mxu0 %v7779
  %9905 = vmatpush1.bf16.msra.mxu0 %v7778
  %9906 = vmatprep.subr.bf16.mxu0 %v7783
  %9907 = vmatpush1.bf16.msra.mxu0 %v7782
  %9908 = vmatprep.subr.bf16.mxu0 %v7787
  %9909 = vmatpush1.bf16.msra.mxu0 %v7786
  %9910 = vmatprep.subr.bf16.mxu0 %v7791
  %9911 = vmatpush1.bf16.msra.mxu0 %v7790
  %9912 = vmatprep.mubr.bf16.mxu0 %v3263
  %9913 = vmatmul.mubr.bf16.gmra.mrb[0].mxu0 %v3262
  %v9914 = vpop.f32.mrb[0].mxu0
  %v9915 = vadd.f32 %v9862, %v9914
  %v9916 = vpop.f32.mrb[0].mxu0
  %v9917 = vadd.f32 %v9864, %v9916
  %v9918 = vpop.f32.mrb[0].mxu0
  %v9919 = vadd.f32 %v9866, %v9918
  %v9920 = vpop.f32.mrb[0].mxu0
  %v9921 = vadd.f32 %v9868, %v9920
  %9922 = vmatprep.mubr.bf16.mxu0 %v3299
  %9923 = vmatmul.mubr.bf16.gmra.mrb[0].mxu0 %v3298
  %v9924 = vpop.f32.mrb[0].mxu0
  %v9925 = vadd.f32 %v9872, %v9924
  %v9926 = vpop.f32.mrb[0].mxu0
  %v9927 = vadd.f32 %v9874, %v9926
  %v9928 = vpop.f32.mrb[0].mxu0
  %v9929 = vadd.f32 %v9876, %v9928
  %v9930 = vpop.f32.mrb[0].mxu0
  %v9931 = vadd.f32 %v9878, %v9930
  %9932 = vdwg.mxu0
  %9933 = vmatprep.subr.bf16.mxu0 %v7795
  %9934 = vmatpush1.bf16.msra.mxu0 %v7794
  %9935 = vmatprep.subr.bf16.mxu0 %v7799
  %9936 = vmatpush1.bf16.msra.mxu0 %v7798
  %9937 = vmatprep.subr.bf16.mxu0 %v7803
  %9938 = vmatpush1.bf16.msra.mxu0 %v7802
  %9939 = vmatprep.subr.bf16.mxu0 %v7807
  %9940 = vmatpush1.bf16.msra.mxu0 %v7806
  %9941 = vmatprep.subr.bf16.mxu0 %v7811
  %9942 = vmatpush1.bf16.msra.mxu0 %v7810
  %9943 = vmatprep.subr.bf16.mxu0 %v7815
  %9944 = vmatpush1.bf16.msra.mxu0 %v7814
  %9945 = vmatprep.subr.bf16.mxu0 %v7819
  %9946 = vmatpush1.bf16.msra.mxu0 %v7818
  %9947 = vmatprep.subr.bf16.mxu0 %v7823
  %9948 = vmatpush1.bf16.msra.mxu0 %v7822
  %9949 = vmatprep.subr.bf16.mxu0 %v7827
  %9950 = vmatpush1.bf16.msra.mxu0 %v7826
  %9951 = vmatprep.subr.bf16.mxu0 %v7831
  %9952 = vmatpush1.bf16.msra.mxu0 %v7830
  %9953 = vmatprep.subr.bf16.mxu0 %v7835
  %9954 = vmatpush1.bf16.msra.mxu0 %v7834
  %9955 = vmatprep.subr.bf16.mxu0 %v7839
  %9956 = vmatpush1.bf16.msra.mxu0 %v7838
  %9957 = vmatprep.subr.bf16.mxu0 %v7843
  %9958 = vmatpush1.bf16.msra.mxu0 %v7842
  %9959 = vmatprep.subr.bf16.mxu0 %v7847
  %9960 = vmatpush1.bf16.msra.mxu0 %v7846
  %9961 = vmatprep.subr.bf16.mxu0 %v7851
  %9962 = vmatpush1.bf16.msra.mxu0 %v7850
  %9963 = vmatprep.subr.bf16.mxu0 %v7855
  %9964 = vmatpush1.bf16.msra.mxu0 %v7854
  %9965 = vmatprep.mubr.bf16.mxu0 %v3265
  %9966 = vmatmul.mubr.bf16.gmra.mrb[0].mxu0 %v3264
  %v9967 = vpop.f32.mrb[0].mxu0
  %v9968 = vadd.f32 %v9915, %v9967
  %v9969 = vpop.f32.mrb[0].mxu0
  %v9970 = vadd.f32 %v9917, %v9969
  %v9971 = vpop.f32.mrb[0].mxu0
  %v9972 = vadd.f32 %v9919, %v9971
  %v9973 = vpop.f32.mrb[0].mxu0
  %v9974 = vadd.f32 %v9921, %v9973
  %9975 = vmatprep.mubr.bf16.mxu0 %v3301
  %9976 = vmatmul.mubr.bf16.gmra.mrb[0].mxu0 %v3300
  %v9977 = vpop.f32.mrb[0].mxu0
  %v9978 = vadd.f32 %v9925, %v9977
  %v9979 = vpop.f32.mrb[0].mxu0
  %v9980 = vadd.f32 %v9927, %v9979
  %v9981 = vpop.f32.mrb[0].mxu0
  %v9982 = vadd.f32 %v9929, %v9981
  %v9983 = vpop.f32.mrb[0].mxu0
  %v9984 = vadd.f32 %v9931, %v9983
  %9985 = vdwg.mxu0
  %9986 = vmatprep.subr.bf16.mxu0 %v7859
  %9987 = vmatpush1.bf16.msra.mxu0 %v7858
  %9988 = vmatprep.subr.bf16.mxu0 %v7863
  %9989 = vmatpush1.bf16.msra.mxu0 %v7862
  %9990 = vmatprep.subr.bf16.mxu0 %v7867
  %9991 = vmatpush1.bf16.msra.mxu0 %v7866
  %9992 = vmatprep.subr.bf16.mxu0 %v7871
  %9993 = vmatpush1.bf16.msra.mxu0 %v7870
  %9994 = vmatprep.subr.bf16.mxu0 %v7875
  %9995 = vmatpush1.bf16.msra.mxu0 %v7874
  %9996 = vmatprep.subr.bf16.mxu0 %v7879
  %9997 = vmatpush1.bf16.msra.mxu0 %v7878
  %9998 = vmatprep.subr.bf16.mxu0 %v7883
  %9999 = vmatpush1.bf16.msra.mxu0 %v7882
  %10000 = vmatprep.subr.bf16.mxu0 %v7887
  %10001 = vmatpush1.bf16.msra.mxu0 %v7886
  %10002 = vmatprep.subr.bf16.mxu0 %v7891
  %10003 = vmatpush1.bf16.msra.mxu0 %v7890
  %10004 = vmatprep.subr.bf16.mxu0 %v7895
  %10005 = vmatpush1.bf16.msra.mxu0 %v7894
  %10006 = vmatprep.subr.bf16.mxu0 %v7899
  %10007 = vmatpush1.bf16.msra.mxu0 %v7898
  %10008 = vmatprep.subr.bf16.mxu0 %v7903
  %10009 = vmatpush1.bf16.msra.mxu0 %v7902
  %10010 = vmatprep.subr.bf16.mxu0 %v7907
  %10011 = vmatpush1.bf16.msra.mxu0 %v7906
  %10012 = vmatprep.subr.bf16.mxu0 %v7911
  %10013 = vmatpush1.bf16.msra.mxu0 %v7910
  %10014 = vmatprep.subr.bf16.mxu0 %v7915
  %10015 = vmatpush1.bf16.msra.mxu0 %v7914
  %10016 = vmatprep.subr.bf16.mxu0 %v7919
  %10017 = vmatpush1.bf16.msra.mxu0 %v7918
  %10018 = vmatprep.mubr.bf16.mxu0 %v3267
  %10019 = vmatmul.mubr.bf16.gmra.mrb[0].mxu0 %v3266
  %v10020 = vpop.f32.mrb[0].mxu0
  %v10021 = vadd.f32 %v9968, %v10020
  %v10022 = vpop.f32.mrb[0].mxu0
  %v10023 = vadd.f32 %v9970, %v10022
  %v10024 = vpop.f32.mrb[0].mxu0
  %v10025 = vadd.f32 %v9972, %v10024
  %v10026 = vpop.f32.mrb[0].mxu0
  %v10027 = vadd.f32 %v9974, %v10026
  %10028 = vmatprep.mubr.bf16.mxu0 %v3303
  %10029 = vmatmul.mubr.bf16.gmra.mrb[0].mxu0 %v3302
  %v10030 = vpop.f32.mrb[0].mxu0
  %v10031 = vadd.f32 %v9978, %v10030
  %v10032 = vpop.f32.mrb[0].mxu0
  %v10033 = vadd.f32 %v9980, %v10032
  %v10034 = vpop.f32.mrb[0].mxu0
  %v10035 = vadd.f32 %v9982, %v10034
  %v10036 = vpop.f32.mrb[0].mxu0
  %v10037 = vadd.f32 %v9984, %v10036
  %10038 = vdwg.mxu0
  %10039 = vmatprep.subr.bf16.mxu0 %v7923
  %10040 = vmatpush1.bf16.msra.mxu0 %v7922
  %10041 = vmatprep.subr.bf16.mxu0 %v7927
  %10042 = vmatpush1.bf16.msra.mxu0 %v7926
  %10043 = vmatprep.subr.bf16.mxu0 %v7931
  %10044 = vmatpush1.bf16.msra.mxu0 %v7930
  %10045 = vmatprep.subr.bf16.mxu0 %v7935
  %10046 = vmatpush1.bf16.msra.mxu0 %v7934
  %10047 = vmatprep.subr.bf16.mxu0 %v7939
  %10048 = vmatpush1.bf16.msra.mxu0 %v7938
  %10049 = vmatprep.subr.bf16.mxu0 %v7943
  %10050 = vmatpush1.bf16.msra.mxu0 %v7942
  %10051 = vmatprep.subr.bf16.mxu0 %v7947
  %10052 = vmatpush1.bf16.msra.mxu0 %v7946
  %10053 = vmatprep.subr.bf16.mxu0 %v7951
  %10054 = vmatpush1.bf16.msra.mxu0 %v7950
  %10055 = vmatprep.subr.bf16.mxu0 %v7955
  %10056 = vmatpush1.bf16.msra.mxu0 %v7954
  %10057 = vmatprep.subr.bf16.mxu0 %v7959
  %10058 = vmatpush1.bf16.msra.mxu0 %v7958
  %10059 = vmatprep.subr.bf16.mxu0 %v7963
  %10060 = vmatpush1.bf16.msra.mxu0 %v7962
  %10061 = vmatprep.subr.bf16.mxu0 %v7967
  %10062 = vmatpush1.bf16.msra.mxu0 %v7966
  %10063 = vmatprep.subr.bf16.mxu0 %v7971
  %10064 = vmatpush1.bf16.msra.mxu0 %v7970
  %10065 = vmatprep.subr.bf16.mxu0 %v7975
  %10066 = vmatpush1.bf16.msra.mxu0 %v7974
  %10067 = vmatprep.subr.bf16.mxu0 %v7979
  %10068 = vmatpush1.bf16.msra.mxu0 %v7978
  %10069 = vmatprep.subr.bf16.mxu0 %v7983
  %10070 = vmatpush1.bf16.msra.mxu0 %v7982
  %10071 = vmatprep.mubr.bf16.mxu0 %v3269
  %10072 = vmatmul.mubr.bf16.gmra.mrb[0].mxu0 %v3268
  %v10073 = vpop.f32.mrb[0].mxu0
  %v10074 = vadd.f32 %v10021, %v10073
  %v10075 = vpop.f32.mrb[0].mxu0
  %v10076 = vadd.f32 %v10023, %v10075
  %v10077 = vpop.f32.mrb[0].mxu0
  %v10078 = vadd.f32 %v10025, %v10077
  %v10079 = vpop.f32.mrb[0].mxu0
  %v10080 = vadd.f32 %v10027, %v10079
  %10081 = vmatprep.mubr.bf16.mxu0 %v3305
  %10082 = vmatmul.mubr.bf16.gmra.mrb[0].mxu0 %v3304
  %v10083 = vpop.f32.mrb[0].mxu0
  %v10084 = vadd.f32 %v10031, %v10083
  %v10085 = vpop.f32.mrb[0].mxu0
  %v10086 = vadd.f32 %v10033, %v10085
  %v10087 = vpop.f32.mrb[0].mxu0
  %v10088 = vadd.f32 %v10035, %v10087
  %v10089 = vpop.f32.mrb[0].mxu0
  %v10090 = vadd.f32 %v10037, %v10089
  %10091 = vdwg.mxu0
  %10092 = vmatprep.subr.bf16.mxu0 %v6837
  %10093 = vmatpush1.bf16.msra.mxu0 %v6836
  %10094 = vmatprep.subr.bf16.mxu0 %v6841
  %10095 = vmatpush1.bf16.msra.mxu0 %v6840
  %10096 = vmatprep.subr.bf16.mxu0 %v6845
  %10097 = vmatpush1.bf16.msra.mxu0 %v6844
  %10098 = vmatprep.subr.bf16.mxu0 %v6849
  %10099 = vmatpush1.bf16.msra.mxu0 %v6848
  %10100 = vmatprep.subr.bf16.mxu0 %v6853
  %10101 = vmatpush1.bf16.msra.mxu0 %v6852
  %10102 = vmatprep.subr.bf16.mxu0 %v6857
  %10103 = vmatpush1.bf16.msra.mxu0 %v6856
  %10104 = vmatprep.subr.bf16.mxu0 %v6861
  %10105 = vmatpush1.bf16.msra.mxu0 %v6860
  %10106 = vmatprep.subr.bf16.mxu0 %v6865
  %10107 = vmatpush1.bf16.msra.mxu0 %v6864
  %10108 = vmatprep.subr.bf16.mxu0 %v6869
  %10109 = vmatpush1.bf16.msra.mxu0 %v6868
  %10110 = vmatprep.subr.bf16.mxu0 %v6873
  %10111 = vmatpush1.bf16.msra.mxu0 %v6872
  %10112 = vmatprep.subr.bf16.mxu0 %v6877
  %10113 = vmatpush1.bf16.msra.mxu0 %v6876
  %10114 = vmatprep.subr.bf16.mxu0 %v6881
  %10115 = vmatpush1.bf16.msra.mxu0 %v6880
  %10116 = vmatprep.subr.bf16.mxu0 %v6885
  %10117 = vmatpush1.bf16.msra.mxu0 %v6884
  %10118 = vmatprep.subr.bf16.mxu0 %v6889
  %10119 = vmatpush1.bf16.msra.mxu0 %v6888
  %10120 = vmatprep.subr.bf16.mxu0 %v6893
  %10121 = vmatpush1.bf16.msra.mxu0 %v6892
  %10122 = vmatprep.subr.bf16.mxu0 %v6897
  %10123 = vmatpush1.bf16.msra.mxu0 %v6896
  %10124 = vmatprep.mubr.bf16.mxu0 %v3235
  %10125 = vmatmul.mubr.bf16.gmra.mrb[0].mxu0 %v3234
  %v10126 = vpop.f32.mrb[0].mxu0
  %v10127 = vadd.f32 %v3009, %v10126
  %v10128 = vpop.f32.mrb[0].mxu0
  %v10129 = vadd.f32 %v3013, %v10128
  %v10130 = vpop.f32.mrb[0].mxu0
  %v10131 = vadd.f32 %v3009, %v10130
  %v10132 = vpop.f32.mrb[0].mxu0
  %v10133 = vadd.f32 %v3013, %v10132
  %10134 = vmatprep.mubr.bf16.mxu0 %v3271
  %10135 = vmatmul.mubr.bf16.gmra.mrb[0].mxu0 %v3270
  %v10136 = vpop.f32.mrb[0].mxu0
  %v10137 = vadd.f32 %v3009, %v10136
  %v10138 = vpop.f32.mrb[0].mxu0
  %v10139 = vadd.f32 %v3013, %v10138
  %v10140 = vpop.f32.mrb[0].mxu0
  %v10141 = vadd.f32 %v3009, %v10140
  %v10142 = vpop.f32.mrb[0].mxu0
  %v10143 = vadd.f32 %v3013, %v10142
  %10144 = vdwg.mxu0
  %10145 = vmatprep.subr.bf16.mxu0 %v6901
  %10146 = vmatpush1.bf16.msra.mxu0 %v6900
  %10147 = vmatprep.subr.bf16.mxu0 %v6905
  %10148 = vmatpush1.bf16.msra.mxu0 %v6904
  %10149 = vmatprep.subr.bf16.mxu0 %v6909
  %10150 = vmatpush1.bf16.msra.mxu0 %v6908
  %10151 = vmatprep.subr.bf16.mxu0 %v6913
  %10152 = vmatpush1.bf16.msra.mxu0 %v6912
  %10153 = vmatprep.subr.bf16.mxu0 %v6917
  %10154 = vmatpush1.bf16.msra.mxu0 %v6916
  %10155 = vmatprep.subr.bf16.mxu0 %v6921
  %10156 = vmatpush1.bf16.msra.mxu0 %v6920
  %10157 = vmatprep.subr.bf16.mxu0 %v6925
  %10158 = vmatpush1.bf16.msra.mxu0 %v6924
  %10159 = vmatprep.subr.bf16.mxu0 %v6929
  %10160 = vmatpush1.bf16.msra.mxu0 %v6928
  %10161 = vmatprep.subr.bf16.mxu0 %v6933
  %10162 = vmatpush1.bf16.msra.mxu0 %v6932
  %10163 = vmatprep.subr.bf16.mxu0 %v6937
  %10164 = vmatpush1.bf16.msra.mxu0 %v6936
  %10165 = vmatprep.subr.bf16.mxu0 %v6941
  %10166 = vmatpush1.bf16.msra.mxu0 %v6940
  %10167 = vmatprep.subr.bf16.mxu0 %v6945
  %10168 = vmatpush1.bf16.msra.mxu0 %v6944
  %10169 = vmatprep.subr.bf16.mxu0 %v6949
  %10170 = vmatpush1.bf16.msra.mxu0 %v6948
  %10171 = vmatprep.subr.bf16.mxu0 %v6953
  %10172 = vmatpush1.bf16.msra.mxu0 %v6952
  %10173 = vmatprep.subr.bf16.mxu0 %v6957
  %10174 = vmatpush1.bf16.msra.mxu0 %v6956
  %10175 = vmatprep.subr.bf16.mxu0 %v6961
  %10176 = vmatpush1.bf16.msra.mxu0 %v6960
  %10177 = vmatprep.mubr.bf16.mxu0 %v3237
  %10178 = vmatmul.mubr.bf16.gmra.mrb[0].mxu0 %v3236
  %v10179 = vpop.f32.mrb[0].mxu0
  %v10180 = vadd.f32 %v10127, %v10179
  %v10181 = vpop.f32.mrb[0].mxu0
  %v10182 = vadd.f32 %v10129, %v10181
  %v10183 = vpop.f32.mrb[0].mxu0
  %v10184 = vadd.f32 %v10131, %v10183
  %v10185 = vpop.f32.mrb[0].mxu0
  %v10186 = vadd.f32 %v10133, %v10185
  %10187 = vmatprep.mubr.bf16.mxu0 %v3273
  %10188 = vmatmul.mubr.bf16.gmra.mrb[0].mxu0 %v3272
  %v10189 = vpop.f32.mrb[0].mxu0
  %v10190 = vadd.f32 %v10137, %v10189
  %v10191 = vpop.f32.mrb[0].mxu0
  %v10192 = vadd.f32 %v10139, %v10191
  %v10193 = vpop.f32.mrb[0].mxu0
  %v10194 = vadd.f32 %v10141, %v10193
  %v10195 = vpop.f32.mrb[0].mxu0
  %v10196 = vadd.f32 %v10143, %v10195
  %10197 = vdwg.mxu0
  %10198 = vmatprep.subr.bf16.mxu0 %v6965
  %10199 = vmatpush1.bf16.msra.mxu0 %v6964
  %10200 = vmatprep.subr.bf16.mxu0 %v6969
  %10201 = vmatpush1.bf16.msra.mxu0 %v6968
  %10202 = vmatprep.subr.bf16.mxu0 %v6973
  %10203 = vmatpush1.bf16.msra.mxu0 %v6972
  %10204 = vmatprep.subr.bf16.mxu0 %v6977
  %10205 = vmatpush1.bf16.msra.mxu0 %v6976
  %10206 = vmatprep.subr.bf16.mxu0 %v6981
  %10207 = vmatpush1.bf16.msra.mxu0 %v6980
  %10208 = vmatprep.subr.bf16.mxu0 %v6985
  %10209 = vmatpush1.bf16.msra.mxu0 %v6984
  %10210 = vmatprep.subr.bf16.mxu0 %v6989
  %10211 = vmatpush1.bf16.msra.mxu0 %v6988
  %10212 = vmatprep.subr.bf16.mxu0 %v6993
  %10213 = vmatpush1.bf16.msra.mxu0 %v6992
  %10214 = vmatprep.subr.bf16.mxu0 %v6997
  %10215 = vmatpush1.bf16.msra.mxu0 %v6996
  %10216 = vmatprep.subr.bf16.mxu0 %v7001
  %10217 = vmatpush1.bf16.msra.mxu0 %v7000
  %10218 = vmatprep.subr.bf16.mxu0 %v7005
  %10219 = vmatpush1.bf16.msra.mxu0 %v7004
  %10220 = vmatprep.subr.bf16.mxu0 %v7009
  %10221 = vmatpush1.bf16.msra.mxu0 %v7008
  %10222 = vmatprep.subr.bf16.mxu0 %v7013
  %10223 = vmatpush1.bf16.msra.mxu0 %v7012
  %10224 = vmatprep.subr.bf16.mxu0 %v7017
  %10225 = vmatpush1.bf16.msra.mxu0 %v7016
  %10226 = vmatprep.subr.bf16.mxu0 %v7021
  %10227 = vmatpush1.bf16.msra.mxu0 %v7020
  %10228 = vmatprep.subr.bf16.mxu0 %v7025
  %10229 = vmatpush1.bf16.msra.mxu0 %v7024
  %10230 = vmatprep.mubr.bf16.mxu0 %v3239
  %10231 = vmatmul.mubr.bf16.gmra.mrb[0].mxu0 %v3238
  %v10232 = vpop.f32.mrb[0].mxu0
  %v10233 = vadd.f32 %v10180, %v10232
  %v10234 = vpop.f32.mrb[0].mxu0
  %v10235 = vadd.f32 %v10182, %v10234
  %v10236 = vpop.f32.mrb[0].mxu0
  %v10237 = vadd.f32 %v10184, %v10236
  %v10238 = vpop.f32.mrb[0].mxu0
  %v10239 = vadd.f32 %v10186, %v10238
  %10240 = vmatprep.mubr.bf16.mxu0 %v3275
  %10241 = vmatmul.mubr.bf16.gmra.mrb[0].mxu0 %v3274
  %v10242 = vpop.f32.mrb[0].mxu0
  %v10243 = vadd.f32 %v10190, %v10242
  %v10244 = vpop.f32.mrb[0].mxu0
  %v10245 = vadd.f32 %v10192, %v10244
  %v10246 = vpop.f32.mrb[0].mxu0
  %v10247 = vadd.f32 %v10194, %v10246
  %v10248 = vpop.f32.mrb[0].mxu0
  %v10249 = vadd.f32 %v10196, %v10248
  %10250 = vdwg.mxu0
  %10251 = vmatprep.subr.bf16.mxu0 %v7029
  %10252 = vmatpush1.bf16.msra.mxu0 %v7028
  %10253 = vmatprep.subr.bf16.mxu0 %v7033
  %10254 = vmatpush1.bf16.msra.mxu0 %v7032
  %10255 = vmatprep.subr.bf16.mxu0 %v7037
  %10256 = vmatpush1.bf16.msra.mxu0 %v7036
  %10257 = vmatprep.subr.bf16.mxu0 %v7041
  %10258 = vmatpush1.bf16.msra.mxu0 %v7040
  %10259 = vmatprep.subr.bf16.mxu0 %v7045
  %10260 = vmatpush1.bf16.msra.mxu0 %v7044
  %10261 = vmatprep.subr.bf16.mxu0 %v7049
  %10262 = vmatpush1.bf16.msra.mxu0 %v7048
  %10263 = vmatprep.subr.bf16.mxu0 %v7053
  %10264 = vmatpush1.bf16.msra.mxu0 %v7052
  %10265 = vmatprep.subr.bf16.mxu0 %v7057
  %10266 = vmatpush1.bf16.msra.mxu0 %v7056
  %10267 = vmatprep.subr.bf16.mxu0 %v7061
  %10268 = vmatpush1.bf16.msra.mxu0 %v7060
  %10269 = vmatprep.subr.bf16.mxu0 %v7065
  %10270 = vmatpush1.bf16.msra.mxu0 %v7064
  %10271 = vmatprep.subr.bf16.mxu0 %v7069
  %10272 = vmatpush1.bf16.msra.mxu0 %v7068
  %10273 = vmatprep.subr.bf16.mxu0 %v7073
  %10274 = vmatpush1.bf16.msra.mxu0 %v7072
  %10275 = vmatprep.subr.bf16.mxu0 %v7077
  %10276 = vmatpush1.bf16.msra.mxu0 %v7076
  %10277 = vmatprep.subr.bf16.mxu0 %v7081
  %10278 = vmatpush1.bf16.msra.mxu0 %v7080
  %10279 = vmatprep.subr.bf16.mxu0 %v7085
  %10280 = vmatpush1.bf16.msra.mxu0 %v7084
  %10281 = vmatprep.subr.bf16.mxu0 %v7089
  %10282 = vmatpush1.bf16.msra.mxu0 %v7088
  %10283 = vmatprep.mubr.bf16.mxu0 %v3241
  %10284 = vmatmul.mubr.bf16.gmra.mrb[0].mxu0 %v3240
  %v10285 = vpop.f32.mrb[0].mxu0
  %v10286 = vadd.f32 %v10233, %v10285
  %v10287 = vpop.f32.mrb[0].mxu0
  %v10288 = vadd.f32 %v10235, %v10287
  %v10289 = vpop.f32.mrb[0].mxu0
  %v10290 = vadd.f32 %v10237, %v10289
  %v10291 = vpop.f32.mrb[0].mxu0
  %v10292 = vadd.f32 %v10239, %v10291
  %10293 = vmatprep.mubr.bf16.mxu0 %v3277
  %10294 = vmatmul.mubr.bf16.gmra.mrb[0].mxu0 %v3276
  %v10295 = vpop.f32.mrb[0].mxu0
  %v10296 = vadd.f32 %v10243, %v10295
  %v10297 = vpop.f32.mrb[0].mxu0
  %v10298 = vadd.f32 %v10245, %v10297
  %v10299 = vpop.f32.mrb[0].mxu0
  %v10300 = vadd.f32 %v10247, %v10299
  %v10301 = vpop.f32.mrb[0].mxu0
  %v10302 = vadd.f32 %v10249, %v10301
  %10303 = vdwg.mxu0
  %10304 = vmatprep.subr.bf16.mxu0 %v7093
  %10305 = vmatpush1.bf16.msra.mxu0 %v7092
  %10306 = vmatprep.subr.bf16.mxu0 %v7097
  %10307 = vmatpush1.bf16.msra.mxu0 %v7096
  %10308 = vmatprep.subr.bf16.mxu0 %v7101
  %10309 = vmatpush1.bf16.msra.mxu0 %v7100
  %10310 = vmatprep.subr.bf16.mxu0 %v7105
  %10311 = vmatpush1.bf16.msra.mxu0 %v7104
  %10312 = vmatprep.subr.bf16.mxu0 %v7109
  %10313 = vmatpush1.bf16.msra.mxu0 %v7108
  %10314 = vmatprep.subr.bf16.mxu0 %v7113
  %10315 = vmatpush1.bf16.msra.mxu0 %v7112
  %10316 = vmatprep.subr.bf16.mxu0 %v7117
  %10317 = vmatpush1.bf16.msra.mxu0 %v7116
  %10318 = vmatprep.subr.bf16.mxu0 %v7121
  %10319 = vmatpush1.bf16.msra.mxu0 %v7120
  %10320 = vmatprep.subr.bf16.mxu0 %v7125
  %10321 = vmatpush1.bf16.msra.mxu0 %v7124
  %10322 = vmatprep.subr.bf16.mxu0 %v7129
  %10323 = vmatpush1.bf16.msra.mxu0 %v7128
  %10324 = vmatprep.subr.bf16.mxu0 %v7133
  %10325 = vmatpush1.bf16.msra.mxu0 %v7132
  %10326 = vmatprep.subr.bf16.mxu0 %v7137
  %10327 = vmatpush1.bf16.msra.mxu0 %v7136
  %10328 = vmatprep.subr.bf16.mxu0 %v7141
  %10329 = vmatpush1.bf16.msra.mxu0 %v7140
  %10330 = vmatprep.subr.bf16.mxu0 %v7145
  %10331 = vmatpush1.bf16.msra.mxu0 %v7144
  %10332 = vmatprep.subr.bf16.mxu0 %v7149
  %10333 = vmatpush1.bf16.msra.mxu0 %v7148
  %10334 = vmatprep.subr.bf16.mxu0 %v7153
  %10335 = vmatpush1.bf16.msra.mxu0 %v7152
  %10336 = vmatprep.mubr.bf16.mxu0 %v3243
  %10337 = vmatmul.mubr.bf16.gmra.mrb[0].mxu0 %v3242
  %v10338 = vpop.f32.mrb[0].mxu0
  %v10339 = vadd.f32 %v10286, %v10338
  %v10340 = vpop.f32.mrb[0].mxu0
  %v10341 = vadd.f32 %v10288, %v10340
  %v10342 = vpop.f32.mrb[0].mxu0
  %v10343 = vadd.f32 %v10290, %v10342
  %v10344 = vpop.f32.mrb[0].mxu0
  %v10345 = vadd.f32 %v10292, %v10344
  %10346 = vmatprep.mubr.bf16.mxu0 %v3279
  %10347 = vmatmul.mubr.bf16.gmra.mrb[0].mxu0 %v3278
  %v10348 = vpop.f32.mrb[0].mxu0
  %v10349 = vadd.f32 %v10296, %v10348
  %v10350 = vpop.f32.mrb[0].mxu0
  %v10351 = vadd.f32 %v10298, %v10350
  %v10352 = vpop.f32.mrb[0].mxu0
  %v10353 = vadd.f32 %v10300, %v10352
  %v10354 = vpop.f32.mrb[0].mxu0
  %v10355 = vadd.f32 %v10302, %v10354
  %10356 = vdwg.mxu0
  %10357 = vmatprep.subr.bf16.mxu0 %v7157
  %10358 = vmatpush1.bf16.msra.mxu0 %v7156
  %10359 = vmatprep.subr.bf16.mxu0 %v7161
  %10360 = vmatpush1.bf16.msra.mxu0 %v7160
  %10361 = vmatprep.subr.bf16.mxu0 %v7165
  %10362 = vmatpush1.bf16.msra.mxu0 %v7164
  %10363 = vmatprep.subr.bf16.mxu0 %v7169
  %10364 = vmatpush1.bf16.msra.mxu0 %v7168
  %10365 = vmatprep.subr.bf16.mxu0 %v7173
  %10366 = vmatpush1.bf16.msra.mxu0 %v7172
  %10367 = vmatprep.subr.bf16.mxu0 %v7177
  %10368 = vmatpush1.bf16.msra.mxu0 %v7176
  %10369 = vmatprep.subr.bf16.mxu0 %v7181
  %10370 = vmatpush1.bf16.msra.mxu0 %v7180
  %10371 = vmatprep.subr.bf16.mxu0 %v7185
  %10372 = vmatpush1.bf16.msra.mxu0 %v7184
  %10373 = vmatprep.subr.bf16.mxu0 %v7189
  %10374 = vmatpush1.bf16.msra.mxu0 %v7188
  %10375 = vmatprep.subr.bf16.mxu0 %v7193
  %10376 = vmatpush1.bf16.msra.mxu0 %v7192
  %10377 = vmatprep.subr.bf16.mxu0 %v7197
  %10378 = vmatpush1.bf16.msra.mxu0 %v7196
  %10379 = vmatprep.subr.bf16.mxu0 %v7201
  %10380 = vmatpush1.bf16.msra.mxu0 %v7200
  %10381 = vmatprep.subr.bf16.mxu0 %v7205
  %10382 = vmatpush1.bf16.msra.mxu0 %v7204
  %10383 = vmatprep.subr.bf16.mxu0 %v7209
  %10384 = vmatpush1.bf16.msra.mxu0 %v7208
  %10385 = vmatprep.subr.bf16.mxu0 %v7213
  %10386 = vmatpush1.bf16.msra.mxu0 %v7212
  %10387 = vmatprep.subr.bf16.mxu0 %v7217
  %10388 = vmatpush1.bf16.msra.mxu0 %v7216
  %10389 = vmatprep.mubr.bf16.mxu0 %v3245
  %10390 = vmatmul.mubr.bf16.gmra.mrb[0].mxu0 %v3244
  %v10391 = vpop.f32.mrb[0].mxu0
  %v10392 = vadd.f32 %v10339, %v10391
  %v10393 = vpop.f32.mrb[0].mxu0
  %v10394 = vadd.f32 %v10341, %v10393
  %v10395 = vpop.f32.mrb[0].mxu0
  %v10396 = vadd.f32 %v10343, %v10395
  %v10397 = vpop.f32.mrb[0].mxu0
  %v10398 = vadd.f32 %v10345, %v10397
  %10399 = vmatprep.mubr.bf16.mxu0 %v3281
  %10400 = vmatmul.mubr.bf16.gmra.mrb[0].mxu0 %v3280
  %v10401 = vpop.f32.mrb[0].mxu0
  %v10402 = vadd.f32 %v10349, %v10401
  %v10403 = vpop.f32.mrb[0].mxu0
  %v10404 = vadd.f32 %v10351, %v10403
  %v10405 = vpop.f32.mrb[0].mxu0
  %v10406 = vadd.f32 %v10353, %v10405
  %v10407 = vpop.f32.mrb[0].mxu0
  %v10408 = vadd.f32 %v10355, %v10407
  %10409 = vdwg.mxu0
  %10410 = vmatprep.subr.bf16.mxu0 %v7221
  %10411 = vmatpush1.bf16.msra.mxu0 %v7220
  %10412 = vmatprep.subr.bf16.mxu0 %v7225
  %10413 = vmatpush1.bf16.msra.mxu0 %v7224
  %10414 = vmatprep.subr.bf16.mxu0 %v7229
  %10415 = vmatpush1.bf16.msra.mxu0 %v7228
  %10416 = vmatprep.subr.bf16.mxu0 %v7233
  %10417 = vmatpush1.bf16.msra.mxu0 %v7232
  %10418 = vmatprep.subr.bf16.mxu0 %v7237
  %10419 = vmatpush1.bf16.msra.mxu0 %v7236
  %10420 = vmatprep.subr.bf16.mxu0 %v7241
  %10421 = vmatpush1.bf16.msra.mxu0 %v7240
  %10422 = vmatprep.subr.bf16.mxu0 %v7245
  %10423 = vmatpush1.bf16.msra.mxu0 %v7244
  %10424 = vmatprep.subr.bf16.mxu0 %v7249
  %10425 = vmatpush1.bf16.msra.mxu0 %v7248
  %10426 = vmatprep.subr.bf16.mxu0 %v7253
  %10427 = vmatpush1.bf16.msra.mxu0 %v7252
  %10428 = vmatprep.subr.bf16.mxu0 %v7257
  %10429 = vmatpush1.bf16.msra.mxu0 %v7256
  %10430 = vmatprep.subr.bf16.mxu0 %v7261
  %10431 = vmatpush1.bf16.msra.mxu0 %v7260
  %10432 = vmatprep.subr.bf16.mxu0 %v7265
  %10433 = vmatpush1.bf16.msra.mxu0 %v7264
  %10434 = vmatprep.subr.bf16.mxu0 %v7269
  %10435 = vmatpush1.bf16.msra.mxu0 %v7268
  %10436 = vmatprep.subr.bf16.mxu0 %v7273
  %10437 = vmatpush1.bf16.msra.mxu0 %v7272
  %10438 = vmatprep.subr.bf16.mxu0 %v7277
  %10439 = vmatpush1.bf16.msra.mxu0 %v7276
  %10440 = vmatprep.subr.bf16.mxu0 %v7281
  %10441 = vmatpush1.bf16.msra.mxu0 %v7280
  %10442 = vmatprep.mubr.bf16.mxu0 %v3247
  %10443 = vmatmul.mubr.bf16.gmra.mrb[0].mxu0 %v3246
  %v10444 = vpop.f32.mrb[0].mxu0
  %v10445 = vadd.f32 %v10392, %v10444
  %v10446 = vpop.f32.mrb[0].mxu0
  %v10447 = vadd.f32 %v10394, %v10446
  %v10448 = vpop.f32.mrb[0].mxu0
  %v10449 = vadd.f32 %v10396, %v10448
  %v10450 = vpop.f32.mrb[0].mxu0
  %v10451 = vadd.f32 %v10398, %v10450
  %10452 = vmatprep.mubr.bf16.mxu0 %v3283
  %10453 = vmatmul.mubr.bf16.gmra.mrb[0].mxu0 %v3282
  %v10454 = vpop.f32.mrb[0].mxu0
  %v10455 = vadd.f32 %v10402, %v10454
  %v10456 = vpop.f32.mrb[0].mxu0
  %v10457 = vadd.f32 %v10404, %v10456
  %v10458 = vpop.f32.mrb[0].mxu0
  %v10459 = vadd.f32 %v10406, %v10458
  %v10460 = vpop.f32.mrb[0].mxu0
  %v10461 = vadd.f32 %v10408, %v10460
  %10462 = vdwg.mxu0
  %10463 = vmatprep.subr.bf16.mxu0 %v7285
  %10464 = vmatpush1.bf16.msra.mxu0 %v7284
  %10465 = vmatprep.subr.bf16.mxu0 %v7289
  %10466 = vmatpush1.bf16.msra.mxu0 %v7288
  %10467 = vmatprep.subr.bf16.mxu0 %v7293
  %10468 = vmatpush1.bf16.msra.mxu0 %v7292
  %10469 = vmatprep.subr.bf16.mxu0 %v7297
  %10470 = vmatpush1.bf16.msra.mxu0 %v7296
  %10471 = vmatprep.subr.bf16.mxu0 %v7301
  %10472 = vmatpush1.bf16.msra.mxu0 %v7300
  %10473 = vmatprep.subr.bf16.mxu0 %v7305
  %10474 = vmatpush1.bf16.msra.mxu0 %v7304
  %10475 = vmatprep.subr.bf16.mxu0 %v7309
  %10476 = vmatpush1.bf16.msra.mxu0 %v7308
  %10477 = vmatprep.subr.bf16.mxu0 %v7313
  %10478 = vmatpush1.bf16.msra.mxu0 %v7312
  %10479 = vmatprep.subr.bf16.mxu0 %v7317
  %10480 = vmatpush1.bf16.msra.mxu0 %v7316
  %10481 = vmatprep.subr.bf16.mxu0 %v7321
  %10482 = vmatpush1.bf16.msra.mxu0 %v7320
  %10483 = vmatprep.subr.bf16.mxu0 %v7325
  %10484 = vmatpush1.bf16.msra.mxu0 %v7324
  %10485 = vmatprep.subr.bf16.mxu0 %v7329
  %10486 = vmatpush1.bf16.msra.mxu0 %v7328
  %10487 = vmatprep.subr.bf16.mxu0 %v7333
  %10488 = vmatpush1.bf16.msra.mxu0 %v7332
  %10489 = vmatprep.subr.bf16.mxu0 %v7337
  %10490 = vmatpush1.bf16.msra.mxu0 %v7336
  %10491 = vmatprep.subr.bf16.mxu0 %v7341
  %10492 = vmatpush1.bf16.msra.mxu0 %v7340
  %10493 = vmatprep.subr.bf16.mxu0 %v7345
  %10494 = vmatpush1.bf16.msra.mxu0 %v7344
  %10495 = vmatprep.mubr.bf16.mxu0 %v3249
  %10496 = vmatmul.mubr.bf16.gmra.mrb[0].mxu0 %v3248
  %v10497 = vpop.f32.mrb[0].mxu0
  %v10498 = vadd.f32 %v10445, %v10497
  %v10499 = vpop.f32.mrb[0].mxu0
  %v10500 = vadd.f32 %v10447, %v10499
  %v10501 = vpop.f32.mrb[0].mxu0
  %v10502 = vadd.f32 %v10449, %v10501
  %v10503 = vpop.f32.mrb[0].mxu0
  %v10504 = vadd.f32 %v10451, %v10503
  %10505 = vmatprep.mubr.bf16.mxu0 %v3285
  %10506 = vmatmul.mubr.bf16.gmra.mrb[0].mxu0 %v3284
  %v10507 = vpop.f32.mrb[0].mxu0
  %v10508 = vadd.f32 %v10455, %v10507
  %v10509 = vpop.f32.mrb[0].mxu0
  %v10510 = vadd.f32 %v10457, %v10509
  %v10511 = vpop.f32.mrb[0].mxu0
  %v10512 = vadd.f32 %v10459, %v10511
  %v10513 = vpop.f32.mrb[0].mxu0
  %v10514 = vadd.f32 %v10461, %v10513
  %10515 = vdwg.mxu0
  %10516 = vmatprep.subr.bf16.mxu0 %v7349
  %10517 = vmatpush1.bf16.msra.mxu0 %v7348
  %10518 = vmatprep.subr.bf16.mxu0 %v7353
  %10519 = vmatpush1.bf16.msra.mxu0 %v7352
  %10520 = vmatprep.subr.bf16.mxu0 %v7357
  %10521 = vmatpush1.bf16.msra.mxu0 %v7356
  %10522 = vmatprep.subr.bf16.mxu0 %v7361
  %10523 = vmatpush1.bf16.msra.mxu0 %v7360
  %10524 = vmatprep.subr.bf16.mxu0 %v7365
  %10525 = vmatpush1.bf16.msra.mxu0 %v7364
  %10526 = vmatprep.subr.bf16.mxu0 %v7369
  %10527 = vmatpush1.bf16.msra.mxu0 %v7368
  %10528 = vmatprep.subr.bf16.mxu0 %v7373
  %10529 = vmatpush1.bf16.msra.mxu0 %v7372
  %10530 = vmatprep.subr.bf16.mxu0 %v7377
  %10531 = vmatpush1.bf16.msra.mxu0 %v7376
  %10532 = vmatprep.subr.bf16.mxu0 %v7381
  %10533 = vmatpush1.bf16.msra.mxu0 %v7380
  %10534 = vmatprep.subr.bf16.mxu0 %v7385
  %10535 = vmatpush1.bf16.msra.mxu0 %v7384
  %10536 = vmatprep.subr.bf16.mxu0 %v7389
  %10537 = vmatpush1.bf16.msra.mxu0 %v7388
  %10538 = vmatprep.subr.bf16.mxu0 %v7393
  %10539 = vmatpush1.bf16.msra.mxu0 %v7392
  %10540 = vmatprep.subr.bf16.mxu0 %v7397
  %10541 = vmatpush1.bf16.msra.mxu0 %v7396
  %10542 = vmatprep.subr.bf16.mxu0 %v7401
  %10543 = vmatpush1.bf16.msra.mxu0 %v7400
  %10544 = vmatprep.subr.bf16.mxu0 %v7405
  %10545 = vmatpush1.bf16.msra.mxu0 %v7404
  %10546 = vmatprep.subr.bf16.mxu0 %v7409
  %10547 = vmatpush1.bf16.msra.mxu0 %v7408
  %10548 = vmatprep.mubr.bf16.mxu0 %v3251
  %10549 = vmatmul.mubr.bf16.gmra.mrb[0].mxu0 %v3250
  %v10550 = vpop.f32.mrb[0].mxu0
  %v10551 = vadd.f32 %v10498, %v10550
  %v10552 = vpop.f32.mrb[0].mxu0
  %v10553 = vadd.f32 %v10500, %v10552
  %v10554 = vpop.f32.mrb[0].mxu0
  %v10555 = vadd.f32 %v10502, %v10554
  %v10556 = vpop.f32.mrb[0].mxu0
  %v10557 = vadd.f32 %v10504, %v10556
  %10558 = vmatprep.mubr.bf16.mxu0 %v3287
  %10559 = vmatmul.mubr.bf16.gmra.mrb[0].mxu0 %v3286
  %v10560 = vpop.f32.mrb[0].mxu0
  %v10561 = vadd.f32 %v10508, %v10560
  %v10562 = vpop.f32.mrb[0].mxu0
  %v10563 = vadd.f32 %v10510, %v10562
  %v10564 = vpop.f32.mrb[0].mxu0
  %v10565 = vadd.f32 %v10512, %v10564
  %v10566 = vpop.f32.mrb[0].mxu0
  %v10567 = vadd.f32 %v10514, %v10566
  %10568 = vdwg.mxu0
  %10569 = vmatprep.subr.bf16.mxu0 %v7413
  %10570 = vmatpush1.bf16.msra.mxu0 %v7412
  %10571 = vmatprep.subr.bf16.mxu0 %v7417
  %10572 = vmatpush1.bf16.msra.mxu0 %v7416
  %10573 = vmatprep.subr.bf16.mxu0 %v7421
  %10574 = vmatpush1.bf16.msra.mxu0 %v7420
  %10575 = vmatprep.subr.bf16.mxu0 %v7425
  %10576 = vmatpush1.bf16.msra.mxu0 %v7424
  %10577 = vmatprep.subr.bf16.mxu0 %v7429
  %10578 = vmatpush1.bf16.msra.mxu0 %v7428
  %10579 = vmatprep.subr.bf16.mxu0 %v7433
  %10580 = vmatpush1.bf16.msra.mxu0 %v7432
  %10581 = vmatprep.subr.bf16.mxu0 %v7437
  %10582 = vmatpush1.bf16.msra.mxu0 %v7436
  %10583 = vmatprep.subr.bf16.mxu0 %v7441
  %10584 = vmatpush1.bf16.msra.mxu0 %v7440
  %10585 = vmatprep.subr.bf16.mxu0 %v7445
  %10586 = vmatpush1.bf16.msra.mxu0 %v7444
  %10587 = vmatprep.subr.bf16.mxu0 %v7449
  %10588 = vmatpush1.bf16.msra.mxu0 %v7448
  %10589 = vmatprep.subr.bf16.mxu0 %v7453
  %10590 = vmatpush1.bf16.msra.mxu0 %v7452
  %10591 = vmatprep.subr.bf16.mxu0 %v7457
  %10592 = vmatpush1.bf16.msra.mxu0 %v7456
  %10593 = vmatprep.subr.bf16.mxu0 %v7461
  %10594 = vmatpush1.bf16.msra.mxu0 %v7460
  %10595 = vmatprep.subr.bf16.mxu0 %v7465
  %10596 = vmatpush1.bf16.msra.mxu0 %v7464
  %10597 = vmatprep.subr.bf16.mxu0 %v7469
  %10598 = vmatpush1.bf16.msra.mxu0 %v7468
  %10599 = vmatprep.subr.bf16.mxu0 %v7473
  %10600 = vmatpush1.bf16.msra.mxu0 %v7472
  %10601 = vmatprep.mubr.bf16.mxu0 %v3253
  %10602 = vmatmul.mubr.bf16.gmra.mrb[0].mxu0 %v3252
  %v10603 = vpop.f32.mrb[0].mxu0
  %v10604 = vadd.f32 %v10551, %v10603
  %v10605 = vpop.f32.mrb[0].mxu0
  %v10606 = vadd.f32 %v10553, %v10605
  %v10607 = vpop.f32.mrb[0].mxu0
  %v10608 = vadd.f32 %v10555, %v10607
  %v10609 = vpop.f32.mrb[0].mxu0
  %v10610 = vadd.f32 %v10557, %v10609
  %10611 = vmatprep.mubr.bf16.mxu0 %v3289
  %10612 = vmatmul.mubr.bf16.gmra.mrb[0].mxu0 %v3288
  %v10613 = vpop.f32.mrb[0].mxu0
  %v10614 = vadd.f32 %v10561, %v10613
  %v10615 = vpop.f32.mrb[0].mxu0
  %v10616 = vadd.f32 %v10563, %v10615
  %v10617 = vpop.f32.mrb[0].mxu0
  %v10618 = vadd.f32 %v10565, %v10617
  %v10619 = vpop.f32.mrb[0].mxu0
  %v10620 = vadd.f32 %v10567, %v10619
  %10621 = vdwg.mxu0
  %10622 = vmatprep.subr.bf16.mxu0 %v7477
  %10623 = vmatpush1.bf16.msra.mxu0 %v7476
  %10624 = vmatprep.subr.bf16.mxu0 %v7481
  %10625 = vmatpush1.bf16.msra.mxu0 %v7480
  %10626 = vmatprep.subr.bf16.mxu0 %v7485
  %10627 = vmatpush1.bf16.msra.mxu0 %v7484
  %10628 = vmatprep.subr.bf16.mxu0 %v7489
  %10629 = vmatpush1.bf16.msra.mxu0 %v7488
  %10630 = vmatprep.subr.bf16.mxu0 %v7493
  %10631 = vmatpush1.bf16.msra.mxu0 %v7492
  %10632 = vmatprep.subr.bf16.mxu0 %v7497
  %10633 = vmatpush1.bf16.msra.mxu0 %v7496
  %10634 = vmatprep.subr.bf16.mxu0 %v7501
  %10635 = vmatpush1.bf16.msra.mxu0 %v7500
  %10636 = vmatprep.subr.bf16.mxu0 %v7505
  %10637 = vmatpush1.bf16.msra.mxu0 %v7504
  %10638 = vmatprep.subr.bf16.mxu0 %v7509
  %10639 = vmatpush1.bf16.msra.mxu0 %v7508
  %10640 = vmatprep.subr.bf16.mxu0 %v7513
  %10641 = vmatpush1.bf16.msra.mxu0 %v7512
  %10642 = vmatprep.subr.bf16.mxu0 %v7517
  %10643 = vmatpush1.bf16.msra.mxu0 %v7516
  %10644 = vmatprep.subr.bf16.mxu0 %v7521
  %10645 = vmatpush1.bf16.msra.mxu0 %v7520
  %10646 = vmatprep.subr.bf16.mxu0 %v7525
  %10647 = vmatpush1.bf16.msra.mxu0 %v7524
  %10648 = vmatprep.subr.bf16.mxu0 %v7529
  %10649 = vmatpush1.bf16.msra.mxu0 %v7528
  %10650 = vmatprep.subr.bf16.mxu0 %v7533
  %10651 = vmatpush1.bf16.msra.mxu0 %v7532
  %10652 = vmatprep.subr.bf16.mxu0 %v7537
  %10653 = vmatpush1.bf16.msra.mxu0 %v7536
  %10654 = vmatprep.mubr.bf16.mxu0 %v3255
  %10655 = vmatmul.mubr.bf16.gmra.mrb[0].mxu0 %v3254
  %v10656 = vpop.f32.mrb[0].mxu0
  %v10657 = vadd.f32 %v10604, %v10656
  %v10658 = vpop.f32.mrb[0].mxu0
  %v10659 = vadd.f32 %v10606, %v10658
  %v10660 = vpop.f32.mrb[0].mxu0
  %v10661 = vadd.f32 %v10608, %v10660
  %v10662 = vpop.f32.mrb[0].mxu0
  %v10663 = vadd.f32 %v10610, %v10662
  %10664 = vmatprep.mubr.bf16.mxu0 %v3291
  %10665 = vmatmul.mubr.bf16.gmra.mrb[0].mxu0 %v3290
  %v10666 = vpop.f32.mrb[0].mxu0
  %v10667 = vadd.f32 %v10614, %v10666
  %v10668 = vpop.f32.mrb[0].mxu0
  %v10669 = vadd.f32 %v10616, %v10668
  %v10670 = vpop.f32.mrb[0].mxu0
  %v10671 = vadd.f32 %v10618, %v10670
  %v10672 = vpop.f32.mrb[0].mxu0
  %v10673 = vadd.f32 %v10620, %v10672
  %10674 = vdwg.mxu0
  %10675 = vmatprep.subr.bf16.mxu0 %v7541
  %10676 = vmatpush1.bf16.msra.mxu0 %v7540
  %10677 = vmatprep.subr.bf16.mxu0 %v7545
  %10678 = vmatpush1.bf16.msra.mxu0 %v7544
  %10679 = vmatprep.subr.bf16.mxu0 %v7549
  %10680 = vmatpush1.bf16.msra.mxu0 %v7548
  %10681 = vmatprep.subr.bf16.mxu0 %v7553
  %10682 = vmatpush1.bf16.msra.mxu0 %v7552
  %10683 = vmatprep.subr.bf16.mxu0 %v7557
  %10684 = vmatpush1.bf16.msra.mxu0 %v7556
  %10685 = vmatprep.subr.bf16.mxu0 %v7561
  %10686 = vmatpush1.bf16.msra.mxu0 %v7560
  %10687 = vmatprep.subr.bf16.mxu0 %v7565
  %10688 = vmatpush1.bf16.msra.mxu0 %v7564
  %10689 = vmatprep.subr.bf16.mxu0 %v7569
  %10690 = vmatpush1.bf16.msra.mxu0 %v7568
  %10691 = vmatprep.subr.bf16.mxu0 %v7573
  %10692 = vmatpush1.bf16.msra.mxu0 %v7572
  %10693 = vmatprep.subr.bf16.mxu0 %v7577
  %10694 = vmatpush1.bf16.msra.mxu0 %v7576
  %10695 = vmatprep.subr.bf16.mxu0 %v7581
  %10696 = vmatpush1.bf16.msra.mxu0 %v7580
  %10697 = vmatprep.subr.bf16.mxu0 %v7585
  %10698 = vmatpush1.bf16.msra.mxu0 %v7584
  %10699 = vmatprep.subr.bf16.mxu0 %v7589
  %10700 = vmatpush1.bf16.msra.mxu0 %v7588
  %10701 = vmatprep.subr.bf16.mxu0 %v7593
  %10702 = vmatpush1.bf16.msra.mxu0 %v7592
  %10703 = vmatprep.subr.bf16.mxu0 %v7597
  %10704 = vmatpush1.bf16.msra.mxu0 %v7596
  %10705 = vmatprep.subr.bf16.mxu0 %v7601
  %10706 = vmatpush1.bf16.msra.mxu0 %v7600
  %10707 = vmatprep.mubr.bf16.mxu0 %v3257
  %10708 = vmatmul.mubr.bf16.gmra.mrb[0].mxu0 %v3256
  %v10709 = vpop.f32.mrb[0].mxu0
  %v10710 = vadd.f32 %v10657, %v10709
  %v10711 = vpop.f32.mrb[0].mxu0
  %v10712 = vadd.f32 %v10659, %v10711
  %v10713 = vpop.f32.mrb[0].mxu0
  %v10714 = vadd.f32 %v10661, %v10713
  %v10715 = vpop.f32.mrb[0].mxu0
  %v10716 = vadd.f32 %v10663, %v10715
  %10717 = vmatprep.mubr.bf16.mxu0 %v3293
  %10718 = vmatmul.mubr.bf16.gmra.mrb[0].mxu0 %v3292
  %v10719 = vpop.f32.mrb[0].mxu0
  %v10720 = vadd.f32 %v10667, %v10719
  %v10721 = vpop.f32.mrb[0].mxu0
  %v10722 = vadd.f32 %v10669, %v10721
  %v10723 = vpop.f32.mrb[0].mxu0
  %v10724 = vadd.f32 %v10671, %v10723
  %v10725 = vpop.f32.mrb[0].mxu0
  %v10726 = vadd.f32 %v10673, %v10725
  %10727 = vdwg.mxu0
  %10728 = vmatprep.subr.bf16.mxu0 %v7605
  %10729 = vmatpush1.bf16.msra.mxu0 %v7604
  %10730 = vmatprep.subr.bf16.mxu0 %v7609
  %10731 = vmatpush1.bf16.msra.mxu0 %v7608
  %10732 = vmatprep.subr.bf16.mxu0 %v7613
  %10733 = vmatpush1.bf16.msra.mxu0 %v7612
  %10734 = vmatprep.subr.bf16.mxu0 %v7617
  %10735 = vmatpush1.bf16.msra.mxu0 %v7616
  %10736 = vmatprep.subr.bf16.mxu0 %v7621
  %10737 = vmatpush1.bf16.msra.mxu0 %v7620
  %10738 = vmatprep.subr.bf16.mxu0 %v7625
  %10739 = vmatpush1.bf16.msra.mxu0 %v7624
  %10740 = vmatprep.subr.bf16.mxu0 %v7629
  %10741 = vmatpush1.bf16.msra.mxu0 %v7628
  %10742 = vmatprep.subr.bf16.mxu0 %v7633
  %10743 = vmatpush1.bf16.msra.mxu0 %v7632
  %10744 = vmatprep.subr.bf16.mxu0 %v7637
  %10745 = vmatpush1.bf16.msra.mxu0 %v7636
  %10746 = vmatprep.subr.bf16.mxu0 %v7641
  %10747 = vmatpush1.bf16.msra.mxu0 %v7640
  %10748 = vmatprep.subr.bf16.mxu0 %v7645
  %10749 = vmatpush1.bf16.msra.mxu0 %v7644
  %10750 = vmatprep.subr.bf16.mxu0 %v7649
  %10751 = vmatpush1.bf16.msra.mxu0 %v7648
  %10752 = vmatprep.subr.bf16.mxu0 %v7653
  %10753 = vmatpush1.bf16.msra.mxu0 %v7652
  %10754 = vmatprep.subr.bf16.mxu0 %v7657
  %10755 = vmatpush1.bf16.msra.mxu0 %v7656
  %10756 = vmatprep.subr.bf16.mxu0 %v7661
  %10757 = vmatpush1.bf16.msra.mxu0 %v7660
  %10758 = vmatprep.subr.bf16.mxu0 %v7665
  %10759 = vmatpush1.bf16.msra.mxu0 %v7664
  %10760 = vmatprep.mubr.bf16.mxu0 %v3259
  %10761 = vmatmul.mubr.bf16.gmra.mrb[0].mxu0 %v3258
  %v10762 = vpop.f32.mrb[0].mxu0
  %v10763 = vadd.f32 %v10710, %v10762
  %v10764 = vpop.f32.mrb[0].mxu0
  %v10765 = vadd.f32 %v10712, %v10764
  %v10766 = vpop.f32.mrb[0].mxu0
  %v10767 = vadd.f32 %v10714, %v10766
  %v10768 = vpop.f32.mrb[0].mxu0
  %v10769 = vadd.f32 %v10716, %v10768
  %10770 = vmatprep.mubr.bf16.mxu0 %v3295
  %10771 = vmatmul.mubr.bf16.gmra.mrb[0].mxu0 %v3294
  %v10772 = vpop.f32.mrb[0].mxu0
  %v10773 = vadd.f32 %v10720, %v10772
  %v10774 = vpop.f32.mrb[0].mxu0
  %v10775 = vadd.f32 %v10722, %v10774
  %v10776 = vpop.f32.mrb[0].mxu0
  %v10777 = vadd.f32 %v10724, %v10776
  %v10778 = vpop.f32.mrb[0].mxu0
  %v10779 = vadd.f32 %v10726, %v10778
  %10780 = vdwg.mxu0
  %10781 = vmatprep.subr.bf16.mxu0 %v7669
  %10782 = vmatpush1.bf16.msra.mxu0 %v7668
  %10783 = vmatprep.subr.bf16.mxu0 %v7673
  %10784 = vmatpush1.bf16.msra.mxu0 %v7672
  %10785 = vmatprep.subr.bf16.mxu0 %v7677
  %10786 = vmatpush1.bf16.msra.mxu0 %v7676
  %10787 = vmatprep.subr.bf16.mxu0 %v7681
  %10788 = vmatpush1.bf16.msra.mxu0 %v7680
  %10789 = vmatprep.subr.bf16.mxu0 %v7685
  %10790 = vmatpush1.bf16.msra.mxu0 %v7684
  %10791 = vmatprep.subr.bf16.mxu0 %v7689
  %10792 = vmatpush1.bf16.msra.mxu0 %v7688
  %10793 = vmatprep.subr.bf16.mxu0 %v7693
  %10794 = vmatpush1.bf16.msra.mxu0 %v7692
  %10795 = vmatprep.subr.bf16.mxu0 %v7697
  %10796 = vmatpush1.bf16.msra.mxu0 %v7696
  %10797 = vmatprep.subr.bf16.mxu0 %v7701
  %10798 = vmatpush1.bf16.msra.mxu0 %v7700
  %10799 = vmatprep.subr.bf16.mxu0 %v7705
  %10800 = vmatpush1.bf16.msra.mxu0 %v7704
  %10801 = vmatprep.subr.bf16.mxu0 %v7709
  %10802 = vmatpush1.bf16.msra.mxu0 %v7708
  %10803 = vmatprep.subr.bf16.mxu0 %v7713
  %10804 = vmatpush1.bf16.msra.mxu0 %v7712
  %10805 = vmatprep.subr.bf16.mxu0 %v7717
  %10806 = vmatpush1.bf16.msra.mxu0 %v7716
  %10807 = vmatprep.subr.bf16.mxu0 %v7721
  %10808 = vmatpush1.bf16.msra.mxu0 %v7720
  %10809 = vmatprep.subr.bf16.mxu0 %v7725
  %10810 = vmatpush1.bf16.msra.mxu0 %v7724
  %10811 = vmatprep.subr.bf16.mxu0 %v7729
  %10812 = vmatpush1.bf16.msra.mxu0 %v7728
  %10813 = vmatprep.mubr.bf16.mxu0 %v3261
  %10814 = vmatmul.mubr.bf16.gmra.mrb[0].mxu0 %v3260
  %v10815 = vpop.f32.mrb[0].mxu0
  %v10816 = vadd.f32 %v10763, %v10815
  %v10817 = vpop.f32.mrb[0].mxu0
  %v10818 = vadd.f32 %v10765, %v10817
  %v10819 = vpop.f32.mrb[0].mxu0
  %v10820 = vadd.f32 %v10767, %v10819
  %v10821 = vpop.f32.mrb[0].mxu0
  %v10822 = vadd.f32 %v10769, %v10821
  %10823 = vmatprep.mubr.bf16.mxu0 %v3297
  %10824 = vmatmul.mubr.bf16.gmra.mrb[0].mxu0 %v3296
  %v10825 = vpop.f32.mrb[0].mxu0
  %v10826 = vadd.f32 %v10773, %v10825
  %v10827 = vpop.f32.mrb[0].mxu0
  %v10828 = vadd.f32 %v10775, %v10827
  %v10829 = vpop.f32.mrb[0].mxu0
  %v10830 = vadd.f32 %v10777, %v10829
  %v10831 = vpop.f32.mrb[0].mxu0
  %v10832 = vadd.f32 %v10779, %v10831
  %10833 = vdwg.mxu0
  %10834 = vmatprep.subr.bf16.mxu0 %v7733
  %10835 = vmatpush1.bf16.msra.mxu0 %v7732
  %10836 = vmatprep.subr.bf16.mxu0 %v7737
  %10837 = vmatpush1.bf16.msra.mxu0 %v7736
  %10838 = vmatprep.subr.bf16.mxu0 %v7741
  %10839 = vmatpush1.bf16.msra.mxu0 %v7740
  %10840 = vmatprep.subr.bf16.mxu0 %v7745
  %10841 = vmatpush1.bf16.msra.mxu0 %v7744
  %10842 = vmatprep.subr.bf16.mxu0 %v7749
  %10843 = vmatpush1.bf16.msra.mxu0 %v7748
  %10844 = vmatprep.subr.bf16.mxu0 %v7753
  %10845 = vmatpush1.bf16.msra.mxu0 %v7752
  %10846 = vmatprep.subr.bf16.mxu0 %v7757
  %10847 = vmatpush1.bf16.msra.mxu0 %v7756
  %10848 = vmatprep.subr.bf16.mxu0 %v7761
  %10849 = vmatpush1.bf16.msra.mxu0 %v7760
  %10850 = vmatprep.subr.bf16.mxu0 %v7765
  %10851 = vmatpush1.bf16.msra.mxu0 %v7764
  %10852 = vmatprep.subr.bf16.mxu0 %v7769
  %10853 = vmatpush1.bf16.msra.mxu0 %v7768
  %10854 = vmatprep.subr.bf16.mxu0 %v7773
  %10855 = vmatpush1.bf16.msra.mxu0 %v7772
  %10856 = vmatprep.subr.bf16.mxu0 %v7777
  %10857 = vmatpush1.bf16.msra.mxu0 %v7776
  %10858 = vmatprep.subr.bf16.mxu0 %v7781
  %10859 = vmatpush1.bf16.msra.mxu0 %v7780
  %10860 = vmatprep.subr.bf16.mxu0 %v7785
  %10861 = vmatpush1.bf16.msra.mxu0 %v7784
  %10862 = vmatprep.subr.bf16.mxu0 %v7789
  %10863 = vmatpush1.bf16.msra.mxu0 %v7788
  %10864 = vmatprep.subr.bf16.mxu0 %v7793
  %10865 = vmatpush1.bf16.msra.mxu0 %v7792
  %10866 = vmatprep.mubr.bf16.mxu0 %v3263
  %10867 = vmatmul.mubr.bf16.gmra.mrb[0].mxu0 %v3262
  %v10868 = vpop.f32.mrb[0].mxu0
  %v10869 = vadd.f32 %v10816, %v10868
  %v10870 = vpop.f32.mrb[0].mxu0
  %v10871 = vadd.f32 %v10818, %v10870
  %v10872 = vpop.f32.mrb[0].mxu0
  %v10873 = vadd.f32 %v10820, %v10872
  %v10874 = vpop.f32.mrb[0].mxu0
  %v10875 = vadd.f32 %v10822, %v10874
  %10876 = vmatprep.mubr.bf16.mxu0 %v3299
  %10877 = vmatmul.mubr.bf16.gmra.mrb[0].mxu0 %v3298
  %v10878 = vpop.f32.mrb[0].mxu0
  %v10879 = vadd.f32 %v10826, %v10878
  %v10880 = vpop.f32.mrb[0].mxu0
  %v10881 = vadd.f32 %v10828, %v10880
  %v10882 = vpop.f32.mrb[0].mxu0
  %v10883 = vadd.f32 %v10830, %v10882
  %v10884 = vpop.f32.mrb[0].mxu0
  %v10885 = vadd.f32 %v10832, %v10884
  %10886 = vdwg.mxu0
  %10887 = vmatprep.subr.bf16.mxu0 %v7797
  %10888 = vmatpush1.bf16.msra.mxu0 %v7796
  %10889 = vmatprep.subr.bf16.mxu0 %v7801
  %10890 = vmatpush1.bf16.msra.mxu0 %v7800
  %10891 = vmatprep.subr.bf16.mxu0 %v7805
  %10892 = vmatpush1.bf16.msra.mxu0 %v7804
  %10893 = vmatprep.subr.bf16.mxu0 %v7809
  %10894 = vmatpush1.bf16.msra.mxu0 %v7808
  %10895 = vmatprep.subr.bf16.mxu0 %v7813
  %10896 = vmatpush1.bf16.msra.mxu0 %v7812
  %10897 = vmatprep.subr.bf16.mxu0 %v7817
  %10898 = vmatpush1.bf16.msra.mxu0 %v7816
  %10899 = vmatprep.subr.bf16.mxu0 %v7821
  %10900 = vmatpush1.bf16.msra.mxu0 %v7820
  %10901 = vmatprep.subr.bf16.mxu0 %v7825
  %10902 = vmatpush1.bf16.msra.mxu0 %v7824
  %10903 = vmatprep.subr.bf16.mxu0 %v7829
  %10904 = vmatpush1.bf16.msra.mxu0 %v7828
  %10905 = vmatprep.subr.bf16.mxu0 %v7833
  %10906 = vmatpush1.bf16.msra.mxu0 %v7832
  %10907 = vmatprep.subr.bf16.mxu0 %v7837
  %10908 = vmatpush1.bf16.msra.mxu0 %v7836
  %10909 = vmatprep.subr.bf16.mxu0 %v7841
  %10910 = vmatpush1.bf16.msra.mxu0 %v7840
  %10911 = vmatprep.subr.bf16.mxu0 %v7845
  %10912 = vmatpush1.bf16.msra.mxu0 %v7844
  %10913 = vmatprep.subr.bf16.mxu0 %v7849
  %10914 = vmatpush1.bf16.msra.mxu0 %v7848
  %10915 = vmatprep.subr.bf16.mxu0 %v7853
  %10916 = vmatpush1.bf16.msra.mxu0 %v7852
  %10917 = vmatprep.subr.bf16.mxu0 %v7857
  %10918 = vmatpush1.bf16.msra.mxu0 %v7856
  %10919 = vmatprep.mubr.bf16.mxu0 %v3265
  %10920 = vmatmul.mubr.bf16.gmra.mrb[0].mxu0 %v3264
  %v10921 = vpop.f32.mrb[0].mxu0
  %v10922 = vadd.f32 %v10869, %v10921
  %v10923 = vpop.f32.mrb[0].mxu0
  %v10924 = vadd.f32 %v10871, %v10923
  %v10925 = vpop.f32.mrb[0].mxu0
  %v10926 = vadd.f32 %v10873, %v10925
  %v10927 = vpop.f32.mrb[0].mxu0
  %v10928 = vadd.f32 %v10875, %v10927
  %10929 = vmatprep.mubr.bf16.mxu0 %v3301
  %10930 = vmatmul.mubr.bf16.gmra.mrb[0].mxu0 %v3300
  %v10931 = vpop.f32.mrb[0].mxu0
  %v10932 = vadd.f32 %v10879, %v10931
  %v10933 = vpop.f32.mrb[0].mxu0
  %v10934 = vadd.f32 %v10881, %v10933
  %v10935 = vpop.f32.mrb[0].mxu0
  %v10936 = vadd.f32 %v10883, %v10935
  %v10937 = vpop.f32.mrb[0].mxu0
  %v10938 = vadd.f32 %v10885, %v10937
  %10939 = vdwg.mxu0
  %10940 = vmatprep.subr.bf16.mxu0 %v7861
  %10941 = vmatpush1.bf16.msra.mxu0 %v7860
  %10942 = vmatprep.subr.bf16.mxu0 %v7865
  %10943 = vmatpush1.bf16.msra.mxu0 %v7864
  %10944 = vmatprep.subr.bf16.mxu0 %v7869
  %10945 = vmatpush1.bf16.msra.mxu0 %v7868
  %10946 = vmatprep.subr.bf16.mxu0 %v7873
  %10947 = vmatpush1.bf16.msra.mxu0 %v7872
  %10948 = vmatprep.subr.bf16.mxu0 %v7877
  %10949 = vmatpush1.bf16.msra.mxu0 %v7876
  %10950 = vmatprep.subr.bf16.mxu0 %v7881
  %10951 = vmatpush1.bf16.msra.mxu0 %v7880
  %10952 = vmatprep.subr.bf16.mxu0 %v7885
  %10953 = vmatpush1.bf16.msra.mxu0 %v7884
  %10954 = vmatprep.subr.bf16.mxu0 %v7889
  %10955 = vmatpush1.bf16.msra.mxu0 %v7888
  %10956 = vmatprep.subr.bf16.mxu0 %v7893
  %10957 = vmatpush1.bf16.msra.mxu0 %v7892
  %10958 = vmatprep.subr.bf16.mxu0 %v7897
  %10959 = vmatpush1.bf16.msra.mxu0 %v7896
  %10960 = vmatprep.subr.bf16.mxu0 %v7901
  %10961 = vmatpush1.bf16.msra.mxu0 %v7900
  %10962 = vmatprep.subr.bf16.mxu0 %v7905
  %10963 = vmatpush1.bf16.msra.mxu0 %v7904
  %10964 = vmatprep.subr.bf16.mxu0 %v7909
  %10965 = vmatpush1.bf16.msra.mxu0 %v7908
  %10966 = vmatprep.subr.bf16.mxu0 %v7913
  %10967 = vmatpush1.bf16.msra.mxu0 %v7912
  %10968 = vmatprep.subr.bf16.mxu0 %v7917
  %10969 = vmatpush1.bf16.msra.mxu0 %v7916
  %10970 = vmatprep.subr.bf16.mxu0 %v7921
  %10971 = vmatpush1.bf16.msra.mxu0 %v7920
  %10972 = vmatprep.mubr.bf16.mxu0 %v3267
  %10973 = vmatmul.mubr.bf16.gmra.mrb[0].mxu0 %v3266
  %v10974 = vpop.f32.mrb[0].mxu0
  %v10975 = vadd.f32 %v10922, %v10974
  %v10976 = vpop.f32.mrb[0].mxu0
  %v10977 = vadd.f32 %v10924, %v10976
  %v10978 = vpop.f32.mrb[0].mxu0
  %v10979 = vadd.f32 %v10926, %v10978
  %v10980 = vpop.f32.mrb[0].mxu0
  %v10981 = vadd.f32 %v10928, %v10980
  %10982 = vmatprep.mubr.bf16.mxu0 %v3303
  %10983 = vmatmul.mubr.bf16.gmra.mrb[0].mxu0 %v3302
  %v10984 = vpop.f32.mrb[0].mxu0
  %v10985 = vadd.f32 %v10932, %v10984
  %v10986 = vpop.f32.mrb[0].mxu0
  %v10987 = vadd.f32 %v10934, %v10986
  %v10988 = vpop.f32.mrb[0].mxu0
  %v10989 = vadd.f32 %v10936, %v10988
  %v10990 = vpop.f32.mrb[0].mxu0
  %v10991 = vadd.f32 %v10938, %v10990
  %10992 = vdwg.mxu0
  %10993 = vmatprep.subr.bf16.mxu0 %v7925
  %10994 = vmatpush1.bf16.msra.mxu0 %v7924
  %10995 = vmatprep.subr.bf16.mxu0 %v7929
  %10996 = vmatpush1.bf16.msra.mxu0 %v7928
  %10997 = vmatprep.subr.bf16.mxu0 %v7933
  %10998 = vmatpush1.bf16.msra.mxu0 %v7932
  %10999 = vmatprep.subr.bf16.mxu0 %v7937
  %11000 = vmatpush1.bf16.msra.mxu0 %v7936
  %11001 = vmatprep.subr.bf16.mxu0 %v7941
  %11002 = vmatpush1.bf16.msra.mxu0 %v7940
  %11003 = vmatprep.subr.bf16.mxu0 %v7945
  %11004 = vmatpush1.bf16.msra.mxu0 %v7944
  %11005 = vmatprep.subr.bf16.mxu0 %v7949
  %11006 = vmatpush1.bf16.msra.mxu0 %v7948
  %11007 = vmatprep.subr.bf16.mxu0 %v7953
  %11008 = vmatpush1.bf16.msra.mxu0 %v7952
  %11009 = vmatprep.subr.bf16.mxu0 %v7957
  %11010 = vmatpush1.bf16.msra.mxu0 %v7956
  %11011 = vmatprep.subr.bf16.mxu0 %v7961
  %11012 = vmatpush1.bf16.msra.mxu0 %v7960
  %11013 = vmatprep.subr.bf16.mxu0 %v7965
  %11014 = vmatpush1.bf16.msra.mxu0 %v7964
  %11015 = vmatprep.subr.bf16.mxu0 %v7969
  %11016 = vmatpush1.bf16.msra.mxu0 %v7968
  %11017 = vmatprep.subr.bf16.mxu0 %v7973
  %11018 = vmatpush1.bf16.msra.mxu0 %v7972
  %11019 = vmatprep.subr.bf16.mxu0 %v7977
  %11020 = vmatpush1.bf16.msra.mxu0 %v7976
  %11021 = vmatprep.subr.bf16.mxu0 %v7981
  %11022 = vmatpush1.bf16.msra.mxu0 %v7980
  %11023 = vmatprep.subr.bf16.mxu0 %v7985
  %11024 = vmatpush1.bf16.msra.mxu0 %v7984
  %11025 = vmatprep.mubr.bf16.mxu0 %v3269
  %11026 = vmatmul.mubr.bf16.gmra.mrb[0].mxu0 %v3268
  %v11027 = vpop.f32.mrb[0].mxu0
  %v11028 = vadd.f32 %v10975, %v11027
  %v11029 = vpop.f32.mrb[0].mxu0
  %v11030 = vadd.f32 %v10977, %v11029
  %v11031 = vpop.f32.mrb[0].mxu0
  %v11032 = vadd.f32 %v10979, %v11031
  %v11033 = vpop.f32.mrb[0].mxu0
  %v11034 = vadd.f32 %v10981, %v11033
  %11035 = vmatprep.mubr.bf16.mxu0 %v3305
  %11036 = vmatmul.mubr.bf16.gmra.mrb[0].mxu0 %v3304
  %v11037 = vpop.f32.mrb[0].mxu0
  %v11038 = vadd.f32 %v10985, %v11037
  %v11039 = vpop.f32.mrb[0].mxu0
  %v11040 = vadd.f32 %v10987, %v11039
  %v11041 = vpop.f32.mrb[0].mxu0
  %v11042 = vadd.f32 %v10989, %v11041
  %v11043 = vpop.f32.mrb[0].mxu0
  %v11044 = vadd.f32 %v10991, %v11043
  %11045 = vdwg.mxu0
  %v11046 = vmax.f32 %v10074, 0.0
  %v11047 = vmax.f32 %v10076, 0.0
  %v11048 = vmax.f32 %v11028, 0.0
  %v11049 = vmax.f32 %v11030, 0.0
  %v11050 = vmax.f32 %v10078, 0.0
  %v11051 = vmax.f32 %v10080, 0.0
  %v11052 = vmax.f32 %v11032, 0.0
  %v11053 = vmax.f32 %v11034, 0.0
  %v11054 = vmax.f32 %v10084, 0.0
  %v11055 = vmax.f32 %v10086, 0.0
  %v11056 = vmax.f32 %v11038, 0.0
  %v11057 = vmax.f32 %v11040, 0.0
  %v11058 = vmax.f32 %v10088, 0.0
  %v11059 = vmax.f32 %v10090, 0.0
  %v11060 = vmax.f32 %v11042, 0.0
  %v11061 = vmax.f32 %v11044, 0.0
  %v11062 = vpack.c.bf16 %v11050, %v11046
  %v11063 = vpack.c.bf16 %v11051, %v11047
  %v11064 = vpack.c.bf16 %v11052, %v11048
  %v11065 = vpack.c.bf16 %v11053, %v11049
  %v11066 = vpack.c.bf16 %v11058, %v11054
  %v11067 = vpack.c.bf16 %v11059, %v11055
  %v11068 = vpack.c.bf16 %v11060, %v11056
  %v11069 = vpack.c.bf16 %v11061, %v11057
  %v11070 = vld [vmem:[%s6] sm:$0xf]
  %v11071 = vld [vmem:[%s6 + $0x4] sm:$0xf]
  %v11072 = vld [vmem:[%s6 + $0x8] sm:$0xf]
  %v11073 = vld [vmem:[%s6 + $0xc] sm:$0xf]
  %v11074 = vld [vmem:[%s6 + $0x10] sm:$0xf]
  %v11075 = vld [vmem:[%s6 + $0x14] sm:$0xf]
  %v11076 = vld [vmem:[%s6 + $0x18] sm:$0xf]
  %v11077 = vld [vmem:[%s6 + $0x1c] sm:$0xf]
  %v11078 = vld [vmem:[%s6 + $0x20] sm:$0xf]
  %v11079 = vld [vmem:[%s6 + $0x24] sm:$0xf]
  %v11080 = vld [vmem:[%s6 + $0x28] sm:$0xf]
  %v11081 = vld [vmem:[%s6 + $0x2c] sm:$0xf]
  %v11082 = vld [vmem:[%s6 + $0x30] sm:$0xf]
  %v11083 = vld [vmem:[%s6 + $0x34] sm:$0xf]
  %v11084 = vld [vmem:[%s6 + $0x38] sm:$0xf]
  %v11085 = vld [vmem:[%s6 + $0x3c] sm:$0xf]
  %v11086 = vld [vmem:[%s6 + $0x40] sm:$0xf]
  %v11087 = vld [vmem:[%s6 + $0x44] sm:$0xf]
  %v11088 = vld [vmem:[%s6 + $0x48] sm:$0xf]
  %v11089 = vld [vmem:[%s6 + $0x4c] sm:$0xf]
  %v11090 = vld [vmem:[%s6 + $0x50] sm:$0xf]
  %v11091 = vld [vmem:[%s6 + $0x54] sm:$0xf]
  %v11092 = vld [vmem:[%s6 + $0x58] sm:$0xf]
  %v11093 = vld [vmem:[%s6 + $0x5c] sm:$0xf]
  %v11094 = vld [vmem:[%s6 + $0x60] sm:$0xf]
  %v11095 = vld [vmem:[%s6 + $0x64] sm:$0xf]
  %v11096 = vld [vmem:[%s6 + $0x68] sm:$0xf]
  %v11097 = vld [vmem:[%s6 + $0x6c] sm:$0xf]
  %v11098 = vld [vmem:[%s6 + $0x70] sm:$0xf]
  %v11099 = vld [vmem:[%s6 + $0x74] sm:$0xf]
  %v11100 = vld [vmem:[%s6 + $0x78] sm:$0xf]
  %v11101 = vld [vmem:[%s6 + $0x7c] sm:$0xf]
  %v11102 = vld [vmem:[%s6 + $0x80] sm:$0xf]
  %v11103 = vld [vmem:[%s6 + $0x84] sm:$0xf]
  %v11104 = vld [vmem:[%s6 + $0x88] sm:$0xf]
  %v11105 = vld [vmem:[%s6 + $0x8c] sm:$0xf]
  %v11106 = vld [vmem:[%s6 + $0x90] sm:$0xf]
  %v11107 = vld [vmem:[%s6 + $0x94] sm:$0xf]
  %v11108 = vld [vmem:[%s6 + $0x98] sm:$0xf]
  %v11109 = vld [vmem:[%s6 + $0x9c] sm:$0xf]
  %v11110 = vld [vmem:[%s6 + $0xa0] sm:$0xf]
  %v11111 = vld [vmem:[%s6 + $0xa4] sm:$0xf]
  %v11112 = vld [vmem:[%s6 + $0xa8] sm:$0xf]
  %v11113 = vld [vmem:[%s6 + $0xac] sm:$0xf]
  %v11114 = vld [vmem:[%s6 + $0xb0] sm:$0xf]
  %v11115 = vld [vmem:[%s6 + $0xb4] sm:$0xf]
  %v11116 = vld [vmem:[%s6 + $0xb8] sm:$0xf]
  %v11117 = vld [vmem:[%s6 + $0xbc] sm:$0xf]
  %v11118 = vld [vmem:[%s6 + $0xc0] sm:$0xf]
  %v11119 = vld [vmem:[%s6 + $0xc4] sm:$0xf]
  %v11120 = vld [vmem:[%s6 + $0xc8] sm:$0xf]
  %v11121 = vld [vmem:[%s6 + $0xcc] sm:$0xf]
  %v11122 = vld [vmem:[%s6 + $0xd0] sm:$0xf]
  %v11123 = vld [vmem:[%s6 + $0xd4] sm:$0xf]
  %v11124 = vld [vmem:[%s6 + $0xd8] sm:$0xf]
  %v11125 = vld [vmem:[%s6 + $0xdc] sm:$0xf]
  %v11126 = vld [vmem:[%s6 + $0xe0] sm:$0xf]
  %v11127 = vld [vmem:[%s6 + $0xe4] sm:$0xf]
  %v11128 = vld [vmem:[%s6 + $0xe8] sm:$0xf]
  %v11129 = vld [vmem:[%s6 + $0xec] sm:$0xf]
  %v11130 = vld [vmem:[%s6 + $0xf0] sm:$0xf]
  %v11131 = vld [vmem:[%s6 + $0xf4] sm:$0xf]
  %v11132 = vld [vmem:[%s6 + $0xf8] sm:$0xf]
  %v11133 = vld [vmem:[%s6 + $0xfc] sm:$0xf]
  %v11198 = vunpack.c.l.b16 %v11070
  %v11199 = vunpack.c.l.b16 %v11071
  %v11200 = vunpack.c.l.b16 %v11072
  %v11201 = vunpack.c.l.b16 %v11073
  %v11202 = vunpack.c.l.b16 %v11074
  %v11203 = vunpack.c.l.b16 %v11075
  %v11204 = vunpack.c.l.b16 %v11076
  %v11205 = vunpack.c.l.b16 %v11077
  %v11206 = vunpack.c.l.b16 %v11078
  %v11207 = vunpack.c.l.b16 %v11079
  %v11208 = vunpack.c.l.b16 %v11080
  %v11209 = vunpack.c.l.b16 %v11081
  %v11210 = vunpack.c.l.b16 %v11082
  %v11211 = vunpack.c.l.b16 %v11083
  %v11212 = vunpack.c.l.b16 %v11084
  %v11213 = vunpack.c.l.b16 %v11085
  %v11214 = vunpack.c.l.b16 %v11086
  %v11215 = vunpack.c.l.b16 %v11087
  %v11216 = vunpack.c.l.b16 %v11088
  %v11217 = vunpack.c.l.b16 %v11089
  %v11218 = vunpack.c.l.b16 %v11090
  %v11219 = vunpack.c.l.b16 %v11091
  %v11220 = vunpack.c.l.b16 %v11092
  %v11221 = vunpack.c.l.b16 %v11093
  %v11222 = vunpack.c.l.b16 %v11094
  %v11223 = vunpack.c.l.b16 %v11095
  %v11224 = vunpack.c.l.b16 %v11096
  %v11225 = vunpack.c.l.b16 %v11097
  %v11226 = vunpack.c.l.b16 %v11098
  %v11227 = vunpack.c.l.b16 %v11099
  %v11228 = vunpack.c.l.b16 %v11100
  %v11229 = vunpack.c.l.b16 %v11101
  %v11230 = vunpack.c.l.b16 %v11102
  %v11231 = vunpack.c.l.b16 %v11103
  %v11232 = vunpack.c.l.b16 %v11104
  %v11233 = vunpack.c.l.b16 %v11105
  %v11234 = vunpack.c.l.b16 %v11106
  %v11235 = vunpack.c.l.b16 %v11107
  %v11236 = vunpack.c.l.b16 %v11108
  %v11237 = vunpack.c.l.b16 %v11109
  %v11238 = vunpack.c.l.b16 %v11110
  %v11239 = vunpack.c.l.b16 %v11111
  %v11240 = vunpack.c.l.b16 %v11112
  %v11241 = vunpack.c.l.b16 %v11113
  %v11242 = vunpack.c.l.b16 %v11114
  %v11243 = vunpack.c.l.b16 %v11115
  %v11244 = vunpack.c.l.b16 %v11116
  %v11245 = vunpack.c.l.b16 %v11117
  %v11246 = vunpack.c.l.b16 %v11118
  %v11247 = vunpack.c.l.b16 %v11119
  %v11248 = vunpack.c.l.b16 %v11120
  %v11249 = vunpack.c.l.b16 %v11121
  %v11250 = vunpack.c.l.b16 %v11122
  %v11251 = vunpack.c.l.b16 %v11123
  %v11252 = vunpack.c.l.b16 %v11124
  %v11253 = vunpack.c.l.b16 %v11125
  %v11254 = vunpack.c.l.b16 %v11126
  %v11255 = vunpack.c.l.b16 %v11127
  %v11256 = vunpack.c.l.b16 %v11128
  %v11257 = vunpack.c.l.b16 %v11129
  %v11258 = vunpack.c.l.b16 %v11130
  %v11259 = vunpack.c.l.b16 %v11131
  %v11260 = vunpack.c.l.b16 %v11132
  %v11261 = vunpack.c.l.b16 %v11133
  %v11262 = vpack.c.b16 %v11199, %v11198
  %v11263 = vpack.c.b16 %v11201, %v11200
  %v11264 = vpack.c.b16 %v11203, %v11202
  %v11265 = vpack.c.b16 %v11205, %v11204
  %v11266 = vpack.c.b16 %v11207, %v11206
  %v11267 = vpack.c.b16 %v11209, %v11208
  %v11268 = vpack.c.b16 %v11211, %v11210
  %v11269 = vpack.c.b16 %v11213, %v11212
  %v11270 = vpack.c.b16 %v11215, %v11214
  %v11271 = vpack.c.b16 %v11217, %v11216
  %v11272 = vpack.c.b16 %v11219, %v11218
  %v11273 = vpack.c.b16 %v11221, %v11220
  %v11274 = vpack.c.b16 %v11223, %v11222
  %v11275 = vpack.c.b16 %v11225, %v11224
  %v11276 = vpack.c.b16 %v11227, %v11226
  %v11277 = vpack.c.b16 %v11229, %v11228
  %v11278 = vpack.c.b16 %v11231, %v11230
  %v11279 = vpack.c.b16 %v11233, %v11232
  %v11280 = vpack.c.b16 %v11235, %v11234
  %v11281 = vpack.c.b16 %v11237, %v11236
  %v11282 = vpack.c.b16 %v11239, %v11238
  %v11283 = vpack.c.b16 %v11241, %v11240
  %v11284 = vpack.c.b16 %v11243, %v11242
  %v11285 = vpack.c.b16 %v11245, %v11244
  %v11286 = vpack.c.b16 %v11247, %v11246
  %v11287 = vpack.c.b16 %v11249, %v11248
  %v11288 = vpack.c.b16 %v11251, %v11250
  %v11289 = vpack.c.b16 %v11253, %v11252
  %v11290 = vpack.c.b16 %v11255, %v11254
  %v11291 = vpack.c.b16 %v11257, %v11256
  %v11292 = vpack.c.b16 %v11259, %v11258
  %v11293 = vpack.c.b16 %v11261, %v11260
  %11326 = vmatprep.subr.bf16.mxu0 0
  %11327 = vmatpush1.bf16.msra.mxu0 %v11262
  %11328 = vmatprep.subr.bf16.mxu0 0
  %11329 = vmatpush1.bf16.msra.mxu0 %v11263
  %11330 = vmatprep.subr.bf16.mxu0 0
  %11331 = vmatpush1.bf16.msra.mxu0 %v11264
  %11332 = vmatprep.subr.bf16.mxu0 0
  %11333 = vmatpush1.bf16.msra.mxu0 %v11265
  %11334 = vmatprep.subr.bf16.mxu0 0
  %11335 = vmatpush1.bf16.msra.mxu0 %v11266
  %11336 = vmatprep.subr.bf16.mxu0 0
  %11337 = vmatpush1.bf16.msra.mxu0 %v11267
  %11338 = vmatprep.subr.bf16.mxu0 0
  %11339 = vmatpush1.bf16.msra.mxu0 %v11268
  %11340 = vmatprep.subr.bf16.mxu0 0
  %11341 = vmatpush1.bf16.msra.mxu0 %v11269
  %11342 = vmatprep.subr.bf16.mxu0 0
  %11343 = vmatpush1.bf16.msra.mxu0 %v11270
  %11344 = vmatprep.subr.bf16.mxu0 0
  %11345 = vmatpush1.bf16.msra.mxu0 %v11271
  %11346 = vmatprep.subr.bf16.mxu0 0
  %11347 = vmatpush1.bf16.msra.mxu0 %v11272
  %11348 = vmatprep.subr.bf16.mxu0 0
  %11349 = vmatpush1.bf16.msra.mxu0 %v11273
  %11350 = vmatprep.subr.bf16.mxu0 0
  %11351 = vmatpush1.bf16.msra.mxu0 %v11274
  %11352 = vmatprep.subr.bf16.mxu0 0
  %11353 = vmatpush1.bf16.msra.mxu0 %v11275
  %11354 = vmatprep.subr.bf16.mxu0 0
  %11355 = vmatpush1.bf16.msra.mxu0 %v11276
  %11356 = vmatprep.subr.bf16.mxu0 0
  %11357 = vmatpush1.bf16.msra.mxu0 %v11277
  %11358 = vmatprep.mubr.bf16.mxu0 %v11063
  %11359 = vmatmul.mubr.bf16.gmra.mrb[0].mxu0 %v11062
  %v11360 = vpop.f32.mrb[0].mxu0
  %v11361 = vadd.f32 0.0, %v11360
  %v11362 = vpop.f32.mrb[0].mxu0
  %v11363 = vpop.f32.mrb[0].mxu0
  %v11364 = vadd.f32 0.0, %v11363
  %v11365 = vpop.f32.mrb[0].mxu0
  %11366 = vmatprep.mubr.bf16.mxu0 %v11067
  %11367 = vmatmul.mubr.bf16.gmra.mrb[0].mxu0 %v11066
  %v11368 = vpop.f32.mrb[0].mxu0
  %v11369 = vadd.f32 0.0, %v11368
  %v11370 = vpop.f32.mrb[0].mxu0
  %v11371 = vpop.f32.mrb[0].mxu0
  %v11372 = vadd.f32 0.0, %v11371
  %v11373 = vpop.f32.mrb[0].mxu0
  %11374 = vdwg.mxu0
  %11375 = vmatprep.subr.bf16.mxu0 0
  %11376 = vmatpush1.bf16.msra.mxu0 %v11278
  %11377 = vmatprep.subr.bf16.mxu0 0
  %11378 = vmatpush1.bf16.msra.mxu0 %v11279
  %11379 = vmatprep.subr.bf16.mxu0 0
  %11380 = vmatpush1.bf16.msra.mxu0 %v11280
  %11381 = vmatprep.subr.bf16.mxu0 0
  %11382 = vmatpush1.bf16.msra.mxu0 %v11281
  %11383 = vmatprep.subr.bf16.mxu0 0
  %11384 = vmatpush1.bf16.msra.mxu0 %v11282
  %11385 = vmatprep.subr.bf16.mxu0 0
  %11386 = vmatpush1.bf16.msra.mxu0 %v11283
  %11387 = vmatprep.subr.bf16.mxu0 0
  %11388 = vmatpush1.bf16.msra.mxu0 %v11284
  %11389 = vmatprep.subr.bf16.mxu0 0
  %11390 = vmatpush1.bf16.msra.mxu0 %v11285
  %11391 = vmatprep.subr.bf16.mxu0 0
  %11392 = vmatpush1.bf16.msra.mxu0 %v11286
  %11393 = vmatprep.subr.bf16.mxu0 0
  %11394 = vmatpush1.bf16.msra.mxu0 %v11287
  %11395 = vmatprep.subr.bf16.mxu0 0
  %11396 = vmatpush1.bf16.msra.mxu0 %v11288
  %11397 = vmatprep.subr.bf16.mxu0 0
  %11398 = vmatpush1.bf16.msra.mxu0 %v11289
  %11399 = vmatprep.subr.bf16.mxu0 0
  %11400 = vmatpush1.bf16.msra.mxu0 %v11290
  %11401 = vmatprep.subr.bf16.mxu0 0
  %11402 = vmatpush1.bf16.msra.mxu0 %v11291
  %11403 = vmatprep.subr.bf16.mxu0 0
  %11404 = vmatpush1.bf16.msra.mxu0 %v11292
  %11405 = vmatprep.subr.bf16.mxu0 0
  %11406 = vmatpush1.bf16.msra.mxu0 %v11293
  %11407 = vmatprep.mubr.bf16.mxu0 %v11065
  %11408 = vmatmul.mubr.bf16.gmra.mrb[0].mxu0 %v11064
  %v11409 = vpop.f32.mrb[0].mxu0
  %v11410 = vadd.f32 %v11361, %v11409
  %v11411 = vpop.f32.mrb[0].mxu0
  %v11412 = vpop.f32.mrb[0].mxu0
  %v11413 = vadd.f32 %v11364, %v11412
  %v11414 = vpop.f32.mrb[0].mxu0
  %11415 = vmatprep.mubr.bf16.mxu0 %v11069
  %11416 = vmatmul.mubr.bf16.gmra.mrb[0].mxu0 %v11068
  %v11417 = vpop.f32.mrb[0].mxu0
  %v11418 = vadd.f32 %v11369, %v11417
  %v11419 = vpop.f32.mrb[0].mxu0
  %v11420 = vpop.f32.mrb[0].mxu0
  %v11421 = vadd.f32 %v11372, %v11420
  %v11422 = vpop.f32.mrb[0].mxu0
  %11423 = vdwg.mxu0
  %11428 = vrot.lane.b32.xlu0 %v11410, 126
  %v11429 = vpop.permute.xlu0 %11428
  %11430 = vrot.lane.b32.xlu0 %v11413, 126
  %v11431 = vpop.permute.xlu0 %11430
  %11432 = vrot.lane.b32.xlu0 %v11418, 126
  %v11433 = vpop.permute.xlu0 %11432
  %11434 = vrot.lane.b32.xlu0 %v11421, 126
  %v11435 = vpop.permute.xlu0 %11434
  %11440 = vst.msk [vmem:[%s10] sm:$0xff] %vm1142, %v11429
  %11441 = vst.msk [vmem:[%s10 + $0x8] sm:$0xff] %vm1142, %v11431
  %11442 = vst.msk [vmem:[%s10 + $0x10] sm:$0xff] %vm1142, %v11433
  %11443 = vst.msk [vmem:[%s10 + $0x18] sm:$0xff] %vm1142, %v11435
  // Predicated region
  $region34: #{_lambda_.1} parent=0 // pred_check
    _
  $region35: #{_lambda_.1} parent=0 // pred_check_branch
    %11445 = sbr.rel (0) target = $region37
  $region36: #{_lambda_.1} parent=0 // pred_region
    _
  $region37: #{_lambda_.1} parent=0 // pred_fallthru
    _
  // Predicated region
  $region38: #{_lambda_.1} parent=0 // pred_check
    _
  $region39: #{_lambda_.1} parent=0 // pred_check_branch
    %11447 = sbr.rel (0) target = $region41
  $region40: #{_lambda_.1} parent=0 // pred_region
    _
  $region41: #{_lambda_.1} parent=0 // pred_fallthru
    _
  // Predicated region
  $region42: #{_lambda_.1} parent=0 // pred_check
    _
  $region43: #{_lambda_.1} parent=0 // pred_check_branch
    %11449 = sbr.rel (0) target = $region45
  $region44: #{_lambda_.1} parent=0 // pred_region
    _
  $region45: #{_lambda_.1} parent=0 // pred_fallthru
    _
  // Predicated region
  $region46: #{_lambda_.1} parent=0 // pred_check
    _
  $region47: #{_lambda_.1} parent=0 // pred_check_branch
    %11451 = sbr.rel (0) target = $region49
  $region48: #{_lambda_.1} parent=0 // pred_region
    _
  $region49: #{_lambda_.1} parent=0 // pred_fallthru
    _
  // Predicated region
  $region50: #{_lambda_.1} parent=0 // pred_check
    _
  $region51: #{_lambda_.1} parent=0 // pred_check_branch
    %11453 = sbr.rel (0) target = $region53
  $region52: #{_lambda_.1} parent=0 // pred_region
    _
  $region53: #{_lambda_.1} parent=0 // pred_fallthru
    _
  // Predicated region
  $region54: #{_lambda_.1} parent=0 // pred_check
    _
  $region55: #{_lambda_.1} parent=0 // pred_check_branch
    %11455 = sbr.rel (0) target = $region57
  $region56: #{_lambda_.1} parent=0 // pred_region
    _
  $region57: #{_lambda_.1} parent=0 // pred_fallthru
    _

</llo_original>
